<compile_context>
chip_gen: v7x
topology: tpu7x:2x2x1
jax: 0.10.0
libtpu: 0.0.40
codegen_flags: <defaults>
</compile_context>

<pallas_src>
import functools

import jax
import jax.numpy as jnp
from jax.experimental import pallas as pl
from jax.experimental.pallas import tpu as pltpu

# ---------------- static configuration ------------------------------------
B = 8                      # number of windows / batch elements
WINDOW = 7                 # window_size (default)
N = WINDOW * WINDOW        # sequence length = 49 (forced by rel-pos bias)
NP = 56                    # N padded up to a multiple of 8 sublanes
D = 32                     # dim
HEADS = 2                  # heads
DH = 8                     # dim_head
INNER = HEADS * DH         # 16
HIDDEN = 4 * D             # FeedForward hidden dim (mult=4) = 128
SCALE = DH ** (-0.5)
LN_EPS = 1e-5              # PyTorch nn.LayerNorm default
NEG = -1e9                 # softmax mask value for padded key columns


def _grid_steps():
    """2 parallel steps on v7x (2 TensorCores/chip); 1 big step on v5e/v6e."""
    try:
        kind = jax.devices()[0].device_kind.lower()
    except Exception:
        return 1
    return 2 if ("v7" in kind or "7x" in kind) else 1


# ---------------------------- Pallas kernel --------------------------------
def attention_block_kernel(
    x_ref,        # (bt*NP, D)          padded, bt windows flattened
    wqkv_ref,     # (D, 3*INNER) bf16   SCALE folded into q columns
    wo_ref,       # (HEADS, DH, D) bf16
    bias_ref,     # (HEADS, NP, NP) f32 rel-pos bias * scale, padded cols = NEG
    w1_ref,       # (D, HIDDEN) bf16
    w2_ref,       # (HIDDEN, D) bf16
    vec_ref,      # (8, 128) f32        packed small vectors
    o_ref,        # (bt*NP, D)
    *,
    bt,
):
    mrows = bt * NP
    x = x_ref[...].astype(jnp.float32)                       # (mrows, 32)

    vec = vec_ref[...]
    ln1g, ln1b = vec[0, :D], vec[1, :D]
    ln2g, ln2b = vec[2, :D], vec[3, :D]
    bo, b2 = vec[4, :D], vec[5, :D]
    b1 = vec[6, :HIDDEN]

    # ---- PreNormResidual(Attention): LayerNorm ----
    mu = jnp.mean(x, axis=-1, keepdims=True)
    var = jnp.mean((x - mu) ** 2, axis=-1, keepdims=True)
    h = ((x - mu) * jax.lax.rsqrt(var + LN_EPS)) * ln1g + ln1b

    # ---- fused q/k/v projection (one MXU push, N = 48) ----
    qkv = jnp.dot(h.astype(jnp.bfloat16), wqkv_ref[...],
                  preferred_element_type=jnp.float32)         # (mrows, 48), q pre-scaled
    qkvb = qkv.astype(jnp.bfloat16)

    def split_heads(off):                                     # -> (HEADS*bt, NP, DH) bf16
        return jnp.concatenate(
            [qkvb[:, off + hd * DH: off + (hd + 1) * DH].reshape(bt, NP, DH)
             for hd in range(HEADS)], axis=0)

    q = split_heads(0)
    k = split_heads(INNER)
    v = split_heads(2 * INNER)

    # ---- batched attention over heads*windows ----
    dots = jnp.einsum("bnd,bmd->bnm", q, k,
                      preferred_element_type=jnp.float32)     # (HEADS*bt, NP, NP)
    dots = (dots.reshape(HEADS, bt, NP, NP)
            + bias_ref[...][:, None, :, :]).reshape(HEADS * bt, NP, NP)
    dots = dots - jnp.max(dots, axis=-1, keepdims=True)
    p = jnp.exp(dots)
    p = p * pl.reciprocal(jnp.sum(p, axis=-1, keepdims=True), approx=True)

    o3 = jnp.einsum("bnm,bmd->bnd", p.astype(jnp.bfloat16), v,
                    preferred_element_type=jnp.float32)       # (HEADS*bt, NP, DH)
    oh = o3.reshape(HEADS, mrows, DH)

    # ---- output projection accumulated over heads (no concat) ----
    y_attn = jnp.dot(oh[0].astype(jnp.bfloat16), wo_ref[0],
                     preferred_element_type=jnp.float32)
    for hd in range(1, HEADS):
        y_attn = y_attn + jnp.dot(oh[hd].astype(jnp.bfloat16), wo_ref[hd],
                                  preferred_element_type=jnp.float32)
    y1 = y_attn + bo + x                                       # residual

    # ---- PreNormResidual(FeedForward): LayerNorm + MLP ----
    mu2 = jnp.mean(y1, axis=-1, keepdims=True)
    var2 = jnp.mean((y1 - mu2) ** 2, axis=-1, keepdims=True)
    h2 = ((y1 - mu2) * jax.lax.rsqrt(var2 + LN_EPS)) * ln2g + ln2b

    ff = jnp.dot(h2.astype(jnp.bfloat16), w1_ref[...],
                 preferred_element_type=jnp.float32) + b1
    ff = jax.nn.gelu(ff, approximate=True)                     # tanh GELU -> EUP slot
    ff = jnp.dot(ff.astype(jnp.bfloat16), w2_ref[...],
                 preferred_element_type=jnp.float32) + b2

    o_ref[...] = (ff + y1).astype(o_ref.dtype)


# ------------------------------ wrapper ------------------------------------
def attention_block(x, kparams):
    wqkv_bf, wo_bf, bias_p, w1_bf, w2_bf, vecs = kparams
    Bn = x.shape[0]

    steps = _grid_steps()
    if Bn % steps != 0:
        steps = 1
    bt = Bn // steps
    mrows = bt * NP

    # pad sequence 49 -> 56 and flatten windows into a sublane-aligned slab
    xp = jnp.pad(x, ((0, 0), (0, NP - N), (0, 0))).reshape(Bn * NP, D)

    full = lambda shape: pl.BlockSpec(shape, lambda i: (0,) * len(shape))
    out = pl.pallas_call(
        functools.partial(attention_block_kernel, bt=bt),
        out_shape=jax.ShapeDtypeStruct((Bn * NP, D), x.dtype),
        grid=(steps,),
        in_specs=[
            pl.BlockSpec((mrows, D), lambda i: (i, 0)),        # x (bt windows, padded)
            full((D, 3 * INNER)),                              # wqkv (bf16, q scaled)
            full((HEADS, DH, D)),                              # wo per head (bf16)
            full((HEADS, NP, NP)),                             # rel-pos bias (scaled, masked)
            full((D, HIDDEN)),                                 # w1 (bf16)
            full((HIDDEN, D)),                                 # w2 (bf16)
            full((8, 128)),                                    # packed small vectors
        ],
        out_specs=pl.BlockSpec((mrows, D), lambda i: (i, 0)),
        compiler_params=pltpu.CompilerParams(
            dimension_semantics=("parallel",)),
    )(xp, wqkv_bf, wo_bf, bias_p, w1_bf, w2_bf, vecs)

    return out.reshape(Bn, NP, D)[:, :N, :]                    # drop padded rows


# ------------------- parameter construction (deterministic) ----------------
def make_params(key):
    ks = jax.random.split(key, 12)
    w = lambda k, shape: (0.02 * jax.random.normal(k, shape)).astype(jnp.float32)

    wqkv = w(ks[0], (D, 3 * INNER))
    wo = w(ks[1], (INNER, D))
    bo = w(ks[2], (1, D))
    ln1g = (1.0 + 0.1 * jax.random.normal(ks[3], (1, D))).astype(jnp.float32)
    ln1b = (0.1 * jax.random.normal(ks[4], (1, D))).astype(jnp.float32)
    ln2g = (1.0 + 0.1 * jax.random.normal(ks[5], (1, D))).astype(jnp.float32)
    ln2b = (0.1 * jax.random.normal(ks[6], (1, D))).astype(jnp.float32)
    w1 = w(ks[7], (D, HIDDEN))
    b1 = w(ks[8], (1, HIDDEN))
    w2 = w(ks[9], (HIDDEN, D))
    b2 = w(ks[10], (1, D))
    rel_pos_table = w(ks[11], ((2 * WINDOW - 1) ** 2, HEADS))

    # rel_pos_indices exactly as the PyTorch __init__ (static glue).
    pos = jnp.arange(WINDOW)
    grid = jnp.stack(jnp.meshgrid(pos, pos, indexing="ij"))      # (2, W, W)
    grid = grid.reshape(2, WINDOW * WINDOW).T                    # (W*W, 2)
    rel = grid[:, None, :] - grid[None, :, :] + (WINDOW - 1)     # (N, N, 2)
    rel_idx = (rel * jnp.array([2 * WINDOW - 1, 1])).sum(-1)     # (N, N)
    bias = rel_pos_table[rel_idx]                                # (N, N, H)
    bias_hnn = jnp.transpose(bias, (2, 0, 1))                    # (H, N, N)

    return (wqkv, wo, bo, ln1g, ln1b, bias_hnn, ln2g, ln2b, w1, b1, w2, b2)


def prepare_kernel_params(params):
    """One-time static transforms: fold SCALE, cast MXU weights to bf16, pad bias,
    split wo per head, pack small parameter vectors into one (8,128) slab."""
    (wqkv, wo, bo, ln1g, ln1b, bias_hnn, ln2g, ln2b, w1, b1, w2, b2) = params

    wqkv_s = wqkv.at[:, :INNER].multiply(SCALE)                  # fold softmax scale into q
    wqkv_bf = wqkv_s.astype(jnp.bfloat16)
    wo_bf = wo.reshape(HEADS, DH, D).astype(jnp.bfloat16)        # per-head output proj
    w1_bf = w1.astype(jnp.bfloat16)
    w2_bf = w2.astype(jnp.bfloat16)

    # rel-pos bias * scale; padded key columns / rows masked with NEG so the
    # 56-wide softmax matches the 49-wide reference.
    bias_p = jnp.full((HEADS, NP, NP), NEG, jnp.float32)
    bias_p = bias_p.at[:, :N, :N].set(bias_hnn * SCALE)

    vecs = jnp.zeros((8, 128), jnp.float32)
    vecs = (vecs.at[0, :D].set(ln1g[0]).at[1, :D].set(ln1b[0])
                .at[2, :D].set(ln2g[0]).at[3, :D].set(ln2b[0])
                .at[4, :D].set(bo[0]).at[5, :D].set(b2[0])
                .at[6, :HIDDEN].set(b1[0]))

    return (wqkv_bf, wo_bf, bias_p, w1_bf, w2_bf, vecs)


# -------------------------- pure-JAX reference ------------------------------
def reference(x, params):
    (wqkv, wo, bo, ln1g, ln1b, bias_hnn, ln2g, ln2b, w1, b1, w2, b2) = params
    Bn, Nn, Dn = x.shape

    def ln(t, g, b):
        mu = jnp.mean(t, axis=-1, keepdims=True)
        var = jnp.mean((t - mu) ** 2, axis=-1, keepdims=True)
        return (t - mu) * jax.lax.rsqrt(var + LN_EPS) * g + b

    h = ln(x, ln1g[0], ln1b[0])
    qkv = h @ wqkv                                           # (B, N, 3*INNER)
    q, k, v = jnp.split(qkv, 3, axis=-1)
    resh = lambda t: jnp.transpose(t.reshape(Bn, Nn, HEADS, DH), (0, 2, 1, 3))
    q, k, v = resh(q), resh(k), resh(v)                      # (B, H, N, DH)
    dots = jnp.einsum("bhnd,bhmd->bhnm", q, k) * SCALE
    dots = dots + bias_hnn[None] * SCALE
    attn = jax.nn.softmax(dots, axis=-1)
    o = jnp.einsum("bhnm,bhmd->bhnd", attn, v)
    o = jnp.transpose(o, (0, 2, 1, 3)).reshape(Bn, Nn, INNER)
    y1 = o @ wo + bo[0] + x

    h2 = ln(y1, ln2g[0], ln2b[0])
    ff = jax.nn.gelu(h2 @ w1 + b1[0], approximate=False) @ w2 + b2[0]
    return ff + y1


# -------------------------------- main --------------------------------------
if __name__ == "__main__":
    key = jax.random.PRNGKey(0)
    kx, kp = jax.random.split(key)
    x = jax.random.normal(kx, (B, N, D), dtype=jnp.float32)
    params = make_params(kp)
    kparams = prepare_kernel_params(params)   # static weight transforms, once

    out = jax.block_until_ready(attention_block(x, kparams))
    ref = jax.block_until_ready(reference(x, params))

    assert out.shape == (B, N, D), out.shape
    err = float(jnp.max(jnp.abs(out - ref)))
    # bf16 MXU operands + tanh GELU + approx reciprocal add ~1e-3-scale error on
    # top of the f32 reference path; typical max-abs error here is well under 1e-3.
    assert err < 3e-3, err

    print("KERNEL_OK")
</pallas_src>

<mosaic_0001>
module attributes {stable_mosaic.version = 11 : i64} {
  func.func @attention_block_kernel(%arg0: i32, %arg1: memref<448x32xf32, #tpu.memory_space<vmem>>, %arg2: memref<32x48xbf16, #tpu.memory_space<vmem>>, %arg3: memref<2x8x32xbf16, #tpu.memory_space<vmem>>, %arg4: memref<2x56x56xf32, #tpu.memory_space<vmem>>, %arg5: memref<32x128xbf16, #tpu.memory_space<vmem>>, %arg6: memref<128x32xbf16, #tpu.memory_space<vmem>>, %arg7: memref<8x128xf32, #tpu.memory_space<vmem>>, %arg8: memref<448x32xf32, #tpu.memory_space<vmem>>) attributes {dimension_semantics = [#tpu.dimension_semantics<parallel>], iteration_bounds = array<i64: 1>, scalar_prefetch = 0 : i64, scratch_operands = 0 : i64, tpu.core_type = #tpu.core_type<tc>, window_params = [{transform_indices = @transform_0, window_bounds = array<i64: 448, 32>}, {pipeline_mode = #tpu.pipeline_mode<synchronous>, transform_indices = @transform_1, window_bounds = array<i64: 32, 48>}, {pipeline_mode = #tpu.pipeline_mode<synchronous>, transform_indices = @transform_2, window_bounds = array<i64: 2, 8, 32>}, {pipeline_mode = #tpu.pipeline_mode<synchronous>, transform_indices = @transform_3, window_bounds = array<i64: 2, 56, 56>}, {pipeline_mode = #tpu.pipeline_mode<synchronous>, transform_indices = @transform_4, window_bounds = array<i64: 32, 128>}, {pipeline_mode = #tpu.pipeline_mode<synchronous>, transform_indices = @transform_5, window_bounds = array<i64: 128, 32>}, {pipeline_mode = #tpu.pipeline_mode<synchronous>, transform_indices = @transform_6, window_bounds = array<i64: 8, 128>}, {transform_indices = @transform_7, window_bounds = array<i64: 448, 32>}]} {
    %c0 = arith.constant 0 : index
    %c0_0 = arith.constant 0 : index
    %0 = vector.load %arg1[%c0, %c0_0] : memref<448x32xf32, #tpu.memory_space<vmem>>, vector<448x32xf32>
    %c0_1 = arith.constant 0 : index
    %c0_2 = arith.constant 0 : index
    %1 = vector.load %arg7[%c0_1, %c0_2] : memref<8x128xf32, #tpu.memory_space<vmem>>, vector<8x128xf32>
    %2 = vector.extract_strided_slice %1 {offsets = [0, 0], sizes = [1, 32], strides = [1, 1]} : vector<8x128xf32> to vector<1x32xf32>
    %3 = vector.shape_cast %2 : vector<1x32xf32> to vector<32xf32>
    %4 = vector.extract_strided_slice %1 {offsets = [1, 0], sizes = [1, 32], strides = [1, 1]} : vector<8x128xf32> to vector<1x32xf32>
    %5 = vector.shape_cast %4 : vector<1x32xf32> to vector<32xf32>
    %6 = vector.extract_strided_slice %1 {offsets = [2, 0], sizes = [1, 32], strides = [1, 1]} : vector<8x128xf32> to vector<1x32xf32>
    %7 = vector.shape_cast %6 : vector<1x32xf32> to vector<32xf32>
    %8 = vector.extract_strided_slice %1 {offsets = [3, 0], sizes = [1, 32], strides = [1, 1]} : vector<8x128xf32> to vector<1x32xf32>
    %9 = vector.shape_cast %8 : vector<1x32xf32> to vector<32xf32>
    %10 = vector.extract_strided_slice %1 {offsets = [4, 0], sizes = [1, 32], strides = [1, 1]} : vector<8x128xf32> to vector<1x32xf32>
    %11 = vector.shape_cast %10 : vector<1x32xf32> to vector<32xf32>
    %12 = vector.extract_strided_slice %1 {offsets = [5, 0], sizes = [1, 32], strides = [1, 1]} : vector<8x128xf32> to vector<1x32xf32>
    %13 = vector.shape_cast %12 : vector<1x32xf32> to vector<32xf32>
    %14 = vector.extract_strided_slice %1 {offsets = [6, 0], sizes = [1, 128], strides = [1, 1]} : vector<8x128xf32> to vector<1x128xf32>
    %15 = vector.shape_cast %14 : vector<1x128xf32> to vector<128xf32>
    %cst = arith.constant dense<0.000000e+00> : vector<448xf32>
    %16 = vector.multi_reduction <add>, %0, %cst [1] : vector<448x32xf32> to vector<448xf32>
    %17 = vector.shape_cast %16 : vector<448xf32> to vector<448x1xf32>
    %cst_3 = arith.constant 3.200000e+01 : f32
    %18 = vector.broadcast %cst_3 : f32 to vector<448x1xf32>
    %19 = arith.divf %17, %18 : vector<448x1xf32>
    %20 = vector.broadcast %19 : vector<448x1xf32> to vector<448x32xf32>
    %21 = arith.subf %0, %20 : vector<448x32xf32>
    %22 = arith.mulf %21, %21 : vector<448x32xf32>
    %cst_4 = arith.constant dense<0.000000e+00> : vector<448xf32>
    %23 = vector.multi_reduction <add>, %22, %cst_4 [1] : vector<448x32xf32> to vector<448xf32>
    %24 = vector.shape_cast %23 : vector<448xf32> to vector<448x1xf32>
    %cst_5 = arith.constant 3.200000e+01 : f32
    %25 = vector.broadcast %cst_5 : f32 to vector<448x1xf32>
    %26 = arith.divf %24, %25 : vector<448x1xf32>
    %27 = vector.broadcast %19 : vector<448x1xf32> to vector<448x32xf32>
    %28 = arith.subf %0, %27 : vector<448x32xf32>
    %cst_6 = arith.constant 9.99999974E-6 : f32
    %29 = vector.broadcast %cst_6 : f32 to vector<448x1xf32>
    %30 = arith.addf %26, %29 : vector<448x1xf32>
    %31 = math.rsqrt %30 : vector<448x1xf32>
    %32 = vector.broadcast %31 : vector<448x1xf32> to vector<448x32xf32>
    %33 = arith.mulf %28, %32 : vector<448x32xf32>
    %34 = vector.shape_cast %3 : vector<32xf32> to vector<1x32xf32>
    %35 = vector.broadcast %34 : vector<1x32xf32> to vector<448x32xf32>
    %36 = arith.mulf %33, %35 : vector<448x32xf32>
    %37 = vector.shape_cast %5 : vector<32xf32> to vector<1x32xf32>
    %38 = vector.broadcast %37 : vector<1x32xf32> to vector<448x32xf32>
    %39 = arith.addf %36, %38 : vector<448x32xf32>
    %40 = arith.truncf %39 : vector<448x32xf32> to vector<448x32xbf16>
    %c0_7 = arith.constant 0 : index
    %c0_8 = arith.constant 0 : index
    %41 = vector.load %arg2[%c0_7, %c0_8] : memref<32x48xbf16, #tpu.memory_space<vmem>>, vector<32x48xbf16>
    %cst_9 = arith.constant dense<0.000000e+00> : vector<448x48xf32>
    %42 = tpu.matmul %40, %41, %cst_9 {dimension_numbers = #tpu.dot_dimension_numbers<[1], [0], [0], [1], [0, 0, 1, 1], [], []>} : vector<448x32xbf16>, vector<32x48xbf16>, vector<448x48xf32> -> vector<448x48xf32>
    %43 = arith.truncf %42 : vector<448x48xf32> to vector<448x48xbf16>
    %44 = vector.extract_strided_slice %43 {offsets = [0, 0], sizes = [448, 8], strides = [1, 1]} : vector<448x48xbf16> to vector<448x8xbf16>
    %45 = vector.shape_cast %44 : vector<448x8xbf16> to vector<8x56x8xbf16>
    %46 = vector.extract_strided_slice %43 {offsets = [0, 8], sizes = [448, 8], strides = [1, 1]} : vector<448x48xbf16> to vector<448x8xbf16>
    %47 = vector.shape_cast %46 : vector<448x8xbf16> to vector<8x56x8xbf16>
    %48 = tpu.concatenate %45, %47 in 0 : vector<8x56x8xbf16>, vector<8x56x8xbf16> -> vector<16x56x8xbf16>
    %49 = vector.extract_strided_slice %43 {offsets = [0, 16], sizes = [448, 8], strides = [1, 1]} : vector<448x48xbf16> to vector<448x8xbf16>
    %50 = vector.shape_cast %49 : vector<448x8xbf16> to vector<8x56x8xbf16>
    %51 = vector.extract_strided_slice %43 {offsets = [0, 24], sizes = [448, 8], strides = [1, 1]} : vector<448x48xbf16> to vector<448x8xbf16>
    %52 = vector.shape_cast %51 : vector<448x8xbf16> to vector<8x56x8xbf16>
    %53 = tpu.concatenate %50, %52 in 0 : vector<8x56x8xbf16>, vector<8x56x8xbf16> -> vector<16x56x8xbf16>
    %54 = vector.extract_strided_slice %43 {offsets = [0, 32], sizes = [448, 8], strides = [1, 1]} : vector<448x48xbf16> to vector<448x8xbf16>
    %55 = vector.shape_cast %54 : vector<448x8xbf16> to vector<8x56x8xbf16>
    %56 = vector.extract_strided_slice %43 {offsets = [0, 40], sizes = [448, 8], strides = [1, 1]} : vector<448x48xbf16> to vector<448x8xbf16>
    %57 = vector.shape_cast %56 : vector<448x8xbf16> to vector<8x56x8xbf16>
    %58 = tpu.concatenate %55, %57 in 0 : vector<8x56x8xbf16>, vector<8x56x8xbf16> -> vector<16x56x8xbf16>
    "tpu.trace_start"() <{level = 10 : i32, message = "bnd,bmd->bnm"}> : () -> ()
    %cst_10 = arith.constant dense<0.000000e+00> : vector<16x56x56xf32>
    %59 = tpu.matmul %48, %53, %cst_10 {dimension_numbers = #tpu.dot_dimension_numbers<[2], [2], [1], [1], [0, 0, 0, 1, 1, 1], [0], [0]>} : vector<16x56x8xbf16>, vector<16x56x8xbf16>, vector<16x56x56xf32> -> vector<16x56x56xf32>
    "tpu.trace_stop"() : () -> ()
    %60 = vector.shape_cast %59 : vector<16x56x56xf32> to vector<2x8x56x56xf32>
    %c0_11 = arith.constant 0 : index
    %c0_12 = arith.constant 0 : index
    %c0_13 = arith.constant 0 : index
    %61 = vector.load %arg4[%c0_11, %c0_12, %c0_13] : memref<2x56x56xf32, #tpu.memory_space<vmem>>, vector<2x56x56xf32>
    %62 = vector.shape_cast %61 : vector<2x56x56xf32> to vector<2x1x56x56xf32>
    %63 = vector.broadcast %62 : vector<2x1x56x56xf32> to vector<2x8x56x56xf32>
    %64 = arith.addf %60, %63 : vector<2x8x56x56xf32>
    %65 = vector.shape_cast %64 : vector<2x8x56x56xf32> to vector<16x56x56xf32>
    %cst_14 = arith.constant dense<0xFF800000> : vector<16x56xf32>
    %66 = vector.multi_reduction <maximumf>, %65, %cst_14 [2] : vector<16x56x56xf32> to vector<16x56xf32>
    %67 = vector.shape_cast %66 : vector<16x56xf32> to vector<16x56x1xf32>
    %68 = vector.broadcast %67 : vector<16x56x1xf32> to vector<16x56x56xf32>
    %69 = arith.subf %65, %68 : vector<16x56x56xf32>
    %70 = math.exp %69 : vector<16x56x56xf32>
    %cst_15 = arith.constant dense<0.000000e+00> : vector<16x56xf32>
    %71 = vector.multi_reduction <add>, %70, %cst_15 [2] : vector<16x56x56xf32> to vector<16x56xf32>
    %72 = vector.shape_cast %71 : vector<16x56xf32> to vector<16x56x1xf32>
    %73 = tpu.reciprocal %72 {approx = true} : vector<16x56x1xf32> -> vector<16x56x1xf32>
    %74 = vector.broadcast %73 : vector<16x56x1xf32> to vector<16x56x56xf32>
    %75 = arith.mulf %70, %74 : vector<16x56x56xf32>
    %76 = arith.truncf %75 : vector<16x56x56xf32> to vector<16x56x56xbf16>
    "tpu.trace_start"() <{level = 10 : i32, message = "bnm,bmd->bnd"}> : () -> ()
    %cst_16 = arith.constant dense<0.000000e+00> : vector<16x56x8xf32>
    %77 = tpu.matmul %76, %58, %cst_16 {dimension_numbers = #tpu.dot_dimension_numbers<[2], [1], [1], [2], [0, 0, 0, 1, 1, 2], [0], [0]>} : vector<16x56x56xbf16>, vector<16x56x8xbf16>, vector<16x56x8xf32> -> vector<16x56x8xf32>
    "tpu.trace_stop"() : () -> ()
    %78 = vector.shape_cast %77 : vector<16x56x8xf32> to vector<2x448x8xf32>
    %79 = vector.extract_strided_slice %78 {offsets = [0, 0, 0], sizes = [1, 448, 8], strides = [1, 1, 1]} : vector<2x448x8xf32> to vector<1x448x8xf32>
    %80 = vector.shape_cast %79 : vector<1x448x8xf32> to vector<448x8xf32>
    %81 = arith.truncf %80 : vector<448x8xf32> to vector<448x8xbf16>
    %c0_17 = arith.constant 0 : index
    %c0_18 = arith.constant 0 : index
    %c0_19 = arith.constant 0 : index
    %82 = vector.load %arg3[%c0_17, %c0_18, %c0_19] : memref<2x8x32xbf16, #tpu.memory_space<vmem>>, vector<1x8x32xbf16>
    %83 = vector.shape_cast %82 : vector<1x8x32xbf16> to vector<8x32xbf16>
    %cst_20 = arith.constant dense<0.000000e+00> : vector<448x32xf32>
    %84 = tpu.matmul %81, %83, %cst_20 {dimension_numbers = #tpu.dot_dimension_numbers<[1], [0], [0], [1], [0, 0, 1, 1], [], []>} : vector<448x8xbf16>, vector<8x32xbf16>, vector<448x32xf32> -> vector<448x32xf32>
    %85 = vector.extract_strided_slice %78 {offsets = [1, 0, 0], sizes = [1, 448, 8], strides = [1, 1, 1]} : vector<2x448x8xf32> to vector<1x448x8xf32>
    %86 = vector.shape_cast %85 : vector<1x448x8xf32> to vector<448x8xf32>
    %87 = arith.truncf %86 : vector<448x8xf32> to vector<448x8xbf16>
    %c1 = arith.constant 1 : index
    %c0_21 = arith.constant 0 : index
    %c0_22 = arith.constant 0 : index
    %88 = vector.load %arg3[%c1, %c0_21, %c0_22] : memref<2x8x32xbf16, #tpu.memory_space<vmem>>, vector<1x8x32xbf16>
    %89 = vector.shape_cast %88 : vector<1x8x32xbf16> to vector<8x32xbf16>
    %cst_23 = arith.constant dense<0.000000e+00> : vector<448x32xf32>
    %90 = tpu.matmul %87, %89, %cst_23 {dimension_numbers = #tpu.dot_dimension_numbers<[1], [0], [0], [1], [0, 0, 1, 1], [], []>} : vector<448x8xbf16>, vector<8x32xbf16>, vector<448x32xf32> -> vector<448x32xf32>
    %91 = arith.addf %84, %90 : vector<448x32xf32>
    %92 = vector.shape_cast %11 : vector<32xf32> to vector<1x32xf32>
    %93 = vector.broadcast %92 : vector<1x32xf32> to vector<448x32xf32>
    %94 = arith.addf %91, %93 : vector<448x32xf32>
    %95 = arith.addf %94, %0 : vector<448x32xf32>
    %cst_24 = arith.constant dense<0.000000e+00> : vector<448xf32>
    %96 = vector.multi_reduction <add>, %95, %cst_24 [1] : vector<448x32xf32> to vector<448xf32>
    %97 = vector.shape_cast %96 : vector<448xf32> to vector<448x1xf32>
    %cst_25 = arith.constant 3.200000e+01 : f32
    %98 = vector.broadcast %cst_25 : f32 to vector<448x1xf32>
    %99 = arith.divf %97, %98 : vector<448x1xf32>
    %100 = vector.broadcast %99 : vector<448x1xf32> to vector<448x32xf32>
    %101 = arith.subf %95, %100 : vector<448x32xf32>
    %102 = arith.mulf %101, %101 : vector<448x32xf32>
    %cst_26 = arith.constant dense<0.000000e+00> : vector<448xf32>
    %103 = vector.multi_reduction <add>, %102, %cst_26 [1] : vector<448x32xf32> to vector<448xf32>
    %104 = vector.shape_cast %103 : vector<448xf32> to vector<448x1xf32>
    %cst_27 = arith.constant 3.200000e+01 : f32
    %105 = vector.broadcast %cst_27 : f32 to vector<448x1xf32>
    %106 = arith.divf %104, %105 : vector<448x1xf32>
    %107 = vector.broadcast %99 : vector<448x1xf32> to vector<448x32xf32>
    %108 = arith.subf %95, %107 : vector<448x32xf32>
    %cst_28 = arith.constant 9.99999974E-6 : f32
    %109 = vector.broadcast %cst_28 : f32 to vector<448x1xf32>
    %110 = arith.addf %106, %109 : vector<448x1xf32>
    %111 = math.rsqrt %110 : vector<448x1xf32>
    %112 = vector.broadcast %111 : vector<448x1xf32> to vector<448x32xf32>
    %113 = arith.mulf %108, %112 : vector<448x32xf32>
    %114 = vector.shape_cast %7 : vector<32xf32> to vector<1x32xf32>
    %115 = vector.broadcast %114 : vector<1x32xf32> to vector<448x32xf32>
    %116 = arith.mulf %113, %115 : vector<448x32xf32>
    %117 = vector.shape_cast %9 : vector<32xf32> to vector<1x32xf32>
    %118 = vector.broadcast %117 : vector<1x32xf32> to vector<448x32xf32>
    %119 = arith.addf %116, %118 : vector<448x32xf32>
    %120 = arith.truncf %119 : vector<448x32xf32> to vector<448x32xbf16>
    %c0_29 = arith.constant 0 : index
    %c0_30 = arith.constant 0 : index
    %121 = vector.load %arg5[%c0_29, %c0_30] : memref<32x128xbf16, #tpu.memory_space<vmem>>, vector<32x128xbf16>
    %cst_31 = arith.constant dense<0.000000e+00> : vector<448x128xf32>
    %122 = tpu.matmul %120, %121, %cst_31 {dimension_numbers = #tpu.dot_dimension_numbers<[1], [0], [0], [1], [0, 0, 1, 1], [], []>} : vector<448x32xbf16>, vector<32x128xbf16>, vector<448x128xf32> -> vector<448x128xf32>
    %123 = vector.shape_cast %15 : vector<128xf32> to vector<1x128xf32>
    %124 = vector.broadcast %123 : vector<1x128xf32> to vector<448x128xf32>
    %125 = arith.addf %122, %124 : vector<448x128xf32>
    %126 = arith.mulf %125, %125 : vector<448x128xf32>
    %127 = arith.mulf %125, %126 : vector<448x128xf32>
    %cst_32 = arith.constant 4.471500e-02 : f32
    %128 = vector.broadcast %cst_32 : f32 to vector<448x128xf32>
    %129 = arith.mulf %128, %127 : vector<448x128xf32>
    %130 = arith.addf %125, %129 : vector<448x128xf32>
    %cst_33 = arith.constant 0.797884583 : f32
    %131 = vector.broadcast %cst_33 : f32 to vector<448x128xf32>
    %132 = arith.mulf %131, %130 : vector<448x128xf32>
    %133 = math.tanh %132 : vector<448x128xf32>
    %cst_34 = arith.constant 1.000000e+00 : f32
    %134 = vector.broadcast %cst_34 : f32 to vector<448x128xf32>
    %135 = arith.addf %134, %133 : vector<448x128xf32>
    %cst_35 = arith.constant 5.000000e-01 : f32
    %136 = vector.broadcast %cst_35 : f32 to vector<448x128xf32>
    %137 = arith.mulf %136, %135 : vector<448x128xf32>
    %138 = arith.mulf %125, %137 : vector<448x128xf32>
    %139 = arith.truncf %138 : vector<448x128xf32> to vector<448x128xbf16>
    %c0_36 = arith.constant 0 : index
    %c0_37 = arith.constant 0 : index
    %140 = vector.load %arg6[%c0_36, %c0_37] : memref<128x32xbf16, #tpu.memory_space<vmem>>, vector<128x32xbf16>
    %cst_38 = arith.constant dense<0.000000e+00> : vector<448x32xf32>
    %141 = tpu.matmul %139, %140, %cst_38 {dimension_numbers = #tpu.dot_dimension_numbers<[1], [0], [0], [1], [0, 0, 1, 1], [], []>} : vector<448x128xbf16>, vector<128x32xbf16>, vector<448x32xf32> -> vector<448x32xf32>
    %142 = vector.shape_cast %13 : vector<32xf32> to vector<1x32xf32>
    %143 = vector.broadcast %142 : vector<1x32xf32> to vector<448x32xf32>
    %144 = arith.addf %141, %143 : vector<448x32xf32>
    %145 = arith.addf %144, %95 : vector<448x32xf32>
    %c0_39 = arith.constant 0 : index
    %c0_40 = arith.constant 0 : index
    %146 = vector.load %arg8[%c0_39, %c0_40] : memref<448x32xf32, #tpu.memory_space<vmem>>, vector<448x32xf32>
    tpu.vector_store %arg8[%c0_39, %c0_40], %145 {strides = array<i32>} : memref<448x32xf32, #tpu.memory_space<vmem>>, vector<448x32xf32>,
    return
  }
  func.func @transform_0(%arg0: i32) -> (i32, i32) {
    %c0_i32 = arith.constant 0 : i32
    %c0_i32_0 = arith.constant 0 : i32
    return %arg0, %c0_i32 : i32, i32
  }
  func.func @transform_1(%arg0: i32) -> (i32, i32) {
    %c0_i32 = arith.constant 0 : i32
    %c0_i32_0 = arith.constant 0 : i32
    %c0_i32_1 = arith.constant 0 : i32
    return %c0_i32, %c0_i32_0 : i32, i32
  }
  func.func @transform_2(%arg0: i32) -> (i32, i32, i32) {
    %c0_i32 = arith.constant 0 : i32
    %c0_i32_0 = arith.constant 0 : i32
    %c0_i32_1 = arith.constant 0 : i32
    %c0_i32_2 = arith.constant 0 : i32
    return %c0_i32, %c0_i32_0, %c0_i32_1 : i32, i32, i32
  }
  func.func @transform_3(%arg0: i32) -> (i32, i32, i32) {
    %c0_i32 = arith.constant 0 : i32
    %c0_i32_0 = arith.constant 0 : i32
    %c0_i32_1 = arith.constant 0 : i32
    %c0_i32_2 = arith.constant 0 : i32
    return %c0_i32, %c0_i32_0, %c0_i32_1 : i32, i32, i32
  }
  func.func @transform_4(%arg0: i32) -> (i32, i32) {
    %c0_i32 = arith.constant 0 : i32
    %c0_i32_0 = arith.constant 0 : i32
    %c0_i32_1 = arith.constant 0 : i32
    return %c0_i32, %c0_i32_0 : i32, i32
  }
  func.func @transform_5(%arg0: i32) -> (i32, i32) {
    %c0_i32 = arith.constant 0 : i32
    %c0_i32_0 = arith.constant 0 : i32
    %c0_i32_1 = arith.constant 0 : i32
    return %c0_i32, %c0_i32_0 : i32, i32
  }
  func.func @transform_6(%arg0: i32) -> (i32, i32) {
    %c0_i32 = arith.constant 0 : i32
    %c0_i32_0 = arith.constant 0 : i32
    %c0_i32_1 = arith.constant 0 : i32
    return %c0_i32, %c0_i32_0 : i32, i32
  }
  func.func @transform_7(%arg0: i32) -> (i32, i32) {
    %c0_i32 = arith.constant 0 : i32
    %c0_i32_0 = arith.constant 0 : i32
    return %arg0, %c0_i32 : i32, i32
  }
}

</mosaic_0001>

<llo_original>
// kernel: tpu_custom_call.1
$region0: #{tpu_custom_call.1}
  #allocation0 [shape = 'u32[]', space=smem, size = 0x4, offset = 0x4, fixed_abs, tag = 'smem constant byte address 0x4 - core index']
  #allocation1 [shape = 'u32[144,128]{1,0:T(1,128)}', space=vmem, size = 0x12000, scoped, tag = 'internal scratch']
  %s0 = inlined_call_operand.vmem [shape: f32[448,32], index: 0, kind: input, shape index: {}]
  %s1 = inlined_call_operand.vmem [shape: bf16[32,48], index: 1, kind: input, shape index: {}]
  %s2 = inlined_call_operand.vmem [shape: bf16[2,8,32], index: 2, kind: input, shape index: {}]
  %s3 = inlined_call_operand.vmem [shape: f32[2,56,56], index: 3, kind: input, shape index: {}]
  %s4 = inlined_call_operand.vmem [shape: bf16[32,128], index: 4, kind: input, shape index: {}]
  %s5 = inlined_call_operand.vmem [shape: bf16[128,32], index: 5, kind: input, shape index: {}]
  %s6 = inlined_call_operand.vmem [shape: f32[8,128], index: 6, kind: input, shape index: {}]
  %s7 = inlined_call_operand.vmem [shape: f32[448,32], index: 7, kind: output, shape index: {}]
  %s8 = sld [smem:[#allocation0]]
  $region38: #{tpu_custom_call.1} parent=0
    _
  %s10 = ssub.s32 1, %s8
  %s11 = scalar_select 0, %s10, %s8
  // Predicated region
  $region2: #{tpu_custom_call.1} parent=0 // pred_check
    _
  $region3: #{tpu_custom_call.1} parent=0 // pred_check_branch
    %13 = sbr.rel (0) target = $region5
  $region4: #{tpu_custom_call.1} parent=0 // pred_region
    _
  $region5: #{tpu_custom_call.1} parent=0 // pred_fallthru
    _
  // Predicated region
  $region6: #{tpu_custom_call.1} parent=0 // pred_check
    _
  $region7: #{tpu_custom_call.1} parent=0 // pred_check_branch
    %15 = sbr.rel (0) target = $region9
  $region8: #{tpu_custom_call.1} parent=0 // pred_region
    _
  $region9: #{tpu_custom_call.1} parent=0 // pred_fallthru
    _
  // Predicated region
  $region10: #{tpu_custom_call.1} parent=0 // pred_check
    _
  $region11: #{tpu_custom_call.1} parent=0 // pred_check_branch
    %17 = sbr.rel (0) target = $region13
  $region12: #{tpu_custom_call.1} parent=0 // pred_region
    _
  $region13: #{tpu_custom_call.1} parent=0 // pred_fallthru
    _
  // Predicated region
  $region14: #{tpu_custom_call.1} parent=0 // pred_check
    _
  $region15: #{tpu_custom_call.1} parent=0 // pred_check_branch
    %19 = sbr.rel (0) target = $region17
  $region16: #{tpu_custom_call.1} parent=0 // pred_region
    _
  $region17: #{tpu_custom_call.1} parent=0 // pred_fallthru
    _
  // Predicated region
  $region18: #{tpu_custom_call.1} parent=0 // pred_check
    _
  $region19: #{tpu_custom_call.1} parent=0 // pred_check_branch
    %21 = sbr.rel (0) target = $region21
  $region20: #{tpu_custom_call.1} parent=0 // pred_region
    _
  $region21: #{tpu_custom_call.1} parent=0 // pred_fallthru
    _
  // Predicated region
  $region22: #{tpu_custom_call.1} parent=0 // pred_check
    _
  $region23: #{tpu_custom_call.1} parent=0 // pred_check_branch
    %23 = sbr.rel (0) target = $region25
  $region24: #{tpu_custom_call.1} parent=0 // pred_region
    _
  $region25: #{tpu_custom_call.1} parent=0 // pred_fallthru
    _
  // Predicated region
  $region26: #{tpu_custom_call.1} parent=0 // pred_check
    _
  $region27: #{tpu_custom_call.1} parent=0 // pred_check_branch
    %25 = sbr.rel (0) target = $region29
  $region28: #{tpu_custom_call.1} parent=0 // pred_region
    _
  $region29: #{tpu_custom_call.1} parent=0 // pred_fallthru
    _
  %v27 = vld [vmem:[%s0] sm:$0xff]
  %v28 = vld [vmem:[%s0 + $0x8] sm:$0xff]
  %v29 = vld [vmem:[%s0 + $0x10] sm:$0xff]
  %v30 = vld [vmem:[%s0 + $0x18] sm:$0xff]
  %v31 = vld [vmem:[%s0 + $0x20] sm:$0xff]
  %v32 = vld [vmem:[%s0 + $0x28] sm:$0xff]
  %v33 = vld [vmem:[%s0 + $0x30] sm:$0xff]
  %v34 = vld [vmem:[%s0 + $0x38] sm:$0xff]
  %v35 = vld [vmem:[%s0 + $0x40] sm:$0xff]
  %v36 = vld [vmem:[%s0 + $0x48] sm:$0xff]
  %v37 = vld [vmem:[%s0 + $0x50] sm:$0xff]
  %v38 = vld [vmem:[%s0 + $0x58] sm:$0xff]
  %v39 = vld [vmem:[%s0 + $0x60] sm:$0xff]
  %v40 = vld [vmem:[%s0 + $0x68] sm:$0xff]
  %v41 = vld [vmem:[%s0 + $0x70] sm:$0xff]
  %v42 = vld [vmem:[%s0 + $0x78] sm:$0xff]
  %v43 = vld [vmem:[%s0 + $0x80] sm:$0xff]
  %v44 = vld [vmem:[%s0 + $0x88] sm:$0xff]
  %v45 = vld [vmem:[%s0 + $0x90] sm:$0xff]
  %v46 = vld [vmem:[%s0 + $0x98] sm:$0xff]
  %v47 = vld [vmem:[%s0 + $0xa0] sm:$0xff]
  %v48 = vld [vmem:[%s0 + $0xa8] sm:$0xff]
  %v49 = vld [vmem:[%s0 + $0xb0] sm:$0xff]
  %v50 = vld [vmem:[%s0 + $0xb8] sm:$0xff]
  %v51 = vld [vmem:[%s0 + $0xc0] sm:$0xff]
  %v52 = vld [vmem:[%s0 + $0xc8] sm:$0xff]
  %v53 = vld [vmem:[%s0 + $0xd0] sm:$0xff]
  %v54 = vld [vmem:[%s0 + $0xd8] sm:$0xff]
  %v55 = vld [vmem:[%s0 + $0xe0] sm:$0xff]
  %v56 = vld [vmem:[%s0 + $0xe8] sm:$0xff]
  %v57 = vld [vmem:[%s0 + $0xf0] sm:$0xff]
  %v58 = vld [vmem:[%s0 + $0xf8] sm:$0xff]
  %v59 = vld [vmem:[%s0 + $0x100] sm:$0xff]
  %v60 = vld [vmem:[%s0 + $0x108] sm:$0xff]
  %v61 = vld [vmem:[%s0 + $0x110] sm:$0xff]
  %v62 = vld [vmem:[%s0 + $0x118] sm:$0xff]
  %v63 = vld [vmem:[%s0 + $0x120] sm:$0xff]
  %v64 = vld [vmem:[%s0 + $0x128] sm:$0xff]
  %v65 = vld [vmem:[%s0 + $0x130] sm:$0xff]
  %v66 = vld [vmem:[%s0 + $0x138] sm:$0xff]
  %v67 = vld [vmem:[%s0 + $0x140] sm:$0xff]
  %v68 = vld [vmem:[%s0 + $0x148] sm:$0xff]
  %v69 = vld [vmem:[%s0 + $0x150] sm:$0xff]
  %v70 = vld [vmem:[%s0 + $0x158] sm:$0xff]
  %v71 = vld [vmem:[%s0 + $0x160] sm:$0xff]
  %v72 = vld [vmem:[%s0 + $0x168] sm:$0xff]
  %v73 = vld [vmem:[%s0 + $0x170] sm:$0xff]
  %v74 = vld [vmem:[%s0 + $0x178] sm:$0xff]
  %v75 = vld [vmem:[%s0 + $0x180] sm:$0xff]
  %v76 = vld [vmem:[%s0 + $0x188] sm:$0xff]
  %v77 = vld [vmem:[%s0 + $0x190] sm:$0xff]
  %v78 = vld [vmem:[%s0 + $0x198] sm:$0xff]
  %v79 = vld [vmem:[%s0 + $0x1a0] sm:$0xff]
  %v80 = vld [vmem:[%s0 + $0x1a8] sm:$0xff]
  %v81 = vld [vmem:[%s0 + $0x1b0] sm:$0xff]
  %v82 = vld [vmem:[%s0 + $0x1b8] sm:$0xff]
  %v83 = vld [vmem:[%s6] sm:$0xff]
  %vm84 = vcmask 261120
  %v85 = vsel %vm84, %v27, 0.0
  %86 = vadd.xlane.f32.xlu0 %v85
  %v87 = vpop.xlane.xlu0 %86
  %v88 = vsel %vm84, %v28, 0.0
  %89 = vadd.xlane.f32.xlu0 %v88
  %v90 = vpop.xlane.xlu0 %89
  %v91 = vsel %vm84, %v29, 0.0
  %92 = vadd.xlane.f32.xlu0 %v91
  %v93 = vpop.xlane.xlu0 %92
  %v94 = vsel %vm84, %v30, 0.0
  %95 = vadd.xlane.f32.xlu0 %v94
  %v96 = vpop.xlane.xlu0 %95
  %v97 = vsel %vm84, %v31, 0.0
  %98 = vadd.xlane.f32.xlu0 %v97
  %v99 = vpop.xlane.xlu0 %98
  %v100 = vsel %vm84, %v32, 0.0
  %101 = vadd.xlane.f32.xlu0 %v100
  %v102 = vpop.xlane.xlu0 %101
  %v103 = vsel %vm84, %v33, 0.0
  %104 = vadd.xlane.f32.xlu0 %v103
  %v105 = vpop.xlane.xlu0 %104
  %v106 = vsel %vm84, %v34, 0.0
  %107 = vadd.xlane.f32.xlu0 %v106
  %v108 = vpop.xlane.xlu0 %107
  %v109 = vsel %vm84, %v35, 0.0
  %110 = vadd.xlane.f32.xlu0 %v109
  %v111 = vpop.xlane.xlu0 %110
  %v112 = vsel %vm84, %v36, 0.0
  %113 = vadd.xlane.f32.xlu0 %v112
  %v114 = vpop.xlane.xlu0 %113
  %v115 = vsel %vm84, %v37, 0.0
  %116 = vadd.xlane.f32.xlu0 %v115
  %v117 = vpop.xlane.xlu0 %116
  %v118 = vsel %vm84, %v38, 0.0
  %119 = vadd.xlane.f32.xlu0 %v118
  %v120 = vpop.xlane.xlu0 %119
  %v121 = vsel %vm84, %v39, 0.0
  %122 = vadd.xlane.f32.xlu0 %v121
  %v123 = vpop.xlane.xlu0 %122
  %v124 = vsel %vm84, %v40, 0.0
  %125 = vadd.xlane.f32.xlu0 %v124
  %v126 = vpop.xlane.xlu0 %125
  %v127 = vsel %vm84, %v41, 0.0
  %128 = vadd.xlane.f32.xlu0 %v127
  %v129 = vpop.xlane.xlu0 %128
  %v130 = vsel %vm84, %v42, 0.0
  %131 = vadd.xlane.f32.xlu0 %v130
  %v132 = vpop.xlane.xlu0 %131
  %v133 = vsel %vm84, %v43, 0.0
  %134 = vadd.xlane.f32.xlu0 %v133
  %v135 = vpop.xlane.xlu0 %134
  %v136 = vsel %vm84, %v44, 0.0
  %137 = vadd.xlane.f32.xlu0 %v136
  %v138 = vpop.xlane.xlu0 %137
  %v139 = vsel %vm84, %v45, 0.0
  %140 = vadd.xlane.f32.xlu0 %v139
  %v141 = vpop.xlane.xlu0 %140
  %v142 = vsel %vm84, %v46, 0.0
  %143 = vadd.xlane.f32.xlu0 %v142
  %v144 = vpop.xlane.xlu0 %143
  %v145 = vsel %vm84, %v47, 0.0
  %146 = vadd.xlane.f32.xlu0 %v145
  %v147 = vpop.xlane.xlu0 %146
  %v148 = vsel %vm84, %v48, 0.0
  %149 = vadd.xlane.f32.xlu0 %v148
  %v150 = vpop.xlane.xlu0 %149
  %v151 = vsel %vm84, %v49, 0.0
  %152 = vadd.xlane.f32.xlu0 %v151
  %v153 = vpop.xlane.xlu0 %152
  %v154 = vsel %vm84, %v50, 0.0
  %155 = vadd.xlane.f32.xlu0 %v154
  %v156 = vpop.xlane.xlu0 %155
  %v157 = vsel %vm84, %v51, 0.0
  %158 = vadd.xlane.f32.xlu0 %v157
  %v159 = vpop.xlane.xlu0 %158
  %v160 = vsel %vm84, %v52, 0.0
  %161 = vadd.xlane.f32.xlu0 %v160
  %v162 = vpop.xlane.xlu0 %161
  %v163 = vsel %vm84, %v53, 0.0
  %164 = vadd.xlane.f32.xlu0 %v163
  %v165 = vpop.xlane.xlu0 %164
  %v166 = vsel %vm84, %v54, 0.0
  %167 = vadd.xlane.f32.xlu0 %v166
  %v168 = vpop.xlane.xlu0 %167
  %v169 = vsel %vm84, %v55, 0.0
  %170 = vadd.xlane.f32.xlu0 %v169
  %v171 = vpop.xlane.xlu0 %170
  %v172 = vsel %vm84, %v56, 0.0
  %173 = vadd.xlane.f32.xlu0 %v172
  %v174 = vpop.xlane.xlu0 %173
  %v175 = vsel %vm84, %v57, 0.0
  %176 = vadd.xlane.f32.xlu0 %v175
  %v177 = vpop.xlane.xlu0 %176
  %v178 = vsel %vm84, %v58, 0.0
  %179 = vadd.xlane.f32.xlu0 %v178
  %v180 = vpop.xlane.xlu0 %179
  %v181 = vsel %vm84, %v59, 0.0
  %182 = vadd.xlane.f32.xlu0 %v181
  %v183 = vpop.xlane.xlu0 %182
  %v184 = vsel %vm84, %v60, 0.0
  %185 = vadd.xlane.f32.xlu0 %v184
  %v186 = vpop.xlane.xlu0 %185
  %v187 = vsel %vm84, %v61, 0.0
  %188 = vadd.xlane.f32.xlu0 %v187
  %v189 = vpop.xlane.xlu0 %188
  %v190 = vsel %vm84, %v62, 0.0
  %191 = vadd.xlane.f32.xlu0 %v190
  %v192 = vpop.xlane.xlu0 %191
  %v193 = vsel %vm84, %v63, 0.0
  %194 = vadd.xlane.f32.xlu0 %v193
  %v195 = vpop.xlane.xlu0 %194
  %v196 = vsel %vm84, %v64, 0.0
  %197 = vadd.xlane.f32.xlu0 %v196
  %v198 = vpop.xlane.xlu0 %197
  %v199 = vsel %vm84, %v65, 0.0
  %200 = vadd.xlane.f32.xlu0 %v199
  %v201 = vpop.xlane.xlu0 %200
  %v202 = vsel %vm84, %v66, 0.0
  %203 = vadd.xlane.f32.xlu0 %v202
  %v204 = vpop.xlane.xlu0 %203
  %v205 = vsel %vm84, %v67, 0.0
  %206 = vadd.xlane.f32.xlu0 %v205
  %v207 = vpop.xlane.xlu0 %206
  %v208 = vsel %vm84, %v68, 0.0
  %209 = vadd.xlane.f32.xlu0 %v208
  %v210 = vpop.xlane.xlu0 %209
  %v211 = vsel %vm84, %v69, 0.0
  %212 = vadd.xlane.f32.xlu0 %v211
  %v213 = vpop.xlane.xlu0 %212
  %v214 = vsel %vm84, %v70, 0.0
  %215 = vadd.xlane.f32.xlu0 %v214
  %v216 = vpop.xlane.xlu0 %215
  %v217 = vsel %vm84, %v71, 0.0
  %218 = vadd.xlane.f32.xlu0 %v217
  %v219 = vpop.xlane.xlu0 %218
  %v220 = vsel %vm84, %v72, 0.0
  %221 = vadd.xlane.f32.xlu0 %v220
  %v222 = vpop.xlane.xlu0 %221
  %v223 = vsel %vm84, %v73, 0.0
  %224 = vadd.xlane.f32.xlu0 %v223
  %v225 = vpop.xlane.xlu0 %224
  %v226 = vsel %vm84, %v74, 0.0
  %227 = vadd.xlane.f32.xlu0 %v226
  %v228 = vpop.xlane.xlu0 %227
  %v229 = vsel %vm84, %v75, 0.0
  %230 = vadd.xlane.f32.xlu0 %v229
  %v231 = vpop.xlane.xlu0 %230
  %v232 = vsel %vm84, %v76, 0.0
  %233 = vadd.xlane.f32.xlu0 %v232
  %v234 = vpop.xlane.xlu0 %233
  %v235 = vsel %vm84, %v77, 0.0
  %236 = vadd.xlane.f32.xlu0 %v235
  %v237 = vpop.xlane.xlu0 %236
  %v238 = vsel %vm84, %v78, 0.0
  %239 = vadd.xlane.f32.xlu0 %v238
  %v240 = vpop.xlane.xlu0 %239
  %v241 = vsel %vm84, %v79, 0.0
  %242 = vadd.xlane.f32.xlu0 %v241
  %v243 = vpop.xlane.xlu0 %242
  %v244 = vsel %vm84, %v80, 0.0
  %245 = vadd.xlane.f32.xlu0 %v244
  %v246 = vpop.xlane.xlu0 %245
  %v247 = vsel %vm84, %v81, 0.0
  %248 = vadd.xlane.f32.xlu0 %v247
  %v249 = vpop.xlane.xlu0 %248
  %v250 = vsel %vm84, %v82, 0.0
  %251 = vadd.xlane.f32.xlu0 %v250
  %v252 = vpop.xlane.xlu0 %251
  %v253 = vrcp.pop 32.0
  %v254 = vmul.f32 %v87, %v253
  %v255 = vmul.f32 %v90, %v253
  %v256 = vmul.f32 %v93, %v253
  %v257 = vmul.f32 %v96, %v253
  %v258 = vmul.f32 %v99, %v253
  %v259 = vmul.f32 %v102, %v253
  %v260 = vmul.f32 %v105, %v253
  %v261 = vmul.f32 %v108, %v253
  %v262 = vmul.f32 %v111, %v253
  %v263 = vmul.f32 %v114, %v253
  %v264 = vmul.f32 %v117, %v253
  %v265 = vmul.f32 %v120, %v253
  %v266 = vmul.f32 %v123, %v253
  %v267 = vmul.f32 %v126, %v253
  %v268 = vmul.f32 %v129, %v253
  %v269 = vmul.f32 %v132, %v253
  %v270 = vmul.f32 %v135, %v253
  %v271 = vmul.f32 %v138, %v253
  %v272 = vmul.f32 %v141, %v253
  %v273 = vmul.f32 %v144, %v253
  %v274 = vmul.f32 %v147, %v253
  %v275 = vmul.f32 %v150, %v253
  %v276 = vmul.f32 %v153, %v253
  %v277 = vmul.f32 %v156, %v253
  %v278 = vmul.f32 %v159, %v253
  %v279 = vmul.f32 %v162, %v253
  %v280 = vmul.f32 %v165, %v253
  %v281 = vmul.f32 %v168, %v253
  %v282 = vmul.f32 %v171, %v253
  %v283 = vmul.f32 %v174, %v253
  %v284 = vmul.f32 %v177, %v253
  %v285 = vmul.f32 %v180, %v253
  %v286 = vmul.f32 %v183, %v253
  %v287 = vmul.f32 %v186, %v253
  %v288 = vmul.f32 %v189, %v253
  %v289 = vmul.f32 %v192, %v253
  %v290 = vmul.f32 %v195, %v253
  %v291 = vmul.f32 %v198, %v253
  %v292 = vmul.f32 %v201, %v253
  %v293 = vmul.f32 %v204, %v253
  %v294 = vmul.f32 %v207, %v253
  %v295 = vmul.f32 %v210, %v253
  %v296 = vmul.f32 %v213, %v253
  %v297 = vmul.f32 %v216, %v253
  %v298 = vmul.f32 %v219, %v253
  %v299 = vmul.f32 %v222, %v253
  %v300 = vmul.f32 %v225, %v253
  %v301 = vmul.f32 %v228, %v253
  %v302 = vmul.f32 %v231, %v253
  %v303 = vmul.f32 %v234, %v253
  %v304 = vmul.f32 %v237, %v253
  %v305 = vmul.f32 %v240, %v253
  %v306 = vmul.f32 %v243, %v253
  %v307 = vmul.f32 %v246, %v253
  %v308 = vmul.f32 %v249, %v253
  %v309 = vmul.f32 %v252, %v253
  %v310 = vsub.f32 %v27, %v254
  %v311 = vsub.f32 %v28, %v255
  %v312 = vsub.f32 %v29, %v256
  %v313 = vsub.f32 %v30, %v257
  %v314 = vsub.f32 %v31, %v258
  %v315 = vsub.f32 %v32, %v259
  %v316 = vsub.f32 %v33, %v260
  %v317 = vsub.f32 %v34, %v261
  %v318 = vsub.f32 %v35, %v262
  %v319 = vsub.f32 %v36, %v263
  %v320 = vsub.f32 %v37, %v264
  %v321 = vsub.f32 %v38, %v265
  %v322 = vsub.f32 %v39, %v266
  %v323 = vsub.f32 %v40, %v267
  %v324 = vsub.f32 %v41, %v268
  %v325 = vsub.f32 %v42, %v269
  %v326 = vsub.f32 %v43, %v270
  %v327 = vsub.f32 %v44, %v271
  %v328 = vsub.f32 %v45, %v272
  %v329 = vsub.f32 %v46, %v273
  %v330 = vsub.f32 %v47, %v274
  %v331 = vsub.f32 %v48, %v275
  %v332 = vsub.f32 %v49, %v276
  %v333 = vsub.f32 %v50, %v277
  %v334 = vsub.f32 %v51, %v278
  %v335 = vsub.f32 %v52, %v279
  %v336 = vsub.f32 %v53, %v280
  %v337 = vsub.f32 %v54, %v281
  %v338 = vsub.f32 %v55, %v282
  %v339 = vsub.f32 %v56, %v283
  %v340 = vsub.f32 %v57, %v284
  %v341 = vsub.f32 %v58, %v285
  %v342 = vsub.f32 %v59, %v286
  %v343 = vsub.f32 %v60, %v287
  %v344 = vsub.f32 %v61, %v288
  %v345 = vsub.f32 %v62, %v289
  %v346 = vsub.f32 %v63, %v290
  %v347 = vsub.f32 %v64, %v291
  %v348 = vsub.f32 %v65, %v292
  %v349 = vsub.f32 %v66, %v293
  %v350 = vsub.f32 %v67, %v294
  %v351 = vsub.f32 %v68, %v295
  %v352 = vsub.f32 %v69, %v296
  %v353 = vsub.f32 %v70, %v297
  %v354 = vsub.f32 %v71, %v298
  %v355 = vsub.f32 %v72, %v299
  %v356 = vsub.f32 %v73, %v300
  %v357 = vsub.f32 %v74, %v301
  %v358 = vsub.f32 %v75, %v302
  %v359 = vsub.f32 %v76, %v303
  %v360 = vsub.f32 %v77, %v304
  %v361 = vsub.f32 %v78, %v305
  %v362 = vsub.f32 %v79, %v306
  %v363 = vsub.f32 %v80, %v307
  %v364 = vsub.f32 %v81, %v308
  %v365 = vsub.f32 %v82, %v309
  %v366 = vmul.f32 %v310, %v310
  %v367 = vmul.f32 %v311, %v311
  %v368 = vmul.f32 %v312, %v312
  %v369 = vmul.f32 %v313, %v313
  %v370 = vmul.f32 %v314, %v314
  %v371 = vmul.f32 %v315, %v315
  %v372 = vmul.f32 %v316, %v316
  %v373 = vmul.f32 %v317, %v317
  %v374 = vmul.f32 %v318, %v318
  %v375 = vmul.f32 %v319, %v319
  %v376 = vmul.f32 %v320, %v320
  %v377 = vmul.f32 %v321, %v321
  %v378 = vmul.f32 %v322, %v322
  %v379 = vmul.f32 %v323, %v323
  %v380 = vmul.f32 %v324, %v324
  %v381 = vmul.f32 %v325, %v325
  %v382 = vmul.f32 %v326, %v326
  %v383 = vmul.f32 %v327, %v327
  %v384 = vmul.f32 %v328, %v328
  %v385 = vmul.f32 %v329, %v329
  %v386 = vmul.f32 %v330, %v330
  %v387 = vmul.f32 %v331, %v331
  %v388 = vmul.f32 %v332, %v332
  %v389 = vmul.f32 %v333, %v333
  %v390 = vmul.f32 %v334, %v334
  %v391 = vmul.f32 %v335, %v335
  %v392 = vmul.f32 %v336, %v336
  %v393 = vmul.f32 %v337, %v337
  %v394 = vmul.f32 %v338, %v338
  %v395 = vmul.f32 %v339, %v339
  %v396 = vmul.f32 %v340, %v340
  %v397 = vmul.f32 %v341, %v341
  %v398 = vmul.f32 %v342, %v342
  %v399 = vmul.f32 %v343, %v343
  %v400 = vmul.f32 %v344, %v344
  %v401 = vmul.f32 %v345, %v345
  %v402 = vmul.f32 %v346, %v346
  %v403 = vmul.f32 %v347, %v347
  %v404 = vmul.f32 %v348, %v348
  %v405 = vmul.f32 %v349, %v349
  %v406 = vmul.f32 %v350, %v350
  %v407 = vmul.f32 %v351, %v351
  %v408 = vmul.f32 %v352, %v352
  %v409 = vmul.f32 %v353, %v353
  %v410 = vmul.f32 %v354, %v354
  %v411 = vmul.f32 %v355, %v355
  %v412 = vmul.f32 %v356, %v356
  %v413 = vmul.f32 %v357, %v357
  %v414 = vmul.f32 %v358, %v358
  %v415 = vmul.f32 %v359, %v359
  %v416 = vmul.f32 %v360, %v360
  %v417 = vmul.f32 %v361, %v361
  %v418 = vmul.f32 %v362, %v362
  %v419 = vmul.f32 %v363, %v363
  %v420 = vmul.f32 %v364, %v364
  %v421 = vmul.f32 %v365, %v365
  %v422 = vsel %vm84, %v366, 0.0
  %423 = vadd.xlane.f32.xlu0 %v422
  %v424 = vpop.xlane.xlu0 %423
  %v425 = vsel %vm84, %v367, 0.0
  %426 = vadd.xlane.f32.xlu0 %v425
  %v427 = vpop.xlane.xlu0 %426
  %v428 = vsel %vm84, %v368, 0.0
  %429 = vadd.xlane.f32.xlu0 %v428
  %v430 = vpop.xlane.xlu0 %429
  %v431 = vsel %vm84, %v369, 0.0
  %432 = vadd.xlane.f32.xlu0 %v431
  %v433 = vpop.xlane.xlu0 %432
  %v434 = vsel %vm84, %v370, 0.0
  %435 = vadd.xlane.f32.xlu0 %v434
  %v436 = vpop.xlane.xlu0 %435
  %v437 = vsel %vm84, %v371, 0.0
  %438 = vadd.xlane.f32.xlu0 %v437
  %v439 = vpop.xlane.xlu0 %438
  %v440 = vsel %vm84, %v372, 0.0
  %441 = vadd.xlane.f32.xlu0 %v440
  %v442 = vpop.xlane.xlu0 %441
  %v443 = vsel %vm84, %v373, 0.0
  %444 = vadd.xlane.f32.xlu0 %v443
  %v445 = vpop.xlane.xlu0 %444
  %v446 = vsel %vm84, %v374, 0.0
  %447 = vadd.xlane.f32.xlu0 %v446
  %v448 = vpop.xlane.xlu0 %447
  %v449 = vsel %vm84, %v375, 0.0
  %450 = vadd.xlane.f32.xlu0 %v449
  %v451 = vpop.xlane.xlu0 %450
  %v452 = vsel %vm84, %v376, 0.0
  %453 = vadd.xlane.f32.xlu0 %v452
  %v454 = vpop.xlane.xlu0 %453
  %v455 = vsel %vm84, %v377, 0.0
  %456 = vadd.xlane.f32.xlu0 %v455
  %v457 = vpop.xlane.xlu0 %456
  %v458 = vsel %vm84, %v378, 0.0
  %459 = vadd.xlane.f32.xlu0 %v458
  %v460 = vpop.xlane.xlu0 %459
  %v461 = vsel %vm84, %v379, 0.0
  %462 = vadd.xlane.f32.xlu0 %v461
  %v463 = vpop.xlane.xlu0 %462
  %v464 = vsel %vm84, %v380, 0.0
  %465 = vadd.xlane.f32.xlu0 %v464
  %v466 = vpop.xlane.xlu0 %465
  %v467 = vsel %vm84, %v381, 0.0
  %468 = vadd.xlane.f32.xlu0 %v467
  %v469 = vpop.xlane.xlu0 %468
  %v470 = vsel %vm84, %v382, 0.0
  %471 = vadd.xlane.f32.xlu0 %v470
  %v472 = vpop.xlane.xlu0 %471
  %v473 = vsel %vm84, %v383, 0.0
  %474 = vadd.xlane.f32.xlu0 %v473
  %v475 = vpop.xlane.xlu0 %474
  %v476 = vsel %vm84, %v384, 0.0
  %477 = vadd.xlane.f32.xlu0 %v476
  %v478 = vpop.xlane.xlu0 %477
  %v479 = vsel %vm84, %v385, 0.0
  %480 = vadd.xlane.f32.xlu0 %v479
  %v481 = vpop.xlane.xlu0 %480
  %v482 = vsel %vm84, %v386, 0.0
  %483 = vadd.xlane.f32.xlu0 %v482
  %v484 = vpop.xlane.xlu0 %483
  %v485 = vsel %vm84, %v387, 0.0
  %486 = vadd.xlane.f32.xlu0 %v485
  %v487 = vpop.xlane.xlu0 %486
  %v488 = vsel %vm84, %v388, 0.0
  %489 = vadd.xlane.f32.xlu0 %v488
  %v490 = vpop.xlane.xlu0 %489
  %v491 = vsel %vm84, %v389, 0.0
  %492 = vadd.xlane.f32.xlu0 %v491
  %v493 = vpop.xlane.xlu0 %492
  %v494 = vsel %vm84, %v390, 0.0
  %495 = vadd.xlane.f32.xlu0 %v494
  %v496 = vpop.xlane.xlu0 %495
  %v497 = vsel %vm84, %v391, 0.0
  %498 = vadd.xlane.f32.xlu0 %v497
  %v499 = vpop.xlane.xlu0 %498
  %v500 = vsel %vm84, %v392, 0.0
  %501 = vadd.xlane.f32.xlu0 %v500
  %v502 = vpop.xlane.xlu0 %501
  %v503 = vsel %vm84, %v393, 0.0
  %504 = vadd.xlane.f32.xlu0 %v503
  %v505 = vpop.xlane.xlu0 %504
  %v506 = vsel %vm84, %v394, 0.0
  %507 = vadd.xlane.f32.xlu0 %v506
  %v508 = vpop.xlane.xlu0 %507
  %v509 = vsel %vm84, %v395, 0.0
  %510 = vadd.xlane.f32.xlu0 %v509
  %v511 = vpop.xlane.xlu0 %510
  %v512 = vsel %vm84, %v396, 0.0
  %513 = vadd.xlane.f32.xlu0 %v512
  %v514 = vpop.xlane.xlu0 %513
  %v515 = vsel %vm84, %v397, 0.0
  %516 = vadd.xlane.f32.xlu0 %v515
  %v517 = vpop.xlane.xlu0 %516
  %v518 = vsel %vm84, %v398, 0.0
  %519 = vadd.xlane.f32.xlu0 %v518
  %v520 = vpop.xlane.xlu0 %519
  %v521 = vsel %vm84, %v399, 0.0
  %522 = vadd.xlane.f32.xlu0 %v521
  %v523 = vpop.xlane.xlu0 %522
  %v524 = vsel %vm84, %v400, 0.0
  %525 = vadd.xlane.f32.xlu0 %v524
  %v526 = vpop.xlane.xlu0 %525
  %v527 = vsel %vm84, %v401, 0.0
  %528 = vadd.xlane.f32.xlu0 %v527
  %v529 = vpop.xlane.xlu0 %528
  %v530 = vsel %vm84, %v402, 0.0
  %531 = vadd.xlane.f32.xlu0 %v530
  %v532 = vpop.xlane.xlu0 %531
  %v533 = vsel %vm84, %v403, 0.0
  %534 = vadd.xlane.f32.xlu0 %v533
  %v535 = vpop.xlane.xlu0 %534
  %v536 = vsel %vm84, %v404, 0.0
  %537 = vadd.xlane.f32.xlu0 %v536
  %v538 = vpop.xlane.xlu0 %537
  %v539 = vsel %vm84, %v405, 0.0
  %540 = vadd.xlane.f32.xlu0 %v539
  %v541 = vpop.xlane.xlu0 %540
  %v542 = vsel %vm84, %v406, 0.0
  %543 = vadd.xlane.f32.xlu0 %v542
  %v544 = vpop.xlane.xlu0 %543
  %v545 = vsel %vm84, %v407, 0.0
  %546 = vadd.xlane.f32.xlu0 %v545
  %v547 = vpop.xlane.xlu0 %546
  %v548 = vsel %vm84, %v408, 0.0
  %549 = vadd.xlane.f32.xlu0 %v548
  %v550 = vpop.xlane.xlu0 %549
  %v551 = vsel %vm84, %v409, 0.0
  %552 = vadd.xlane.f32.xlu0 %v551
  %v553 = vpop.xlane.xlu0 %552
  %v554 = vsel %vm84, %v410, 0.0
  %555 = vadd.xlane.f32.xlu0 %v554
  %v556 = vpop.xlane.xlu0 %555
  %v557 = vsel %vm84, %v411, 0.0
  %558 = vadd.xlane.f32.xlu0 %v557
  %v559 = vpop.xlane.xlu0 %558
  %v560 = vsel %vm84, %v412, 0.0
  %561 = vadd.xlane.f32.xlu0 %v560
  %v562 = vpop.xlane.xlu0 %561
  %v563 = vsel %vm84, %v413, 0.0
  %564 = vadd.xlane.f32.xlu0 %v563
  %v565 = vpop.xlane.xlu0 %564
  %v566 = vsel %vm84, %v414, 0.0
  %567 = vadd.xlane.f32.xlu0 %v566
  %v568 = vpop.xlane.xlu0 %567
  %v569 = vsel %vm84, %v415, 0.0
  %570 = vadd.xlane.f32.xlu0 %v569
  %v571 = vpop.xlane.xlu0 %570
  %v572 = vsel %vm84, %v416, 0.0
  %573 = vadd.xlane.f32.xlu0 %v572
  %v574 = vpop.xlane.xlu0 %573
  %v575 = vsel %vm84, %v417, 0.0
  %576 = vadd.xlane.f32.xlu0 %v575
  %v577 = vpop.xlane.xlu0 %576
  %v578 = vsel %vm84, %v418, 0.0
  %579 = vadd.xlane.f32.xlu0 %v578
  %v580 = vpop.xlane.xlu0 %579
  %v581 = vsel %vm84, %v419, 0.0
  %582 = vadd.xlane.f32.xlu0 %v581
  %v583 = vpop.xlane.xlu0 %582
  %v584 = vsel %vm84, %v420, 0.0
  %585 = vadd.xlane.f32.xlu0 %v584
  %v586 = vpop.xlane.xlu0 %585
  %v587 = vsel %vm84, %v421, 0.0
  %588 = vadd.xlane.f32.xlu0 %v587
  %v589 = vpop.xlane.xlu0 %588
  %v590 = vmul.f32 %v424, %v253
  %v591 = vmul.f32 %v427, %v253
  %v592 = vmul.f32 %v430, %v253
  %v593 = vmul.f32 %v433, %v253
  %v594 = vmul.f32 %v436, %v253
  %v595 = vmul.f32 %v439, %v253
  %v596 = vmul.f32 %v442, %v253
  %v597 = vmul.f32 %v445, %v253
  %v598 = vmul.f32 %v448, %v253
  %v599 = vmul.f32 %v451, %v253
  %v600 = vmul.f32 %v454, %v253
  %v601 = vmul.f32 %v457, %v253
  %v602 = vmul.f32 %v460, %v253
  %v603 = vmul.f32 %v463, %v253
  %v604 = vmul.f32 %v466, %v253
  %v605 = vmul.f32 %v469, %v253
  %v606 = vmul.f32 %v472, %v253
  %v607 = vmul.f32 %v475, %v253
  %v608 = vmul.f32 %v478, %v253
  %v609 = vmul.f32 %v481, %v253
  %v610 = vmul.f32 %v484, %v253
  %v611 = vmul.f32 %v487, %v253
  %v612 = vmul.f32 %v490, %v253
  %v613 = vmul.f32 %v493, %v253
  %v614 = vmul.f32 %v496, %v253
  %v615 = vmul.f32 %v499, %v253
  %v616 = vmul.f32 %v502, %v253
  %v617 = vmul.f32 %v505, %v253
  %v618 = vmul.f32 %v508, %v253
  %v619 = vmul.f32 %v511, %v253
  %v620 = vmul.f32 %v514, %v253
  %v621 = vmul.f32 %v517, %v253
  %v622 = vmul.f32 %v520, %v253
  %v623 = vmul.f32 %v523, %v253
  %v624 = vmul.f32 %v526, %v253
  %v625 = vmul.f32 %v529, %v253
  %v626 = vmul.f32 %v532, %v253
  %v627 = vmul.f32 %v535, %v253
  %v628 = vmul.f32 %v538, %v253
  %v629 = vmul.f32 %v541, %v253
  %v630 = vmul.f32 %v544, %v253
  %v631 = vmul.f32 %v547, %v253
  %v632 = vmul.f32 %v550, %v253
  %v633 = vmul.f32 %v553, %v253
  %v634 = vmul.f32 %v556, %v253
  %v635 = vmul.f32 %v559, %v253
  %v636 = vmul.f32 %v562, %v253
  %v637 = vmul.f32 %v565, %v253
  %v638 = vmul.f32 %v568, %v253
  %v639 = vmul.f32 %v571, %v253
  %v640 = vmul.f32 %v574, %v253
  %v641 = vmul.f32 %v577, %v253
  %v642 = vmul.f32 %v580, %v253
  %v643 = vmul.f32 %v583, %v253
  %v644 = vmul.f32 %v586, %v253
  %v645 = vmul.f32 %v589, %v253
  %v646 = vadd.f32 %v590, 1e-05
  %v647 = vadd.f32 %v591, 1e-05
  %v648 = vadd.f32 %v592, 1e-05
  %v649 = vadd.f32 %v593, 1e-05
  %v650 = vadd.f32 %v594, 1e-05
  %v651 = vadd.f32 %v595, 1e-05
  %v652 = vadd.f32 %v596, 1e-05
  %v653 = vadd.f32 %v597, 1e-05
  %v654 = vadd.f32 %v598, 1e-05
  %v655 = vadd.f32 %v599, 1e-05
  %v656 = vadd.f32 %v600, 1e-05
  %v657 = vadd.f32 %v601, 1e-05
  %v658 = vadd.f32 %v602, 1e-05
  %v659 = vadd.f32 %v603, 1e-05
  %v660 = vadd.f32 %v604, 1e-05
  %v661 = vadd.f32 %v605, 1e-05
  %v662 = vadd.f32 %v606, 1e-05
  %v663 = vadd.f32 %v607, 1e-05
  %v664 = vadd.f32 %v608, 1e-05
  %v665 = vadd.f32 %v609, 1e-05
  %v666 = vadd.f32 %v610, 1e-05
  %v667 = vadd.f32 %v611, 1e-05
  %v668 = vadd.f32 %v612, 1e-05
  %v669 = vadd.f32 %v613, 1e-05
  %v670 = vadd.f32 %v614, 1e-05
  %v671 = vadd.f32 %v615, 1e-05
  %v672 = vadd.f32 %v616, 1e-05
  %v673 = vadd.f32 %v617, 1e-05
  %v674 = vadd.f32 %v618, 1e-05
  %v675 = vadd.f32 %v619, 1e-05
  %v676 = vadd.f32 %v620, 1e-05
  %v677 = vadd.f32 %v621, 1e-05
  %v678 = vadd.f32 %v622, 1e-05
  %v679 = vadd.f32 %v623, 1e-05
  %v680 = vadd.f32 %v624, 1e-05
  %v681 = vadd.f32 %v625, 1e-05
  %v682 = vadd.f32 %v626, 1e-05
  %v683 = vadd.f32 %v627, 1e-05
  %v684 = vadd.f32 %v628, 1e-05
  %v685 = vadd.f32 %v629, 1e-05
  %v686 = vadd.f32 %v630, 1e-05
  %v687 = vadd.f32 %v631, 1e-05
  %v688 = vadd.f32 %v632, 1e-05
  %v689 = vadd.f32 %v633, 1e-05
  %v690 = vadd.f32 %v634, 1e-05
  %v691 = vadd.f32 %v635, 1e-05
  %v692 = vadd.f32 %v636, 1e-05
  %v693 = vadd.f32 %v637, 1e-05
  %v694 = vadd.f32 %v638, 1e-05
  %v695 = vadd.f32 %v639, 1e-05
  %v696 = vadd.f32 %v640, 1e-05
  %v697 = vadd.f32 %v641, 1e-05
  %v698 = vadd.f32 %v642, 1e-05
  %v699 = vadd.f32 %v643, 1e-05
  %v700 = vadd.f32 %v644, 1e-05
  %v701 = vadd.f32 %v645, 1e-05
  %v702 = vrsqrt.pop %v646
  %v703 = vrsqrt.pop %v647
  %v704 = vrsqrt.pop %v648
  %v705 = vrsqrt.pop %v649
  %v706 = vrsqrt.pop %v650
  %v707 = vrsqrt.pop %v651
  %v708 = vrsqrt.pop %v652
  %v709 = vrsqrt.pop %v653
  %v710 = vrsqrt.pop %v654
  %v711 = vrsqrt.pop %v655
  %v712 = vrsqrt.pop %v656
  %v713 = vrsqrt.pop %v657
  %v714 = vrsqrt.pop %v658
  %v715 = vrsqrt.pop %v659
  %v716 = vrsqrt.pop %v660
  %v717 = vrsqrt.pop %v661
  %v718 = vrsqrt.pop %v662
  %v719 = vrsqrt.pop %v663
  %v720 = vrsqrt.pop %v664
  %v721 = vrsqrt.pop %v665
  %v722 = vrsqrt.pop %v666
  %v723 = vrsqrt.pop %v667
  %v724 = vrsqrt.pop %v668
  %v725 = vrsqrt.pop %v669
  %v726 = vrsqrt.pop %v670
  %v727 = vrsqrt.pop %v671
  %v728 = vrsqrt.pop %v672
  %v729 = vrsqrt.pop %v673
  %v730 = vrsqrt.pop %v674
  %v731 = vrsqrt.pop %v675
  %v732 = vrsqrt.pop %v676
  %v733 = vrsqrt.pop %v677
  %v734 = vrsqrt.pop %v678
  %v735 = vrsqrt.pop %v679
  %v736 = vrsqrt.pop %v680
  %v737 = vrsqrt.pop %v681
  %v738 = vrsqrt.pop %v682
  %v739 = vrsqrt.pop %v683
  %v740 = vrsqrt.pop %v684
  %v741 = vrsqrt.pop %v685
  %v742 = vrsqrt.pop %v686
  %v743 = vrsqrt.pop %v687
  %v744 = vrsqrt.pop %v688
  %v745 = vrsqrt.pop %v689
  %v746 = vrsqrt.pop %v690
  %v747 = vrsqrt.pop %v691
  %v748 = vrsqrt.pop %v692
  %v749 = vrsqrt.pop %v693
  %v750 = vrsqrt.pop %v694
  %v751 = vrsqrt.pop %v695
  %v752 = vrsqrt.pop %v696
  %v753 = vrsqrt.pop %v697
  %v754 = vrsqrt.pop %v698
  %v755 = vrsqrt.pop %v699
  %v756 = vrsqrt.pop %v700
  %v757 = vrsqrt.pop %v701
  %v758 = vmul.f32 %v310, %v702
  %v759 = vmul.f32 %v311, %v703
  %v760 = vmul.f32 %v312, %v704
  %v761 = vmul.f32 %v313, %v705
  %v762 = vmul.f32 %v314, %v706
  %v763 = vmul.f32 %v315, %v707
  %v764 = vmul.f32 %v316, %v708
  %v765 = vmul.f32 %v317, %v709
  %v766 = vmul.f32 %v318, %v710
  %v767 = vmul.f32 %v319, %v711
  %v768 = vmul.f32 %v320, %v712
  %v769 = vmul.f32 %v321, %v713
  %v770 = vmul.f32 %v322, %v714
  %v771 = vmul.f32 %v323, %v715
  %v772 = vmul.f32 %v324, %v716
  %v773 = vmul.f32 %v325, %v717
  %v774 = vmul.f32 %v326, %v718
  %v775 = vmul.f32 %v327, %v719
  %v776 = vmul.f32 %v328, %v720
  %v777 = vmul.f32 %v329, %v721
  %v778 = vmul.f32 %v330, %v722
  %v779 = vmul.f32 %v331, %v723
  %v780 = vmul.f32 %v332, %v724
  %v781 = vmul.f32 %v333, %v725
  %v782 = vmul.f32 %v334, %v726
  %v783 = vmul.f32 %v335, %v727
  %v784 = vmul.f32 %v336, %v728
  %v785 = vmul.f32 %v337, %v729
  %v786 = vmul.f32 %v338, %v730
  %v787 = vmul.f32 %v339, %v731
  %v788 = vmul.f32 %v340, %v732
  %v789 = vmul.f32 %v341, %v733
  %v790 = vmul.f32 %v342, %v734
  %v791 = vmul.f32 %v343, %v735
  %v792 = vmul.f32 %v344, %v736
  %v793 = vmul.f32 %v345, %v737
  %v794 = vmul.f32 %v346, %v738
  %v795 = vmul.f32 %v347, %v739
  %v796 = vmul.f32 %v348, %v740
  %v797 = vmul.f32 %v349, %v741
  %v798 = vmul.f32 %v350, %v742
  %v799 = vmul.f32 %v351, %v743
  %v800 = vmul.f32 %v352, %v744
  %v801 = vmul.f32 %v353, %v745
  %v802 = vmul.f32 %v354, %v746
  %v803 = vmul.f32 %v355, %v747
  %v804 = vmul.f32 %v356, %v748
  %v805 = vmul.f32 %v357, %v749
  %v806 = vmul.f32 %v358, %v750
  %v807 = vmul.f32 %v359, %v751
  %v808 = vmul.f32 %v360, %v752
  %v809 = vmul.f32 %v361, %v753
  %v810 = vmul.f32 %v362, %v754
  %v811 = vmul.f32 %v363, %v755
  %v812 = vmul.f32 %v364, %v756
  %v813 = vmul.f32 %v365, %v757
  %v814 = vlaneseq
  %v815 = vshrl.u32 %v814, 7
  %v816 = vsub.s32 0, %v815
  %v817 = vrot.slane %v83, %v816
  %v818 = vmul.f32 %v758, %v817
  %v819 = vmul.f32 %v759, %v817
  %v820 = vmul.f32 %v760, %v817
  %v821 = vmul.f32 %v761, %v817
  %v822 = vmul.f32 %v762, %v817
  %v823 = vmul.f32 %v763, %v817
  %v824 = vmul.f32 %v764, %v817
  %v825 = vmul.f32 %v765, %v817
  %v826 = vmul.f32 %v766, %v817
  %v827 = vmul.f32 %v767, %v817
  %v828 = vmul.f32 %v768, %v817
  %v829 = vmul.f32 %v769, %v817
  %v830 = vmul.f32 %v770, %v817
  %v831 = vmul.f32 %v771, %v817
  %v832 = vmul.f32 %v772, %v817
  %v833 = vmul.f32 %v773, %v817
  %v834 = vmul.f32 %v774, %v817
  %v835 = vmul.f32 %v775, %v817
  %v836 = vmul.f32 %v776, %v817
  %v837 = vmul.f32 %v777, %v817
  %v838 = vmul.f32 %v778, %v817
  %v839 = vmul.f32 %v779, %v817
  %v840 = vmul.f32 %v780, %v817
  %v841 = vmul.f32 %v781, %v817
  %v842 = vmul.f32 %v782, %v817
  %v843 = vmul.f32 %v783, %v817
  %v844 = vmul.f32 %v784, %v817
  %v845 = vmul.f32 %v785, %v817
  %v846 = vmul.f32 %v786, %v817
  %v847 = vmul.f32 %v787, %v817
  %v848 = vmul.f32 %v788, %v817
  %v849 = vmul.f32 %v789, %v817
  %v850 = vmul.f32 %v790, %v817
  %v851 = vmul.f32 %v791, %v817
  %v852 = vmul.f32 %v792, %v817
  %v853 = vmul.f32 %v793, %v817
  %v854 = vmul.f32 %v794, %v817
  %v855 = vmul.f32 %v795, %v817
  %v856 = vmul.f32 %v796, %v817
  %v857 = vmul.f32 %v797, %v817
  %v858 = vmul.f32 %v798, %v817
  %v859 = vmul.f32 %v799, %v817
  %v860 = vmul.f32 %v800, %v817
  %v861 = vmul.f32 %v801, %v817
  %v862 = vmul.f32 %v802, %v817
  %v863 = vmul.f32 %v803, %v817
  %v864 = vmul.f32 %v804, %v817
  %v865 = vmul.f32 %v805, %v817
  %v866 = vmul.f32 %v806, %v817
  %v867 = vmul.f32 %v807, %v817
  %v868 = vmul.f32 %v808, %v817
  %v869 = vmul.f32 %v809, %v817
  %v870 = vmul.f32 %v810, %v817
  %v871 = vmul.f32 %v811, %v817
  %v872 = vmul.f32 %v812, %v817
  %v873 = vmul.f32 %v813, %v817
  %v874 = vlaneseq
  %v875 = vshrl.u32 %v874, 7
  %v876 = vsub.s32 1, %v875
  %v877 = vrot.slane %v83, %v876
  %v878 = vadd.f32 %v818, %v877
  %v879 = vadd.f32 %v819, %v877
  %v880 = vadd.f32 %v820, %v877
  %v881 = vadd.f32 %v821, %v877
  %v882 = vadd.f32 %v822, %v877
  %v883 = vadd.f32 %v823, %v877
  %v884 = vadd.f32 %v824, %v877
  %v885 = vadd.f32 %v825, %v877
  %v886 = vadd.f32 %v826, %v877
  %v887 = vadd.f32 %v827, %v877
  %v888 = vadd.f32 %v828, %v877
  %v889 = vadd.f32 %v829, %v877
  %v890 = vadd.f32 %v830, %v877
  %v891 = vadd.f32 %v831, %v877
  %v892 = vadd.f32 %v832, %v877
  %v893 = vadd.f32 %v833, %v877
  %v894 = vadd.f32 %v834, %v877
  %v895 = vadd.f32 %v835, %v877
  %v896 = vadd.f32 %v836, %v877
  %v897 = vadd.f32 %v837, %v877
  %v898 = vadd.f32 %v838, %v877
  %v899 = vadd.f32 %v839, %v877
  %v900 = vadd.f32 %v840, %v877
  %v901 = vadd.f32 %v841, %v877
  %v902 = vadd.f32 %v842, %v877
  %v903 = vadd.f32 %v843, %v877
  %v904 = vadd.f32 %v844, %v877
  %v905 = vadd.f32 %v845, %v877
  %v906 = vadd.f32 %v846, %v877
  %v907 = vadd.f32 %v847, %v877
  %v908 = vadd.f32 %v848, %v877
  %v909 = vadd.f32 %v849, %v877
  %v910 = vadd.f32 %v850, %v877
  %v911 = vadd.f32 %v851, %v877
  %v912 = vadd.f32 %v852, %v877
  %v913 = vadd.f32 %v853, %v877
  %v914 = vadd.f32 %v854, %v877
  %v915 = vadd.f32 %v855, %v877
  %v916 = vadd.f32 %v856, %v877
  %v917 = vadd.f32 %v857, %v877
  %v918 = vadd.f32 %v858, %v877
  %v919 = vadd.f32 %v859, %v877
  %v920 = vadd.f32 %v860, %v877
  %v921 = vadd.f32 %v861, %v877
  %v922 = vadd.f32 %v862, %v877
  %v923 = vadd.f32 %v863, %v877
  %v924 = vadd.f32 %v864, %v877
  %v925 = vadd.f32 %v865, %v877
  %v926 = vadd.f32 %v866, %v877
  %v927 = vadd.f32 %v867, %v877
  %v928 = vadd.f32 %v868, %v877
  %v929 = vadd.f32 %v869, %v877
  %v930 = vadd.f32 %v870, %v877
  %v931 = vadd.f32 %v871, %v877
  %v932 = vadd.f32 %v872, %v877
  %v933 = vadd.f32 %v873, %v877
  %v934 = vpack.c.bf16 %v879, %v878
  %v935 = vpack.c.bf16 %v881, %v880
  %v936 = vpack.c.bf16 %v883, %v882
  %v937 = vpack.c.bf16 %v885, %v884
  %v938 = vpack.c.bf16 %v887, %v886
  %v939 = vpack.c.bf16 %v889, %v888
  %v940 = vpack.c.bf16 %v891, %v890
  %v941 = vpack.c.bf16 %v893, %v892
  %v942 = vpack.c.bf16 %v895, %v894
  %v943 = vpack.c.bf16 %v897, %v896
  %v944 = vpack.c.bf16 %v899, %v898
  %v945 = vpack.c.bf16 %v901, %v900
  %v946 = vpack.c.bf16 %v903, %v902
  %v947 = vpack.c.bf16 %v905, %v904
  %v948 = vpack.c.bf16 %v907, %v906
  %v949 = vpack.c.bf16 %v909, %v908
  %v950 = vpack.c.bf16 %v911, %v910
  %v951 = vpack.c.bf16 %v913, %v912
  %v952 = vpack.c.bf16 %v915, %v914
  %v953 = vpack.c.bf16 %v917, %v916
  %v954 = vpack.c.bf16 %v919, %v918
  %v955 = vpack.c.bf16 %v921, %v920
  %v956 = vpack.c.bf16 %v923, %v922
  %v957 = vpack.c.bf16 %v925, %v924
  %v958 = vpack.c.bf16 %v927, %v926
  %v959 = vpack.c.bf16 %v929, %v928
  %v960 = vpack.c.bf16 %v931, %v930
  %v961 = vpack.c.bf16 %v933, %v932
  %v962 = vld [vmem:[%s1] sm:$0xf]
  %v963 = vld [vmem:[%s1 + $0x4] sm:$0xf]
  %v964 = vld [vmem:[%s1 + $0x8] sm:$0xf]
  %v965 = vld [vmem:[%s1 + $0xc] sm:$0xf]
  %v970 = vunpack.c.l.b16 %v962
  %v971 = vunpack.c.l.b16 %v963
  %v972 = vunpack.c.l.b16 %v964
  %v973 = vunpack.c.l.b16 %v965
  %v974 = vpack.c.b16 %v971, %v970
  %v975 = vpack.c.b16 %v973, %v972
  %v979 = vsel %vm84, %v934, 0
  %v982 = vsel %vm84, %v935, 0
  %v985 = vsel %vm84, %v936, 0
  %v988 = vsel %vm84, %v937, 0
  %v991 = vsel %vm84, %v938, 0
  %v994 = vsel %vm84, %v939, 0
  %v997 = vsel %vm84, %v940, 0
  %v1000 = vsel %vm84, %v941, 0
  %v1003 = vsel %vm84, %v942, 0
  %v1006 = vsel %vm84, %v943, 0
  %v1009 = vsel %vm84, %v944, 0
  %v1012 = vsel %vm84, %v945, 0
  %v1015 = vsel %vm84, %v946, 0
  %v1018 = vsel %vm84, %v947, 0
  %v1021 = vsel %vm84, %v948, 0
  %v1024 = vsel %vm84, %v949, 0
  %v1027 = vsel %vm84, %v950, 0
  %v1030 = vsel %vm84, %v951, 0
  %v1033 = vsel %vm84, %v952, 0
  %v1036 = vsel %vm84, %v953, 0
  %v1039 = vsel %vm84, %v954, 0
  %v1042 = vsel %vm84, %v955, 0
  %v1045 = vsel %vm84, %v956, 0
  %v1048 = vsel %vm84, %v957, 0
  %v1051 = vsel %vm84, %v958, 0
  %v1054 = vsel %vm84, %v959, 0
  %v1057 = vsel %vm84, %v960, 0
  %v1060 = vsel %vm84, %v961, 0
  %1062 = vmatprep.subr.bf16.mxu0 0
  %1063 = vmatpush1.bf16.msra.mxu0 %v974
  %1064 = vmatprep.subr.bf16.mxu0 0
  %1065 = vmatpush1.bf16.msra.mxu0 %v975
  %1066 = vmatprep.subr.bf16.mxu0 0
  %1067 = vmatpush1.bf16.msra.mxu0 0
  %1068 = vmatprep.subr.bf16.mxu0 0
  %1069 = vmatpush1.bf16.msra.mxu0 0
  %1070 = vmatprep.subr.bf16.mxu0 0
  %1071 = vmatpush1.bf16.msra.mxu0 0
  %1072 = vmatprep.subr.bf16.mxu0 0
  %1073 = vmatpush1.bf16.msra.mxu0 0
  %1074 = vmatprep.subr.bf16.mxu0 0
  %1075 = vmatpush1.bf16.msra.mxu0 0
  %1076 = vmatprep.subr.bf16.mxu0 0
  %1077 = vmatpush1.bf16.msra.mxu0 0
  %1078 = vmatprep.subr.bf16.mxu0 0
  %1079 = vmatpush1.bf16.msra.mxu0 0
  %1080 = vmatprep.subr.bf16.mxu0 0
  %1081 = vmatpush1.bf16.msra.mxu0 0
  %1082 = vmatprep.subr.bf16.mxu0 0
  %1083 = vmatpush1.bf16.msra.mxu0 0
  %1084 = vmatprep.subr.bf16.mxu0 0
  %1085 = vmatpush1.bf16.msra.mxu0 0
  %1086 = vmatprep.subr.bf16.mxu0 0
  %1087 = vmatpush1.bf16.msra.mxu0 0
  %1088 = vmatprep.subr.bf16.mxu0 0
  %1089 = vmatpush1.bf16.msra.mxu0 0
  %1090 = vmatprep.subr.bf16.mxu0 0
  %1091 = vmatpush1.bf16.msra.mxu0 0
  %1092 = vmatprep.subr.bf16.mxu0 0
  %1093 = vmatpush1.bf16.msra.mxu0 0
  %1094 = vmatprep.mubr.bf16.mxu0 0
  %1095 = vmatmul.mubr.bf16.gmra.mrb[0].mxu0 %v979
  %v1096 = vpop.f32.mrb[0].mxu0
  %v1097 = vadd.f32 0.0, %v1096
  %v1098 = vpop.f32.mrb[0].mxu0
  %v1099 = vpop.f32.mrb[0].mxu0
  %v1100 = vadd.f32 0.0, %v1099
  %v1101 = vpop.f32.mrb[0].mxu0
  %1102 = vmatprep.mubr.bf16.mxu0 0
  %1103 = vmatmul.mubr.bf16.gmra.mrb[0].mxu0 %v982
  %v1104 = vpop.f32.mrb[0].mxu0
  %v1105 = vadd.f32 0.0, %v1104
  %v1106 = vpop.f32.mrb[0].mxu0
  %v1107 = vpop.f32.mrb[0].mxu0
  %v1108 = vadd.f32 0.0, %v1107
  %v1109 = vpop.f32.mrb[0].mxu0
  %1110 = vmatprep.mubr.bf16.mxu0 0
  %1111 = vmatmul.mubr.bf16.gmra.mrb[0].mxu0 %v985
  %v1112 = vpop.f32.mrb[0].mxu0
  %v1113 = vadd.f32 0.0, %v1112
  %v1114 = vpop.f32.mrb[0].mxu0
  %v1115 = vpop.f32.mrb[0].mxu0
  %v1116 = vadd.f32 0.0, %v1115
  %v1117 = vpop.f32.mrb[0].mxu0
  %1118 = vmatprep.mubr.bf16.mxu0 0
  %1119 = vmatmul.mubr.bf16.gmra.mrb[0].mxu0 %v988
  %v1120 = vpop.f32.mrb[0].mxu0
  %v1121 = vadd.f32 0.0, %v1120
  %v1122 = vpop.f32.mrb[0].mxu0
  %v1123 = vpop.f32.mrb[0].mxu0
  %v1124 = vadd.f32 0.0, %v1123
  %v1125 = vpop.f32.mrb[0].mxu0
  %1126 = vmatprep.mubr.bf16.mxu0 0
  %1127 = vmatmul.mubr.bf16.gmra.mrb[0].mxu0 %v991
  %v1128 = vpop.f32.mrb[0].mxu0
  %v1129 = vadd.f32 0.0, %v1128
  %v1130 = vpop.f32.mrb[0].mxu0
  %v1131 = vpop.f32.mrb[0].mxu0
  %v1132 = vadd.f32 0.0, %v1131
  %v1133 = vpop.f32.mrb[0].mxu0
  %1134 = vmatprep.mubr.bf16.mxu0 0
  %1135 = vmatmul.mubr.bf16.gmra.mrb[0].mxu0 %v994
  %v1136 = vpop.f32.mrb[0].mxu0
  %v1137 = vadd.f32 0.0, %v1136
  %v1138 = vpop.f32.mrb[0].mxu0
  %v1139 = vpop.f32.mrb[0].mxu0
  %v1140 = vadd.f32 0.0, %v1139
  %v1141 = vpop.f32.mrb[0].mxu0
  %1142 = vmatprep.mubr.bf16.mxu0 0
  %1143 = vmatmul.mubr.bf16.gmra.mrb[0].mxu0 %v997
  %v1144 = vpop.f32.mrb[0].mxu0
  %v1145 = vadd.f32 0.0, %v1144
  %v1146 = vpop.f32.mrb[0].mxu0
  %v1147 = vpop.f32.mrb[0].mxu0
  %v1148 = vadd.f32 0.0, %v1147
  %v1149 = vpop.f32.mrb[0].mxu0
  %1150 = vmatprep.mubr.bf16.mxu0 0
  %1151 = vmatmul.mubr.bf16.gmra.mrb[0].mxu0 %v1000
  %v1152 = vpop.f32.mrb[0].mxu0
  %v1153 = vadd.f32 0.0, %v1152
  %v1154 = vpop.f32.mrb[0].mxu0
  %v1155 = vpop.f32.mrb[0].mxu0
  %v1156 = vadd.f32 0.0, %v1155
  %v1157 = vpop.f32.mrb[0].mxu0
  %1158 = vmatprep.mubr.bf16.mxu0 0
  %1159 = vmatmul.mubr.bf16.gmra.mrb[0].mxu0 %v1003
  %v1160 = vpop.f32.mrb[0].mxu0
  %v1161 = vadd.f32 0.0, %v1160
  %v1162 = vpop.f32.mrb[0].mxu0
  %v1163 = vpop.f32.mrb[0].mxu0
  %v1164 = vadd.f32 0.0, %v1163
  %v1165 = vpop.f32.mrb[0].mxu0
  %1166 = vmatprep.mubr.bf16.mxu0 0
  %1167 = vmatmul.mubr.bf16.gmra.mrb[0].mxu0 %v1006
  %v1168 = vpop.f32.mrb[0].mxu0
  %v1169 = vadd.f32 0.0, %v1168
  %v1170 = vpop.f32.mrb[0].mxu0
  %v1171 = vpop.f32.mrb[0].mxu0
  %v1172 = vadd.f32 0.0, %v1171
  %v1173 = vpop.f32.mrb[0].mxu0
  %1174 = vmatprep.mubr.bf16.mxu0 0
  %1175 = vmatmul.mubr.bf16.gmra.mrb[0].mxu0 %v1009
  %v1176 = vpop.f32.mrb[0].mxu0
  %v1177 = vadd.f32 0.0, %v1176
  %v1178 = vpop.f32.mrb[0].mxu0
  %v1179 = vpop.f32.mrb[0].mxu0
  %v1180 = vadd.f32 0.0, %v1179
  %v1181 = vpop.f32.mrb[0].mxu0
  %1182 = vmatprep.mubr.bf16.mxu0 0
  %1183 = vmatmul.mubr.bf16.gmra.mrb[0].mxu0 %v1012
  %v1184 = vpop.f32.mrb[0].mxu0
  %v1185 = vadd.f32 0.0, %v1184
  %v1186 = vpop.f32.mrb[0].mxu0
  %v1187 = vpop.f32.mrb[0].mxu0
  %v1188 = vadd.f32 0.0, %v1187
  %v1189 = vpop.f32.mrb[0].mxu0
  %1190 = vmatprep.mubr.bf16.mxu0 0
  %1191 = vmatmul.mubr.bf16.gmra.mrb[0].mxu0 %v1015
  %v1192 = vpop.f32.mrb[0].mxu0
  %v1193 = vadd.f32 0.0, %v1192
  %v1194 = vpop.f32.mrb[0].mxu0
  %v1195 = vpop.f32.mrb[0].mxu0
  %v1196 = vadd.f32 0.0, %v1195
  %v1197 = vpop.f32.mrb[0].mxu0
  %1198 = vmatprep.mubr.bf16.mxu0 0
  %1199 = vmatmul.mubr.bf16.gmra.mrb[0].mxu0 %v1018
  %v1200 = vpop.f32.mrb[0].mxu0
  %v1201 = vadd.f32 0.0, %v1200
  %v1202 = vpop.f32.mrb[0].mxu0
  %v1203 = vpop.f32.mrb[0].mxu0
  %v1204 = vadd.f32 0.0, %v1203
  %v1205 = vpop.f32.mrb[0].mxu0
  %1206 = vmatprep.mubr.bf16.mxu0 0
  %1207 = vmatmul.mubr.bf16.gmra.mrb[0].mxu0 %v1021
  %v1208 = vpop.f32.mrb[0].mxu0
  %v1209 = vadd.f32 0.0, %v1208
  %v1210 = vpop.f32.mrb[0].mxu0
  %v1211 = vpop.f32.mrb[0].mxu0
  %v1212 = vadd.f32 0.0, %v1211
  %v1213 = vpop.f32.mrb[0].mxu0
  %1214 = vmatprep.mubr.bf16.mxu0 0
  %1215 = vmatmul.mubr.bf16.gmra.mrb[0].mxu0 %v1024
  %v1216 = vpop.f32.mrb[0].mxu0
  %v1217 = vadd.f32 0.0, %v1216
  %v1218 = vpop.f32.mrb[0].mxu0
  %v1219 = vpop.f32.mrb[0].mxu0
  %v1220 = vadd.f32 0.0, %v1219
  %v1221 = vpop.f32.mrb[0].mxu0
  %1222 = vmatprep.mubr.bf16.mxu0 0
  %1223 = vmatmul.mubr.bf16.gmra.mrb[0].mxu0 %v1027
  %v1224 = vpop.f32.mrb[0].mxu0
  %v1225 = vadd.f32 0.0, %v1224
  %v1226 = vpop.f32.mrb[0].mxu0
  %v1227 = vpop.f32.mrb[0].mxu0
  %v1228 = vadd.f32 0.0, %v1227
  %v1229 = vpop.f32.mrb[0].mxu0
  %1230 = vmatprep.mubr.bf16.mxu0 0
  %1231 = vmatmul.mubr.bf16.gmra.mrb[0].mxu0 %v1030
  %v1232 = vpop.f32.mrb[0].mxu0
  %v1233 = vadd.f32 0.0, %v1232
  %v1234 = vpop.f32.mrb[0].mxu0
  %v1235 = vpop.f32.mrb[0].mxu0
  %v1236 = vadd.f32 0.0, %v1235
  %v1237 = vpop.f32.mrb[0].mxu0
  %1238 = vmatprep.mubr.bf16.mxu0 0
  %1239 = vmatmul.mubr.bf16.gmra.mrb[0].mxu0 %v1033
  %v1240 = vpop.f32.mrb[0].mxu0
  %v1241 = vadd.f32 0.0, %v1240
  %v1242 = vpop.f32.mrb[0].mxu0
  %v1243 = vpop.f32.mrb[0].mxu0
  %v1244 = vadd.f32 0.0, %v1243
  %v1245 = vpop.f32.mrb[0].mxu0
  %1246 = vmatprep.mubr.bf16.mxu0 0
  %1247 = vmatmul.mubr.bf16.gmra.mrb[0].mxu0 %v1036
  %v1248 = vpop.f32.mrb[0].mxu0
  %v1249 = vadd.f32 0.0, %v1248
  %v1250 = vpop.f32.mrb[0].mxu0
  %v1251 = vpop.f32.mrb[0].mxu0
  %v1252 = vadd.f32 0.0, %v1251
  %v1253 = vpop.f32.mrb[0].mxu0
  %1254 = vmatprep.mubr.bf16.mxu0 0
  %1255 = vmatmul.mubr.bf16.gmra.mrb[0].mxu0 %v1039
  %v1256 = vpop.f32.mrb[0].mxu0
  %v1257 = vadd.f32 0.0, %v1256
  %v1258 = vpop.f32.mrb[0].mxu0
  %v1259 = vpop.f32.mrb[0].mxu0
  %v1260 = vadd.f32 0.0, %v1259
  %v1261 = vpop.f32.mrb[0].mxu0
  %1262 = vmatprep.mubr.bf16.mxu0 0
  %1263 = vmatmul.mubr.bf16.gmra.mrb[0].mxu0 %v1042
  %v1264 = vpop.f32.mrb[0].mxu0
  %v1265 = vadd.f32 0.0, %v1264
  %v1266 = vpop.f32.mrb[0].mxu0
  %v1267 = vpop.f32.mrb[0].mxu0
  %v1268 = vadd.f32 0.0, %v1267
  %v1269 = vpop.f32.mrb[0].mxu0
  %1270 = vmatprep.mubr.bf16.mxu0 0
  %1271 = vmatmul.mubr.bf16.gmra.mrb[0].mxu0 %v1045
  %v1272 = vpop.f32.mrb[0].mxu0
  %v1273 = vadd.f32 0.0, %v1272
  %v1274 = vpop.f32.mrb[0].mxu0
  %v1275 = vpop.f32.mrb[0].mxu0
  %v1276 = vadd.f32 0.0, %v1275
  %v1277 = vpop.f32.mrb[0].mxu0
  %1278 = vmatprep.mubr.bf16.mxu0 0
  %1279 = vmatmul.mubr.bf16.gmra.mrb[0].mxu0 %v1048
  %v1280 = vpop.f32.mrb[0].mxu0
  %v1281 = vadd.f32 0.0, %v1280
  %v1282 = vpop.f32.mrb[0].mxu0
  %v1283 = vpop.f32.mrb[0].mxu0
  %v1284 = vadd.f32 0.0, %v1283
  %v1285 = vpop.f32.mrb[0].mxu0
  %1286 = vmatprep.mubr.bf16.mxu0 0
  %1287 = vmatmul.mubr.bf16.gmra.mrb[0].mxu0 %v1051
  %v1288 = vpop.f32.mrb[0].mxu0
  %v1289 = vadd.f32 0.0, %v1288
  %v1290 = vpop.f32.mrb[0].mxu0
  %v1291 = vpop.f32.mrb[0].mxu0
  %v1292 = vadd.f32 0.0, %v1291
  %v1293 = vpop.f32.mrb[0].mxu0
  %1294 = vmatprep.mubr.bf16.mxu0 0
  %1295 = vmatmul.mubr.bf16.gmra.mrb[0].mxu0 %v1054
  %v1296 = vpop.f32.mrb[0].mxu0
  %v1297 = vadd.f32 0.0, %v1296
  %v1298 = vpop.f32.mrb[0].mxu0
  %v1299 = vpop.f32.mrb[0].mxu0
  %v1300 = vadd.f32 0.0, %v1299
  %v1301 = vpop.f32.mrb[0].mxu0
  %1302 = vmatprep.mubr.bf16.mxu0 0
  %1303 = vmatmul.mubr.bf16.gmra.mrb[0].mxu0 %v1057
  %v1304 = vpop.f32.mrb[0].mxu0
  %v1305 = vadd.f32 0.0, %v1304
  %v1306 = vpop.f32.mrb[0].mxu0
  %v1307 = vpop.f32.mrb[0].mxu0
  %v1308 = vadd.f32 0.0, %v1307
  %v1309 = vpop.f32.mrb[0].mxu0
  %1310 = vmatprep.mubr.bf16.mxu0 0
  %1311 = vmatmul.mubr.bf16.gmra.mrb[0].mxu0 %v1060
  %v1312 = vpop.f32.mrb[0].mxu0
  %v1313 = vadd.f32 0.0, %v1312
  %v1314 = vpop.f32.mrb[0].mxu0
  %v1315 = vpop.f32.mrb[0].mxu0
  %v1316 = vadd.f32 0.0, %v1315
  %v1317 = vpop.f32.mrb[0].mxu0
  %1318 = vdwg.mxu0
  %v1319 = vpack.c.bf16 %v1100, %v1097
  %v1320 = vpack.c.bf16 %v1108, %v1105
  %v1321 = vpack.c.bf16 %v1116, %v1113
  %v1322 = vpack.c.bf16 %v1124, %v1121
  %v1323 = vpack.c.bf16 %v1132, %v1129
  %v1324 = vpack.c.bf16 %v1140, %v1137
  %v1325 = vpack.c.bf16 %v1148, %v1145
  %v1326 = vpack.c.bf16 %v1156, %v1153
  %v1327 = vpack.c.bf16 %v1164, %v1161
  %v1328 = vpack.c.bf16 %v1172, %v1169
  %v1329 = vpack.c.bf16 %v1180, %v1177
  %v1330 = vpack.c.bf16 %v1188, %v1185
  %v1331 = vpack.c.bf16 %v1196, %v1193
  %v1332 = vpack.c.bf16 %v1204, %v1201
  %v1333 = vpack.c.bf16 %v1212, %v1209
  %v1334 = vpack.c.bf16 %v1220, %v1217
  %v1335 = vpack.c.bf16 %v1228, %v1225
  %v1336 = vpack.c.bf16 %v1236, %v1233
  %v1337 = vpack.c.bf16 %v1244, %v1241
  %v1338 = vpack.c.bf16 %v1252, %v1249
  %v1339 = vpack.c.bf16 %v1260, %v1257
  %v1340 = vpack.c.bf16 %v1268, %v1265
  %v1341 = vpack.c.bf16 %v1276, %v1273
  %v1342 = vpack.c.bf16 %v1284, %v1281
  %v1343 = vpack.c.bf16 %v1292, %v1289
  %v1344 = vpack.c.bf16 %v1300, %v1297
  %v1345 = vpack.c.bf16 %v1308, %v1305
  %v1346 = vpack.c.bf16 %v1316, %v1313
  %v1375 = vunpack.c.l.b16 %v1319
  %v1376 = vunpack.c.h.b16 %v1319
  %v1377 = vunpack.c.l.b16 %v1320
  %v1378 = vunpack.c.h.b16 %v1320
  %v1379 = vunpack.c.l.b16 %v1321
  %v1380 = vunpack.c.h.b16 %v1321
  %v1381 = vunpack.c.l.b16 %v1322
  %v1382 = vunpack.c.h.b16 %v1322
  %v1383 = vunpack.c.l.b16 %v1323
  %v1384 = vunpack.c.h.b16 %v1323
  %v1385 = vunpack.c.l.b16 %v1324
  %v1386 = vunpack.c.h.b16 %v1324
  %v1387 = vunpack.c.l.b16 %v1325
  %v1388 = vunpack.c.h.b16 %v1325
  %v1389 = vunpack.c.l.b16 %v1326
  %v1390 = vunpack.c.h.b16 %v1326
  %v1391 = vunpack.c.l.b16 %v1327
  %v1392 = vunpack.c.h.b16 %v1327
  %v1393 = vunpack.c.l.b16 %v1328
  %v1394 = vunpack.c.h.b16 %v1328
  %v1395 = vunpack.c.l.b16 %v1329
  %v1396 = vunpack.c.h.b16 %v1329
  %v1397 = vunpack.c.l.b16 %v1330
  %v1398 = vunpack.c.h.b16 %v1330
  %v1399 = vunpack.c.l.b16 %v1331
  %v1400 = vunpack.c.h.b16 %v1331
  %v1401 = vunpack.c.l.b16 %v1332
  %v1402 = vunpack.c.h.b16 %v1332
  %v1403 = vunpack.c.l.b16 %v1333
  %v1404 = vunpack.c.h.b16 %v1333
  %v1405 = vunpack.c.l.b16 %v1334
  %v1406 = vunpack.c.h.b16 %v1334
  %v1407 = vunpack.c.l.b16 %v1335
  %v1408 = vunpack.c.h.b16 %v1335
  %v1409 = vunpack.c.l.b16 %v1336
  %v1410 = vunpack.c.h.b16 %v1336
  %v1411 = vunpack.c.l.b16 %v1337
  %v1412 = vunpack.c.h.b16 %v1337
  %v1413 = vunpack.c.l.b16 %v1338
  %v1414 = vunpack.c.h.b16 %v1338
  %v1415 = vunpack.c.l.b16 %v1339
  %v1416 = vunpack.c.h.b16 %v1339
  %v1417 = vunpack.c.l.b16 %v1340
  %v1418 = vunpack.c.h.b16 %v1340
  %v1419 = vunpack.c.l.b16 %v1341
  %v1420 = vunpack.c.h.b16 %v1341
  %v1421 = vunpack.c.l.b16 %v1342
  %v1422 = vunpack.c.h.b16 %v1342
  %v1423 = vunpack.c.l.b16 %v1343
  %v1424 = vunpack.c.h.b16 %v1343
  %v1425 = vunpack.c.l.b16 %v1344
  %v1426 = vunpack.c.h.b16 %v1344
  %v1427 = vunpack.c.l.b16 %v1345
  %v1428 = vunpack.c.h.b16 %v1345
  %v1429 = vunpack.c.l.b16 %v1346
  %v1430 = vunpack.c.h.b16 %v1346
  %v1431 = vpack.c.b16 %v1375, %v1375
  %v1432 = vpack.c.b16 %v1376, %v1376
  %v1433 = vpack.c.b16 %v1377, %v1377
  %v1434 = vpack.c.b16 %v1378, %v1378
  %v1435 = vpack.c.b16 %v1379, %v1379
  %v1436 = vpack.c.b16 %v1380, %v1380
  %v1437 = vpack.c.b16 %v1381, %v1381
  %v1438 = vpack.c.b16 %v1382, %v1382
  %v1439 = vpack.c.b16 %v1383, %v1383
  %v1440 = vpack.c.b16 %v1384, %v1384
  %v1441 = vpack.c.b16 %v1385, %v1385
  %v1442 = vpack.c.b16 %v1386, %v1386
  %v1443 = vpack.c.b16 %v1387, %v1387
  %v1444 = vpack.c.b16 %v1388, %v1388
  %v1445 = vpack.c.b16 %v1389, %v1389
  %v1446 = vpack.c.b16 %v1390, %v1390
  %v1447 = vpack.c.b16 %v1391, %v1391
  %v1448 = vpack.c.b16 %v1392, %v1392
  %v1449 = vpack.c.b16 %v1393, %v1393
  %v1450 = vpack.c.b16 %v1394, %v1394
  %v1451 = vpack.c.b16 %v1395, %v1395
  %v1452 = vpack.c.b16 %v1396, %v1396
  %v1453 = vpack.c.b16 %v1397, %v1397
  %v1454 = vpack.c.b16 %v1398, %v1398
  %v1455 = vpack.c.b16 %v1399, %v1399
  %v1456 = vpack.c.b16 %v1400, %v1400
  %v1457 = vpack.c.b16 %v1401, %v1401
  %v1458 = vpack.c.b16 %v1402, %v1402
  %v1459 = vpack.c.b16 %v1403, %v1403
  %v1460 = vpack.c.b16 %v1404, %v1404
  %v1461 = vpack.c.b16 %v1405, %v1405
  %v1462 = vpack.c.b16 %v1406, %v1406
  %v1463 = vpack.c.b16 %v1407, %v1407
  %v1464 = vpack.c.b16 %v1408, %v1408
  %v1465 = vpack.c.b16 %v1409, %v1409
  %v1466 = vpack.c.b16 %v1410, %v1410
  %v1467 = vpack.c.b16 %v1411, %v1411
  %v1468 = vpack.c.b16 %v1412, %v1412
  %v1469 = vpack.c.b16 %v1413, %v1413
  %v1470 = vpack.c.b16 %v1414, %v1414
  %v1471 = vpack.c.b16 %v1415, %v1415
  %v1472 = vpack.c.b16 %v1416, %v1416
  %v1473 = vpack.c.b16 %v1417, %v1417
  %v1474 = vpack.c.b16 %v1418, %v1418
  %v1475 = vpack.c.b16 %v1419, %v1419
  %v1476 = vpack.c.b16 %v1420, %v1420
  %v1477 = vpack.c.b16 %v1421, %v1421
  %v1478 = vpack.c.b16 %v1422, %v1422
  %v1479 = vpack.c.b16 %v1423, %v1423
  %v1480 = vpack.c.b16 %v1424, %v1424
  %v1481 = vpack.c.b16 %v1425, %v1425
  %v1482 = vpack.c.b16 %v1426, %v1426
  %v1483 = vpack.c.b16 %v1427, %v1427
  %v1484 = vpack.c.b16 %v1428, %v1428
  %v1485 = vpack.c.b16 %v1429, %v1429
  %v1486 = vpack.c.b16 %v1430, %v1430
  %1487 = vrot.lane.b32.xlu0 %v1431, 120
  %v1488 = vpop.permute.xlu0 %1487
  %1489 = vrot.lane.b32.xlu0 %v1432, 120
  %v1490 = vpop.permute.xlu0 %1489
  %1491 = vrot.lane.b32.xlu0 %v1433, 120
  %v1492 = vpop.permute.xlu0 %1491
  %1493 = vrot.lane.b32.xlu0 %v1434, 120
  %v1494 = vpop.permute.xlu0 %1493
  %1495 = vrot.lane.b32.xlu0 %v1435, 120
  %v1496 = vpop.permute.xlu0 %1495
  %1497 = vrot.lane.b32.xlu0 %v1436, 120
  %v1498 = vpop.permute.xlu0 %1497
  %1499 = vrot.lane.b32.xlu0 %v1437, 120
  %v1500 = vpop.permute.xlu0 %1499
  %1501 = vrot.lane.b32.xlu0 %v1438, 120
  %v1502 = vpop.permute.xlu0 %1501
  %1503 = vrot.lane.b32.xlu0 %v1439, 120
  %v1504 = vpop.permute.xlu0 %1503
  %1505 = vrot.lane.b32.xlu0 %v1440, 120
  %v1506 = vpop.permute.xlu0 %1505
  %1507 = vrot.lane.b32.xlu0 %v1441, 120
  %v1508 = vpop.permute.xlu0 %1507
  %1509 = vrot.lane.b32.xlu0 %v1442, 120
  %v1510 = vpop.permute.xlu0 %1509
  %1511 = vrot.lane.b32.xlu0 %v1443, 120
  %v1512 = vpop.permute.xlu0 %1511
  %1513 = vrot.lane.b32.xlu0 %v1444, 120
  %v1514 = vpop.permute.xlu0 %1513
  %1515 = vrot.lane.b32.xlu0 %v1445, 120
  %v1516 = vpop.permute.xlu0 %1515
  %1517 = vrot.lane.b32.xlu0 %v1446, 120
  %v1518 = vpop.permute.xlu0 %1517
  %1519 = vrot.lane.b32.xlu0 %v1447, 120
  %v1520 = vpop.permute.xlu0 %1519
  %1521 = vrot.lane.b32.xlu0 %v1448, 120
  %v1522 = vpop.permute.xlu0 %1521
  %1523 = vrot.lane.b32.xlu0 %v1449, 120
  %v1524 = vpop.permute.xlu0 %1523
  %1525 = vrot.lane.b32.xlu0 %v1450, 120
  %v1526 = vpop.permute.xlu0 %1525
  %1527 = vrot.lane.b32.xlu0 %v1451, 120
  %v1528 = vpop.permute.xlu0 %1527
  %1529 = vrot.lane.b32.xlu0 %v1452, 120
  %v1530 = vpop.permute.xlu0 %1529
  %1531 = vrot.lane.b32.xlu0 %v1453, 120
  %v1532 = vpop.permute.xlu0 %1531
  %1533 = vrot.lane.b32.xlu0 %v1454, 120
  %v1534 = vpop.permute.xlu0 %1533
  %1535 = vrot.lane.b32.xlu0 %v1455, 120
  %v1536 = vpop.permute.xlu0 %1535
  %1537 = vrot.lane.b32.xlu0 %v1456, 120
  %v1538 = vpop.permute.xlu0 %1537
  %1539 = vrot.lane.b32.xlu0 %v1457, 120
  %v1540 = vpop.permute.xlu0 %1539
  %1541 = vrot.lane.b32.xlu0 %v1458, 120
  %v1542 = vpop.permute.xlu0 %1541
  %1543 = vrot.lane.b32.xlu0 %v1459, 120
  %v1544 = vpop.permute.xlu0 %1543
  %1545 = vrot.lane.b32.xlu0 %v1460, 120
  %v1546 = vpop.permute.xlu0 %1545
  %1547 = vrot.lane.b32.xlu0 %v1461, 120
  %v1548 = vpop.permute.xlu0 %1547
  %1549 = vrot.lane.b32.xlu0 %v1462, 120
  %v1550 = vpop.permute.xlu0 %1549
  %1551 = vrot.lane.b32.xlu0 %v1463, 120
  %v1552 = vpop.permute.xlu0 %1551
  %1553 = vrot.lane.b32.xlu0 %v1464, 120
  %v1554 = vpop.permute.xlu0 %1553
  %1555 = vrot.lane.b32.xlu0 %v1465, 120
  %v1556 = vpop.permute.xlu0 %1555
  %1557 = vrot.lane.b32.xlu0 %v1466, 120
  %v1558 = vpop.permute.xlu0 %1557
  %1559 = vrot.lane.b32.xlu0 %v1467, 120
  %v1560 = vpop.permute.xlu0 %1559
  %1561 = vrot.lane.b32.xlu0 %v1468, 120
  %v1562 = vpop.permute.xlu0 %1561
  %1563 = vrot.lane.b32.xlu0 %v1469, 120
  %v1564 = vpop.permute.xlu0 %1563
  %1565 = vrot.lane.b32.xlu0 %v1470, 120
  %v1566 = vpop.permute.xlu0 %1565
  %1567 = vrot.lane.b32.xlu0 %v1471, 120
  %v1568 = vpop.permute.xlu0 %1567
  %1569 = vrot.lane.b32.xlu0 %v1472, 120
  %v1570 = vpop.permute.xlu0 %1569
  %1571 = vrot.lane.b32.xlu0 %v1473, 120
  %v1572 = vpop.permute.xlu0 %1571
  %1573 = vrot.lane.b32.xlu0 %v1474, 120
  %v1574 = vpop.permute.xlu0 %1573
  %1575 = vrot.lane.b32.xlu0 %v1475, 120
  %v1576 = vpop.permute.xlu0 %1575
  %1577 = vrot.lane.b32.xlu0 %v1476, 120
  %v1578 = vpop.permute.xlu0 %1577
  %1579 = vrot.lane.b32.xlu0 %v1477, 120
  %v1580 = vpop.permute.xlu0 %1579
  %1581 = vrot.lane.b32.xlu0 %v1478, 120
  %v1582 = vpop.permute.xlu0 %1581
  %1583 = vrot.lane.b32.xlu0 %v1479, 120
  %v1584 = vpop.permute.xlu0 %1583
  %1585 = vrot.lane.b32.xlu0 %v1480, 120
  %v1586 = vpop.permute.xlu0 %1585
  %1587 = vrot.lane.b32.xlu0 %v1481, 120
  %v1588 = vpop.permute.xlu0 %1587
  %1589 = vrot.lane.b32.xlu0 %v1482, 120
  %v1590 = vpop.permute.xlu0 %1589
  %1591 = vrot.lane.b32.xlu0 %v1483, 120
  %v1592 = vpop.permute.xlu0 %1591
  %1593 = vrot.lane.b32.xlu0 %v1484, 120
  %v1594 = vpop.permute.xlu0 %1593
  %1595 = vrot.lane.b32.xlu0 %v1485, 120
  %v1596 = vpop.permute.xlu0 %1595
  %1597 = vrot.lane.b32.xlu0 %v1486, 120
  %v1598 = vpop.permute.xlu0 %1597
  %v1599 = vpack.c.b16 %v1376, %v1375
  %v1600 = vpack.c.b16 %v1378, %v1377
  %v1601 = vpack.c.b16 %v1380, %v1379
  %1602 = vrot.lane.b32.xlu0 %v1599, 112
  %v1603 = vpop.permute.xlu0 %1602
  %1604 = vrot.lane.b32.xlu0 %v1600, 112
  %v1605 = vpop.permute.xlu0 %1604
  %1606 = vrot.lane.b32.xlu0 %v1601, 112
  %v1607 = vpop.permute.xlu0 %1606
  %1608 = vrot.lane.b32.xlu0 %v1437, 112
  %v1609 = vpop.permute.xlu0 %1608
  %vm1610 = vcmask 64512
  %v1612 = vsel %vm1610, %v1599, 0
  %v1615 = vsel %vm1610, %v1600, 0
  %v1618 = vsel %vm1610, %v1601, 0
  %v1621 = vsel %vm1610, %v1437, 0
  %v1624 = vsel %vm1610, %v1603, 0
  %v1627 = vsel %vm1610, %v1605, 0
  %v1630 = vsel %vm1610, %v1607, 0
  %v1633 = vsel %vm1610, %v1609, 0
  %1635 = vmatprep.subr.bf16.mxu0 0
  %1636 = vmatpush1.bf16.xpose.msra.mxu0 %v1624
  %1637 = vmatprep.subr.bf16.mxu0 0
  %1638 = vmatpush1.bf16.xpose.msra.mxu0 %v1627
  %1639 = vmatprep.subr.bf16.mxu0 0
  %1640 = vmatpush1.bf16.xpose.msra.mxu0 %v1630
  %1641 = vmatprep.subr.bf16.mxu0 0
  %1642 = vmatpush1.bf16.xpose.msra.mxu0 %v1633
  %1643 = vmatprep.subr.bf16.mxu0 0
  %1644 = vmatpush1.bf16.xpose.msra.mxu0 0
  %1645 = vmatprep.subr.bf16.mxu0 0
  %1646 = vmatpush1.bf16.xpose.msra.mxu0 0
  %1647 = vmatprep.subr.bf16.mxu0 0
  %1648 = vmatpush1.bf16.xpose.msra.mxu0 0
  %1649 = vmatprep.subr.bf16.mxu0 0
  %1650 = vmatpush1.bf16.xpose.msra.mxu0 0
  %1651 = vmatprep.subr.bf16.mxu0 0
  %1652 = vmatpush1.bf16.xpose.msra.mxu0 0
  %1653 = vmatprep.subr.bf16.mxu0 0
  %1654 = vmatpush1.bf16.xpose.msra.mxu0 0
  %1655 = vmatprep.subr.bf16.mxu0 0
  %1656 = vmatpush1.bf16.xpose.msra.mxu0 0
  %1657 = vmatprep.subr.bf16.mxu0 0
  %1658 = vmatpush1.bf16.xpose.msra.mxu0 0
  %1659 = vmatprep.subr.bf16.mxu0 0
  %1660 = vmatpush1.bf16.xpose.msra.mxu0 0
  %1661 = vmatprep.subr.bf16.mxu0 0
  %1662 = vmatpush1.bf16.xpose.msra.mxu0 0
  %1663 = vmatprep.subr.bf16.mxu0 0
  %1664 = vmatpush1.bf16.xpose.msra.mxu0 0
  %1665 = vmatprep.subr.bf16.mxu0 0
  %1666 = vmatpush1.bf16.xpose.msra.mxu0 0
  %1667 = vmatprep.mubr.bf16.mxu0 0
  %1668 = vmatmul.mubr.bf16.gmra.mrb[0].mxu0 %v1612
  %v1669 = vpop.f32.mrb[0].mxu0
  %v1670 = vadd.f32 0.0, %v1669
  %v1671 = vpop.f32.mrb[0].mxu0
  %v1672 = vpop.f32.mrb[0].mxu0
  %v1673 = vadd.f32 0.0, %v1672
  %v1674 = vpop.f32.mrb[0].mxu0
  %1675 = vmatprep.mubr.bf16.mxu0 0
  %1676 = vmatmul.mubr.bf16.gmra.mrb[0].mxu0 %v1615
  %v1677 = vpop.f32.mrb[0].mxu0
  %v1678 = vadd.f32 0.0, %v1677
  %v1679 = vpop.f32.mrb[0].mxu0
  %v1680 = vpop.f32.mrb[0].mxu0
  %v1681 = vadd.f32 0.0, %v1680
  %v1682 = vpop.f32.mrb[0].mxu0
  %1683 = vmatprep.mubr.bf16.mxu0 0
  %1684 = vmatmul.mubr.bf16.gmra.mrb[0].mxu0 %v1618
  %v1685 = vpop.f32.mrb[0].mxu0
  %v1686 = vadd.f32 0.0, %v1685
  %v1687 = vpop.f32.mrb[0].mxu0
  %v1688 = vpop.f32.mrb[0].mxu0
  %v1689 = vadd.f32 0.0, %v1688
  %v1690 = vpop.f32.mrb[0].mxu0
  %1691 = vmatprep.mubr.bf16.mxu0 0
  %1692 = vmatmul.mubr.bf16.gmra.mrb[0].mxu0 %v1621
  %v1693 = vpop.f32.mrb[0].mxu0
  %v1694 = vadd.f32 0.0, %v1693
  %v1695 = vpop.f32.mrb[0].mxu0
  %v1696 = vpop.f32.mrb[0].mxu0
  %v1697 = vpop.f32.mrb[0].mxu0
  %1698 = vdwg.mxu0
  %v1699 = vpack.c.b16 %v1383, %v1382
  %v1700 = vpack.c.b16 %v1385, %v1384
  %v1701 = vpack.c.b16 %v1387, %v1386
  %1702 = vrot.lane.b32.xlu0 %v1699, 112
  %v1703 = vpop.permute.xlu0 %1702
  %1704 = vrot.lane.b32.xlu0 %v1700, 112
  %v1705 = vpop.permute.xlu0 %1704
  %1706 = vrot.lane.b32.xlu0 %v1701, 112
  %v1707 = vpop.permute.xlu0 %1706
  %1708 = vrot.lane.b32.xlu0 %v1444, 112
  %v1709 = vpop.permute.xlu0 %1708
  %v1711 = vsel %vm1610, %v1699, 0
  %v1714 = vsel %vm1610, %v1700, 0
  %v1717 = vsel %vm1610, %v1701, 0
  %v1720 = vsel %vm1610, %v1444, 0
  %v1723 = vsel %vm1610, %v1703, 0
  %v1726 = vsel %vm1610, %v1705, 0
  %v1729 = vsel %vm1610, %v1707, 0
  %v1732 = vsel %vm1610, %v1709, 0
  %1734 = vmatprep.subr.bf16.mxu0 0
  %1735 = vmatpush1.bf16.xpose.msra.mxu0 %v1723
  %1736 = vmatprep.subr.bf16.mxu0 0
  %1737 = vmatpush1.bf16.xpose.msra.mxu0 %v1726
  %1738 = vmatprep.subr.bf16.mxu0 0
  %1739 = vmatpush1.bf16.xpose.msra.mxu0 %v1729
  %1740 = vmatprep.subr.bf16.mxu0 0
  %1741 = vmatpush1.bf16.xpose.msra.mxu0 %v1732
  %1742 = vmatprep.subr.bf16.mxu0 0
  %1743 = vmatpush1.bf16.xpose.msra.mxu0 0
  %1744 = vmatprep.subr.bf16.mxu0 0
  %1745 = vmatpush1.bf16.xpose.msra.mxu0 0
  %1746 = vmatprep.subr.bf16.mxu0 0
  %1747 = vmatpush1.bf16.xpose.msra.mxu0 0
  %1748 = vmatprep.subr.bf16.mxu0 0
  %1749 = vmatpush1.bf16.xpose.msra.mxu0 0
  %1750 = vmatprep.subr.bf16.mxu0 0
  %1751 = vmatpush1.bf16.xpose.msra.mxu0 0
  %1752 = vmatprep.subr.bf16.mxu0 0
  %1753 = vmatpush1.bf16.xpose.msra.mxu0 0
  %1754 = vmatprep.subr.bf16.mxu0 0
  %1755 = vmatpush1.bf16.xpose.msra.mxu0 0
  %1756 = vmatprep.subr.bf16.mxu0 0
  %1757 = vmatpush1.bf16.xpose.msra.mxu0 0
  %1758 = vmatprep.subr.bf16.mxu0 0
  %1759 = vmatpush1.bf16.xpose.msra.mxu0 0
  %1760 = vmatprep.subr.bf16.mxu0 0
  %1761 = vmatpush1.bf16.xpose.msra.mxu0 0
  %1762 = vmatprep.subr.bf16.mxu0 0
  %1763 = vmatpush1.bf16.xpose.msra.mxu0 0
  %1764 = vmatprep.subr.bf16.mxu0 0
  %1765 = vmatpush1.bf16.xpose.msra.mxu0 0
  %1766 = vmatprep.mubr.bf16.mxu0 0
  %1767 = vmatmul.mubr.bf16.gmra.mrb[0].mxu0 %v1711
  %v1768 = vpop.f32.mrb[0].mxu0
  %v1769 = vadd.f32 0.0, %v1768
  %v1770 = vpop.f32.mrb[0].mxu0
  %v1771 = vpop.f32.mrb[0].mxu0
  %v1772 = vadd.f32 0.0, %v1771
  %v1773 = vpop.f32.mrb[0].mxu0
  %1774 = vmatprep.mubr.bf16.mxu0 0
  %1775 = vmatmul.mubr.bf16.gmra.mrb[0].mxu0 %v1714
  %v1776 = vpop.f32.mrb[0].mxu0
  %v1777 = vadd.f32 0.0, %v1776
  %v1778 = vpop.f32.mrb[0].mxu0
  %v1779 = vpop.f32.mrb[0].mxu0
  %v1780 = vadd.f32 0.0, %v1779
  %v1781 = vpop.f32.mrb[0].mxu0
  %1782 = vmatprep.mubr.bf16.mxu0 0
  %1783 = vmatmul.mubr.bf16.gmra.mrb[0].mxu0 %v1717
  %v1784 = vpop.f32.mrb[0].mxu0
  %v1785 = vadd.f32 0.0, %v1784
  %v1786 = vpop.f32.mrb[0].mxu0
  %v1787 = vpop.f32.mrb[0].mxu0
  %v1788 = vadd.f32 0.0, %v1787
  %v1789 = vpop.f32.mrb[0].mxu0
  %1790 = vmatprep.mubr.bf16.mxu0 0
  %1791 = vmatmul.mubr.bf16.gmra.mrb[0].mxu0 %v1720
  %v1792 = vpop.f32.mrb[0].mxu0
  %v1793 = vadd.f32 0.0, %v1792
  %v1794 = vpop.f32.mrb[0].mxu0
  %v1795 = vpop.f32.mrb[0].mxu0
  %v1796 = vpop.f32.mrb[0].mxu0
  %1797 = vdwg.mxu0
  %v1798 = vpack.c.b16 %v1390, %v1389
  %v1799 = vpack.c.b16 %v1392, %v1391
  %v1800 = vpack.c.b16 %v1394, %v1393
  %1801 = vrot.lane.b32.xlu0 %v1798, 112
  %v1802 = vpop.permute.xlu0 %1801
  %1803 = vrot.lane.b32.xlu0 %v1799, 112
  %v1804 = vpop.permute.xlu0 %1803
  %1805 = vrot.lane.b32.xlu0 %v1800, 112
  %v1806 = vpop.permute.xlu0 %1805
  %1807 = vrot.lane.b32.xlu0 %v1451, 112
  %v1808 = vpop.permute.xlu0 %1807
  %v1810 = vsel %vm1610, %v1798, 0
  %v1813 = vsel %vm1610, %v1799, 0
  %v1816 = vsel %vm1610, %v1800, 0
  %v1819 = vsel %vm1610, %v1451, 0
  %v1822 = vsel %vm1610, %v1802, 0
  %v1825 = vsel %vm1610, %v1804, 0
  %v1828 = vsel %vm1610, %v1806, 0
  %v1831 = vsel %vm1610, %v1808, 0
  %1833 = vmatprep.subr.bf16.mxu0 0
  %1834 = vmatpush1.bf16.xpose.msra.mxu0 %v1822
  %1835 = vmatprep.subr.bf16.mxu0 0
  %1836 = vmatpush1.bf16.xpose.msra.mxu0 %v1825
  %1837 = vmatprep.subr.bf16.mxu0 0
  %1838 = vmatpush1.bf16.xpose.msra.mxu0 %v1828
  %1839 = vmatprep.subr.bf16.mxu0 0
  %1840 = vmatpush1.bf16.xpose.msra.mxu0 %v1831
  %1841 = vmatprep.subr.bf16.mxu0 0
  %1842 = vmatpush1.bf16.xpose.msra.mxu0 0
  %1843 = vmatprep.subr.bf16.mxu0 0
  %1844 = vmatpush1.bf16.xpose.msra.mxu0 0
  %1845 = vmatprep.subr.bf16.mxu0 0
  %1846 = vmatpush1.bf16.xpose.msra.mxu0 0
  %1847 = vmatprep.subr.bf16.mxu0 0
  %1848 = vmatpush1.bf16.xpose.msra.mxu0 0
  %1849 = vmatprep.subr.bf16.mxu0 0
  %1850 = vmatpush1.bf16.xpose.msra.mxu0 0
  %1851 = vmatprep.subr.bf16.mxu0 0
  %1852 = vmatpush1.bf16.xpose.msra.mxu0 0
  %1853 = vmatprep.subr.bf16.mxu0 0
  %1854 = vmatpush1.bf16.xpose.msra.mxu0 0
  %1855 = vmatprep.subr.bf16.mxu0 0
  %1856 = vmatpush1.bf16.xpose.msra.mxu0 0
  %1857 = vmatprep.subr.bf16.mxu0 0
  %1858 = vmatpush1.bf16.xpose.msra.mxu0 0
  %1859 = vmatprep.subr.bf16.mxu0 0
  %1860 = vmatpush1.bf16.xpose.msra.mxu0 0
  %1861 = vmatprep.subr.bf16.mxu0 0
  %1862 = vmatpush1.bf16.xpose.msra.mxu0 0
  %1863 = vmatprep.subr.bf16.mxu0 0
  %1864 = vmatpush1.bf16.xpose.msra.mxu0 0
  %1865 = vmatprep.mubr.bf16.mxu0 0
  %1866 = vmatmul.mubr.bf16.gmra.mrb[0].mxu0 %v1810
  %v1867 = vpop.f32.mrb[0].mxu0
  %v1868 = vadd.f32 0.0, %v1867
  %v1869 = vpop.f32.mrb[0].mxu0
  %v1870 = vpop.f32.mrb[0].mxu0
  %v1871 = vadd.f32 0.0, %v1870
  %v1872 = vpop.f32.mrb[0].mxu0
  %1873 = vmatprep.mubr.bf16.mxu0 0
  %1874 = vmatmul.mubr.bf16.gmra.mrb[0].mxu0 %v1813
  %v1875 = vpop.f32.mrb[0].mxu0
  %v1876 = vadd.f32 0.0, %v1875
  %v1877 = vpop.f32.mrb[0].mxu0
  %v1878 = vpop.f32.mrb[0].mxu0
  %v1879 = vadd.f32 0.0, %v1878
  %v1880 = vpop.f32.mrb[0].mxu0
  %1881 = vmatprep.mubr.bf16.mxu0 0
  %1882 = vmatmul.mubr.bf16.gmra.mrb[0].mxu0 %v1816
  %v1883 = vpop.f32.mrb[0].mxu0
  %v1884 = vadd.f32 0.0, %v1883
  %v1885 = vpop.f32.mrb[0].mxu0
  %v1886 = vpop.f32.mrb[0].mxu0
  %v1887 = vadd.f32 0.0, %v1886
  %v1888 = vpop.f32.mrb[0].mxu0
  %1889 = vmatprep.mubr.bf16.mxu0 0
  %1890 = vmatmul.mubr.bf16.gmra.mrb[0].mxu0 %v1819
  %v1891 = vpop.f32.mrb[0].mxu0
  %v1892 = vadd.f32 0.0, %v1891
  %v1893 = vpop.f32.mrb[0].mxu0
  %v1894 = vpop.f32.mrb[0].mxu0
  %v1895 = vpop.f32.mrb[0].mxu0
  %1896 = vdwg.mxu0
  %v1897 = vpack.c.b16 %v1397, %v1396
  %v1898 = vpack.c.b16 %v1399, %v1398
  %v1899 = vpack.c.b16 %v1401, %v1400
  %1900 = vrot.lane.b32.xlu0 %v1897, 112
  %v1901 = vpop.permute.xlu0 %1900
  %1902 = vrot.lane.b32.xlu0 %v1898, 112
  %v1903 = vpop.permute.xlu0 %1902
  %1904 = vrot.lane.b32.xlu0 %v1899, 112
  %v1905 = vpop.permute.xlu0 %1904
  %1906 = vrot.lane.b32.xlu0 %v1458, 112
  %v1907 = vpop.permute.xlu0 %1906
  %v1909 = vsel %vm1610, %v1897, 0
  %v1912 = vsel %vm1610, %v1898, 0
  %v1915 = vsel %vm1610, %v1899, 0
  %v1918 = vsel %vm1610, %v1458, 0
  %v1921 = vsel %vm1610, %v1901, 0
  %v1924 = vsel %vm1610, %v1903, 0
  %v1927 = vsel %vm1610, %v1905, 0
  %v1930 = vsel %vm1610, %v1907, 0
  %1932 = vmatprep.subr.bf16.mxu0 0
  %1933 = vmatpush1.bf16.xpose.msra.mxu0 %v1921
  %1934 = vmatprep.subr.bf16.mxu0 0
  %1935 = vmatpush1.bf16.xpose.msra.mxu0 %v1924
  %1936 = vmatprep.subr.bf16.mxu0 0
  %1937 = vmatpush1.bf16.xpose.msra.mxu0 %v1927
  %1938 = vmatprep.subr.bf16.mxu0 0
  %1939 = vmatpush1.bf16.xpose.msra.mxu0 %v1930
  %1940 = vmatprep.subr.bf16.mxu0 0
  %1941 = vmatpush1.bf16.xpose.msra.mxu0 0
  %1942 = vmatprep.subr.bf16.mxu0 0
  %1943 = vmatpush1.bf16.xpose.msra.mxu0 0
  %1944 = vmatprep.subr.bf16.mxu0 0
  %1945 = vmatpush1.bf16.xpose.msra.mxu0 0
  %1946 = vmatprep.subr.bf16.mxu0 0
  %1947 = vmatpush1.bf16.xpose.msra.mxu0 0
  %1948 = vmatprep.subr.bf16.mxu0 0
  %1949 = vmatpush1.bf16.xpose.msra.mxu0 0
  %1950 = vmatprep.subr.bf16.mxu0 0
  %1951 = vmatpush1.bf16.xpose.msra.mxu0 0
  %1952 = vmatprep.subr.bf16.mxu0 0
  %1953 = vmatpush1.bf16.xpose.msra.mxu0 0
  %1954 = vmatprep.subr.bf16.mxu0 0
  %1955 = vmatpush1.bf16.xpose.msra.mxu0 0
  %1956 = vmatprep.subr.bf16.mxu0 0
  %1957 = vmatpush1.bf16.xpose.msra.mxu0 0
  %1958 = vmatprep.subr.bf16.mxu0 0
  %1959 = vmatpush1.bf16.xpose.msra.mxu0 0
  %1960 = vmatprep.subr.bf16.mxu0 0
  %1961 = vmatpush1.bf16.xpose.msra.mxu0 0
  %1962 = vmatprep.subr.bf16.mxu0 0
  %1963 = vmatpush1.bf16.xpose.msra.mxu0 0
  %1964 = vmatprep.mubr.bf16.mxu0 0
  %1965 = vmatmul.mubr.bf16.gmra.mrb[0].mxu0 %v1909
  %v1966 = vpop.f32.mrb[0].mxu0
  %v1967 = vadd.f32 0.0, %v1966
  %v1968 = vpop.f32.mrb[0].mxu0
  %v1969 = vpop.f32.mrb[0].mxu0
  %v1970 = vadd.f32 0.0, %v1969
  %v1971 = vpop.f32.mrb[0].mxu0
  %1972 = vmatprep.mubr.bf16.mxu0 0
  %1973 = vmatmul.mubr.bf16.gmra.mrb[0].mxu0 %v1912
  %v1974 = vpop.f32.mrb[0].mxu0
  %v1975 = vadd.f32 0.0, %v1974
  %v1976 = vpop.f32.mrb[0].mxu0
  %v1977 = vpop.f32.mrb[0].mxu0
  %v1978 = vadd.f32 0.0, %v1977
  %v1979 = vpop.f32.mrb[0].mxu0
  %1980 = vmatprep.mubr.bf16.mxu0 0
  %1981 = vmatmul.mubr.bf16.gmra.mrb[0].mxu0 %v1915
  %v1982 = vpop.f32.mrb[0].mxu0
  %v1983 = vadd.f32 0.0, %v1982
  %v1984 = vpop.f32.mrb[0].mxu0
  %v1985 = vpop.f32.mrb[0].mxu0
  %v1986 = vadd.f32 0.0, %v1985
  %v1987 = vpop.f32.mrb[0].mxu0
  %1988 = vmatprep.mubr.bf16.mxu0 0
  %1989 = vmatmul.mubr.bf16.gmra.mrb[0].mxu0 %v1918
  %v1990 = vpop.f32.mrb[0].mxu0
  %v1991 = vadd.f32 0.0, %v1990
  %v1992 = vpop.f32.mrb[0].mxu0
  %v1993 = vpop.f32.mrb[0].mxu0
  %v1994 = vpop.f32.mrb[0].mxu0
  %1995 = vdwg.mxu0
  %v1996 = vpack.c.b16 %v1404, %v1403
  %v1997 = vpack.c.b16 %v1406, %v1405
  %v1998 = vpack.c.b16 %v1408, %v1407
  %1999 = vrot.lane.b32.xlu0 %v1996, 112
  %v2000 = vpop.permute.xlu0 %1999
  %2001 = vrot.lane.b32.xlu0 %v1997, 112
  %v2002 = vpop.permute.xlu0 %2001
  %2003 = vrot.lane.b32.xlu0 %v1998, 112
  %v2004 = vpop.permute.xlu0 %2003
  %2005 = vrot.lane.b32.xlu0 %v1465, 112
  %v2006 = vpop.permute.xlu0 %2005
  %v2008 = vsel %vm1610, %v1996, 0
  %v2011 = vsel %vm1610, %v1997, 0
  %v2014 = vsel %vm1610, %v1998, 0
  %v2017 = vsel %vm1610, %v1465, 0
  %v2020 = vsel %vm1610, %v2000, 0
  %v2023 = vsel %vm1610, %v2002, 0
  %v2026 = vsel %vm1610, %v2004, 0
  %v2029 = vsel %vm1610, %v2006, 0
  %2031 = vmatprep.subr.bf16.mxu0 0
  %2032 = vmatpush1.bf16.xpose.msra.mxu0 %v2020
  %2033 = vmatprep.subr.bf16.mxu0 0
  %2034 = vmatpush1.bf16.xpose.msra.mxu0 %v2023
  %2035 = vmatprep.subr.bf16.mxu0 0
  %2036 = vmatpush1.bf16.xpose.msra.mxu0 %v2026
  %2037 = vmatprep.subr.bf16.mxu0 0
  %2038 = vmatpush1.bf16.xpose.msra.mxu0 %v2029
  %2039 = vmatprep.subr.bf16.mxu0 0
  %2040 = vmatpush1.bf16.xpose.msra.mxu0 0
  %2041 = vmatprep.subr.bf16.mxu0 0
  %2042 = vmatpush1.bf16.xpose.msra.mxu0 0
  %2043 = vmatprep.subr.bf16.mxu0 0
  %2044 = vmatpush1.bf16.xpose.msra.mxu0 0
  %2045 = vmatprep.subr.bf16.mxu0 0
  %2046 = vmatpush1.bf16.xpose.msra.mxu0 0
  %2047 = vmatprep.subr.bf16.mxu0 0
  %2048 = vmatpush1.bf16.xpose.msra.mxu0 0
  %2049 = vmatprep.subr.bf16.mxu0 0
  %2050 = vmatpush1.bf16.xpose.msra.mxu0 0
  %2051 = vmatprep.subr.bf16.mxu0 0
  %2052 = vmatpush1.bf16.xpose.msra.mxu0 0
  %2053 = vmatprep.subr.bf16.mxu0 0
  %2054 = vmatpush1.bf16.xpose.msra.mxu0 0
  %2055 = vmatprep.subr.bf16.mxu0 0
  %2056 = vmatpush1.bf16.xpose.msra.mxu0 0
  %2057 = vmatprep.subr.bf16.mxu0 0
  %2058 = vmatpush1.bf16.xpose.msra.mxu0 0
  %2059 = vmatprep.subr.bf16.mxu0 0
  %2060 = vmatpush1.bf16.xpose.msra.mxu0 0
  %2061 = vmatprep.subr.bf16.mxu0 0
  %2062 = vmatpush1.bf16.xpose.msra.mxu0 0
  %2063 = vmatprep.mubr.bf16.mxu0 0
  %2064 = vmatmul.mubr.bf16.gmra.mrb[0].mxu0 %v2008
  %v2065 = vpop.f32.mrb[0].mxu0
  %v2066 = vadd.f32 0.0, %v2065
  %v2067 = vpop.f32.mrb[0].mxu0
  %v2068 = vpop.f32.mrb[0].mxu0
  %v2069 = vadd.f32 0.0, %v2068
  %v2070 = vpop.f32.mrb[0].mxu0
  %2071 = vmatprep.mubr.bf16.mxu0 0
  %2072 = vmatmul.mubr.bf16.gmra.mrb[0].mxu0 %v2011
  %v2073 = vpop.f32.mrb[0].mxu0
  %v2074 = vadd.f32 0.0, %v2073
  %v2075 = vpop.f32.mrb[0].mxu0
  %v2076 = vpop.f32.mrb[0].mxu0
  %v2077 = vadd.f32 0.0, %v2076
  %v2078 = vpop.f32.mrb[0].mxu0
  %2079 = vmatprep.mubr.bf16.mxu0 0
  %2080 = vmatmul.mubr.bf16.gmra.mrb[0].mxu0 %v2014
  %v2081 = vpop.f32.mrb[0].mxu0
  %v2082 = vadd.f32 0.0, %v2081
  %v2083 = vpop.f32.mrb[0].mxu0
  %v2084 = vpop.f32.mrb[0].mxu0
  %v2085 = vadd.f32 0.0, %v2084
  %v2086 = vpop.f32.mrb[0].mxu0
  %2087 = vmatprep.mubr.bf16.mxu0 0
  %2088 = vmatmul.mubr.bf16.gmra.mrb[0].mxu0 %v2017
  %v2089 = vpop.f32.mrb[0].mxu0
  %v2090 = vadd.f32 0.0, %v2089
  %v2091 = vpop.f32.mrb[0].mxu0
  %v2092 = vpop.f32.mrb[0].mxu0
  %v2093 = vpop.f32.mrb[0].mxu0
  %2094 = vdwg.mxu0
  %v2095 = vpack.c.b16 %v1411, %v1410
  %v2096 = vpack.c.b16 %v1413, %v1412
  %v2097 = vpack.c.b16 %v1415, %v1414
  %2098 = vrot.lane.b32.xlu0 %v2095, 112
  %v2099 = vpop.permute.xlu0 %2098
  %2100 = vrot.lane.b32.xlu0 %v2096, 112
  %v2101 = vpop.permute.xlu0 %2100
  %2102 = vrot.lane.b32.xlu0 %v2097, 112
  %v2103 = vpop.permute.xlu0 %2102
  %2104 = vrot.lane.b32.xlu0 %v1472, 112
  %v2105 = vpop.permute.xlu0 %2104
  %v2107 = vsel %vm1610, %v2095, 0
  %v2110 = vsel %vm1610, %v2096, 0
  %v2113 = vsel %vm1610, %v2097, 0
  %v2116 = vsel %vm1610, %v1472, 0
  %v2119 = vsel %vm1610, %v2099, 0
  %v2122 = vsel %vm1610, %v2101, 0
  %v2125 = vsel %vm1610, %v2103, 0
  %v2128 = vsel %vm1610, %v2105, 0
  %2130 = vmatprep.subr.bf16.mxu0 0
  %2131 = vmatpush1.bf16.xpose.msra.mxu0 %v2119
  %2132 = vmatprep.subr.bf16.mxu0 0
  %2133 = vmatpush1.bf16.xpose.msra.mxu0 %v2122
  %2134 = vmatprep.subr.bf16.mxu0 0
  %2135 = vmatpush1.bf16.xpose.msra.mxu0 %v2125
  %2136 = vmatprep.subr.bf16.mxu0 0
  %2137 = vmatpush1.bf16.xpose.msra.mxu0 %v2128
  %2138 = vmatprep.subr.bf16.mxu0 0
  %2139 = vmatpush1.bf16.xpose.msra.mxu0 0
  %2140 = vmatprep.subr.bf16.mxu0 0
  %2141 = vmatpush1.bf16.xpose.msra.mxu0 0
  %2142 = vmatprep.subr.bf16.mxu0 0
  %2143 = vmatpush1.bf16.xpose.msra.mxu0 0
  %2144 = vmatprep.subr.bf16.mxu0 0
  %2145 = vmatpush1.bf16.xpose.msra.mxu0 0
  %2146 = vmatprep.subr.bf16.mxu0 0
  %2147 = vmatpush1.bf16.xpose.msra.mxu0 0
  %2148 = vmatprep.subr.bf16.mxu0 0
  %2149 = vmatpush1.bf16.xpose.msra.mxu0 0
  %2150 = vmatprep.subr.bf16.mxu0 0
  %2151 = vmatpush1.bf16.xpose.msra.mxu0 0
  %2152 = vmatprep.subr.bf16.mxu0 0
  %2153 = vmatpush1.bf16.xpose.msra.mxu0 0
  %2154 = vmatprep.subr.bf16.mxu0 0
  %2155 = vmatpush1.bf16.xpose.msra.mxu0 0
  %2156 = vmatprep.subr.bf16.mxu0 0
  %2157 = vmatpush1.bf16.xpose.msra.mxu0 0
  %2158 = vmatprep.subr.bf16.mxu0 0
  %2159 = vmatpush1.bf16.xpose.msra.mxu0 0
  %2160 = vmatprep.subr.bf16.mxu0 0
  %2161 = vmatpush1.bf16.xpose.msra.mxu0 0
  %2162 = vmatprep.mubr.bf16.mxu0 0
  %2163 = vmatmul.mubr.bf16.gmra.mrb[0].mxu0 %v2107
  %v2164 = vpop.f32.mrb[0].mxu0
  %v2165 = vadd.f32 0.0, %v2164
  %v2166 = vpop.f32.mrb[0].mxu0
  %v2167 = vpop.f32.mrb[0].mxu0
  %v2168 = vadd.f32 0.0, %v2167
  %v2169 = vpop.f32.mrb[0].mxu0
  %2170 = vmatprep.mubr.bf16.mxu0 0
  %2171 = vmatmul.mubr.bf16.gmra.mrb[0].mxu0 %v2110
  %v2172 = vpop.f32.mrb[0].mxu0
  %v2173 = vadd.f32 0.0, %v2172
  %v2174 = vpop.f32.mrb[0].mxu0
  %v2175 = vpop.f32.mrb[0].mxu0
  %v2176 = vadd.f32 0.0, %v2175
  %v2177 = vpop.f32.mrb[0].mxu0
  %2178 = vmatprep.mubr.bf16.mxu0 0
  %2179 = vmatmul.mubr.bf16.gmra.mrb[0].mxu0 %v2113
  %v2180 = vpop.f32.mrb[0].mxu0
  %v2181 = vadd.f32 0.0, %v2180
  %v2182 = vpop.f32.mrb[0].mxu0
  %v2183 = vpop.f32.mrb[0].mxu0
  %v2184 = vadd.f32 0.0, %v2183
  %v2185 = vpop.f32.mrb[0].mxu0
  %2186 = vmatprep.mubr.bf16.mxu0 0
  %2187 = vmatmul.mubr.bf16.gmra.mrb[0].mxu0 %v2116
  %v2188 = vpop.f32.mrb[0].mxu0
  %v2189 = vadd.f32 0.0, %v2188
  %v2190 = vpop.f32.mrb[0].mxu0
  %v2191 = vpop.f32.mrb[0].mxu0
  %v2192 = vpop.f32.mrb[0].mxu0
  %2193 = vdwg.mxu0
  %v2194 = vpack.c.b16 %v1418, %v1417
  %v2195 = vpack.c.b16 %v1420, %v1419
  %v2196 = vpack.c.b16 %v1422, %v1421
  %2197 = vrot.lane.b32.xlu0 %v2194, 112
  %v2198 = vpop.permute.xlu0 %2197
  %2199 = vrot.lane.b32.xlu0 %v2195, 112
  %v2200 = vpop.permute.xlu0 %2199
  %2201 = vrot.lane.b32.xlu0 %v2196, 112
  %v2202 = vpop.permute.xlu0 %2201
  %2203 = vrot.lane.b32.xlu0 %v1479, 112
  %v2204 = vpop.permute.xlu0 %2203
  %v2206 = vsel %vm1610, %v2194, 0
  %v2209 = vsel %vm1610, %v2195, 0
  %v2212 = vsel %vm1610, %v2196, 0
  %v2215 = vsel %vm1610, %v1479, 0
  %v2218 = vsel %vm1610, %v2198, 0
  %v2221 = vsel %vm1610, %v2200, 0
  %v2224 = vsel %vm1610, %v2202, 0
  %v2227 = vsel %vm1610, %v2204, 0
  %2229 = vmatprep.subr.bf16.mxu0 0
  %2230 = vmatpush1.bf16.xpose.msra.mxu0 %v2218
  %2231 = vmatprep.subr.bf16.mxu0 0
  %2232 = vmatpush1.bf16.xpose.msra.mxu0 %v2221
  %2233 = vmatprep.subr.bf16.mxu0 0
  %2234 = vmatpush1.bf16.xpose.msra.mxu0 %v2224
  %2235 = vmatprep.subr.bf16.mxu0 0
  %2236 = vmatpush1.bf16.xpose.msra.mxu0 %v2227
  %2237 = vmatprep.subr.bf16.mxu0 0
  %2238 = vmatpush1.bf16.xpose.msra.mxu0 0
  %2239 = vmatprep.subr.bf16.mxu0 0
  %2240 = vmatpush1.bf16.xpose.msra.mxu0 0
  %2241 = vmatprep.subr.bf16.mxu0 0
  %2242 = vmatpush1.bf16.xpose.msra.mxu0 0
  %2243 = vmatprep.subr.bf16.mxu0 0
  %2244 = vmatpush1.bf16.xpose.msra.mxu0 0
  %2245 = vmatprep.subr.bf16.mxu0 0
  %2246 = vmatpush1.bf16.xpose.msra.mxu0 0
  %2247 = vmatprep.subr.bf16.mxu0 0
  %2248 = vmatpush1.bf16.xpose.msra.mxu0 0
  %2249 = vmatprep.subr.bf16.mxu0 0
  %2250 = vmatpush1.bf16.xpose.msra.mxu0 0
  %2251 = vmatprep.subr.bf16.mxu0 0
  %2252 = vmatpush1.bf16.xpose.msra.mxu0 0
  %2253 = vmatprep.subr.bf16.mxu0 0
  %2254 = vmatpush1.bf16.xpose.msra.mxu0 0
  %2255 = vmatprep.subr.bf16.mxu0 0
  %2256 = vmatpush1.bf16.xpose.msra.mxu0 0
  %2257 = vmatprep.subr.bf16.mxu0 0
  %2258 = vmatpush1.bf16.xpose.msra.mxu0 0
  %2259 = vmatprep.subr.bf16.mxu0 0
  %2260 = vmatpush1.bf16.xpose.msra.mxu0 0
  %2261 = vmatprep.mubr.bf16.mxu0 0
  %2262 = vmatmul.mubr.bf16.gmra.mrb[0].mxu0 %v2206
  %v2263 = vpop.f32.mrb[0].mxu0
  %v2264 = vadd.f32 0.0, %v2263
  %v2265 = vpop.f32.mrb[0].mxu0
  %v2266 = vpop.f32.mrb[0].mxu0
  %v2267 = vadd.f32 0.0, %v2266
  %v2268 = vpop.f32.mrb[0].mxu0
  %2269 = vmatprep.mubr.bf16.mxu0 0
  %2270 = vmatmul.mubr.bf16.gmra.mrb[0].mxu0 %v2209
  %v2271 = vpop.f32.mrb[0].mxu0
  %v2272 = vadd.f32 0.0, %v2271
  %v2273 = vpop.f32.mrb[0].mxu0
  %v2274 = vpop.f32.mrb[0].mxu0
  %v2275 = vadd.f32 0.0, %v2274
  %v2276 = vpop.f32.mrb[0].mxu0
  %2277 = vmatprep.mubr.bf16.mxu0 0
  %2278 = vmatmul.mubr.bf16.gmra.mrb[0].mxu0 %v2212
  %v2279 = vpop.f32.mrb[0].mxu0
  %v2280 = vadd.f32 0.0, %v2279
  %v2281 = vpop.f32.mrb[0].mxu0
  %v2282 = vpop.f32.mrb[0].mxu0
  %v2283 = vadd.f32 0.0, %v2282
  %v2284 = vpop.f32.mrb[0].mxu0
  %2285 = vmatprep.mubr.bf16.mxu0 0
  %2286 = vmatmul.mubr.bf16.gmra.mrb[0].mxu0 %v2215
  %v2287 = vpop.f32.mrb[0].mxu0
  %v2288 = vadd.f32 0.0, %v2287
  %v2289 = vpop.f32.mrb[0].mxu0
  %v2290 = vpop.f32.mrb[0].mxu0
  %v2291 = vpop.f32.mrb[0].mxu0
  %2292 = vdwg.mxu0
  %v2293 = vpack.c.b16 %v1425, %v1424
  %v2294 = vpack.c.b16 %v1427, %v1426
  %v2295 = vpack.c.b16 %v1429, %v1428
  %2296 = vrot.lane.b32.xlu0 %v2293, 112
  %v2297 = vpop.permute.xlu0 %2296
  %2298 = vrot.lane.b32.xlu0 %v2294, 112
  %v2299 = vpop.permute.xlu0 %2298
  %2300 = vrot.lane.b32.xlu0 %v2295, 112
  %v2301 = vpop.permute.xlu0 %2300
  %2302 = vrot.lane.b32.xlu0 %v1486, 112
  %v2303 = vpop.permute.xlu0 %2302
  %v2305 = vsel %vm1610, %v2293, 0
  %v2308 = vsel %vm1610, %v2294, 0
  %v2311 = vsel %vm1610, %v2295, 0
  %v2314 = vsel %vm1610, %v1486, 0
  %v2317 = vsel %vm1610, %v2297, 0
  %v2320 = vsel %vm1610, %v2299, 0
  %v2323 = vsel %vm1610, %v2301, 0
  %v2326 = vsel %vm1610, %v2303, 0
  %2328 = vmatprep.subr.bf16.mxu0 0
  %2329 = vmatpush1.bf16.xpose.msra.mxu0 %v2317
  %2330 = vmatprep.subr.bf16.mxu0 0
  %2331 = vmatpush1.bf16.xpose.msra.mxu0 %v2320
  %2332 = vmatprep.subr.bf16.mxu0 0
  %2333 = vmatpush1.bf16.xpose.msra.mxu0 %v2323
  %2334 = vmatprep.subr.bf16.mxu0 0
  %2335 = vmatpush1.bf16.xpose.msra.mxu0 %v2326
  %2336 = vmatprep.subr.bf16.mxu0 0
  %2337 = vmatpush1.bf16.xpose.msra.mxu0 0
  %2338 = vmatprep.subr.bf16.mxu0 0
  %2339 = vmatpush1.bf16.xpose.msra.mxu0 0
  %2340 = vmatprep.subr.bf16.mxu0 0
  %2341 = vmatpush1.bf16.xpose.msra.mxu0 0
  %2342 = vmatprep.subr.bf16.mxu0 0
  %2343 = vmatpush1.bf16.xpose.msra.mxu0 0
  %2344 = vmatprep.subr.bf16.mxu0 0
  %2345 = vmatpush1.bf16.xpose.msra.mxu0 0
  %2346 = vmatprep.subr.bf16.mxu0 0
  %2347 = vmatpush1.bf16.xpose.msra.mxu0 0
  %2348 = vmatprep.subr.bf16.mxu0 0
  %2349 = vmatpush1.bf16.xpose.msra.mxu0 0
  %2350 = vmatprep.subr.bf16.mxu0 0
  %2351 = vmatpush1.bf16.xpose.msra.mxu0 0
  %2352 = vmatprep.subr.bf16.mxu0 0
  %2353 = vmatpush1.bf16.xpose.msra.mxu0 0
  %2354 = vmatprep.subr.bf16.mxu0 0
  %2355 = vmatpush1.bf16.xpose.msra.mxu0 0
  %2356 = vmatprep.subr.bf16.mxu0 0
  %2357 = vmatpush1.bf16.xpose.msra.mxu0 0
  %2358 = vmatprep.subr.bf16.mxu0 0
  %2359 = vmatpush1.bf16.xpose.msra.mxu0 0
  %2360 = vmatprep.mubr.bf16.mxu0 0
  %2361 = vmatmul.mubr.bf16.gmra.mrb[0].mxu0 %v2305
  %v2362 = vpop.f32.mrb[0].mxu0
  %v2363 = vadd.f32 0.0, %v2362
  %v2364 = vpop.f32.mrb[0].mxu0
  %v2365 = vpop.f32.mrb[0].mxu0
  %v2366 = vadd.f32 0.0, %v2365
  %v2367 = vpop.f32.mrb[0].mxu0
  %2368 = vmatprep.mubr.bf16.mxu0 0
  %2369 = vmatmul.mubr.bf16.gmra.mrb[0].mxu0 %v2308
  %v2370 = vpop.f32.mrb[0].mxu0
  %v2371 = vadd.f32 0.0, %v2370
  %v2372 = vpop.f32.mrb[0].mxu0
  %v2373 = vpop.f32.mrb[0].mxu0
  %v2374 = vadd.f32 0.0, %v2373
  %v2375 = vpop.f32.mrb[0].mxu0
  %2376 = vmatprep.mubr.bf16.mxu0 0
  %2377 = vmatmul.mubr.bf16.gmra.mrb[0].mxu0 %v2311
  %v2378 = vpop.f32.mrb[0].mxu0
  %v2379 = vadd.f32 0.0, %v2378
  %v2380 = vpop.f32.mrb[0].mxu0
  %v2381 = vpop.f32.mrb[0].mxu0
  %v2382 = vadd.f32 0.0, %v2381
  %v2383 = vpop.f32.mrb[0].mxu0
  %2384 = vmatprep.mubr.bf16.mxu0 0
  %2385 = vmatmul.mubr.bf16.gmra.mrb[0].mxu0 %v2314
  %v2386 = vpop.f32.mrb[0].mxu0
  %v2387 = vadd.f32 0.0, %v2386
  %v2388 = vpop.f32.mrb[0].mxu0
  %v2389 = vpop.f32.mrb[0].mxu0
  %v2390 = vpop.f32.mrb[0].mxu0
  %2391 = vdwg.mxu0
  %v2392 = vunpack.c.l.b16 %v1488
  %v2393 = vunpack.c.l.b16 %v1490
  %v2394 = vunpack.c.l.b16 %v1492
  %v2395 = vunpack.c.l.b16 %v1494
  %v2396 = vunpack.c.l.b16 %v1496
  %v2397 = vunpack.c.l.b16 %v1498
  %v2398 = vunpack.c.l.b16 %v1500
  %v2399 = vpack.c.b16 %v2393, %v2392
  %v2400 = vpack.c.b16 %v2395, %v2394
  %v2401 = vpack.c.b16 %v2397, %v2396
  %v2402 = vpack.c.b16 %v2398, %v2398
  %2403 = vrot.lane.b32.xlu0 %v2399, 112
  %v2404 = vpop.permute.xlu0 %2403
  %2405 = vrot.lane.b32.xlu0 %v2400, 112
  %v2406 = vpop.permute.xlu0 %2405
  %2407 = vrot.lane.b32.xlu0 %v2401, 112
  %v2408 = vpop.permute.xlu0 %2407
  %2409 = vrot.lane.b32.xlu0 %v2402, 112
  %v2410 = vpop.permute.xlu0 %2409
  %v2412 = vsel %vm1610, %v2399, 0
  %v2415 = vsel %vm1610, %v2400, 0
  %v2418 = vsel %vm1610, %v2401, 0
  %v2421 = vsel %vm1610, %v2402, 0
  %v2424 = vsel %vm1610, %v2404, 0
  %v2427 = vsel %vm1610, %v2406, 0
  %v2430 = vsel %vm1610, %v2408, 0
  %v2433 = vsel %vm1610, %v2410, 0
  %2435 = vmatprep.subr.bf16.mxu0 0
  %2436 = vmatpush1.bf16.xpose.msra.mxu0 %v2424
  %2437 = vmatprep.subr.bf16.mxu0 0
  %2438 = vmatpush1.bf16.xpose.msra.mxu0 %v2427
  %2439 = vmatprep.subr.bf16.mxu0 0
  %2440 = vmatpush1.bf16.xpose.msra.mxu0 %v2430
  %2441 = vmatprep.subr.bf16.mxu0 0
  %2442 = vmatpush1.bf16.xpose.msra.mxu0 %v2433
  %2443 = vmatprep.subr.bf16.mxu0 0
  %2444 = vmatpush1.bf16.xpose.msra.mxu0 0
  %2445 = vmatprep.subr.bf16.mxu0 0
  %2446 = vmatpush1.bf16.xpose.msra.mxu0 0
  %2447 = vmatprep.subr.bf16.mxu0 0
  %2448 = vmatpush1.bf16.xpose.msra.mxu0 0
  %2449 = vmatprep.subr.bf16.mxu0 0
  %2450 = vmatpush1.bf16.xpose.msra.mxu0 0
  %2451 = vmatprep.subr.bf16.mxu0 0
  %2452 = vmatpush1.bf16.xpose.msra.mxu0 0
  %2453 = vmatprep.subr.bf16.mxu0 0
  %2454 = vmatpush1.bf16.xpose.msra.mxu0 0
  %2455 = vmatprep.subr.bf16.mxu0 0
  %2456 = vmatpush1.bf16.xpose.msra.mxu0 0
  %2457 = vmatprep.subr.bf16.mxu0 0
  %2458 = vmatpush1.bf16.xpose.msra.mxu0 0
  %2459 = vmatprep.subr.bf16.mxu0 0
  %2460 = vmatpush1.bf16.xpose.msra.mxu0 0
  %2461 = vmatprep.subr.bf16.mxu0 0
  %2462 = vmatpush1.bf16.xpose.msra.mxu0 0
  %2463 = vmatprep.subr.bf16.mxu0 0
  %2464 = vmatpush1.bf16.xpose.msra.mxu0 0
  %2465 = vmatprep.subr.bf16.mxu0 0
  %2466 = vmatpush1.bf16.xpose.msra.mxu0 0
  %2467 = vmatprep.mubr.bf16.mxu0 0
  %2468 = vmatmul.mubr.bf16.gmra.mrb[0].mxu0 %v2412
  %v2469 = vpop.f32.mrb[0].mxu0
  %v2470 = vadd.f32 0.0, %v2469
  %v2471 = vpop.f32.mrb[0].mxu0
  %v2472 = vpop.f32.mrb[0].mxu0
  %v2473 = vadd.f32 0.0, %v2472
  %v2474 = vpop.f32.mrb[0].mxu0
  %2475 = vmatprep.mubr.bf16.mxu0 0
  %2476 = vmatmul.mubr.bf16.gmra.mrb[0].mxu0 %v2415
  %v2477 = vpop.f32.mrb[0].mxu0
  %v2478 = vadd.f32 0.0, %v2477
  %v2479 = vpop.f32.mrb[0].mxu0
  %v2480 = vpop.f32.mrb[0].mxu0
  %v2481 = vadd.f32 0.0, %v2480
  %v2482 = vpop.f32.mrb[0].mxu0
  %2483 = vmatprep.mubr.bf16.mxu0 0
  %2484 = vmatmul.mubr.bf16.gmra.mrb[0].mxu0 %v2418
  %v2485 = vpop.f32.mrb[0].mxu0
  %v2486 = vadd.f32 0.0, %v2485
  %v2487 = vpop.f32.mrb[0].mxu0
  %v2488 = vpop.f32.mrb[0].mxu0
  %v2489 = vadd.f32 0.0, %v2488
  %v2490 = vpop.f32.mrb[0].mxu0
  %2491 = vmatprep.mubr.bf16.mxu0 0
  %2492 = vmatmul.mubr.bf16.gmra.mrb[0].mxu0 %v2421
  %v2493 = vpop.f32.mrb[0].mxu0
  %v2494 = vadd.f32 0.0, %v2493
  %v2495 = vpop.f32.mrb[0].mxu0
  %v2496 = vpop.f32.mrb[0].mxu0
  %v2497 = vpop.f32.mrb[0].mxu0
  %2498 = vdwg.mxu0
  %v2499 = vunpack.c.l.b16 %v1502
  %v2500 = vunpack.c.l.b16 %v1504
  %v2501 = vunpack.c.l.b16 %v1506
  %v2502 = vunpack.c.l.b16 %v1508
  %v2503 = vunpack.c.l.b16 %v1510
  %v2504 = vunpack.c.l.b16 %v1512
  %v2505 = vunpack.c.l.b16 %v1514
  %v2506 = vpack.c.b16 %v2500, %v2499
  %v2507 = vpack.c.b16 %v2502, %v2501
  %v2508 = vpack.c.b16 %v2504, %v2503
  %v2509 = vpack.c.b16 %v2505, %v2505
  %2510 = vrot.lane.b32.xlu0 %v2506, 112
  %v2511 = vpop.permute.xlu0 %2510
  %2512 = vrot.lane.b32.xlu0 %v2507, 112
  %v2513 = vpop.permute.xlu0 %2512
  %2514 = vrot.lane.b32.xlu0 %v2508, 112
  %v2515 = vpop.permute.xlu0 %2514
  %2516 = vrot.lane.b32.xlu0 %v2509, 112
  %v2517 = vpop.permute.xlu0 %2516
  %v2519 = vsel %vm1610, %v2506, 0
  %v2522 = vsel %vm1610, %v2507, 0
  %v2525 = vsel %vm1610, %v2508, 0
  %v2528 = vsel %vm1610, %v2509, 0
  %v2531 = vsel %vm1610, %v2511, 0
  %v2534 = vsel %vm1610, %v2513, 0
  %v2537 = vsel %vm1610, %v2515, 0
  %v2540 = vsel %vm1610, %v2517, 0
  %2542 = vmatprep.subr.bf16.mxu0 0
  %2543 = vmatpush1.bf16.xpose.msra.mxu0 %v2531
  %2544 = vmatprep.subr.bf16.mxu0 0
  %2545 = vmatpush1.bf16.xpose.msra.mxu0 %v2534
  %2546 = vmatprep.subr.bf16.mxu0 0
  %2547 = vmatpush1.bf16.xpose.msra.mxu0 %v2537
  %2548 = vmatprep.subr.bf16.mxu0 0
  %2549 = vmatpush1.bf16.xpose.msra.mxu0 %v2540
  %2550 = vmatprep.subr.bf16.mxu0 0
  %2551 = vmatpush1.bf16.xpose.msra.mxu0 0
  %2552 = vmatprep.subr.bf16.mxu0 0
  %2553 = vmatpush1.bf16.xpose.msra.mxu0 0
  %2554 = vmatprep.subr.bf16.mxu0 0
  %2555 = vmatpush1.bf16.xpose.msra.mxu0 0
  %2556 = vmatprep.subr.bf16.mxu0 0
  %2557 = vmatpush1.bf16.xpose.msra.mxu0 0
  %2558 = vmatprep.subr.bf16.mxu0 0
  %2559 = vmatpush1.bf16.xpose.msra.mxu0 0
  %2560 = vmatprep.subr.bf16.mxu0 0
  %2561 = vmatpush1.bf16.xpose.msra.mxu0 0
  %2562 = vmatprep.subr.bf16.mxu0 0
  %2563 = vmatpush1.bf16.xpose.msra.mxu0 0
  %2564 = vmatprep.subr.bf16.mxu0 0
  %2565 = vmatpush1.bf16.xpose.msra.mxu0 0
  %2566 = vmatprep.subr.bf16.mxu0 0
  %2567 = vmatpush1.bf16.xpose.msra.mxu0 0
  %2568 = vmatprep.subr.bf16.mxu0 0
  %2569 = vmatpush1.bf16.xpose.msra.mxu0 0
  %2570 = vmatprep.subr.bf16.mxu0 0
  %2571 = vmatpush1.bf16.xpose.msra.mxu0 0
  %2572 = vmatprep.subr.bf16.mxu0 0
  %2573 = vmatpush1.bf16.xpose.msra.mxu0 0
  %2574 = vmatprep.mubr.bf16.mxu0 0
  %2575 = vmatmul.mubr.bf16.gmra.mrb[0].mxu0 %v2519
  %v2576 = vpop.f32.mrb[0].mxu0
  %v2577 = vadd.f32 0.0, %v2576
  %v2578 = vpop.f32.mrb[0].mxu0
  %v2579 = vpop.f32.mrb[0].mxu0
  %v2580 = vadd.f32 0.0, %v2579
  %v2581 = vpop.f32.mrb[0].mxu0
  %2582 = vmatprep.mubr.bf16.mxu0 0
  %2583 = vmatmul.mubr.bf16.gmra.mrb[0].mxu0 %v2522
  %v2584 = vpop.f32.mrb[0].mxu0
  %v2585 = vadd.f32 0.0, %v2584
  %v2586 = vpop.f32.mrb[0].mxu0
  %v2587 = vpop.f32.mrb[0].mxu0
  %v2588 = vadd.f32 0.0, %v2587
  %v2589 = vpop.f32.mrb[0].mxu0
  %2590 = vmatprep.mubr.bf16.mxu0 0
  %2591 = vmatmul.mubr.bf16.gmra.mrb[0].mxu0 %v2525
  %v2592 = vpop.f32.mrb[0].mxu0
  %v2593 = vadd.f32 0.0, %v2592
  %v2594 = vpop.f32.mrb[0].mxu0
  %v2595 = vpop.f32.mrb[0].mxu0
  %v2596 = vadd.f32 0.0, %v2595
  %v2597 = vpop.f32.mrb[0].mxu0
  %2598 = vmatprep.mubr.bf16.mxu0 0
  %2599 = vmatmul.mubr.bf16.gmra.mrb[0].mxu0 %v2528
  %v2600 = vpop.f32.mrb[0].mxu0
  %v2601 = vadd.f32 0.0, %v2600
  %v2602 = vpop.f32.mrb[0].mxu0
  %v2603 = vpop.f32.mrb[0].mxu0
  %v2604 = vpop.f32.mrb[0].mxu0
  %2605 = vdwg.mxu0
  %v2606 = vunpack.c.l.b16 %v1516
  %v2607 = vunpack.c.l.b16 %v1518
  %v2608 = vunpack.c.l.b16 %v1520
  %v2609 = vunpack.c.l.b16 %v1522
  %v2610 = vunpack.c.l.b16 %v1524
  %v2611 = vunpack.c.l.b16 %v1526
  %v2612 = vunpack.c.l.b16 %v1528
  %v2613 = vpack.c.b16 %v2607, %v2606
  %v2614 = vpack.c.b16 %v2609, %v2608
  %v2615 = vpack.c.b16 %v2611, %v2610
  %v2616 = vpack.c.b16 %v2612, %v2612
  %2617 = vrot.lane.b32.xlu0 %v2613, 112
  %v2618 = vpop.permute.xlu0 %2617
  %2619 = vrot.lane.b32.xlu0 %v2614, 112
  %v2620 = vpop.permute.xlu0 %2619
  %2621 = vrot.lane.b32.xlu0 %v2615, 112
  %v2622 = vpop.permute.xlu0 %2621
  %2623 = vrot.lane.b32.xlu0 %v2616, 112
  %v2624 = vpop.permute.xlu0 %2623
  %v2626 = vsel %vm1610, %v2613, 0
  %v2629 = vsel %vm1610, %v2614, 0
  %v2632 = vsel %vm1610, %v2615, 0
  %v2635 = vsel %vm1610, %v2616, 0
  %v2638 = vsel %vm1610, %v2618, 0
  %v2641 = vsel %vm1610, %v2620, 0
  %v2644 = vsel %vm1610, %v2622, 0
  %v2647 = vsel %vm1610, %v2624, 0
  %2649 = vmatprep.subr.bf16.mxu0 0
  %2650 = vmatpush1.bf16.xpose.msra.mxu0 %v2638
  %2651 = vmatprep.subr.bf16.mxu0 0
  %2652 = vmatpush1.bf16.xpose.msra.mxu0 %v2641
  %2653 = vmatprep.subr.bf16.mxu0 0
  %2654 = vmatpush1.bf16.xpose.msra.mxu0 %v2644
  %2655 = vmatprep.subr.bf16.mxu0 0
  %2656 = vmatpush1.bf16.xpose.msra.mxu0 %v2647
  %2657 = vmatprep.subr.bf16.mxu0 0
  %2658 = vmatpush1.bf16.xpose.msra.mxu0 0
  %2659 = vmatprep.subr.bf16.mxu0 0
  %2660 = vmatpush1.bf16.xpose.msra.mxu0 0
  %2661 = vmatprep.subr.bf16.mxu0 0
  %2662 = vmatpush1.bf16.xpose.msra.mxu0 0
  %2663 = vmatprep.subr.bf16.mxu0 0
  %2664 = vmatpush1.bf16.xpose.msra.mxu0 0
  %2665 = vmatprep.subr.bf16.mxu0 0
  %2666 = vmatpush1.bf16.xpose.msra.mxu0 0
  %2667 = vmatprep.subr.bf16.mxu0 0
  %2668 = vmatpush1.bf16.xpose.msra.mxu0 0
  %2669 = vmatprep.subr.bf16.mxu0 0
  %2670 = vmatpush1.bf16.xpose.msra.mxu0 0
  %2671 = vmatprep.subr.bf16.mxu0 0
  %2672 = vmatpush1.bf16.xpose.msra.mxu0 0
  %2673 = vmatprep.subr.bf16.mxu0 0
  %2674 = vmatpush1.bf16.xpose.msra.mxu0 0
  %2675 = vmatprep.subr.bf16.mxu0 0
  %2676 = vmatpush1.bf16.xpose.msra.mxu0 0
  %2677 = vmatprep.subr.bf16.mxu0 0
  %2678 = vmatpush1.bf16.xpose.msra.mxu0 0
  %2679 = vmatprep.subr.bf16.mxu0 0
  %2680 = vmatpush1.bf16.xpose.msra.mxu0 0
  %2681 = vmatprep.mubr.bf16.mxu0 0
  %2682 = vmatmul.mubr.bf16.gmra.mrb[0].mxu0 %v2626
  %v2683 = vpop.f32.mrb[0].mxu0
  %v2684 = vadd.f32 0.0, %v2683
  %v2685 = vpop.f32.mrb[0].mxu0
  %v2686 = vpop.f32.mrb[0].mxu0
  %v2687 = vadd.f32 0.0, %v2686
  %v2688 = vpop.f32.mrb[0].mxu0
  %2689 = vmatprep.mubr.bf16.mxu0 0
  %2690 = vmatmul.mubr.bf16.gmra.mrb[0].mxu0 %v2629
  %v2691 = vpop.f32.mrb[0].mxu0
  %v2692 = vadd.f32 0.0, %v2691
  %v2693 = vpop.f32.mrb[0].mxu0
  %v2694 = vpop.f32.mrb[0].mxu0
  %v2695 = vadd.f32 0.0, %v2694
  %v2696 = vpop.f32.mrb[0].mxu0
  %2697 = vmatprep.mubr.bf16.mxu0 0
  %2698 = vmatmul.mubr.bf16.gmra.mrb[0].mxu0 %v2632
  %v2699 = vpop.f32.mrb[0].mxu0
  %v2700 = vadd.f32 0.0, %v2699
  %v2701 = vpop.f32.mrb[0].mxu0
  %v2702 = vpop.f32.mrb[0].mxu0
  %v2703 = vadd.f32 0.0, %v2702
  %v2704 = vpop.f32.mrb[0].mxu0
  %2705 = vmatprep.mubr.bf16.mxu0 0
  %2706 = vmatmul.mubr.bf16.gmra.mrb[0].mxu0 %v2635
  %v2707 = vpop.f32.mrb[0].mxu0
  %v2708 = vadd.f32 0.0, %v2707
  %v2709 = vpop.f32.mrb[0].mxu0
  %v2710 = vpop.f32.mrb[0].mxu0
  %v2711 = vpop.f32.mrb[0].mxu0
  %2712 = vdwg.mxu0
  %v2713 = vunpack.c.l.b16 %v1530
  %v2714 = vunpack.c.l.b16 %v1532
  %v2715 = vunpack.c.l.b16 %v1534
  %v2716 = vunpack.c.l.b16 %v1536
  %v2717 = vunpack.c.l.b16 %v1538
  %v2718 = vunpack.c.l.b16 %v1540
  %v2719 = vunpack.c.l.b16 %v1542
  %v2720 = vpack.c.b16 %v2714, %v2713
  %v2721 = vpack.c.b16 %v2716, %v2715
  %v2722 = vpack.c.b16 %v2718, %v2717
  %v2723 = vpack.c.b16 %v2719, %v2719
  %2724 = vrot.lane.b32.xlu0 %v2720, 112
  %v2725 = vpop.permute.xlu0 %2724
  %2726 = vrot.lane.b32.xlu0 %v2721, 112
  %v2727 = vpop.permute.xlu0 %2726
  %2728 = vrot.lane.b32.xlu0 %v2722, 112
  %v2729 = vpop.permute.xlu0 %2728
  %2730 = vrot.lane.b32.xlu0 %v2723, 112
  %v2731 = vpop.permute.xlu0 %2730
  %v2733 = vsel %vm1610, %v2720, 0
  %v2736 = vsel %vm1610, %v2721, 0
  %v2739 = vsel %vm1610, %v2722, 0
  %v2742 = vsel %vm1610, %v2723, 0
  %v2745 = vsel %vm1610, %v2725, 0
  %v2748 = vsel %vm1610, %v2727, 0
  %v2751 = vsel %vm1610, %v2729, 0
  %v2754 = vsel %vm1610, %v2731, 0
  %2756 = vmatprep.subr.bf16.mxu0 0
  %2757 = vmatpush1.bf16.xpose.msra.mxu0 %v2745
  %2758 = vmatprep.subr.bf16.mxu0 0
  %2759 = vmatpush1.bf16.xpose.msra.mxu0 %v2748
  %2760 = vmatprep.subr.bf16.mxu0 0
  %2761 = vmatpush1.bf16.xpose.msra.mxu0 %v2751
  %2762 = vmatprep.subr.bf16.mxu0 0
  %2763 = vmatpush1.bf16.xpose.msra.mxu0 %v2754
  %2764 = vmatprep.subr.bf16.mxu0 0
  %2765 = vmatpush1.bf16.xpose.msra.mxu0 0
  %2766 = vmatprep.subr.bf16.mxu0 0
  %2767 = vmatpush1.bf16.xpose.msra.mxu0 0
  %2768 = vmatprep.subr.bf16.mxu0 0
  %2769 = vmatpush1.bf16.xpose.msra.mxu0 0
  %2770 = vmatprep.subr.bf16.mxu0 0
  %2771 = vmatpush1.bf16.xpose.msra.mxu0 0
  %2772 = vmatprep.subr.bf16.mxu0 0
  %2773 = vmatpush1.bf16.xpose.msra.mxu0 0
  %2774 = vmatprep.subr.bf16.mxu0 0
  %2775 = vmatpush1.bf16.xpose.msra.mxu0 0
  %2776 = vmatprep.subr.bf16.mxu0 0
  %2777 = vmatpush1.bf16.xpose.msra.mxu0 0
  %2778 = vmatprep.subr.bf16.mxu0 0
  %2779 = vmatpush1.bf16.xpose.msra.mxu0 0
  %2780 = vmatprep.subr.bf16.mxu0 0
  %2781 = vmatpush1.bf16.xpose.msra.mxu0 0
  %2782 = vmatprep.subr.bf16.mxu0 0
  %2783 = vmatpush1.bf16.xpose.msra.mxu0 0
  %2784 = vmatprep.subr.bf16.mxu0 0
  %2785 = vmatpush1.bf16.xpose.msra.mxu0 0
  %2786 = vmatprep.subr.bf16.mxu0 0
  %2787 = vmatpush1.bf16.xpose.msra.mxu0 0
  %2788 = vmatprep.mubr.bf16.mxu0 0
  %2789 = vmatmul.mubr.bf16.gmra.mrb[0].mxu0 %v2733
  %v2790 = vpop.f32.mrb[0].mxu0
  %v2791 = vadd.f32 0.0, %v2790
  %v2792 = vpop.f32.mrb[0].mxu0
  %v2793 = vpop.f32.mrb[0].mxu0
  %v2794 = vadd.f32 0.0, %v2793
  %v2795 = vpop.f32.mrb[0].mxu0
  %2796 = vmatprep.mubr.bf16.mxu0 0
  %2797 = vmatmul.mubr.bf16.gmra.mrb[0].mxu0 %v2736
  %v2798 = vpop.f32.mrb[0].mxu0
  %v2799 = vadd.f32 0.0, %v2798
  %v2800 = vpop.f32.mrb[0].mxu0
  %v2801 = vpop.f32.mrb[0].mxu0
  %v2802 = vadd.f32 0.0, %v2801
  %v2803 = vpop.f32.mrb[0].mxu0
  %2804 = vmatprep.mubr.bf16.mxu0 0
  %2805 = vmatmul.mubr.bf16.gmra.mrb[0].mxu0 %v2739
  %v2806 = vpop.f32.mrb[0].mxu0
  %v2807 = vadd.f32 0.0, %v2806
  %v2808 = vpop.f32.mrb[0].mxu0
  %v2809 = vpop.f32.mrb[0].mxu0
  %v2810 = vadd.f32 0.0, %v2809
  %v2811 = vpop.f32.mrb[0].mxu0
  %2812 = vmatprep.mubr.bf16.mxu0 0
  %2813 = vmatmul.mubr.bf16.gmra.mrb[0].mxu0 %v2742
  %v2814 = vpop.f32.mrb[0].mxu0
  %v2815 = vadd.f32 0.0, %v2814
  %v2816 = vpop.f32.mrb[0].mxu0
  %v2817 = vpop.f32.mrb[0].mxu0
  %v2818 = vpop.f32.mrb[0].mxu0
  %2819 = vdwg.mxu0
  %v2820 = vunpack.c.l.b16 %v1544
  %v2821 = vunpack.c.l.b16 %v1546
  %v2822 = vunpack.c.l.b16 %v1548
  %v2823 = vunpack.c.l.b16 %v1550
  %v2824 = vunpack.c.l.b16 %v1552
  %v2825 = vunpack.c.l.b16 %v1554
  %v2826 = vunpack.c.l.b16 %v1556
  %v2827 = vpack.c.b16 %v2821, %v2820
  %v2828 = vpack.c.b16 %v2823, %v2822
  %v2829 = vpack.c.b16 %v2825, %v2824
  %v2830 = vpack.c.b16 %v2826, %v2826
  %2831 = vrot.lane.b32.xlu0 %v2827, 112
  %v2832 = vpop.permute.xlu0 %2831
  %2833 = vrot.lane.b32.xlu0 %v2828, 112
  %v2834 = vpop.permute.xlu0 %2833
  %2835 = vrot.lane.b32.xlu0 %v2829, 112
  %v2836 = vpop.permute.xlu0 %2835
  %2837 = vrot.lane.b32.xlu0 %v2830, 112
  %v2838 = vpop.permute.xlu0 %2837
  %v2840 = vsel %vm1610, %v2827, 0
  %v2843 = vsel %vm1610, %v2828, 0
  %v2846 = vsel %vm1610, %v2829, 0
  %v2849 = vsel %vm1610, %v2830, 0
  %v2852 = vsel %vm1610, %v2832, 0
  %v2855 = vsel %vm1610, %v2834, 0
  %v2858 = vsel %vm1610, %v2836, 0
  %v2861 = vsel %vm1610, %v2838, 0
  %2863 = vmatprep.subr.bf16.mxu0 0
  %2864 = vmatpush1.bf16.xpose.msra.mxu0 %v2852
  %2865 = vmatprep.subr.bf16.mxu0 0
  %2866 = vmatpush1.bf16.xpose.msra.mxu0 %v2855
  %2867 = vmatprep.subr.bf16.mxu0 0
  %2868 = vmatpush1.bf16.xpose.msra.mxu0 %v2858
  %2869 = vmatprep.subr.bf16.mxu0 0
  %2870 = vmatpush1.bf16.xpose.msra.mxu0 %v2861
  %2871 = vmatprep.subr.bf16.mxu0 0
  %2872 = vmatpush1.bf16.xpose.msra.mxu0 0
  %2873 = vmatprep.subr.bf16.mxu0 0
  %2874 = vmatpush1.bf16.xpose.msra.mxu0 0
  %2875 = vmatprep.subr.bf16.mxu0 0
  %2876 = vmatpush1.bf16.xpose.msra.mxu0 0
  %2877 = vmatprep.subr.bf16.mxu0 0
  %2878 = vmatpush1.bf16.xpose.msra.mxu0 0
  %2879 = vmatprep.subr.bf16.mxu0 0
  %2880 = vmatpush1.bf16.xpose.msra.mxu0 0
  %2881 = vmatprep.subr.bf16.mxu0 0
  %2882 = vmatpush1.bf16.xpose.msra.mxu0 0
  %2883 = vmatprep.subr.bf16.mxu0 0
  %2884 = vmatpush1.bf16.xpose.msra.mxu0 0
  %2885 = vmatprep.subr.bf16.mxu0 0
  %2886 = vmatpush1.bf16.xpose.msra.mxu0 0
  %2887 = vmatprep.subr.bf16.mxu0 0
  %2888 = vmatpush1.bf16.xpose.msra.mxu0 0
  %2889 = vmatprep.subr.bf16.mxu0 0
  %2890 = vmatpush1.bf16.xpose.msra.mxu0 0
  %2891 = vmatprep.subr.bf16.mxu0 0
  %2892 = vmatpush1.bf16.xpose.msra.mxu0 0
  %2893 = vmatprep.subr.bf16.mxu0 0
  %2894 = vmatpush1.bf16.xpose.msra.mxu0 0
  %2895 = vmatprep.mubr.bf16.mxu0 0
  %2896 = vmatmul.mubr.bf16.gmra.mrb[0].mxu0 %v2840
  %v2897 = vpop.f32.mrb[0].mxu0
  %v2898 = vadd.f32 0.0, %v2897
  %v2899 = vpop.f32.mrb[0].mxu0
  %v2900 = vpop.f32.mrb[0].mxu0
  %v2901 = vadd.f32 0.0, %v2900
  %v2902 = vpop.f32.mrb[0].mxu0
  %2903 = vmatprep.mubr.bf16.mxu0 0
  %2904 = vmatmul.mubr.bf16.gmra.mrb[0].mxu0 %v2843
  %v2905 = vpop.f32.mrb[0].mxu0
  %v2906 = vadd.f32 0.0, %v2905
  %v2907 = vpop.f32.mrb[0].mxu0
  %v2908 = vpop.f32.mrb[0].mxu0
  %v2909 = vadd.f32 0.0, %v2908
  %v2910 = vpop.f32.mrb[0].mxu0
  %2911 = vmatprep.mubr.bf16.mxu0 0
  %2912 = vmatmul.mubr.bf16.gmra.mrb[0].mxu0 %v2846
  %v2913 = vpop.f32.mrb[0].mxu0
  %v2914 = vadd.f32 0.0, %v2913
  %v2915 = vpop.f32.mrb[0].mxu0
  %v2916 = vpop.f32.mrb[0].mxu0
  %v2917 = vadd.f32 0.0, %v2916
  %v2918 = vpop.f32.mrb[0].mxu0
  %2919 = vmatprep.mubr.bf16.mxu0 0
  %2920 = vmatmul.mubr.bf16.gmra.mrb[0].mxu0 %v2849
  %v2921 = vpop.f32.mrb[0].mxu0
  %v2922 = vadd.f32 0.0, %v2921
  %v2923 = vpop.f32.mrb[0].mxu0
  %v2924 = vpop.f32.mrb[0].mxu0
  %v2925 = vpop.f32.mrb[0].mxu0
  %2926 = vdwg.mxu0
  %v2927 = vunpack.c.l.b16 %v1558
  %v2928 = vunpack.c.l.b16 %v1560
  %v2929 = vunpack.c.l.b16 %v1562
  %v2930 = vunpack.c.l.b16 %v1564
  %v2931 = vunpack.c.l.b16 %v1566
  %v2932 = vunpack.c.l.b16 %v1568
  %v2933 = vunpack.c.l.b16 %v1570
  %v2934 = vpack.c.b16 %v2928, %v2927
  %v2935 = vpack.c.b16 %v2930, %v2929
  %v2936 = vpack.c.b16 %v2932, %v2931
  %v2937 = vpack.c.b16 %v2933, %v2933
  %2938 = vrot.lane.b32.xlu0 %v2934, 112
  %v2939 = vpop.permute.xlu0 %2938
  %2940 = vrot.lane.b32.xlu0 %v2935, 112
  %v2941 = vpop.permute.xlu0 %2940
  %2942 = vrot.lane.b32.xlu0 %v2936, 112
  %v2943 = vpop.permute.xlu0 %2942
  %2944 = vrot.lane.b32.xlu0 %v2937, 112
  %v2945 = vpop.permute.xlu0 %2944
  %v2947 = vsel %vm1610, %v2934, 0
  %v2950 = vsel %vm1610, %v2935, 0
  %v2953 = vsel %vm1610, %v2936, 0
  %v2956 = vsel %vm1610, %v2937, 0
  %v2959 = vsel %vm1610, %v2939, 0
  %v2962 = vsel %vm1610, %v2941, 0
  %v2965 = vsel %vm1610, %v2943, 0
  %v2968 = vsel %vm1610, %v2945, 0
  %2970 = vmatprep.subr.bf16.mxu0 0
  %2971 = vmatpush1.bf16.xpose.msra.mxu0 %v2959
  %2972 = vmatprep.subr.bf16.mxu0 0
  %2973 = vmatpush1.bf16.xpose.msra.mxu0 %v2962
  %2974 = vmatprep.subr.bf16.mxu0 0
  %2975 = vmatpush1.bf16.xpose.msra.mxu0 %v2965
  %2976 = vmatprep.subr.bf16.mxu0 0
  %2977 = vmatpush1.bf16.xpose.msra.mxu0 %v2968
  %2978 = vmatprep.subr.bf16.mxu0 0
  %2979 = vmatpush1.bf16.xpose.msra.mxu0 0
  %2980 = vmatprep.subr.bf16.mxu0 0
  %2981 = vmatpush1.bf16.xpose.msra.mxu0 0
  %2982 = vmatprep.subr.bf16.mxu0 0
  %2983 = vmatpush1.bf16.xpose.msra.mxu0 0
  %2984 = vmatprep.subr.bf16.mxu0 0
  %2985 = vmatpush1.bf16.xpose.msra.mxu0 0
  %2986 = vmatprep.subr.bf16.mxu0 0
  %2987 = vmatpush1.bf16.xpose.msra.mxu0 0
  %2988 = vmatprep.subr.bf16.mxu0 0
  %2989 = vmatpush1.bf16.xpose.msra.mxu0 0
  %2990 = vmatprep.subr.bf16.mxu0 0
  %2991 = vmatpush1.bf16.xpose.msra.mxu0 0
  %2992 = vmatprep.subr.bf16.mxu0 0
  %2993 = vmatpush1.bf16.xpose.msra.mxu0 0
  %2994 = vmatprep.subr.bf16.mxu0 0
  %2995 = vmatpush1.bf16.xpose.msra.mxu0 0
  %2996 = vmatprep.subr.bf16.mxu0 0
  %2997 = vmatpush1.bf16.xpose.msra.mxu0 0
  %2998 = vmatprep.subr.bf16.mxu0 0
  %2999 = vmatpush1.bf16.xpose.msra.mxu0 0
  %3000 = vmatprep.subr.bf16.mxu0 0
  %3001 = vmatpush1.bf16.xpose.msra.mxu0 0
  %3002 = vmatprep.mubr.bf16.mxu0 0
  %3003 = vmatmul.mubr.bf16.gmra.mrb[0].mxu0 %v2947
  %v3004 = vpop.f32.mrb[0].mxu0
  %v3005 = vadd.f32 0.0, %v3004
  %v3006 = vpop.f32.mrb[0].mxu0
  %v3007 = vpop.f32.mrb[0].mxu0
  %v3008 = vadd.f32 0.0, %v3007
  %v3009 = vpop.f32.mrb[0].mxu0
  %3010 = vmatprep.mubr.bf16.mxu0 0
  %3011 = vmatmul.mubr.bf16.gmra.mrb[0].mxu0 %v2950
  %v3012 = vpop.f32.mrb[0].mxu0
  %v3013 = vadd.f32 0.0, %v3012
  %v3014 = vpop.f32.mrb[0].mxu0
  %v3015 = vpop.f32.mrb[0].mxu0
  %v3016 = vadd.f32 0.0, %v3015
  %v3017 = vpop.f32.mrb[0].mxu0
  %3018 = vmatprep.mubr.bf16.mxu0 0
  %3019 = vmatmul.mubr.bf16.gmra.mrb[0].mxu0 %v2953
  %v3020 = vpop.f32.mrb[0].mxu0
  %v3021 = vadd.f32 0.0, %v3020
  %v3022 = vpop.f32.mrb[0].mxu0
  %v3023 = vpop.f32.mrb[0].mxu0
  %v3024 = vadd.f32 0.0, %v3023
  %v3025 = vpop.f32.mrb[0].mxu0
  %3026 = vmatprep.mubr.bf16.mxu0 0
  %3027 = vmatmul.mubr.bf16.gmra.mrb[0].mxu0 %v2956
  %v3028 = vpop.f32.mrb[0].mxu0
  %v3029 = vadd.f32 0.0, %v3028
  %v3030 = vpop.f32.mrb[0].mxu0
  %v3031 = vpop.f32.mrb[0].mxu0
  %v3032 = vpop.f32.mrb[0].mxu0
  %3033 = vdwg.mxu0
  %v3034 = vunpack.c.l.b16 %v1572
  %v3035 = vunpack.c.l.b16 %v1574
  %v3036 = vunpack.c.l.b16 %v1576
  %v3037 = vunpack.c.l.b16 %v1578
  %v3038 = vunpack.c.l.b16 %v1580
  %v3039 = vunpack.c.l.b16 %v1582
  %v3040 = vunpack.c.l.b16 %v1584
  %v3041 = vpack.c.b16 %v3035, %v3034
  %v3042 = vpack.c.b16 %v3037, %v3036
  %v3043 = vpack.c.b16 %v3039, %v3038
  %v3044 = vpack.c.b16 %v3040, %v3040
  %3045 = vrot.lane.b32.xlu0 %v3041, 112
  %v3046 = vpop.permute.xlu0 %3045
  %3047 = vrot.lane.b32.xlu0 %v3042, 112
  %v3048 = vpop.permute.xlu0 %3047
  %3049 = vrot.lane.b32.xlu0 %v3043, 112
  %v3050 = vpop.permute.xlu0 %3049
  %3051 = vrot.lane.b32.xlu0 %v3044, 112
  %v3052 = vpop.permute.xlu0 %3051
  %v3054 = vsel %vm1610, %v3041, 0
  %v3057 = vsel %vm1610, %v3042, 0
  %v3060 = vsel %vm1610, %v3043, 0
  %v3063 = vsel %vm1610, %v3044, 0
  %v3066 = vsel %vm1610, %v3046, 0
  %v3069 = vsel %vm1610, %v3048, 0
  %v3072 = vsel %vm1610, %v3050, 0
  %v3075 = vsel %vm1610, %v3052, 0
  %3077 = vmatprep.subr.bf16.mxu0 0
  %3078 = vmatpush1.bf16.xpose.msra.mxu0 %v3066
  %3079 = vmatprep.subr.bf16.mxu0 0
  %3080 = vmatpush1.bf16.xpose.msra.mxu0 %v3069
  %3081 = vmatprep.subr.bf16.mxu0 0
  %3082 = vmatpush1.bf16.xpose.msra.mxu0 %v3072
  %3083 = vmatprep.subr.bf16.mxu0 0
  %3084 = vmatpush1.bf16.xpose.msra.mxu0 %v3075
  %3085 = vmatprep.subr.bf16.mxu0 0
  %3086 = vmatpush1.bf16.xpose.msra.mxu0 0
  %3087 = vmatprep.subr.bf16.mxu0 0
  %3088 = vmatpush1.bf16.xpose.msra.mxu0 0
  %3089 = vmatprep.subr.bf16.mxu0 0
  %3090 = vmatpush1.bf16.xpose.msra.mxu0 0
  %3091 = vmatprep.subr.bf16.mxu0 0
  %3092 = vmatpush1.bf16.xpose.msra.mxu0 0
  %3093 = vmatprep.subr.bf16.mxu0 0
  %3094 = vmatpush1.bf16.xpose.msra.mxu0 0
  %3095 = vmatprep.subr.bf16.mxu0 0
  %3096 = vmatpush1.bf16.xpose.msra.mxu0 0
  %3097 = vmatprep.subr.bf16.mxu0 0
  %3098 = vmatpush1.bf16.xpose.msra.mxu0 0
  %3099 = vmatprep.subr.bf16.mxu0 0
  %3100 = vmatpush1.bf16.xpose.msra.mxu0 0
  %3101 = vmatprep.subr.bf16.mxu0 0
  %3102 = vmatpush1.bf16.xpose.msra.mxu0 0
  %3103 = vmatprep.subr.bf16.mxu0 0
  %3104 = vmatpush1.bf16.xpose.msra.mxu0 0
  %3105 = vmatprep.subr.bf16.mxu0 0
  %3106 = vmatpush1.bf16.xpose.msra.mxu0 0
  %3107 = vmatprep.subr.bf16.mxu0 0
  %3108 = vmatpush1.bf16.xpose.msra.mxu0 0
  %3109 = vmatprep.mubr.bf16.mxu0 0
  %3110 = vmatmul.mubr.bf16.gmra.mrb[0].mxu0 %v3054
  %v3111 = vpop.f32.mrb[0].mxu0
  %v3112 = vadd.f32 0.0, %v3111
  %v3113 = vpop.f32.mrb[0].mxu0
  %v3114 = vpop.f32.mrb[0].mxu0
  %v3115 = vadd.f32 0.0, %v3114
  %v3116 = vpop.f32.mrb[0].mxu0
  %3117 = vmatprep.mubr.bf16.mxu0 0
  %3118 = vmatmul.mubr.bf16.gmra.mrb[0].mxu0 %v3057
  %v3119 = vpop.f32.mrb[0].mxu0
  %v3120 = vadd.f32 0.0, %v3119
  %v3121 = vpop.f32.mrb[0].mxu0
  %v3122 = vpop.f32.mrb[0].mxu0
  %v3123 = vadd.f32 0.0, %v3122
  %v3124 = vpop.f32.mrb[0].mxu0
  %3125 = vmatprep.mubr.bf16.mxu0 0
  %3126 = vmatmul.mubr.bf16.gmra.mrb[0].mxu0 %v3060
  %v3127 = vpop.f32.mrb[0].mxu0
  %v3128 = vadd.f32 0.0, %v3127
  %v3129 = vpop.f32.mrb[0].mxu0
  %v3130 = vpop.f32.mrb[0].mxu0
  %v3131 = vadd.f32 0.0, %v3130
  %v3132 = vpop.f32.mrb[0].mxu0
  %3133 = vmatprep.mubr.bf16.mxu0 0
  %3134 = vmatmul.mubr.bf16.gmra.mrb[0].mxu0 %v3063
  %v3135 = vpop.f32.mrb[0].mxu0
  %v3136 = vadd.f32 0.0, %v3135
  %v3137 = vpop.f32.mrb[0].mxu0
  %v3138 = vpop.f32.mrb[0].mxu0
  %v3139 = vpop.f32.mrb[0].mxu0
  %3140 = vdwg.mxu0
  %v3141 = vunpack.c.l.b16 %v1586
  %v3142 = vunpack.c.l.b16 %v1588
  %v3143 = vunpack.c.l.b16 %v1590
  %v3144 = vunpack.c.l.b16 %v1592
  %v3145 = vunpack.c.l.b16 %v1594
  %v3146 = vunpack.c.l.b16 %v1596
  %v3147 = vunpack.c.l.b16 %v1598
  %v3148 = vpack.c.b16 %v3142, %v3141
  %v3149 = vpack.c.b16 %v3144, %v3143
  %v3150 = vpack.c.b16 %v3146, %v3145
  %v3151 = vpack.c.b16 %v3147, %v3147
  %3152 = vrot.lane.b32.xlu0 %v3148, 112
  %v3153 = vpop.permute.xlu0 %3152
  %3154 = vrot.lane.b32.xlu0 %v3149, 112
  %v3155 = vpop.permute.xlu0 %3154
  %3156 = vrot.lane.b32.xlu0 %v3150, 112
  %v3157 = vpop.permute.xlu0 %3156
  %3158 = vrot.lane.b32.xlu0 %v3151, 112
  %v3159 = vpop.permute.xlu0 %3158
  %v3161 = vsel %vm1610, %v3148, 0
  %v3164 = vsel %vm1610, %v3149, 0
  %v3167 = vsel %vm1610, %v3150, 0
  %v3170 = vsel %vm1610, %v3151, 0
  %v3173 = vsel %vm1610, %v3153, 0
  %v3176 = vsel %vm1610, %v3155, 0
  %v3179 = vsel %vm1610, %v3157, 0
  %v3182 = vsel %vm1610, %v3159, 0
  %3184 = vmatprep.subr.bf16.mxu0 0
  %3185 = vmatpush1.bf16.xpose.msra.mxu0 %v3173
  %3186 = vmatprep.subr.bf16.mxu0 0
  %3187 = vmatpush1.bf16.xpose.msra.mxu0 %v3176
  %3188 = vmatprep.subr.bf16.mxu0 0
  %3189 = vmatpush1.bf16.xpose.msra.mxu0 %v3179
  %3190 = vmatprep.subr.bf16.mxu0 0
  %3191 = vmatpush1.bf16.xpose.msra.mxu0 %v3182
  %3192 = vmatprep.subr.bf16.mxu0 0
  %3193 = vmatpush1.bf16.xpose.msra.mxu0 0
  %3194 = vmatprep.subr.bf16.mxu0 0
  %3195 = vmatpush1.bf16.xpose.msra.mxu0 0
  %3196 = vmatprep.subr.bf16.mxu0 0
  %3197 = vmatpush1.bf16.xpose.msra.mxu0 0
  %3198 = vmatprep.subr.bf16.mxu0 0
  %3199 = vmatpush1.bf16.xpose.msra.mxu0 0
  %3200 = vmatprep.subr.bf16.mxu0 0
  %3201 = vmatpush1.bf16.xpose.msra.mxu0 0
  %3202 = vmatprep.subr.bf16.mxu0 0
  %3203 = vmatpush1.bf16.xpose.msra.mxu0 0
  %3204 = vmatprep.subr.bf16.mxu0 0
  %3205 = vmatpush1.bf16.xpose.msra.mxu0 0
  %3206 = vmatprep.subr.bf16.mxu0 0
  %3207 = vmatpush1.bf16.xpose.msra.mxu0 0
  %3208 = vmatprep.subr.bf16.mxu0 0
  %3209 = vmatpush1.bf16.xpose.msra.mxu0 0
  %3210 = vmatprep.subr.bf16.mxu0 0
  %3211 = vmatpush1.bf16.xpose.msra.mxu0 0
  %3212 = vmatprep.subr.bf16.mxu0 0
  %3213 = vmatpush1.bf16.xpose.msra.mxu0 0
  %3214 = vmatprep.subr.bf16.mxu0 0
  %3215 = vmatpush1.bf16.xpose.msra.mxu0 0
  %3216 = vmatprep.mubr.bf16.mxu0 0
  %3217 = vmatmul.mubr.bf16.gmra.mrb[0].mxu0 %v3161
  %v3218 = vpop.f32.mrb[0].mxu0
  %v3219 = vadd.f32 0.0, %v3218
  %v3220 = vpop.f32.mrb[0].mxu0
  %v3221 = vpop.f32.mrb[0].mxu0
  %v3222 = vadd.f32 0.0, %v3221
  %v3223 = vpop.f32.mrb[0].mxu0
  %3224 = vmatprep.mubr.bf16.mxu0 0
  %3225 = vmatmul.mubr.bf16.gmra.mrb[0].mxu0 %v3164
  %v3226 = vpop.f32.mrb[0].mxu0
  %v3227 = vadd.f32 0.0, %v3226
  %v3228 = vpop.f32.mrb[0].mxu0
  %v3229 = vpop.f32.mrb[0].mxu0
  %v3230 = vadd.f32 0.0, %v3229
  %v3231 = vpop.f32.mrb[0].mxu0
  %3232 = vmatprep.mubr.bf16.mxu0 0
  %3233 = vmatmul.mubr.bf16.gmra.mrb[0].mxu0 %v3167
  %v3234 = vpop.f32.mrb[0].mxu0
  %v3235 = vadd.f32 0.0, %v3234
  %v3236 = vpop.f32.mrb[0].mxu0
  %v3237 = vpop.f32.mrb[0].mxu0
  %v3238 = vadd.f32 0.0, %v3237
  %v3239 = vpop.f32.mrb[0].mxu0
  %3240 = vmatprep.mubr.bf16.mxu0 0
  %3241 = vmatmul.mubr.bf16.gmra.mrb[0].mxu0 %v3170
  %v3242 = vpop.f32.mrb[0].mxu0
  %v3243 = vadd.f32 0.0, %v3242
  %v3244 = vpop.f32.mrb[0].mxu0
  %v3245 = vpop.f32.mrb[0].mxu0
  %v3246 = vpop.f32.mrb[0].mxu0
  %3247 = vdwg.mxu0
  %v3248 = vld [vmem:[%s3] sm:$0xff]
  %v3249 = vld [vmem:[%s3 + $0x8] sm:$0xff]
  %v3250 = vld [vmem:[%s3 + $0x10] sm:$0xff]
  %v3251 = vld [vmem:[%s3 + $0x18] sm:$0xff]
  %v3252 = vld [vmem:[%s3 + $0x20] sm:$0xff]
  %v3253 = vld [vmem:[%s3 + $0x28] sm:$0xff]
  %v3254 = vld [vmem:[%s3 + $0x30] sm:$0xff]
  %v3255 = vld [vmem:[%s3 + $0x38] sm:$0xff]
  %v3256 = vld [vmem:[%s3 + $0x40] sm:$0xff]
  %v3257 = vld [vmem:[%s3 + $0x48] sm:$0xff]
  %v3258 = vld [vmem:[%s3 + $0x50] sm:$0xff]
  %v3259 = vld [vmem:[%s3 + $0x58] sm:$0xff]
  %v3260 = vld [vmem:[%s3 + $0x60] sm:$0xff]
  %v3261 = vld [vmem:[%s3 + $0x68] sm:$0xff]
  %v3262 = vadd.f32 %v1670, %v3248
  %v3263 = vadd.f32 %v1673, %v3249
  %v3264 = vadd.f32 %v1678, %v3250
  %v3265 = vadd.f32 %v1681, %v3251
  %v3266 = vadd.f32 %v1686, %v3252
  %v3267 = vadd.f32 %v1689, %v3253
  %v3268 = vadd.f32 %v1694, %v3254
  %v3269 = vadd.f32 %v1769, %v3248
  %v3270 = vadd.f32 %v1772, %v3249
  %v3271 = vadd.f32 %v1777, %v3250
  %v3272 = vadd.f32 %v1780, %v3251
  %v3273 = vadd.f32 %v1785, %v3252
  %v3274 = vadd.f32 %v1788, %v3253
  %v3275 = vadd.f32 %v1793, %v3254
  %v3276 = vadd.f32 %v1868, %v3248
  %v3277 = vadd.f32 %v1871, %v3249
  %v3278 = vadd.f32 %v1876, %v3250
  %v3279 = vadd.f32 %v1879, %v3251
  %v3280 = vadd.f32 %v1884, %v3252
  %v3281 = vadd.f32 %v1887, %v3253
  %v3282 = vadd.f32 %v1892, %v3254
  %v3283 = vadd.f32 %v1967, %v3248
  %v3284 = vadd.f32 %v1970, %v3249
  %v3285 = vadd.f32 %v1975, %v3250
  %v3286 = vadd.f32 %v1978, %v3251
  %v3287 = vadd.f32 %v1983, %v3252
  %v3288 = vadd.f32 %v1986, %v3253
  %v3289 = vadd.f32 %v1991, %v3254
  %v3290 = vadd.f32 %v2066, %v3248
  %v3291 = vadd.f32 %v2069, %v3249
  %v3292 = vadd.f32 %v2074, %v3250
  %v3293 = vadd.f32 %v2077, %v3251
  %v3294 = vadd.f32 %v2082, %v3252
  %v3295 = vadd.f32 %v2085, %v3253
  %v3296 = vadd.f32 %v2090, %v3254
  %v3297 = vadd.f32 %v2165, %v3248
  %v3298 = vadd.f32 %v2168, %v3249
  %v3299 = vadd.f32 %v2173, %v3250
  %v3300 = vadd.f32 %v2176, %v3251
  %v3301 = vadd.f32 %v2181, %v3252
  %v3302 = vadd.f32 %v2184, %v3253
  %v3303 = vadd.f32 %v2189, %v3254
  %v3304 = vadd.f32 %v2264, %v3248
  %v3305 = vadd.f32 %v2267, %v3249
  %v3306 = vadd.f32 %v2272, %v3250
  %v3307 = vadd.f32 %v2275, %v3251
  %v3308 = vadd.f32 %v2280, %v3252
  %v3309 = vadd.f32 %v2283, %v3253
  %v3310 = vadd.f32 %v2288, %v3254
  %v3311 = vadd.f32 %v2363, %v3248
  %v3312 = vadd.f32 %v2366, %v3249
  %v3313 = vadd.f32 %v2371, %v3250
  %v3314 = vadd.f32 %v2374, %v3251
  %v3315 = vadd.f32 %v2379, %v3252
  %v3316 = vadd.f32 %v2382, %v3253
  %v3317 = vadd.f32 %v2387, %v3254
  %v3318 = vadd.f32 %v2470, %v3255
  %v3319 = vadd.f32 %v2473, %v3256
  %v3320 = vadd.f32 %v2478, %v3257
  %v3321 = vadd.f32 %v2481, %v3258
  %v3322 = vadd.f32 %v2486, %v3259
  %v3323 = vadd.f32 %v2489, %v3260
  %v3324 = vadd.f32 %v2494, %v3261
  %v3325 = vadd.f32 %v2577, %v3255
  %v3326 = vadd.f32 %v2580, %v3256
  %v3327 = vadd.f32 %v2585, %v3257
  %v3328 = vadd.f32 %v2588, %v3258
  %v3329 = vadd.f32 %v2593, %v3259
  %v3330 = vadd.f32 %v2596, %v3260
  %v3331 = vadd.f32 %v2601, %v3261
  %v3332 = vadd.f32 %v2684, %v3255
  %v3333 = vadd.f32 %v2687, %v3256
  %v3334 = vadd.f32 %v2692, %v3257
  %v3335 = vadd.f32 %v2695, %v3258
  %v3336 = vadd.f32 %v2700, %v3259
  %v3337 = vadd.f32 %v2703, %v3260
  %v3338 = vadd.f32 %v2708, %v3261
  %v3339 = vadd.f32 %v2791, %v3255
  %v3340 = vadd.f32 %v2794, %v3256
  %v3341 = vadd.f32 %v2799, %v3257
  %v3342 = vadd.f32 %v2802, %v3258
  %v3343 = vadd.f32 %v2807, %v3259
  %v3344 = vadd.f32 %v2810, %v3260
  %v3345 = vadd.f32 %v2815, %v3261
  %v3346 = vadd.f32 %v2898, %v3255
  %v3347 = vadd.f32 %v2901, %v3256
  %v3348 = vadd.f32 %v2906, %v3257
  %v3349 = vadd.f32 %v2909, %v3258
  %v3350 = vadd.f32 %v2914, %v3259
  %v3351 = vadd.f32 %v2917, %v3260
  %v3352 = vadd.f32 %v2922, %v3261
  %v3353 = vadd.f32 %v3005, %v3255
  %v3354 = vadd.f32 %v3008, %v3256
  %v3355 = vadd.f32 %v3013, %v3257
  %v3356 = vadd.f32 %v3016, %v3258
  %v3357 = vadd.f32 %v3021, %v3259
  %v3358 = vadd.f32 %v3024, %v3260
  %v3359 = vadd.f32 %v3029, %v3261
  %v3360 = vadd.f32 %v3112, %v3255
  %v3361 = vadd.f32 %v3115, %v3256
  %v3362 = vadd.f32 %v3120, %v3257
  %v3363 = vadd.f32 %v3123, %v3258
  %v3364 = vadd.f32 %v3128, %v3259
  %v3365 = vadd.f32 %v3131, %v3260
  %v3366 = vadd.f32 %v3136, %v3261
  %v3367 = vadd.f32 %v3219, %v3255
  %v3368 = vadd.f32 %v3222, %v3256
  %v3369 = vadd.f32 %v3227, %v3257
  %v3370 = vadd.f32 %v3230, %v3258
  %v3371 = vadd.f32 %v3235, %v3259
  %v3372 = vadd.f32 %v3238, %v3260
  %v3373 = vadd.f32 %v3243, %v3261
  %vm3374 = vcmask 457728
  %v3375 = vsel %vm3374, %v3262, -inf
  %3376 = vmax.xlane.f32.xlu0 %v3375
  %v3377 = vpop.xlane.xlu0 %3376
  %v3378 = vsel %vm3374, %v3263, -inf
  %3379 = vmax.xlane.f32.xlu0 %v3378
  %v3380 = vpop.xlane.xlu0 %3379
  %v3381 = vsel %vm3374, %v3264, -inf
  %3382 = vmax.xlane.f32.xlu0 %v3381
  %v3383 = vpop.xlane.xlu0 %3382
  %v3384 = vsel %vm3374, %v3265, -inf
  %3385 = vmax.xlane.f32.xlu0 %v3384
  %v3386 = vpop.xlane.xlu0 %3385
  %v3387 = vsel %vm3374, %v3266, -inf
  %3388 = vmax.xlane.f32.xlu0 %v3387
  %v3389 = vpop.xlane.xlu0 %3388
  %v3390 = vsel %vm3374, %v3267, -inf
  %3391 = vmax.xlane.f32.xlu0 %v3390
  %v3392 = vpop.xlane.xlu0 %3391
  %v3393 = vsel %vm3374, %v3268, -inf
  %3394 = vmax.xlane.f32.xlu0 %v3393
  %v3395 = vpop.xlane.xlu0 %3394
  %v3396 = vsel %vm3374, %v3269, -inf
  %3397 = vmax.xlane.f32.xlu0 %v3396
  %v3398 = vpop.xlane.xlu0 %3397
  %v3399 = vsel %vm3374, %v3270, -inf
  %3400 = vmax.xlane.f32.xlu0 %v3399
  %v3401 = vpop.xlane.xlu0 %3400
  %v3402 = vsel %vm3374, %v3271, -inf
  %3403 = vmax.xlane.f32.xlu0 %v3402
  %v3404 = vpop.xlane.xlu0 %3403
  %v3405 = vsel %vm3374, %v3272, -inf
  %3406 = vmax.xlane.f32.xlu0 %v3405
  %v3407 = vpop.xlane.xlu0 %3406
  %v3408 = vsel %vm3374, %v3273, -inf
  %3409 = vmax.xlane.f32.xlu0 %v3408
  %v3410 = vpop.xlane.xlu0 %3409
  %v3411 = vsel %vm3374, %v3274, -inf
  %3412 = vmax.xlane.f32.xlu0 %v3411
  %v3413 = vpop.xlane.xlu0 %3412
  %v3414 = vsel %vm3374, %v3275, -inf
  %3415 = vmax.xlane.f32.xlu0 %v3414
  %v3416 = vpop.xlane.xlu0 %3415
  %v3417 = vsel %vm3374, %v3276, -inf
  %3418 = vmax.xlane.f32.xlu0 %v3417
  %v3419 = vpop.xlane.xlu0 %3418
  %v3420 = vsel %vm3374, %v3277, -inf
  %3421 = vmax.xlane.f32.xlu0 %v3420
  %v3422 = vpop.xlane.xlu0 %3421
  %v3423 = vsel %vm3374, %v3278, -inf
  %3424 = vmax.xlane.f32.xlu0 %v3423
  %v3425 = vpop.xlane.xlu0 %3424
  %v3426 = vsel %vm3374, %v3279, -inf
  %3427 = vmax.xlane.f32.xlu0 %v3426
  %v3428 = vpop.xlane.xlu0 %3427
  %v3429 = vsel %vm3374, %v3280, -inf
  %3430 = vmax.xlane.f32.xlu0 %v3429
  %v3431 = vpop.xlane.xlu0 %3430
  %v3432 = vsel %vm3374, %v3281, -inf
  %3433 = vmax.xlane.f32.xlu0 %v3432
  %v3434 = vpop.xlane.xlu0 %3433
  %v3435 = vsel %vm3374, %v3282, -inf
  %3436 = vmax.xlane.f32.xlu0 %v3435
  %v3437 = vpop.xlane.xlu0 %3436
  %v3438 = vsel %vm3374, %v3283, -inf
  %3439 = vmax.xlane.f32.xlu0 %v3438
  %v3440 = vpop.xlane.xlu0 %3439
  %v3441 = vsel %vm3374, %v3284, -inf
  %3442 = vmax.xlane.f32.xlu0 %v3441
  %v3443 = vpop.xlane.xlu0 %3442
  %v3444 = vsel %vm3374, %v3285, -inf
  %3445 = vmax.xlane.f32.xlu0 %v3444
  %v3446 = vpop.xlane.xlu0 %3445
  %v3447 = vsel %vm3374, %v3286, -inf
  %3448 = vmax.xlane.f32.xlu0 %v3447
  %v3449 = vpop.xlane.xlu0 %3448
  %v3450 = vsel %vm3374, %v3287, -inf
  %3451 = vmax.xlane.f32.xlu0 %v3450
  %v3452 = vpop.xlane.xlu0 %3451
  %v3453 = vsel %vm3374, %v3288, -inf
  %3454 = vmax.xlane.f32.xlu0 %v3453
  %v3455 = vpop.xlane.xlu0 %3454
  %v3456 = vsel %vm3374, %v3289, -inf
  %3457 = vmax.xlane.f32.xlu0 %v3456
  %v3458 = vpop.xlane.xlu0 %3457
  %v3459 = vsel %vm3374, %v3290, -inf
  %3460 = vmax.xlane.f32.xlu0 %v3459
  %v3461 = vpop.xlane.xlu0 %3460
  %v3462 = vsel %vm3374, %v3291, -inf
  %3463 = vmax.xlane.f32.xlu0 %v3462
  %v3464 = vpop.xlane.xlu0 %3463
  %v3465 = vsel %vm3374, %v3292, -inf
  %3466 = vmax.xlane.f32.xlu0 %v3465
  %v3467 = vpop.xlane.xlu0 %3466
  %v3468 = vsel %vm3374, %v3293, -inf
  %3469 = vmax.xlane.f32.xlu0 %v3468
  %v3470 = vpop.xlane.xlu0 %3469
  %v3471 = vsel %vm3374, %v3294, -inf
  %3472 = vmax.xlane.f32.xlu0 %v3471
  %v3473 = vpop.xlane.xlu0 %3472
  %v3474 = vsel %vm3374, %v3295, -inf
  %3475 = vmax.xlane.f32.xlu0 %v3474
  %v3476 = vpop.xlane.xlu0 %3475
  %v3477 = vsel %vm3374, %v3296, -inf
  %3478 = vmax.xlane.f32.xlu0 %v3477
  %v3479 = vpop.xlane.xlu0 %3478
  %v3480 = vsel %vm3374, %v3297, -inf
  %3481 = vmax.xlane.f32.xlu0 %v3480
  %v3482 = vpop.xlane.xlu0 %3481
  %v3483 = vsel %vm3374, %v3298, -inf
  %3484 = vmax.xlane.f32.xlu0 %v3483
  %v3485 = vpop.xlane.xlu0 %3484
  %v3486 = vsel %vm3374, %v3299, -inf
  %3487 = vmax.xlane.f32.xlu0 %v3486
  %v3488 = vpop.xlane.xlu0 %3487
  %v3489 = vsel %vm3374, %v3300, -inf
  %3490 = vmax.xlane.f32.xlu0 %v3489
  %v3491 = vpop.xlane.xlu0 %3490
  %v3492 = vsel %vm3374, %v3301, -inf
  %3493 = vmax.xlane.f32.xlu0 %v3492
  %v3494 = vpop.xlane.xlu0 %3493
  %v3495 = vsel %vm3374, %v3302, -inf
  %3496 = vmax.xlane.f32.xlu0 %v3495
  %v3497 = vpop.xlane.xlu0 %3496
  %v3498 = vsel %vm3374, %v3303, -inf
  %3499 = vmax.xlane.f32.xlu0 %v3498
  %v3500 = vpop.xlane.xlu0 %3499
  %v3501 = vsel %vm3374, %v3304, -inf
  %3502 = vmax.xlane.f32.xlu0 %v3501
  %v3503 = vpop.xlane.xlu0 %3502
  %v3504 = vsel %vm3374, %v3305, -inf
  %3505 = vmax.xlane.f32.xlu0 %v3504
  %v3506 = vpop.xlane.xlu0 %3505
  %v3507 = vsel %vm3374, %v3306, -inf
  %3508 = vmax.xlane.f32.xlu0 %v3507
  %v3509 = vpop.xlane.xlu0 %3508
  %v3510 = vsel %vm3374, %v3307, -inf
  %3511 = vmax.xlane.f32.xlu0 %v3510
  %v3512 = vpop.xlane.xlu0 %3511
  %v3513 = vsel %vm3374, %v3308, -inf
  %3514 = vmax.xlane.f32.xlu0 %v3513
  %v3515 = vpop.xlane.xlu0 %3514
  %v3516 = vsel %vm3374, %v3309, -inf
  %3517 = vmax.xlane.f32.xlu0 %v3516
  %v3518 = vpop.xlane.xlu0 %3517
  %v3519 = vsel %vm3374, %v3310, -inf
  %3520 = vmax.xlane.f32.xlu0 %v3519
  %v3521 = vpop.xlane.xlu0 %3520
  %v3522 = vsel %vm3374, %v3311, -inf
  %3523 = vmax.xlane.f32.xlu0 %v3522
  %v3524 = vpop.xlane.xlu0 %3523
  %v3525 = vsel %vm3374, %v3312, -inf
  %3526 = vmax.xlane.f32.xlu0 %v3525
  %v3527 = vpop.xlane.xlu0 %3526
  %v3528 = vsel %vm3374, %v3313, -inf
  %3529 = vmax.xlane.f32.xlu0 %v3528
  %v3530 = vpop.xlane.xlu0 %3529
  %v3531 = vsel %vm3374, %v3314, -inf
  %3532 = vmax.xlane.f32.xlu0 %v3531
  %v3533 = vpop.xlane.xlu0 %3532
  %v3534 = vsel %vm3374, %v3315, -inf
  %3535 = vmax.xlane.f32.xlu0 %v3534
  %v3536 = vpop.xlane.xlu0 %3535
  %v3537 = vsel %vm3374, %v3316, -inf
  %3538 = vmax.xlane.f32.xlu0 %v3537
  %v3539 = vpop.xlane.xlu0 %3538
  %v3540 = vsel %vm3374, %v3317, -inf
  %3541 = vmax.xlane.f32.xlu0 %v3540
  %v3542 = vpop.xlane.xlu0 %3541
  %v3543 = vsel %vm3374, %v3318, -inf
  %3544 = vmax.xlane.f32.xlu0 %v3543
  %v3545 = vpop.xlane.xlu0 %3544
  %v3546 = vsel %vm3374, %v3319, -inf
  %3547 = vmax.xlane.f32.xlu0 %v3546
  %v3548 = vpop.xlane.xlu0 %3547
  %v3549 = vsel %vm3374, %v3320, -inf
  %3550 = vmax.xlane.f32.xlu0 %v3549
  %v3551 = vpop.xlane.xlu0 %3550
  %v3552 = vsel %vm3374, %v3321, -inf
  %3553 = vmax.xlane.f32.xlu0 %v3552
  %v3554 = vpop.xlane.xlu0 %3553
  %v3555 = vsel %vm3374, %v3322, -inf
  %3556 = vmax.xlane.f32.xlu0 %v3555
  %v3557 = vpop.xlane.xlu0 %3556
  %v3558 = vsel %vm3374, %v3323, -inf
  %3559 = vmax.xlane.f32.xlu0 %v3558
  %v3560 = vpop.xlane.xlu0 %3559
  %v3561 = vsel %vm3374, %v3324, -inf
  %3562 = vmax.xlane.f32.xlu0 %v3561
  %v3563 = vpop.xlane.xlu0 %3562
  %v3564 = vsel %vm3374, %v3325, -inf
  %3565 = vmax.xlane.f32.xlu0 %v3564
  %v3566 = vpop.xlane.xlu0 %3565
  %v3567 = vsel %vm3374, %v3326, -inf
  %3568 = vmax.xlane.f32.xlu0 %v3567
  %v3569 = vpop.xlane.xlu0 %3568
  %v3570 = vsel %vm3374, %v3327, -inf
  %3571 = vmax.xlane.f32.xlu0 %v3570
  %v3572 = vpop.xlane.xlu0 %3571
  %v3573 = vsel %vm3374, %v3328, -inf
  %3574 = vmax.xlane.f32.xlu0 %v3573
  %v3575 = vpop.xlane.xlu0 %3574
  %v3576 = vsel %vm3374, %v3329, -inf
  %3577 = vmax.xlane.f32.xlu0 %v3576
  %v3578 = vpop.xlane.xlu0 %3577
  %v3579 = vsel %vm3374, %v3330, -inf
  %3580 = vmax.xlane.f32.xlu0 %v3579
  %v3581 = vpop.xlane.xlu0 %3580
  %v3582 = vsel %vm3374, %v3331, -inf
  %3583 = vmax.xlane.f32.xlu0 %v3582
  %v3584 = vpop.xlane.xlu0 %3583
  %v3585 = vsel %vm3374, %v3332, -inf
  %3586 = vmax.xlane.f32.xlu0 %v3585
  %v3587 = vpop.xlane.xlu0 %3586
  %v3588 = vsel %vm3374, %v3333, -inf
  %3589 = vmax.xlane.f32.xlu0 %v3588
  %v3590 = vpop.xlane.xlu0 %3589
  %v3591 = vsel %vm3374, %v3334, -inf
  %3592 = vmax.xlane.f32.xlu0 %v3591
  %v3593 = vpop.xlane.xlu0 %3592
  %v3594 = vsel %vm3374, %v3335, -inf
  %3595 = vmax.xlane.f32.xlu0 %v3594
  %v3596 = vpop.xlane.xlu0 %3595
  %v3597 = vsel %vm3374, %v3336, -inf
  %3598 = vmax.xlane.f32.xlu0 %v3597
  %v3599 = vpop.xlane.xlu0 %3598
  %v3600 = vsel %vm3374, %v3337, -inf
  %3601 = vmax.xlane.f32.xlu0 %v3600
  %v3602 = vpop.xlane.xlu0 %3601
  %v3603 = vsel %vm3374, %v3338, -inf
  %3604 = vmax.xlane.f32.xlu0 %v3603
  %v3605 = vpop.xlane.xlu0 %3604
  %v3606 = vsel %vm3374, %v3339, -inf
  %3607 = vmax.xlane.f32.xlu0 %v3606
  %v3608 = vpop.xlane.xlu0 %3607
  %v3609 = vsel %vm3374, %v3340, -inf
  %3610 = vmax.xlane.f32.xlu0 %v3609
  %v3611 = vpop.xlane.xlu0 %3610
  %v3612 = vsel %vm3374, %v3341, -inf
  %3613 = vmax.xlane.f32.xlu0 %v3612
  %v3614 = vpop.xlane.xlu0 %3613
  %v3615 = vsel %vm3374, %v3342, -inf
  %3616 = vmax.xlane.f32.xlu0 %v3615
  %v3617 = vpop.xlane.xlu0 %3616
  %v3618 = vsel %vm3374, %v3343, -inf
  %3619 = vmax.xlane.f32.xlu0 %v3618
  %v3620 = vpop.xlane.xlu0 %3619
  %v3621 = vsel %vm3374, %v3344, -inf
  %3622 = vmax.xlane.f32.xlu0 %v3621
  %v3623 = vpop.xlane.xlu0 %3622
  %v3624 = vsel %vm3374, %v3345, -inf
  %3625 = vmax.xlane.f32.xlu0 %v3624
  %v3626 = vpop.xlane.xlu0 %3625
  %v3627 = vsel %vm3374, %v3346, -inf
  %3628 = vmax.xlane.f32.xlu0 %v3627
  %v3629 = vpop.xlane.xlu0 %3628
  %v3630 = vsel %vm3374, %v3347, -inf
  %3631 = vmax.xlane.f32.xlu0 %v3630
  %v3632 = vpop.xlane.xlu0 %3631
  %v3633 = vsel %vm3374, %v3348, -inf
  %3634 = vmax.xlane.f32.xlu0 %v3633
  %v3635 = vpop.xlane.xlu0 %3634
  %v3636 = vsel %vm3374, %v3349, -inf
  %3637 = vmax.xlane.f32.xlu0 %v3636
  %v3638 = vpop.xlane.xlu0 %3637
  %v3639 = vsel %vm3374, %v3350, -inf
  %3640 = vmax.xlane.f32.xlu0 %v3639
  %v3641 = vpop.xlane.xlu0 %3640
  %v3642 = vsel %vm3374, %v3351, -inf
  %3643 = vmax.xlane.f32.xlu0 %v3642
  %v3644 = vpop.xlane.xlu0 %3643
  %v3645 = vsel %vm3374, %v3352, -inf
  %3646 = vmax.xlane.f32.xlu0 %v3645
  %v3647 = vpop.xlane.xlu0 %3646
  %v3648 = vsel %vm3374, %v3353, -inf
  %3649 = vmax.xlane.f32.xlu0 %v3648
  %v3650 = vpop.xlane.xlu0 %3649
  %v3651 = vsel %vm3374, %v3354, -inf
  %3652 = vmax.xlane.f32.xlu0 %v3651
  %v3653 = vpop.xlane.xlu0 %3652
  %v3654 = vsel %vm3374, %v3355, -inf
  %3655 = vmax.xlane.f32.xlu0 %v3654
  %v3656 = vpop.xlane.xlu0 %3655
  %v3657 = vsel %vm3374, %v3356, -inf
  %3658 = vmax.xlane.f32.xlu0 %v3657
  %v3659 = vpop.xlane.xlu0 %3658
  %v3660 = vsel %vm3374, %v3357, -inf
  %3661 = vmax.xlane.f32.xlu0 %v3660
  %v3662 = vpop.xlane.xlu0 %3661
  %v3663 = vsel %vm3374, %v3358, -inf
  %3664 = vmax.xlane.f32.xlu0 %v3663
  %v3665 = vpop.xlane.xlu0 %3664
  %v3666 = vsel %vm3374, %v3359, -inf
  %3667 = vmax.xlane.f32.xlu0 %v3666
  %v3668 = vpop.xlane.xlu0 %3667
  %v3669 = vsel %vm3374, %v3360, -inf
  %3670 = vmax.xlane.f32.xlu0 %v3669
  %v3671 = vpop.xlane.xlu0 %3670
  %v3672 = vsel %vm3374, %v3361, -inf
  %3673 = vmax.xlane.f32.xlu0 %v3672
  %v3674 = vpop.xlane.xlu0 %3673
  %v3675 = vsel %vm3374, %v3362, -inf
  %3676 = vmax.xlane.f32.xlu0 %v3675
  %v3677 = vpop.xlane.xlu0 %3676
  %v3678 = vsel %vm3374, %v3363, -inf
  %3679 = vmax.xlane.f32.xlu0 %v3678
  %v3680 = vpop.xlane.xlu0 %3679
  %v3681 = vsel %vm3374, %v3364, -inf
  %3682 = vmax.xlane.f32.xlu0 %v3681
  %v3683 = vpop.xlane.xlu0 %3682
  %v3684 = vsel %vm3374, %v3365, -inf
  %3685 = vmax.xlane.f32.xlu0 %v3684
  %v3686 = vpop.xlane.xlu0 %3685
  %v3687 = vsel %vm3374, %v3366, -inf
  %3688 = vmax.xlane.f32.xlu0 %v3687
  %v3689 = vpop.xlane.xlu0 %3688
  %v3690 = vsel %vm3374, %v3367, -inf
  %3691 = vmax.xlane.f32.xlu0 %v3690
  %v3692 = vpop.xlane.xlu0 %3691
  %v3693 = vsel %vm3374, %v3368, -inf
  %3694 = vmax.xlane.f32.xlu0 %v3693
  %v3695 = vpop.xlane.xlu0 %3694
  %v3696 = vsel %vm3374, %v3369, -inf
  %3697 = vmax.xlane.f32.xlu0 %v3696
  %v3698 = vpop.xlane.xlu0 %3697
  %v3699 = vsel %vm3374, %v3370, -inf
  %3700 = vmax.xlane.f32.xlu0 %v3699
  %v3701 = vpop.xlane.xlu0 %3700
  %v3702 = vsel %vm3374, %v3371, -inf
  %3703 = vmax.xlane.f32.xlu0 %v3702
  %v3704 = vpop.xlane.xlu0 %3703
  %v3705 = vsel %vm3374, %v3372, -inf
  %3706 = vmax.xlane.f32.xlu0 %v3705
  %v3707 = vpop.xlane.xlu0 %3706
  %v3708 = vsel %vm3374, %v3373, -inf
  %3709 = vmax.xlane.f32.xlu0 %v3708
  %v3710 = vpop.xlane.xlu0 %3709
  %v3711 = vsub.f32 %v3262, %v3377
  %v3712 = vsub.f32 %v3263, %v3380
  %v3713 = vsub.f32 %v3264, %v3383
  %v3714 = vsub.f32 %v3265, %v3386
  %v3715 = vsub.f32 %v3266, %v3389
  %v3716 = vsub.f32 %v3267, %v3392
  %v3717 = vsub.f32 %v3268, %v3395
  %v3718 = vsub.f32 %v3269, %v3398
  %v3719 = vsub.f32 %v3270, %v3401
  %v3720 = vsub.f32 %v3271, %v3404
  %v3721 = vsub.f32 %v3272, %v3407
  %v3722 = vsub.f32 %v3273, %v3410
  %v3723 = vsub.f32 %v3274, %v3413
  %v3724 = vsub.f32 %v3275, %v3416
  %v3725 = vsub.f32 %v3276, %v3419
  %v3726 = vsub.f32 %v3277, %v3422
  %v3727 = vsub.f32 %v3278, %v3425
  %v3728 = vsub.f32 %v3279, %v3428
  %v3729 = vsub.f32 %v3280, %v3431
  %v3730 = vsub.f32 %v3281, %v3434
  %v3731 = vsub.f32 %v3282, %v3437
  %v3732 = vsub.f32 %v3283, %v3440
  %v3733 = vsub.f32 %v3284, %v3443
  %v3734 = vsub.f32 %v3285, %v3446
  %v3735 = vsub.f32 %v3286, %v3449
  %v3736 = vsub.f32 %v3287, %v3452
  %v3737 = vsub.f32 %v3288, %v3455
  %v3738 = vsub.f32 %v3289, %v3458
  %v3739 = vsub.f32 %v3290, %v3461
  %v3740 = vsub.f32 %v3291, %v3464
  %v3741 = vsub.f32 %v3292, %v3467
  %v3742 = vsub.f32 %v3293, %v3470
  %v3743 = vsub.f32 %v3294, %v3473
  %v3744 = vsub.f32 %v3295, %v3476
  %v3745 = vsub.f32 %v3296, %v3479
  %v3746 = vsub.f32 %v3297, %v3482
  %v3747 = vsub.f32 %v3298, %v3485
  %v3748 = vsub.f32 %v3299, %v3488
  %v3749 = vsub.f32 %v3300, %v3491
  %v3750 = vsub.f32 %v3301, %v3494
  %v3751 = vsub.f32 %v3302, %v3497
  %v3752 = vsub.f32 %v3303, %v3500
  %v3753 = vsub.f32 %v3304, %v3503
  %v3754 = vsub.f32 %v3305, %v3506
  %v3755 = vsub.f32 %v3306, %v3509
  %v3756 = vsub.f32 %v3307, %v3512
  %v3757 = vsub.f32 %v3308, %v3515
  %v3758 = vsub.f32 %v3309, %v3518
  %v3759 = vsub.f32 %v3310, %v3521
  %v3760 = vsub.f32 %v3311, %v3524
  %v3761 = vsub.f32 %v3312, %v3527
  %v3762 = vsub.f32 %v3313, %v3530
  %v3763 = vsub.f32 %v3314, %v3533
  %v3764 = vsub.f32 %v3315, %v3536
  %v3765 = vsub.f32 %v3316, %v3539
  %v3766 = vsub.f32 %v3317, %v3542
  %v3767 = vsub.f32 %v3318, %v3545
  %v3768 = vsub.f32 %v3319, %v3548
  %v3769 = vsub.f32 %v3320, %v3551
  %v3770 = vsub.f32 %v3321, %v3554
  %v3771 = vsub.f32 %v3322, %v3557
  %v3772 = vsub.f32 %v3323, %v3560
  %v3773 = vsub.f32 %v3324, %v3563
  %v3774 = vsub.f32 %v3325, %v3566
  %v3775 = vsub.f32 %v3326, %v3569
  %v3776 = vsub.f32 %v3327, %v3572
  %v3777 = vsub.f32 %v3328, %v3575
  %v3778 = vsub.f32 %v3329, %v3578
  %v3779 = vsub.f32 %v3330, %v3581
  %v3780 = vsub.f32 %v3331, %v3584
  %v3781 = vsub.f32 %v3332, %v3587
  %v3782 = vsub.f32 %v3333, %v3590
  %v3783 = vsub.f32 %v3334, %v3593
  %v3784 = vsub.f32 %v3335, %v3596
  %v3785 = vsub.f32 %v3336, %v3599
  %v3786 = vsub.f32 %v3337, %v3602
  %v3787 = vsub.f32 %v3338, %v3605
  %v3788 = vsub.f32 %v3339, %v3608
  %v3789 = vsub.f32 %v3340, %v3611
  %v3790 = vsub.f32 %v3341, %v3614
  %v3791 = vsub.f32 %v3342, %v3617
  %v3792 = vsub.f32 %v3343, %v3620
  %v3793 = vsub.f32 %v3344, %v3623
  %v3794 = vsub.f32 %v3345, %v3626
  %v3795 = vsub.f32 %v3346, %v3629
  %v3796 = vsub.f32 %v3347, %v3632
  %v3797 = vsub.f32 %v3348, %v3635
  %v3798 = vsub.f32 %v3349, %v3638
  %v3799 = vsub.f32 %v3350, %v3641
  %v3800 = vsub.f32 %v3351, %v3644
  %v3801 = vsub.f32 %v3352, %v3647
  %v3802 = vsub.f32 %v3353, %v3650
  %v3803 = vsub.f32 %v3354, %v3653
  %v3804 = vsub.f32 %v3355, %v3656
  %v3805 = vsub.f32 %v3356, %v3659
  %v3806 = vsub.f32 %v3357, %v3662
  %v3807 = vsub.f32 %v3358, %v3665
  %v3808 = vsub.f32 %v3359, %v3668
  %v3809 = vsub.f32 %v3360, %v3671
  %v3810 = vsub.f32 %v3361, %v3674
  %v3811 = vsub.f32 %v3362, %v3677
  %v3812 = vsub.f32 %v3363, %v3680
  %v3813 = vsub.f32 %v3364, %v3683
  %v3814 = vsub.f32 %v3365, %v3686
  %v3815 = vsub.f32 %v3366, %v3689
  %v3816 = vsub.f32 %v3367, %v3692
  %v3817 = vsub.f32 %v3368, %v3695
  %v3818 = vsub.f32 %v3369, %v3698
  %v3819 = vsub.f32 %v3370, %v3701
  %v3820 = vsub.f32 %v3371, %v3704
  %v3821 = vsub.f32 %v3372, %v3707
  %v3822 = vsub.f32 %v3373, %v3710
  %v3823 = vmul.f32 %v3711, 1.442695
  %v3824 = vpow.pop %v3823
  %v3825 = vmul.f32 %v3712, 1.442695
  %v3826 = vpow.pop %v3825
  %v3827 = vmul.f32 %v3713, 1.442695
  %v3828 = vpow.pop %v3827
  %v3829 = vmul.f32 %v3714, 1.442695
  %v3830 = vpow.pop %v3829
  %v3831 = vmul.f32 %v3715, 1.442695
  %v3832 = vpow.pop %v3831
  %v3833 = vmul.f32 %v3716, 1.442695
  %v3834 = vpow.pop %v3833
  %v3835 = vmul.f32 %v3717, 1.442695
  %v3836 = vpow.pop %v3835
  %v3837 = vmul.f32 %v3718, 1.442695
  %v3838 = vpow.pop %v3837
  %v3839 = vmul.f32 %v3719, 1.442695
  %v3840 = vpow.pop %v3839
  %v3841 = vmul.f32 %v3720, 1.442695
  %v3842 = vpow.pop %v3841
  %v3843 = vmul.f32 %v3721, 1.442695
  %v3844 = vpow.pop %v3843
  %v3845 = vmul.f32 %v3722, 1.442695
  %v3846 = vpow.pop %v3845
  %v3847 = vmul.f32 %v3723, 1.442695
  %v3848 = vpow.pop %v3847
  %v3849 = vmul.f32 %v3724, 1.442695
  %v3850 = vpow.pop %v3849
  %v3851 = vmul.f32 %v3725, 1.442695
  %v3852 = vpow.pop %v3851
  %v3853 = vmul.f32 %v3726, 1.442695
  %v3854 = vpow.pop %v3853
  %v3855 = vmul.f32 %v3727, 1.442695
  %v3856 = vpow.pop %v3855
  %v3857 = vmul.f32 %v3728, 1.442695
  %v3858 = vpow.pop %v3857
  %v3859 = vmul.f32 %v3729, 1.442695
  %v3860 = vpow.pop %v3859
  %v3861 = vmul.f32 %v3730, 1.442695
  %v3862 = vpow.pop %v3861
  %v3863 = vmul.f32 %v3731, 1.442695
  %v3864 = vpow.pop %v3863
  %v3865 = vmul.f32 %v3732, 1.442695
  %v3866 = vpow.pop %v3865
  %v3867 = vmul.f32 %v3733, 1.442695
  %v3868 = vpow.pop %v3867
  %v3869 = vmul.f32 %v3734, 1.442695
  %v3870 = vpow.pop %v3869
  %v3871 = vmul.f32 %v3735, 1.442695
  %v3872 = vpow.pop %v3871
  %v3873 = vmul.f32 %v3736, 1.442695
  %v3874 = vpow.pop %v3873
  %v3875 = vmul.f32 %v3737, 1.442695
  %v3876 = vpow.pop %v3875
  %v3877 = vmul.f32 %v3738, 1.442695
  %v3878 = vpow.pop %v3877
  %v3879 = vmul.f32 %v3739, 1.442695
  %v3880 = vpow.pop %v3879
  %v3881 = vmul.f32 %v3740, 1.442695
  %v3882 = vpow.pop %v3881
  %v3883 = vmul.f32 %v3741, 1.442695
  %v3884 = vpow.pop %v3883
  %v3885 = vmul.f32 %v3742, 1.442695
  %v3886 = vpow.pop %v3885
  %v3887 = vmul.f32 %v3743, 1.442695
  %v3888 = vpow.pop %v3887
  %v3889 = vmul.f32 %v3744, 1.442695
  %v3890 = vpow.pop %v3889
  %v3891 = vmul.f32 %v3745, 1.442695
  %v3892 = vpow.pop %v3891
  %v3893 = vmul.f32 %v3746, 1.442695
  %v3894 = vpow.pop %v3893
  %v3895 = vmul.f32 %v3747, 1.442695
  %v3896 = vpow.pop %v3895
  %v3897 = vmul.f32 %v3748, 1.442695
  %v3898 = vpow.pop %v3897
  %v3899 = vmul.f32 %v3749, 1.442695
  %v3900 = vpow.pop %v3899
  %v3901 = vmul.f32 %v3750, 1.442695
  %v3902 = vpow.pop %v3901
  %v3903 = vmul.f32 %v3751, 1.442695
  %v3904 = vpow.pop %v3903
  %v3905 = vmul.f32 %v3752, 1.442695
  %v3906 = vpow.pop %v3905
  %v3907 = vmul.f32 %v3753, 1.442695
  %v3908 = vpow.pop %v3907
  %v3909 = vmul.f32 %v3754, 1.442695
  %v3910 = vpow.pop %v3909
  %v3911 = vmul.f32 %v3755, 1.442695
  %v3912 = vpow.pop %v3911
  %v3913 = vmul.f32 %v3756, 1.442695
  %v3914 = vpow.pop %v3913
  %v3915 = vmul.f32 %v3757, 1.442695
  %v3916 = vpow.pop %v3915
  %v3917 = vmul.f32 %v3758, 1.442695
  %v3918 = vpow.pop %v3917
  %v3919 = vmul.f32 %v3759, 1.442695
  %v3920 = vpow.pop %v3919
  %v3921 = vmul.f32 %v3760, 1.442695
  %v3922 = vpow.pop %v3921
  %v3923 = vmul.f32 %v3761, 1.442695
  %v3924 = vpow.pop %v3923
  %v3925 = vmul.f32 %v3762, 1.442695
  %v3926 = vpow.pop %v3925
  %v3927 = vmul.f32 %v3763, 1.442695
  %v3928 = vpow.pop %v3927
  %v3929 = vmul.f32 %v3764, 1.442695
  %v3930 = vpow.pop %v3929
  %v3931 = vmul.f32 %v3765, 1.442695
  %v3932 = vpow.pop %v3931
  %v3933 = vmul.f32 %v3766, 1.442695
  %v3934 = vpow.pop %v3933
  %v3935 = vmul.f32 %v3767, 1.442695
  %v3936 = vpow.pop %v3935
  %v3937 = vmul.f32 %v3768, 1.442695
  %v3938 = vpow.pop %v3937
  %v3939 = vmul.f32 %v3769, 1.442695
  %v3940 = vpow.pop %v3939
  %v3941 = vmul.f32 %v3770, 1.442695
  %v3942 = vpow.pop %v3941
  %v3943 = vmul.f32 %v3771, 1.442695
  %v3944 = vpow.pop %v3943
  %v3945 = vmul.f32 %v3772, 1.442695
  %v3946 = vpow.pop %v3945
  %v3947 = vmul.f32 %v3773, 1.442695
  %v3948 = vpow.pop %v3947
  %v3949 = vmul.f32 %v3774, 1.442695
  %v3950 = vpow.pop %v3949
  %v3951 = vmul.f32 %v3775, 1.442695
  %v3952 = vpow.pop %v3951
  %v3953 = vmul.f32 %v3776, 1.442695
  %v3954 = vpow.pop %v3953
  %v3955 = vmul.f32 %v3777, 1.442695
  %v3956 = vpow.pop %v3955
  %v3957 = vmul.f32 %v3778, 1.442695
  %v3958 = vpow.pop %v3957
  %v3959 = vmul.f32 %v3779, 1.442695
  %v3960 = vpow.pop %v3959
  %v3961 = vmul.f32 %v3780, 1.442695
  %v3962 = vpow.pop %v3961
  %v3963 = vmul.f32 %v3781, 1.442695
  %v3964 = vpow.pop %v3963
  %v3965 = vmul.f32 %v3782, 1.442695
  %v3966 = vpow.pop %v3965
  %v3967 = vmul.f32 %v3783, 1.442695
  %v3968 = vpow.pop %v3967
  %v3969 = vmul.f32 %v3784, 1.442695
  %v3970 = vpow.pop %v3969
  %v3971 = vmul.f32 %v3785, 1.442695
  %v3972 = vpow.pop %v3971
  %v3973 = vmul.f32 %v3786, 1.442695
  %v3974 = vpow.pop %v3973
  %v3975 = vmul.f32 %v3787, 1.442695
  %v3976 = vpow.pop %v3975
  %v3977 = vmul.f32 %v3788, 1.442695
  %v3978 = vpow.pop %v3977
  %v3979 = vmul.f32 %v3789, 1.442695
  %v3980 = vpow.pop %v3979
  %v3981 = vmul.f32 %v3790, 1.442695
  %v3982 = vpow.pop %v3981
  %v3983 = vmul.f32 %v3791, 1.442695
  %v3984 = vpow.pop %v3983
  %v3985 = vmul.f32 %v3792, 1.442695
  %v3986 = vpow.pop %v3985
  %v3987 = vmul.f32 %v3793, 1.442695
  %v3988 = vpow.pop %v3987
  %v3989 = vmul.f32 %v3794, 1.442695
  %v3990 = vpow.pop %v3989
  %v3991 = vmul.f32 %v3795, 1.442695
  %v3992 = vpow.pop %v3991
  %v3993 = vmul.f32 %v3796, 1.442695
  %v3994 = vpow.pop %v3993
  %v3995 = vmul.f32 %v3797, 1.442695
  %v3996 = vpow.pop %v3995
  %v3997 = vmul.f32 %v3798, 1.442695
  %v3998 = vpow.pop %v3997
  %v3999 = vmul.f32 %v3799, 1.442695
  %v4000 = vpow.pop %v3999
  %v4001 = vmul.f32 %v3800, 1.442695
  %v4002 = vpow.pop %v4001
  %v4003 = vmul.f32 %v3801, 1.442695
  %v4004 = vpow.pop %v4003
  %v4005 = vmul.f32 %v3802, 1.442695
  %v4006 = vpow.pop %v4005
  %v4007 = vmul.f32 %v3803, 1.442695
  %v4008 = vpow.pop %v4007
  %v4009 = vmul.f32 %v3804, 1.442695
  %v4010 = vpow.pop %v4009
  %v4011 = vmul.f32 %v3805, 1.442695
  %v4012 = vpow.pop %v4011
  %v4013 = vmul.f32 %v3806, 1.442695
  %v4014 = vpow.pop %v4013
  %v4015 = vmul.f32 %v3807, 1.442695
  %v4016 = vpow.pop %v4015
  %v4017 = vmul.f32 %v3808, 1.442695
  %v4018 = vpow.pop %v4017
  %v4019 = vmul.f32 %v3809, 1.442695
  %v4020 = vpow.pop %v4019
  %v4021 = vmul.f32 %v3810, 1.442695
  %v4022 = vpow.pop %v4021
  %v4023 = vmul.f32 %v3811, 1.442695
  %v4024 = vpow.pop %v4023
  %v4025 = vmul.f32 %v3812, 1.442695
  %v4026 = vpow.pop %v4025
  %v4027 = vmul.f32 %v3813, 1.442695
  %v4028 = vpow.pop %v4027
  %v4029 = vmul.f32 %v3814, 1.442695
  %v4030 = vpow.pop %v4029
  %v4031 = vmul.f32 %v3815, 1.442695
  %v4032 = vpow.pop %v4031
  %v4033 = vmul.f32 %v3816, 1.442695
  %v4034 = vpow.pop %v4033
  %v4035 = vmul.f32 %v3817, 1.442695
  %v4036 = vpow.pop %v4035
  %v4037 = vmul.f32 %v3818, 1.442695
  %v4038 = vpow.pop %v4037
  %v4039 = vmul.f32 %v3819, 1.442695
  %v4040 = vpow.pop %v4039
  %v4041 = vmul.f32 %v3820, 1.442695
  %v4042 = vpow.pop %v4041
  %v4043 = vmul.f32 %v3821, 1.442695
  %v4044 = vpow.pop %v4043
  %v4045 = vmul.f32 %v3822, 1.442695
  %v4046 = vpow.pop %v4045
  %v4047 = vsel %vm3374, %v3824, 0.0
  %4048 = vadd.xlane.f32.xlu0 %v4047
  %v4049 = vpop.xlane.xlu0 %4048
  %v4050 = vsel %vm3374, %v3826, 0.0
  %4051 = vadd.xlane.f32.xlu0 %v4050
  %v4052 = vpop.xlane.xlu0 %4051
  %v4053 = vsel %vm3374, %v3828, 0.0
  %4054 = vadd.xlane.f32.xlu0 %v4053
  %v4055 = vpop.xlane.xlu0 %4054
  %v4056 = vsel %vm3374, %v3830, 0.0
  %4057 = vadd.xlane.f32.xlu0 %v4056
  %v4058 = vpop.xlane.xlu0 %4057
  %v4059 = vsel %vm3374, %v3832, 0.0
  %4060 = vadd.xlane.f32.xlu0 %v4059
  %v4061 = vpop.xlane.xlu0 %4060
  %v4062 = vsel %vm3374, %v3834, 0.0
  %4063 = vadd.xlane.f32.xlu0 %v4062
  %v4064 = vpop.xlane.xlu0 %4063
  %v4065 = vsel %vm3374, %v3836, 0.0
  %4066 = vadd.xlane.f32.xlu0 %v4065
  %v4067 = vpop.xlane.xlu0 %4066
  %v4068 = vsel %vm3374, %v3838, 0.0
  %4069 = vadd.xlane.f32.xlu0 %v4068
  %v4070 = vpop.xlane.xlu0 %4069
  %v4071 = vsel %vm3374, %v3840, 0.0
  %4072 = vadd.xlane.f32.xlu0 %v4071
  %v4073 = vpop.xlane.xlu0 %4072
  %v4074 = vsel %vm3374, %v3842, 0.0
  %4075 = vadd.xlane.f32.xlu0 %v4074
  %v4076 = vpop.xlane.xlu0 %4075
  %v4077 = vsel %vm3374, %v3844, 0.0
  %4078 = vadd.xlane.f32.xlu0 %v4077
  %v4079 = vpop.xlane.xlu0 %4078
  %v4080 = vsel %vm3374, %v3846, 0.0
  %4081 = vadd.xlane.f32.xlu0 %v4080
  %v4082 = vpop.xlane.xlu0 %4081
  %v4083 = vsel %vm3374, %v3848, 0.0
  %4084 = vadd.xlane.f32.xlu0 %v4083
  %v4085 = vpop.xlane.xlu0 %4084
  %v4086 = vsel %vm3374, %v3850, 0.0
  %4087 = vadd.xlane.f32.xlu0 %v4086
  %v4088 = vpop.xlane.xlu0 %4087
  %v4089 = vsel %vm3374, %v3852, 0.0
  %4090 = vadd.xlane.f32.xlu0 %v4089
  %v4091 = vpop.xlane.xlu0 %4090
  %v4092 = vsel %vm3374, %v3854, 0.0
  %4093 = vadd.xlane.f32.xlu0 %v4092
  %v4094 = vpop.xlane.xlu0 %4093
  %v4095 = vsel %vm3374, %v3856, 0.0
  %4096 = vadd.xlane.f32.xlu0 %v4095
  %v4097 = vpop.xlane.xlu0 %4096
  %v4098 = vsel %vm3374, %v3858, 0.0
  %4099 = vadd.xlane.f32.xlu0 %v4098
  %v4100 = vpop.xlane.xlu0 %4099
  %v4101 = vsel %vm3374, %v3860, 0.0
  %4102 = vadd.xlane.f32.xlu0 %v4101
  %v4103 = vpop.xlane.xlu0 %4102
  %v4104 = vsel %vm3374, %v3862, 0.0
  %4105 = vadd.xlane.f32.xlu0 %v4104
  %v4106 = vpop.xlane.xlu0 %4105
  %v4107 = vsel %vm3374, %v3864, 0.0
  %4108 = vadd.xlane.f32.xlu0 %v4107
  %v4109 = vpop.xlane.xlu0 %4108
  %v4110 = vsel %vm3374, %v3866, 0.0
  %4111 = vadd.xlane.f32.xlu0 %v4110
  %v4112 = vpop.xlane.xlu0 %4111
  %v4113 = vsel %vm3374, %v3868, 0.0
  %4114 = vadd.xlane.f32.xlu0 %v4113
  %v4115 = vpop.xlane.xlu0 %4114
  %v4116 = vsel %vm3374, %v3870, 0.0
  %4117 = vadd.xlane.f32.xlu0 %v4116
  %v4118 = vpop.xlane.xlu0 %4117
  %v4119 = vsel %vm3374, %v3872, 0.0
  %4120 = vadd.xlane.f32.xlu0 %v4119
  %v4121 = vpop.xlane.xlu0 %4120
  %v4122 = vsel %vm3374, %v3874, 0.0
  %4123 = vadd.xlane.f32.xlu0 %v4122
  %v4124 = vpop.xlane.xlu0 %4123
  %v4125 = vsel %vm3374, %v3876, 0.0
  %4126 = vadd.xlane.f32.xlu0 %v4125
  %v4127 = vpop.xlane.xlu0 %4126
  %v4128 = vsel %vm3374, %v3878, 0.0
  %4129 = vadd.xlane.f32.xlu0 %v4128
  %v4130 = vpop.xlane.xlu0 %4129
  %v4131 = vsel %vm3374, %v3880, 0.0
  %4132 = vadd.xlane.f32.xlu0 %v4131
  %v4133 = vpop.xlane.xlu0 %4132
  %v4134 = vsel %vm3374, %v3882, 0.0
  %4135 = vadd.xlane.f32.xlu0 %v4134
  %v4136 = vpop.xlane.xlu0 %4135
  %v4137 = vsel %vm3374, %v3884, 0.0
  %4138 = vadd.xlane.f32.xlu0 %v4137
  %v4139 = vpop.xlane.xlu0 %4138
  %v4140 = vsel %vm3374, %v3886, 0.0
  %4141 = vadd.xlane.f32.xlu0 %v4140
  %v4142 = vpop.xlane.xlu0 %4141
  %v4143 = vsel %vm3374, %v3888, 0.0
  %4144 = vadd.xlane.f32.xlu0 %v4143
  %v4145 = vpop.xlane.xlu0 %4144
  %v4146 = vsel %vm3374, %v3890, 0.0
  %4147 = vadd.xlane.f32.xlu0 %v4146
  %v4148 = vpop.xlane.xlu0 %4147
  %v4149 = vsel %vm3374, %v3892, 0.0
  %4150 = vadd.xlane.f32.xlu0 %v4149
  %v4151 = vpop.xlane.xlu0 %4150
  %v4152 = vsel %vm3374, %v3894, 0.0
  %4153 = vadd.xlane.f32.xlu0 %v4152
  %v4154 = vpop.xlane.xlu0 %4153
  %v4155 = vsel %vm3374, %v3896, 0.0
  %4156 = vadd.xlane.f32.xlu0 %v4155
  %v4157 = vpop.xlane.xlu0 %4156
  %v4158 = vsel %vm3374, %v3898, 0.0
  %4159 = vadd.xlane.f32.xlu0 %v4158
  %v4160 = vpop.xlane.xlu0 %4159
  %v4161 = vsel %vm3374, %v3900, 0.0
  %4162 = vadd.xlane.f32.xlu0 %v4161
  %v4163 = vpop.xlane.xlu0 %4162
  %v4164 = vsel %vm3374, %v3902, 0.0
  %4165 = vadd.xlane.f32.xlu0 %v4164
  %v4166 = vpop.xlane.xlu0 %4165
  %v4167 = vsel %vm3374, %v3904, 0.0
  %4168 = vadd.xlane.f32.xlu0 %v4167
  %v4169 = vpop.xlane.xlu0 %4168
  %v4170 = vsel %vm3374, %v3906, 0.0
  %4171 = vadd.xlane.f32.xlu0 %v4170
  %v4172 = vpop.xlane.xlu0 %4171
  %v4173 = vsel %vm3374, %v3908, 0.0
  %4174 = vadd.xlane.f32.xlu0 %v4173
  %v4175 = vpop.xlane.xlu0 %4174
  %v4176 = vsel %vm3374, %v3910, 0.0
  %4177 = vadd.xlane.f32.xlu0 %v4176
  %v4178 = vpop.xlane.xlu0 %4177
  %v4179 = vsel %vm3374, %v3912, 0.0
  %4180 = vadd.xlane.f32.xlu0 %v4179
  %v4181 = vpop.xlane.xlu0 %4180
  %v4182 = vsel %vm3374, %v3914, 0.0
  %4183 = vadd.xlane.f32.xlu0 %v4182
  %v4184 = vpop.xlane.xlu0 %4183
  %v4185 = vsel %vm3374, %v3916, 0.0
  %4186 = vadd.xlane.f32.xlu0 %v4185
  %v4187 = vpop.xlane.xlu0 %4186
  %v4188 = vsel %vm3374, %v3918, 0.0
  %4189 = vadd.xlane.f32.xlu0 %v4188
  %v4190 = vpop.xlane.xlu0 %4189
  %v4191 = vsel %vm3374, %v3920, 0.0
  %4192 = vadd.xlane.f32.xlu0 %v4191
  %v4193 = vpop.xlane.xlu0 %4192
  %v4194 = vsel %vm3374, %v3922, 0.0
  %4195 = vadd.xlane.f32.xlu0 %v4194
  %v4196 = vpop.xlane.xlu0 %4195
  %v4197 = vsel %vm3374, %v3924, 0.0
  %4198 = vadd.xlane.f32.xlu0 %v4197
  %v4199 = vpop.xlane.xlu0 %4198
  %v4200 = vsel %vm3374, %v3926, 0.0
  %4201 = vadd.xlane.f32.xlu0 %v4200
  %v4202 = vpop.xlane.xlu0 %4201
  %v4203 = vsel %vm3374, %v3928, 0.0
  %4204 = vadd.xlane.f32.xlu0 %v4203
  %v4205 = vpop.xlane.xlu0 %4204
  %v4206 = vsel %vm3374, %v3930, 0.0
  %4207 = vadd.xlane.f32.xlu0 %v4206
  %v4208 = vpop.xlane.xlu0 %4207
  %v4209 = vsel %vm3374, %v3932, 0.0
  %4210 = vadd.xlane.f32.xlu0 %v4209
  %v4211 = vpop.xlane.xlu0 %4210
  %v4212 = vsel %vm3374, %v3934, 0.0
  %4213 = vadd.xlane.f32.xlu0 %v4212
  %v4214 = vpop.xlane.xlu0 %4213
  %v4215 = vsel %vm3374, %v3936, 0.0
  %4216 = vadd.xlane.f32.xlu0 %v4215
  %v4217 = vpop.xlane.xlu0 %4216
  %v4218 = vsel %vm3374, %v3938, 0.0
  %4219 = vadd.xlane.f32.xlu0 %v4218
  %v4220 = vpop.xlane.xlu0 %4219
  %v4221 = vsel %vm3374, %v3940, 0.0
  %4222 = vadd.xlane.f32.xlu0 %v4221
  %v4223 = vpop.xlane.xlu0 %4222
  %v4224 = vsel %vm3374, %v3942, 0.0
  %4225 = vadd.xlane.f32.xlu0 %v4224
  %v4226 = vpop.xlane.xlu0 %4225
  %v4227 = vsel %vm3374, %v3944, 0.0
  %4228 = vadd.xlane.f32.xlu0 %v4227
  %v4229 = vpop.xlane.xlu0 %4228
  %v4230 = vsel %vm3374, %v3946, 0.0
  %4231 = vadd.xlane.f32.xlu0 %v4230
  %v4232 = vpop.xlane.xlu0 %4231
  %v4233 = vsel %vm3374, %v3948, 0.0
  %4234 = vadd.xlane.f32.xlu0 %v4233
  %v4235 = vpop.xlane.xlu0 %4234
  %v4236 = vsel %vm3374, %v3950, 0.0
  %4237 = vadd.xlane.f32.xlu0 %v4236
  %v4238 = vpop.xlane.xlu0 %4237
  %v4239 = vsel %vm3374, %v3952, 0.0
  %4240 = vadd.xlane.f32.xlu0 %v4239
  %v4241 = vpop.xlane.xlu0 %4240
  %v4242 = vsel %vm3374, %v3954, 0.0
  %4243 = vadd.xlane.f32.xlu0 %v4242
  %v4244 = vpop.xlane.xlu0 %4243
  %v4245 = vsel %vm3374, %v3956, 0.0
  %4246 = vadd.xlane.f32.xlu0 %v4245
  %v4247 = vpop.xlane.xlu0 %4246
  %v4248 = vsel %vm3374, %v3958, 0.0
  %4249 = vadd.xlane.f32.xlu0 %v4248
  %v4250 = vpop.xlane.xlu0 %4249
  %v4251 = vsel %vm3374, %v3960, 0.0
  %4252 = vadd.xlane.f32.xlu0 %v4251
  %v4253 = vpop.xlane.xlu0 %4252
  %v4254 = vsel %vm3374, %v3962, 0.0
  %4255 = vadd.xlane.f32.xlu0 %v4254
  %v4256 = vpop.xlane.xlu0 %4255
  %v4257 = vsel %vm3374, %v3964, 0.0
  %4258 = vadd.xlane.f32.xlu0 %v4257
  %v4259 = vpop.xlane.xlu0 %4258
  %v4260 = vsel %vm3374, %v3966, 0.0
  %4261 = vadd.xlane.f32.xlu0 %v4260
  %v4262 = vpop.xlane.xlu0 %4261
  %v4263 = vsel %vm3374, %v3968, 0.0
  %4264 = vadd.xlane.f32.xlu0 %v4263
  %v4265 = vpop.xlane.xlu0 %4264
  %v4266 = vsel %vm3374, %v3970, 0.0
  %4267 = vadd.xlane.f32.xlu0 %v4266
  %v4268 = vpop.xlane.xlu0 %4267
  %v4269 = vsel %vm3374, %v3972, 0.0
  %4270 = vadd.xlane.f32.xlu0 %v4269
  %v4271 = vpop.xlane.xlu0 %4270
  %v4272 = vsel %vm3374, %v3974, 0.0
  %4273 = vadd.xlane.f32.xlu0 %v4272
  %v4274 = vpop.xlane.xlu0 %4273
  %v4275 = vsel %vm3374, %v3976, 0.0
  %4276 = vadd.xlane.f32.xlu0 %v4275
  %v4277 = vpop.xlane.xlu0 %4276
  %v4278 = vsel %vm3374, %v3978, 0.0
  %4279 = vadd.xlane.f32.xlu0 %v4278
  %v4280 = vpop.xlane.xlu0 %4279
  %v4281 = vsel %vm3374, %v3980, 0.0
  %4282 = vadd.xlane.f32.xlu0 %v4281
  %v4283 = vpop.xlane.xlu0 %4282
  %v4284 = vsel %vm3374, %v3982, 0.0
  %4285 = vadd.xlane.f32.xlu0 %v4284
  %v4286 = vpop.xlane.xlu0 %4285
  %v4287 = vsel %vm3374, %v3984, 0.0
  %4288 = vadd.xlane.f32.xlu0 %v4287
  %v4289 = vpop.xlane.xlu0 %4288
  %v4290 = vsel %vm3374, %v3986, 0.0
  %4291 = vadd.xlane.f32.xlu0 %v4290
  %v4292 = vpop.xlane.xlu0 %4291
  %v4293 = vsel %vm3374, %v3988, 0.0
  %4294 = vadd.xlane.f32.xlu0 %v4293
  %v4295 = vpop.xlane.xlu0 %4294
  %v4296 = vsel %vm3374, %v3990, 0.0
  %4297 = vadd.xlane.f32.xlu0 %v4296
  %v4298 = vpop.xlane.xlu0 %4297
  %v4299 = vsel %vm3374, %v3992, 0.0
  %4300 = vadd.xlane.f32.xlu0 %v4299
  %v4301 = vpop.xlane.xlu0 %4300
  %v4302 = vsel %vm3374, %v3994, 0.0
  %4303 = vadd.xlane.f32.xlu0 %v4302
  %v4304 = vpop.xlane.xlu0 %4303
  %v4305 = vsel %vm3374, %v3996, 0.0
  %4306 = vadd.xlane.f32.xlu0 %v4305
  %v4307 = vpop.xlane.xlu0 %4306
  %v4308 = vsel %vm3374, %v3998, 0.0
  %4309 = vadd.xlane.f32.xlu0 %v4308
  %v4310 = vpop.xlane.xlu0 %4309
  %v4311 = vsel %vm3374, %v4000, 0.0
  %4312 = vadd.xlane.f32.xlu0 %v4311
  %v4313 = vpop.xlane.xlu0 %4312
  %v4314 = vsel %vm3374, %v4002, 0.0
  %4315 = vadd.xlane.f32.xlu0 %v4314
  %v4316 = vpop.xlane.xlu0 %4315
  %v4317 = vsel %vm3374, %v4004, 0.0
  %4318 = vadd.xlane.f32.xlu0 %v4317
  %v4319 = vpop.xlane.xlu0 %4318
  %v4320 = vsel %vm3374, %v4006, 0.0
  %4321 = vadd.xlane.f32.xlu0 %v4320
  %v4322 = vpop.xlane.xlu0 %4321
  %v4323 = vsel %vm3374, %v4008, 0.0
  %4324 = vadd.xlane.f32.xlu0 %v4323
  %v4325 = vpop.xlane.xlu0 %4324
  %v4326 = vsel %vm3374, %v4010, 0.0
  %4327 = vadd.xlane.f32.xlu0 %v4326
  %v4328 = vpop.xlane.xlu0 %4327
  %v4329 = vsel %vm3374, %v4012, 0.0
  %4330 = vadd.xlane.f32.xlu0 %v4329
  %v4331 = vpop.xlane.xlu0 %4330
  %v4332 = vsel %vm3374, %v4014, 0.0
  %4333 = vadd.xlane.f32.xlu0 %v4332
  %v4334 = vpop.xlane.xlu0 %4333
  %v4335 = vsel %vm3374, %v4016, 0.0
  %4336 = vadd.xlane.f32.xlu0 %v4335
  %v4337 = vpop.xlane.xlu0 %4336
  %v4338 = vsel %vm3374, %v4018, 0.0
  %4339 = vadd.xlane.f32.xlu0 %v4338
  %v4340 = vpop.xlane.xlu0 %4339
  %v4341 = vsel %vm3374, %v4020, 0.0
  %4342 = vadd.xlane.f32.xlu0 %v4341
  %v4343 = vpop.xlane.xlu0 %4342
  %v4344 = vsel %vm3374, %v4022, 0.0
  %4345 = vadd.xlane.f32.xlu0 %v4344
  %v4346 = vpop.xlane.xlu0 %4345
  %v4347 = vsel %vm3374, %v4024, 0.0
  %4348 = vadd.xlane.f32.xlu0 %v4347
  %v4349 = vpop.xlane.xlu0 %4348
  %v4350 = vsel %vm3374, %v4026, 0.0
  %4351 = vadd.xlane.f32.xlu0 %v4350
  %v4352 = vpop.xlane.xlu0 %4351
  %v4353 = vsel %vm3374, %v4028, 0.0
  %4354 = vadd.xlane.f32.xlu0 %v4353
  %v4355 = vpop.xlane.xlu0 %4354
  %v4356 = vsel %vm3374, %v4030, 0.0
  %4357 = vadd.xlane.f32.xlu0 %v4356
  %v4358 = vpop.xlane.xlu0 %4357
  %v4359 = vsel %vm3374, %v4032, 0.0
  %4360 = vadd.xlane.f32.xlu0 %v4359
  %v4361 = vpop.xlane.xlu0 %4360
  %v4362 = vsel %vm3374, %v4034, 0.0
  %4363 = vadd.xlane.f32.xlu0 %v4362
  %v4364 = vpop.xlane.xlu0 %4363
  %v4365 = vsel %vm3374, %v4036, 0.0
  %4366 = vadd.xlane.f32.xlu0 %v4365
  %v4367 = vpop.xlane.xlu0 %4366
  %v4368 = vsel %vm3374, %v4038, 0.0
  %4369 = vadd.xlane.f32.xlu0 %v4368
  %v4370 = vpop.xlane.xlu0 %4369
  %v4371 = vsel %vm3374, %v4040, 0.0
  %4372 = vadd.xlane.f32.xlu0 %v4371
  %v4373 = vpop.xlane.xlu0 %4372
  %v4374 = vsel %vm3374, %v4042, 0.0
  %4375 = vadd.xlane.f32.xlu0 %v4374
  %v4376 = vpop.xlane.xlu0 %4375
  %v4377 = vsel %vm3374, %v4044, 0.0
  %4378 = vadd.xlane.f32.xlu0 %v4377
  %v4379 = vpop.xlane.xlu0 %4378
  %v4380 = vsel %vm3374, %v4046, 0.0
  %4381 = vadd.xlane.f32.xlu0 %v4380
  %v4382 = vpop.xlane.xlu0 %4381
  %v4383 = vrcp.pop %v4049
  %v4384 = vrcp.pop %v4052
  %v4385 = vrcp.pop %v4055
  %v4386 = vrcp.pop %v4058
  %v4387 = vrcp.pop %v4061
  %v4388 = vrcp.pop %v4064
  %v4389 = vrcp.pop %v4067
  %v4390 = vrcp.pop %v4070
  %v4391 = vrcp.pop %v4073
  %v4392 = vrcp.pop %v4076
  %v4393 = vrcp.pop %v4079
  %v4394 = vrcp.pop %v4082
  %v4395 = vrcp.pop %v4085
  %v4396 = vrcp.pop %v4088
  %v4397 = vrcp.pop %v4091
  %v4398 = vrcp.pop %v4094
  %v4399 = vrcp.pop %v4097
  %v4400 = vrcp.pop %v4100
  %v4401 = vrcp.pop %v4103
  %v4402 = vrcp.pop %v4106
  %v4403 = vrcp.pop %v4109
  %v4404 = vrcp.pop %v4112
  %v4405 = vrcp.pop %v4115
  %v4406 = vrcp.pop %v4118
  %v4407 = vrcp.pop %v4121
  %v4408 = vrcp.pop %v4124
  %v4409 = vrcp.pop %v4127
  %v4410 = vrcp.pop %v4130
  %v4411 = vrcp.pop %v4133
  %v4412 = vrcp.pop %v4136
  %v4413 = vrcp.pop %v4139
  %v4414 = vrcp.pop %v4142
  %v4415 = vrcp.pop %v4145
  %v4416 = vrcp.pop %v4148
  %v4417 = vrcp.pop %v4151
  %v4418 = vrcp.pop %v4154
  %v4419 = vrcp.pop %v4157
  %v4420 = vrcp.pop %v4160
  %v4421 = vrcp.pop %v4163
  %v4422 = vrcp.pop %v4166
  %v4423 = vrcp.pop %v4169
  %v4424 = vrcp.pop %v4172
  %v4425 = vrcp.pop %v4175
  %v4426 = vrcp.pop %v4178
  %v4427 = vrcp.pop %v4181
  %v4428 = vrcp.pop %v4184
  %v4429 = vrcp.pop %v4187
  %v4430 = vrcp.pop %v4190
  %v4431 = vrcp.pop %v4193
  %v4432 = vrcp.pop %v4196
  %v4433 = vrcp.pop %v4199
  %v4434 = vrcp.pop %v4202
  %v4435 = vrcp.pop %v4205
  %v4436 = vrcp.pop %v4208
  %v4437 = vrcp.pop %v4211
  %v4438 = vrcp.pop %v4214
  %v4439 = vrcp.pop %v4217
  %v4440 = vrcp.pop %v4220
  %v4441 = vrcp.pop %v4223
  %v4442 = vrcp.pop %v4226
  %v4443 = vrcp.pop %v4229
  %v4444 = vrcp.pop %v4232
  %v4445 = vrcp.pop %v4235
  %v4446 = vrcp.pop %v4238
  %v4447 = vrcp.pop %v4241
  %v4448 = vrcp.pop %v4244
  %v4449 = vrcp.pop %v4247
  %v4450 = vrcp.pop %v4250
  %v4451 = vrcp.pop %v4253
  %v4452 = vrcp.pop %v4256
  %v4453 = vrcp.pop %v4259
  %v4454 = vrcp.pop %v4262
  %v4455 = vrcp.pop %v4265
  %v4456 = vrcp.pop %v4268
  %v4457 = vrcp.pop %v4271
  %v4458 = vrcp.pop %v4274
  %v4459 = vrcp.pop %v4277
  %v4460 = vrcp.pop %v4280
  %v4461 = vrcp.pop %v4283
  %v4462 = vrcp.pop %v4286
  %v4463 = vrcp.pop %v4289
  %v4464 = vrcp.pop %v4292
  %v4465 = vrcp.pop %v4295
  %v4466 = vrcp.pop %v4298
  %v4467 = vrcp.pop %v4301
  %v4468 = vrcp.pop %v4304
  %v4469 = vrcp.pop %v4307
  %v4470 = vrcp.pop %v4310
  %v4471 = vrcp.pop %v4313
  %v4472 = vrcp.pop %v4316
  %v4473 = vrcp.pop %v4319
  %v4474 = vrcp.pop %v4322
  %v4475 = vrcp.pop %v4325
  %v4476 = vrcp.pop %v4328
  %v4477 = vrcp.pop %v4331
  %v4478 = vrcp.pop %v4334
  %v4479 = vrcp.pop %v4337
  %v4480 = vrcp.pop %v4340
  %v4481 = vrcp.pop %v4343
  %v4482 = vrcp.pop %v4346
  %v4483 = vrcp.pop %v4349
  %v4484 = vrcp.pop %v4352
  %v4485 = vrcp.pop %v4355
  %v4486 = vrcp.pop %v4358
  %v4487 = vrcp.pop %v4361
  %v4488 = vrcp.pop %v4364
  %v4489 = vrcp.pop %v4367
  %v4490 = vrcp.pop %v4370
  %v4491 = vrcp.pop %v4373
  %v4492 = vrcp.pop %v4376
  %v4493 = vrcp.pop %v4379
  %v4494 = vrcp.pop %v4382
  %v4495 = vmul.f32 %v3824, %v4383
  %v4496 = vmul.f32 %v3826, %v4384
  %v4497 = vmul.f32 %v3828, %v4385
  %v4498 = vmul.f32 %v3830, %v4386
  %v4499 = vmul.f32 %v3832, %v4387
  %v4500 = vmul.f32 %v3834, %v4388
  %v4501 = vmul.f32 %v3836, %v4389
  %v4502 = vmul.f32 %v3838, %v4390
  %v4503 = vmul.f32 %v3840, %v4391
  %v4504 = vmul.f32 %v3842, %v4392
  %v4505 = vmul.f32 %v3844, %v4393
  %v4506 = vmul.f32 %v3846, %v4394
  %v4507 = vmul.f32 %v3848, %v4395
  %v4508 = vmul.f32 %v3850, %v4396
  %v4509 = vmul.f32 %v3852, %v4397
  %v4510 = vmul.f32 %v3854, %v4398
  %v4511 = vmul.f32 %v3856, %v4399
  %v4512 = vmul.f32 %v3858, %v4400
  %v4513 = vmul.f32 %v3860, %v4401
  %v4514 = vmul.f32 %v3862, %v4402
  %v4515 = vmul.f32 %v3864, %v4403
  %v4516 = vmul.f32 %v3866, %v4404
  %v4517 = vmul.f32 %v3868, %v4405
  %v4518 = vmul.f32 %v3870, %v4406
  %v4519 = vmul.f32 %v3872, %v4407
  %v4520 = vmul.f32 %v3874, %v4408
  %v4521 = vmul.f32 %v3876, %v4409
  %v4522 = vmul.f32 %v3878, %v4410
  %v4523 = vmul.f32 %v3880, %v4411
  %v4524 = vmul.f32 %v3882, %v4412
  %v4525 = vmul.f32 %v3884, %v4413
  %v4526 = vmul.f32 %v3886, %v4414
  %v4527 = vmul.f32 %v3888, %v4415
  %v4528 = vmul.f32 %v3890, %v4416
  %v4529 = vmul.f32 %v3892, %v4417
  %v4530 = vmul.f32 %v3894, %v4418
  %v4531 = vmul.f32 %v3896, %v4419
  %v4532 = vmul.f32 %v3898, %v4420
  %v4533 = vmul.f32 %v3900, %v4421
  %v4534 = vmul.f32 %v3902, %v4422
  %v4535 = vmul.f32 %v3904, %v4423
  %v4536 = vmul.f32 %v3906, %v4424
  %v4537 = vmul.f32 %v3908, %v4425
  %v4538 = vmul.f32 %v3910, %v4426
  %v4539 = vmul.f32 %v3912, %v4427
  %v4540 = vmul.f32 %v3914, %v4428
  %v4541 = vmul.f32 %v3916, %v4429
  %v4542 = vmul.f32 %v3918, %v4430
  %v4543 = vmul.f32 %v3920, %v4431
  %v4544 = vmul.f32 %v3922, %v4432
  %v4545 = vmul.f32 %v3924, %v4433
  %v4546 = vmul.f32 %v3926, %v4434
  %v4547 = vmul.f32 %v3928, %v4435
  %v4548 = vmul.f32 %v3930, %v4436
  %v4549 = vmul.f32 %v3932, %v4437
  %v4550 = vmul.f32 %v3934, %v4438
  %v4551 = vmul.f32 %v3936, %v4439
  %v4552 = vmul.f32 %v3938, %v4440
  %v4553 = vmul.f32 %v3940, %v4441
  %v4554 = vmul.f32 %v3942, %v4442
  %v4555 = vmul.f32 %v3944, %v4443
  %v4556 = vmul.f32 %v3946, %v4444
  %v4557 = vmul.f32 %v3948, %v4445
  %v4558 = vmul.f32 %v3950, %v4446
  %v4559 = vmul.f32 %v3952, %v4447
  %v4560 = vmul.f32 %v3954, %v4448
  %v4561 = vmul.f32 %v3956, %v4449
  %v4562 = vmul.f32 %v3958, %v4450
  %v4563 = vmul.f32 %v3960, %v4451
  %v4564 = vmul.f32 %v3962, %v4452
  %v4565 = vmul.f32 %v3964, %v4453
  %v4566 = vmul.f32 %v3966, %v4454
  %v4567 = vmul.f32 %v3968, %v4455
  %v4568 = vmul.f32 %v3970, %v4456
  %v4569 = vmul.f32 %v3972, %v4457
  %v4570 = vmul.f32 %v3974, %v4458
  %v4571 = vmul.f32 %v3976, %v4459
  %v4572 = vmul.f32 %v3978, %v4460
  %v4573 = vmul.f32 %v3980, %v4461
  %v4574 = vmul.f32 %v3982, %v4462
  %v4575 = vmul.f32 %v3984, %v4463
  %v4576 = vmul.f32 %v3986, %v4464
  %v4577 = vmul.f32 %v3988, %v4465
  %v4578 = vmul.f32 %v3990, %v4466
  %v4579 = vmul.f32 %v3992, %v4467
  %v4580 = vmul.f32 %v3994, %v4468
  %v4581 = vmul.f32 %v3996, %v4469
  %v4582 = vmul.f32 %v3998, %v4470
  %v4583 = vmul.f32 %v4000, %v4471
  %v4584 = vmul.f32 %v4002, %v4472
  %v4585 = vmul.f32 %v4004, %v4473
  %v4586 = vmul.f32 %v4006, %v4474
  %v4587 = vmul.f32 %v4008, %v4475
  %v4588 = vmul.f32 %v4010, %v4476
  %v4589 = vmul.f32 %v4012, %v4477
  %v4590 = vmul.f32 %v4014, %v4478
  %v4591 = vmul.f32 %v4016, %v4479
  %v4592 = vmul.f32 %v4018, %v4480
  %v4593 = vmul.f32 %v4020, %v4481
  %v4594 = vmul.f32 %v4022, %v4482
  %v4595 = vmul.f32 %v4024, %v4483
  %v4596 = vmul.f32 %v4026, %v4484
  %v4597 = vmul.f32 %v4028, %v4485
  %v4598 = vmul.f32 %v4030, %v4486
  %v4599 = vmul.f32 %v4032, %v4487
  %v4600 = vmul.f32 %v4034, %v4488
  %v4601 = vmul.f32 %v4036, %v4489
  %v4602 = vmul.f32 %v4038, %v4490
  %v4603 = vmul.f32 %v4040, %v4491
  %v4604 = vmul.f32 %v4042, %v4492
  %v4605 = vmul.f32 %v4044, %v4493
  %v4606 = vmul.f32 %v4046, %v4494
  %v4607 = vpack.c.bf16 %v4496, %v4495
  %v4608 = vpack.c.bf16 %v4498, %v4497
  %v4609 = vpack.c.bf16 %v4500, %v4499
  %v4610 = vpack.c.bf16 %v4501, %v4501
  %v4611 = vpack.c.bf16 %v4503, %v4502
  %v4612 = vpack.c.bf16 %v4505, %v4504
  %v4613 = vpack.c.bf16 %v4507, %v4506
  %v4614 = vpack.c.bf16 %v4508, %v4508
  %v4615 = vpack.c.bf16 %v4510, %v4509
  %v4616 = vpack.c.bf16 %v4512, %v4511
  %v4617 = vpack.c.bf16 %v4514, %v4513
  %v4618 = vpack.c.bf16 %v4515, %v4515
  %v4619 = vpack.c.bf16 %v4517, %v4516
  %v4620 = vpack.c.bf16 %v4519, %v4518
  %v4621 = vpack.c.bf16 %v4521, %v4520
  %v4622 = vpack.c.bf16 %v4522, %v4522
  %v4623 = vpack.c.bf16 %v4524, %v4523
  %v4624 = vpack.c.bf16 %v4526, %v4525
  %v4625 = vpack.c.bf16 %v4528, %v4527
  %v4626 = vpack.c.bf16 %v4529, %v4529
  %v4627 = vpack.c.bf16 %v4531, %v4530
  %v4628 = vpack.c.bf16 %v4533, %v4532
  %v4629 = vpack.c.bf16 %v4535, %v4534
  %v4630 = vpack.c.bf16 %v4536, %v4536
  %v4631 = vpack.c.bf16 %v4538, %v4537
  %v4632 = vpack.c.bf16 %v4540, %v4539
  %v4633 = vpack.c.bf16 %v4542, %v4541
  %v4634 = vpack.c.bf16 %v4543, %v4543
  %v4635 = vpack.c.bf16 %v4545, %v4544
  %v4636 = vpack.c.bf16 %v4547, %v4546
  %v4637 = vpack.c.bf16 %v4549, %v4548
  %v4638 = vpack.c.bf16 %v4550, %v4550
  %v4639 = vpack.c.bf16 %v4552, %v4551
  %v4640 = vpack.c.bf16 %v4554, %v4553
  %v4641 = vpack.c.bf16 %v4556, %v4555
  %v4642 = vpack.c.bf16 %v4557, %v4557
  %v4643 = vpack.c.bf16 %v4559, %v4558
  %v4644 = vpack.c.bf16 %v4561, %v4560
  %v4645 = vpack.c.bf16 %v4563, %v4562
  %v4646 = vpack.c.bf16 %v4564, %v4564
  %v4647 = vpack.c.bf16 %v4566, %v4565
  %v4648 = vpack.c.bf16 %v4568, %v4567
  %v4649 = vpack.c.bf16 %v4570, %v4569
  %v4650 = vpack.c.bf16 %v4571, %v4571
  %v4651 = vpack.c.bf16 %v4573, %v4572
  %v4652 = vpack.c.bf16 %v4575, %v4574
  %v4653 = vpack.c.bf16 %v4577, %v4576
  %v4654 = vpack.c.bf16 %v4578, %v4578
  %v4655 = vpack.c.bf16 %v4580, %v4579
  %v4656 = vpack.c.bf16 %v4582, %v4581
  %v4657 = vpack.c.bf16 %v4584, %v4583
  %v4658 = vpack.c.bf16 %v4585, %v4585
  %v4659 = vpack.c.bf16 %v4587, %v4586
  %v4660 = vpack.c.bf16 %v4589, %v4588
  %v4661 = vpack.c.bf16 %v4591, %v4590
  %v4662 = vpack.c.bf16 %v4592, %v4592
  %v4663 = vpack.c.bf16 %v4594, %v4593
  %v4664 = vpack.c.bf16 %v4596, %v4595
  %v4665 = vpack.c.bf16 %v4598, %v4597
  %v4666 = vpack.c.bf16 %v4599, %v4599
  %v4667 = vpack.c.bf16 %v4601, %v4600
  %v4668 = vpack.c.bf16 %v4603, %v4602
  %v4669 = vpack.c.bf16 %v4605, %v4604
  %v4670 = vpack.c.bf16 %v4606, %v4606
  %4671 = vrot.lane.b32.xlu0 %v1599, 96
  %v4672 = vpop.permute.xlu0 %4671
  %4673 = vrot.lane.b32.xlu0 %v1600, 96
  %v4674 = vpop.permute.xlu0 %4673
  %4675 = vrot.lane.b32.xlu0 %v1601, 96
  %v4676 = vpop.permute.xlu0 %4675
  %4677 = vrot.lane.b32.xlu0 %v1437, 96
  %v4678 = vpop.permute.xlu0 %4677
  %v4683 = vsel %vm3374, %v4607, 0
  %v4686 = vsel %vm3374, %v4608, 0
  %v4689 = vsel %vm3374, %v4609, 0
  %v4692 = vsel %vm3374, %v4610, 0
  %vm4694 = vcmask 1043456
  %v4696 = vsel %vm4694, %v4678, 0
  %4698 = vmatprep.subr.bf16.mxu0 0
  %4699 = vmatpush1.bf16.msra.mxu0 %v4672
  %4700 = vmatprep.subr.bf16.mxu0 0
  %4701 = vmatpush1.bf16.msra.mxu0 %v4674
  %4702 = vmatprep.subr.bf16.mxu0 0
  %4703 = vmatpush1.bf16.msra.mxu0 %v4676
  %4704 = vmatprep.subr.bf16.mxu0 0
  %4705 = vmatpush1.bf16.msra.mxu0 %v4696
  %4706 = vmatprep.subr.bf16.mxu0 0
  %4707 = vmatpush1.bf16.msra.mxu0 0
  %4708 = vmatprep.subr.bf16.mxu0 0
  %4709 = vmatpush1.bf16.msra.mxu0 0
  %4710 = vmatprep.subr.bf16.mxu0 0
  %4711 = vmatpush1.bf16.msra.mxu0 0
  %4712 = vmatprep.subr.bf16.mxu0 0
  %4713 = vmatpush1.bf16.msra.mxu0 0
  %4714 = vmatprep.subr.bf16.mxu0 0
  %4715 = vmatpush1.bf16.msra.mxu0 0
  %4716 = vmatprep.subr.bf16.mxu0 0
  %4717 = vmatpush1.bf16.msra.mxu0 0
  %4718 = vmatprep.subr.bf16.mxu0 0
  %4719 = vmatpush1.bf16.msra.mxu0 0
  %4720 = vmatprep.subr.bf16.mxu0 0
  %4721 = vmatpush1.bf16.msra.mxu0 0
  %4722 = vmatprep.subr.bf16.mxu0 0
  %4723 = vmatpush1.bf16.msra.mxu0 0
  %4724 = vmatprep.subr.bf16.mxu0 0
  %4725 = vmatpush1.bf16.msra.mxu0 0
  %4726 = vmatprep.subr.bf16.mxu0 0
  %4727 = vmatpush1.bf16.msra.mxu0 0
  %4728 = vmatprep.subr.bf16.mxu0 0
  %4729 = vmatpush1.bf16.msra.mxu0 0
  %4730 = vmatprep.mubr.bf16.mxu0 0
  %4731 = vmatmul.mubr.bf16.gmra.mrb[0].mxu0 %v4683
  %v4732 = vpop.f32.mrb[0].mxu0
  %v4733 = vadd.f32 0.0, %v4732
  %v4734 = vpop.f32.mrb[0].mxu0
  %v4735 = vpop.f32.mrb[0].mxu0
  %v4736 = vadd.f32 0.0, %v4735
  %v4737 = vpop.f32.mrb[0].mxu0
  %4738 = vmatprep.mubr.bf16.mxu0 0
  %4739 = vmatmul.mubr.bf16.gmra.mrb[0].mxu0 %v4686
  %v4740 = vpop.f32.mrb[0].mxu0
  %v4741 = vadd.f32 0.0, %v4740
  %v4742 = vpop.f32.mrb[0].mxu0
  %v4743 = vpop.f32.mrb[0].mxu0
  %v4744 = vadd.f32 0.0, %v4743
  %v4745 = vpop.f32.mrb[0].mxu0
  %4746 = vmatprep.mubr.bf16.mxu0 0
  %4747 = vmatmul.mubr.bf16.gmra.mrb[0].mxu0 %v4689
  %v4748 = vpop.f32.mrb[0].mxu0
  %v4749 = vadd.f32 0.0, %v4748
  %v4750 = vpop.f32.mrb[0].mxu0
  %v4751 = vpop.f32.mrb[0].mxu0
  %v4752 = vadd.f32 0.0, %v4751
  %v4753 = vpop.f32.mrb[0].mxu0
  %4754 = vmatprep.mubr.bf16.mxu0 0
  %4755 = vmatmul.mubr.bf16.gmra.mrb[0].mxu0 %v4692
  %v4756 = vpop.f32.mrb[0].mxu0
  %v4757 = vadd.f32 0.0, %v4756
  %v4758 = vpop.f32.mrb[0].mxu0
  %v4759 = vpop.f32.mrb[0].mxu0
  %v4760 = vpop.f32.mrb[0].mxu0
  %4761 = vdwg.mxu0
  %4762 = vrot.lane.b32.xlu0 %v1699, 96
  %v4763 = vpop.permute.xlu0 %4762
  %4764 = vrot.lane.b32.xlu0 %v1700, 96
  %v4765 = vpop.permute.xlu0 %4764
  %4766 = vrot.lane.b32.xlu0 %v1701, 96
  %v4767 = vpop.permute.xlu0 %4766
  %4768 = vrot.lane.b32.xlu0 %v1444, 96
  %v4769 = vpop.permute.xlu0 %4768
  %v4774 = vsel %vm3374, %v4611, 0
  %v4777 = vsel %vm3374, %v4612, 0
  %v4780 = vsel %vm3374, %v4613, 0
  %v4783 = vsel %vm3374, %v4614, 0
  %v4786 = vsel %vm4694, %v4769, 0
  %4788 = vmatprep.subr.bf16.mxu0 0
  %4789 = vmatpush1.bf16.msra.mxu0 %v4763
  %4790 = vmatprep.subr.bf16.mxu0 0
  %4791 = vmatpush1.bf16.msra.mxu0 %v4765
  %4792 = vmatprep.subr.bf16.mxu0 0
  %4793 = vmatpush1.bf16.msra.mxu0 %v4767
  %4794 = vmatprep.subr.bf16.mxu0 0
  %4795 = vmatpush1.bf16.msra.mxu0 %v4786
  %4796 = vmatprep.subr.bf16.mxu0 0
  %4797 = vmatpush1.bf16.msra.mxu0 0
  %4798 = vmatprep.subr.bf16.mxu0 0
  %4799 = vmatpush1.bf16.msra.mxu0 0
  %4800 = vmatprep.subr.bf16.mxu0 0
  %4801 = vmatpush1.bf16.msra.mxu0 0
  %4802 = vmatprep.subr.bf16.mxu0 0
  %4803 = vmatpush1.bf16.msra.mxu0 0
  %4804 = vmatprep.subr.bf16.mxu0 0
  %4805 = vmatpush1.bf16.msra.mxu0 0
  %4806 = vmatprep.subr.bf16.mxu0 0
  %4807 = vmatpush1.bf16.msra.mxu0 0
  %4808 = vmatprep.subr.bf16.mxu0 0
  %4809 = vmatpush1.bf16.msra.mxu0 0
  %4810 = vmatprep.subr.bf16.mxu0 0
  %4811 = vmatpush1.bf16.msra.mxu0 0
  %4812 = vmatprep.subr.bf16.mxu0 0
  %4813 = vmatpush1.bf16.msra.mxu0 0
  %4814 = vmatprep.subr.bf16.mxu0 0
  %4815 = vmatpush1.bf16.msra.mxu0 0
  %4816 = vmatprep.subr.bf16.mxu0 0
  %4817 = vmatpush1.bf16.msra.mxu0 0
  %4818 = vmatprep.subr.bf16.mxu0 0
  %4819 = vmatpush1.bf16.msra.mxu0 0
  %4820 = vmatprep.mubr.bf16.mxu0 0
  %4821 = vmatmul.mubr.bf16.gmra.mrb[0].mxu0 %v4774
  %v4822 = vpop.f32.mrb[0].mxu0
  %v4823 = vadd.f32 0.0, %v4822
  %v4824 = vpop.f32.mrb[0].mxu0
  %v4825 = vpop.f32.mrb[0].mxu0
  %v4826 = vadd.f32 0.0, %v4825
  %v4827 = vpop.f32.mrb[0].mxu0
  %4828 = vmatprep.mubr.bf16.mxu0 0
  %4829 = vmatmul.mubr.bf16.gmra.mrb[0].mxu0 %v4777
  %v4830 = vpop.f32.mrb[0].mxu0
  %v4831 = vadd.f32 0.0, %v4830
  %v4832 = vpop.f32.mrb[0].mxu0
  %v4833 = vpop.f32.mrb[0].mxu0
  %v4834 = vadd.f32 0.0, %v4833
  %v4835 = vpop.f32.mrb[0].mxu0
  %4836 = vmatprep.mubr.bf16.mxu0 0
  %4837 = vmatmul.mubr.bf16.gmra.mrb[0].mxu0 %v4780
  %v4838 = vpop.f32.mrb[0].mxu0
  %v4839 = vadd.f32 0.0, %v4838
  %v4840 = vpop.f32.mrb[0].mxu0
  %v4841 = vpop.f32.mrb[0].mxu0
  %v4842 = vadd.f32 0.0, %v4841
  %v4843 = vpop.f32.mrb[0].mxu0
  %4844 = vmatprep.mubr.bf16.mxu0 0
  %4845 = vmatmul.mubr.bf16.gmra.mrb[0].mxu0 %v4783
  %v4846 = vpop.f32.mrb[0].mxu0
  %v4847 = vadd.f32 0.0, %v4846
  %v4848 = vpop.f32.mrb[0].mxu0
  %v4849 = vpop.f32.mrb[0].mxu0
  %v4850 = vpop.f32.mrb[0].mxu0
  %4851 = vdwg.mxu0
  %4852 = vrot.lane.b32.xlu0 %v1798, 96
  %v4853 = vpop.permute.xlu0 %4852
  %4854 = vrot.lane.b32.xlu0 %v1799, 96
  %v4855 = vpop.permute.xlu0 %4854
  %4856 = vrot.lane.b32.xlu0 %v1800, 96
  %v4857 = vpop.permute.xlu0 %4856
  %4858 = vrot.lane.b32.xlu0 %v1451, 96
  %v4859 = vpop.permute.xlu0 %4858
  %v4864 = vsel %vm3374, %v4615, 0
  %v4867 = vsel %vm3374, %v4616, 0
  %v4870 = vsel %vm3374, %v4617, 0
  %v4873 = vsel %vm3374, %v4618, 0
  %v4876 = vsel %vm4694, %v4859, 0
  %4878 = vmatprep.subr.bf16.mxu0 0
  %4879 = vmatpush1.bf16.msra.mxu0 %v4853
  %4880 = vmatprep.subr.bf16.mxu0 0
  %4881 = vmatpush1.bf16.msra.mxu0 %v4855
  %4882 = vmatprep.subr.bf16.mxu0 0
  %4883 = vmatpush1.bf16.msra.mxu0 %v4857
  %4884 = vmatprep.subr.bf16.mxu0 0
  %4885 = vmatpush1.bf16.msra.mxu0 %v4876
  %4886 = vmatprep.subr.bf16.mxu0 0
  %4887 = vmatpush1.bf16.msra.mxu0 0
  %4888 = vmatprep.subr.bf16.mxu0 0
  %4889 = vmatpush1.bf16.msra.mxu0 0
  %4890 = vmatprep.subr.bf16.mxu0 0
  %4891 = vmatpush1.bf16.msra.mxu0 0
  %4892 = vmatprep.subr.bf16.mxu0 0
  %4893 = vmatpush1.bf16.msra.mxu0 0
  %4894 = vmatprep.subr.bf16.mxu0 0
  %4895 = vmatpush1.bf16.msra.mxu0 0
  %4896 = vmatprep.subr.bf16.mxu0 0
  %4897 = vmatpush1.bf16.msra.mxu0 0
  %4898 = vmatprep.subr.bf16.mxu0 0
  %4899 = vmatpush1.bf16.msra.mxu0 0
  %4900 = vmatprep.subr.bf16.mxu0 0
  %4901 = vmatpush1.bf16.msra.mxu0 0
  %4902 = vmatprep.subr.bf16.mxu0 0
  %4903 = vmatpush1.bf16.msra.mxu0 0
  %4904 = vmatprep.subr.bf16.mxu0 0
  %4905 = vmatpush1.bf16.msra.mxu0 0
  %4906 = vmatprep.subr.bf16.mxu0 0
  %4907 = vmatpush1.bf16.msra.mxu0 0
  %4908 = vmatprep.subr.bf16.mxu0 0
  %4909 = vmatpush1.bf16.msra.mxu0 0
  %4910 = vmatprep.mubr.bf16.mxu0 0
  %4911 = vmatmul.mubr.bf16.gmra.mrb[0].mxu0 %v4864
  %v4912 = vpop.f32.mrb[0].mxu0
  %v4913 = vadd.f32 0.0, %v4912
  %v4914 = vpop.f32.mrb[0].mxu0
  %v4915 = vpop.f32.mrb[0].mxu0
  %v4916 = vadd.f32 0.0, %v4915
  %v4917 = vpop.f32.mrb[0].mxu0
  %4918 = vmatprep.mubr.bf16.mxu0 0
  %4919 = vmatmul.mubr.bf16.gmra.mrb[0].mxu0 %v4867
  %v4920 = vpop.f32.mrb[0].mxu0
  %v4921 = vadd.f32 0.0, %v4920
  %v4922 = vpop.f32.mrb[0].mxu0
  %v4923 = vpop.f32.mrb[0].mxu0
  %v4924 = vadd.f32 0.0, %v4923
  %v4925 = vpop.f32.mrb[0].mxu0
  %4926 = vmatprep.mubr.bf16.mxu0 0
  %4927 = vmatmul.mubr.bf16.gmra.mrb[0].mxu0 %v4870
  %v4928 = vpop.f32.mrb[0].mxu0
  %v4929 = vadd.f32 0.0, %v4928
  %v4930 = vpop.f32.mrb[0].mxu0
  %v4931 = vpop.f32.mrb[0].mxu0
  %v4932 = vadd.f32 0.0, %v4931
  %v4933 = vpop.f32.mrb[0].mxu0
  %4934 = vmatprep.mubr.bf16.mxu0 0
  %4935 = vmatmul.mubr.bf16.gmra.mrb[0].mxu0 %v4873
  %v4936 = vpop.f32.mrb[0].mxu0
  %v4937 = vadd.f32 0.0, %v4936
  %v4938 = vpop.f32.mrb[0].mxu0
  %v4939 = vpop.f32.mrb[0].mxu0
  %v4940 = vpop.f32.mrb[0].mxu0
  %4941 = vdwg.mxu0
  %4942 = vrot.lane.b32.xlu0 %v1897, 96
  %v4943 = vpop.permute.xlu0 %4942
  %4944 = vrot.lane.b32.xlu0 %v1898, 96
  %v4945 = vpop.permute.xlu0 %4944
  %4946 = vrot.lane.b32.xlu0 %v1899, 96
  %v4947 = vpop.permute.xlu0 %4946
  %4948 = vrot.lane.b32.xlu0 %v1458, 96
  %v4949 = vpop.permute.xlu0 %4948
  %v4954 = vsel %vm3374, %v4619, 0
  %v4957 = vsel %vm3374, %v4620, 0
  %v4960 = vsel %vm3374, %v4621, 0
  %v4963 = vsel %vm3374, %v4622, 0
  %v4966 = vsel %vm4694, %v4949, 0
  %4968 = vmatprep.subr.bf16.mxu0 0
  %4969 = vmatpush1.bf16.msra.mxu0 %v4943
  %4970 = vmatprep.subr.bf16.mxu0 0
  %4971 = vmatpush1.bf16.msra.mxu0 %v4945
  %4972 = vmatprep.subr.bf16.mxu0 0
  %4973 = vmatpush1.bf16.msra.mxu0 %v4947
  %4974 = vmatprep.subr.bf16.mxu0 0
  %4975 = vmatpush1.bf16.msra.mxu0 %v4966
  %4976 = vmatprep.subr.bf16.mxu0 0
  %4977 = vmatpush1.bf16.msra.mxu0 0
  %4978 = vmatprep.subr.bf16.mxu0 0
  %4979 = vmatpush1.bf16.msra.mxu0 0
  %4980 = vmatprep.subr.bf16.mxu0 0
  %4981 = vmatpush1.bf16.msra.mxu0 0
  %4982 = vmatprep.subr.bf16.mxu0 0
  %4983 = vmatpush1.bf16.msra.mxu0 0
  %4984 = vmatprep.subr.bf16.mxu0 0
  %4985 = vmatpush1.bf16.msra.mxu0 0
  %4986 = vmatprep.subr.bf16.mxu0 0
  %4987 = vmatpush1.bf16.msra.mxu0 0
  %4988 = vmatprep.subr.bf16.mxu0 0
  %4989 = vmatpush1.bf16.msra.mxu0 0
  %4990 = vmatprep.subr.bf16.mxu0 0
  %4991 = vmatpush1.bf16.msra.mxu0 0
  %4992 = vmatprep.subr.bf16.mxu0 0
  %4993 = vmatpush1.bf16.msra.mxu0 0
  %4994 = vmatprep.subr.bf16.mxu0 0
  %4995 = vmatpush1.bf16.msra.mxu0 0
  %4996 = vmatprep.subr.bf16.mxu0 0
  %4997 = vmatpush1.bf16.msra.mxu0 0
  %4998 = vmatprep.subr.bf16.mxu0 0
  %4999 = vmatpush1.bf16.msra.mxu0 0
  %5000 = vmatprep.mubr.bf16.mxu0 0
  %5001 = vmatmul.mubr.bf16.gmra.mrb[0].mxu0 %v4954
  %v5002 = vpop.f32.mrb[0].mxu0
  %v5003 = vadd.f32 0.0, %v5002
  %v5004 = vpop.f32.mrb[0].mxu0
  %v5005 = vpop.f32.mrb[0].mxu0
  %v5006 = vadd.f32 0.0, %v5005
  %v5007 = vpop.f32.mrb[0].mxu0
  %5008 = vmatprep.mubr.bf16.mxu0 0
  %5009 = vmatmul.mubr.bf16.gmra.mrb[0].mxu0 %v4957
  %v5010 = vpop.f32.mrb[0].mxu0
  %v5011 = vadd.f32 0.0, %v5010
  %v5012 = vpop.f32.mrb[0].mxu0
  %v5013 = vpop.f32.mrb[0].mxu0
  %v5014 = vadd.f32 0.0, %v5013
  %v5015 = vpop.f32.mrb[0].mxu0
  %5016 = vmatprep.mubr.bf16.mxu0 0
  %5017 = vmatmul.mubr.bf16.gmra.mrb[0].mxu0 %v4960
  %v5018 = vpop.f32.mrb[0].mxu0
  %v5019 = vadd.f32 0.0, %v5018
  %v5020 = vpop.f32.mrb[0].mxu0
  %v5021 = vpop.f32.mrb[0].mxu0
  %v5022 = vadd.f32 0.0, %v5021
  %v5023 = vpop.f32.mrb[0].mxu0
  %5024 = vmatprep.mubr.bf16.mxu0 0
  %5025 = vmatmul.mubr.bf16.gmra.mrb[0].mxu0 %v4963
  %v5026 = vpop.f32.mrb[0].mxu0
  %v5027 = vadd.f32 0.0, %v5026
  %v5028 = vpop.f32.mrb[0].mxu0
  %v5029 = vpop.f32.mrb[0].mxu0
  %v5030 = vpop.f32.mrb[0].mxu0
  %5031 = vdwg.mxu0
  %5032 = vrot.lane.b32.xlu0 %v1996, 96
  %v5033 = vpop.permute.xlu0 %5032
  %5034 = vrot.lane.b32.xlu0 %v1997, 96
  %v5035 = vpop.permute.xlu0 %5034
  %5036 = vrot.lane.b32.xlu0 %v1998, 96
  %v5037 = vpop.permute.xlu0 %5036
  %5038 = vrot.lane.b32.xlu0 %v1465, 96
  %v5039 = vpop.permute.xlu0 %5038
  %v5044 = vsel %vm3374, %v4623, 0
  %v5047 = vsel %vm3374, %v4624, 0
  %v5050 = vsel %vm3374, %v4625, 0
  %v5053 = vsel %vm3374, %v4626, 0
  %v5056 = vsel %vm4694, %v5039, 0
  %5058 = vmatprep.subr.bf16.mxu0 0
  %5059 = vmatpush1.bf16.msra.mxu0 %v5033
  %5060 = vmatprep.subr.bf16.mxu0 0
  %5061 = vmatpush1.bf16.msra.mxu0 %v5035
  %5062 = vmatprep.subr.bf16.mxu0 0
  %5063 = vmatpush1.bf16.msra.mxu0 %v5037
  %5064 = vmatprep.subr.bf16.mxu0 0
  %5065 = vmatpush1.bf16.msra.mxu0 %v5056
  %5066 = vmatprep.subr.bf16.mxu0 0
  %5067 = vmatpush1.bf16.msra.mxu0 0
  %5068 = vmatprep.subr.bf16.mxu0 0
  %5069 = vmatpush1.bf16.msra.mxu0 0
  %5070 = vmatprep.subr.bf16.mxu0 0
  %5071 = vmatpush1.bf16.msra.mxu0 0
  %5072 = vmatprep.subr.bf16.mxu0 0
  %5073 = vmatpush1.bf16.msra.mxu0 0
  %5074 = vmatprep.subr.bf16.mxu0 0
  %5075 = vmatpush1.bf16.msra.mxu0 0
  %5076 = vmatprep.subr.bf16.mxu0 0
  %5077 = vmatpush1.bf16.msra.mxu0 0
  %5078 = vmatprep.subr.bf16.mxu0 0
  %5079 = vmatpush1.bf16.msra.mxu0 0
  %5080 = vmatprep.subr.bf16.mxu0 0
  %5081 = vmatpush1.bf16.msra.mxu0 0
  %5082 = vmatprep.subr.bf16.mxu0 0
  %5083 = vmatpush1.bf16.msra.mxu0 0
  %5084 = vmatprep.subr.bf16.mxu0 0
  %5085 = vmatpush1.bf16.msra.mxu0 0
  %5086 = vmatprep.subr.bf16.mxu0 0
  %5087 = vmatpush1.bf16.msra.mxu0 0
  %5088 = vmatprep.subr.bf16.mxu0 0
  %5089 = vmatpush1.bf16.msra.mxu0 0
  %5090 = vmatprep.mubr.bf16.mxu0 0
  %5091 = vmatmul.mubr.bf16.gmra.mrb[0].mxu0 %v5044
  %v5092 = vpop.f32.mrb[0].mxu0
  %v5093 = vadd.f32 0.0, %v5092
  %v5094 = vpop.f32.mrb[0].mxu0
  %v5095 = vpop.f32.mrb[0].mxu0
  %v5096 = vadd.f32 0.0, %v5095
  %v5097 = vpop.f32.mrb[0].mxu0
  %5098 = vmatprep.mubr.bf16.mxu0 0
  %5099 = vmatmul.mubr.bf16.gmra.mrb[0].mxu0 %v5047
  %v5100 = vpop.f32.mrb[0].mxu0
  %v5101 = vadd.f32 0.0, %v5100
  %v5102 = vpop.f32.mrb[0].mxu0
  %v5103 = vpop.f32.mrb[0].mxu0
  %v5104 = vadd.f32 0.0, %v5103
  %v5105 = vpop.f32.mrb[0].mxu0
  %5106 = vmatprep.mubr.bf16.mxu0 0
  %5107 = vmatmul.mubr.bf16.gmra.mrb[0].mxu0 %v5050
  %v5108 = vpop.f32.mrb[0].mxu0
  %v5109 = vadd.f32 0.0, %v5108
  %v5110 = vpop.f32.mrb[0].mxu0
  %v5111 = vpop.f32.mrb[0].mxu0
  %v5112 = vadd.f32 0.0, %v5111
  %v5113 = vpop.f32.mrb[0].mxu0
  %5114 = vmatprep.mubr.bf16.mxu0 0
  %5115 = vmatmul.mubr.bf16.gmra.mrb[0].mxu0 %v5053
  %v5116 = vpop.f32.mrb[0].mxu0
  %v5117 = vadd.f32 0.0, %v5116
  %v5118 = vpop.f32.mrb[0].mxu0
  %v5119 = vpop.f32.mrb[0].mxu0
  %v5120 = vpop.f32.mrb[0].mxu0
  %5121 = vdwg.mxu0
  %5122 = vrot.lane.b32.xlu0 %v2095, 96
  %v5123 = vpop.permute.xlu0 %5122
  %5124 = vrot.lane.b32.xlu0 %v2096, 96
  %v5125 = vpop.permute.xlu0 %5124
  %5126 = vrot.lane.b32.xlu0 %v2097, 96
  %v5127 = vpop.permute.xlu0 %5126
  %5128 = vrot.lane.b32.xlu0 %v1472, 96
  %v5129 = vpop.permute.xlu0 %5128
  %v5134 = vsel %vm3374, %v4627, 0
  %v5137 = vsel %vm3374, %v4628, 0
  %v5140 = vsel %vm3374, %v4629, 0
  %v5143 = vsel %vm3374, %v4630, 0
  %v5146 = vsel %vm4694, %v5129, 0
  %5148 = vmatprep.subr.bf16.mxu0 0
  %5149 = vmatpush1.bf16.msra.mxu0 %v5123
  %5150 = vmatprep.subr.bf16.mxu0 0
  %5151 = vmatpush1.bf16.msra.mxu0 %v5125
  %5152 = vmatprep.subr.bf16.mxu0 0
  %5153 = vmatpush1.bf16.msra.mxu0 %v5127
  %5154 = vmatprep.subr.bf16.mxu0 0
  %5155 = vmatpush1.bf16.msra.mxu0 %v5146
  %5156 = vmatprep.subr.bf16.mxu0 0
  %5157 = vmatpush1.bf16.msra.mxu0 0
  %5158 = vmatprep.subr.bf16.mxu0 0
  %5159 = vmatpush1.bf16.msra.mxu0 0
  %5160 = vmatprep.subr.bf16.mxu0 0
  %5161 = vmatpush1.bf16.msra.mxu0 0
  %5162 = vmatprep.subr.bf16.mxu0 0
  %5163 = vmatpush1.bf16.msra.mxu0 0
  %5164 = vmatprep.subr.bf16.mxu0 0
  %5165 = vmatpush1.bf16.msra.mxu0 0
  %5166 = vmatprep.subr.bf16.mxu0 0
  %5167 = vmatpush1.bf16.msra.mxu0 0
  %5168 = vmatprep.subr.bf16.mxu0 0
  %5169 = vmatpush1.bf16.msra.mxu0 0
  %5170 = vmatprep.subr.bf16.mxu0 0
  %5171 = vmatpush1.bf16.msra.mxu0 0
  %5172 = vmatprep.subr.bf16.mxu0 0
  %5173 = vmatpush1.bf16.msra.mxu0 0
  %5174 = vmatprep.subr.bf16.mxu0 0
  %5175 = vmatpush1.bf16.msra.mxu0 0
  %5176 = vmatprep.subr.bf16.mxu0 0
  %5177 = vmatpush1.bf16.msra.mxu0 0
  %5178 = vmatprep.subr.bf16.mxu0 0
  %5179 = vmatpush1.bf16.msra.mxu0 0
  %5180 = vmatprep.mubr.bf16.mxu0 0
  %5181 = vmatmul.mubr.bf16.gmra.mrb[0].mxu0 %v5134
  %v5182 = vpop.f32.mrb[0].mxu0
  %v5183 = vadd.f32 0.0, %v5182
  %v5184 = vpop.f32.mrb[0].mxu0
  %v5185 = vpop.f32.mrb[0].mxu0
  %v5186 = vadd.f32 0.0, %v5185
  %v5187 = vpop.f32.mrb[0].mxu0
  %5188 = vmatprep.mubr.bf16.mxu0 0
  %5189 = vmatmul.mubr.bf16.gmra.mrb[0].mxu0 %v5137
  %v5190 = vpop.f32.mrb[0].mxu0
  %v5191 = vadd.f32 0.0, %v5190
  %v5192 = vpop.f32.mrb[0].mxu0
  %v5193 = vpop.f32.mrb[0].mxu0
  %v5194 = vadd.f32 0.0, %v5193
  %v5195 = vpop.f32.mrb[0].mxu0
  %5196 = vmatprep.mubr.bf16.mxu0 0
  %5197 = vmatmul.mubr.bf16.gmra.mrb[0].mxu0 %v5140
  %v5198 = vpop.f32.mrb[0].mxu0
  %v5199 = vadd.f32 0.0, %v5198
  %v5200 = vpop.f32.mrb[0].mxu0
  %v5201 = vpop.f32.mrb[0].mxu0
  %v5202 = vadd.f32 0.0, %v5201
  %v5203 = vpop.f32.mrb[0].mxu0
  %5204 = vmatprep.mubr.bf16.mxu0 0
  %5205 = vmatmul.mubr.bf16.gmra.mrb[0].mxu0 %v5143
  %v5206 = vpop.f32.mrb[0].mxu0
  %v5207 = vadd.f32 0.0, %v5206
  %v5208 = vpop.f32.mrb[0].mxu0
  %v5209 = vpop.f32.mrb[0].mxu0
  %v5210 = vpop.f32.mrb[0].mxu0
  %5211 = vdwg.mxu0
  %5212 = vrot.lane.b32.xlu0 %v2194, 96
  %v5213 = vpop.permute.xlu0 %5212
  %5214 = vrot.lane.b32.xlu0 %v2195, 96
  %v5215 = vpop.permute.xlu0 %5214
  %5216 = vrot.lane.b32.xlu0 %v2196, 96
  %v5217 = vpop.permute.xlu0 %5216
  %5218 = vrot.lane.b32.xlu0 %v1479, 96
  %v5219 = vpop.permute.xlu0 %5218
  %v5224 = vsel %vm3374, %v4631, 0
  %v5227 = vsel %vm3374, %v4632, 0
  %v5230 = vsel %vm3374, %v4633, 0
  %v5233 = vsel %vm3374, %v4634, 0
  %v5236 = vsel %vm4694, %v5219, 0
  %5238 = vmatprep.subr.bf16.mxu0 0
  %5239 = vmatpush1.bf16.msra.mxu0 %v5213
  %5240 = vmatprep.subr.bf16.mxu0 0
  %5241 = vmatpush1.bf16.msra.mxu0 %v5215
  %5242 = vmatprep.subr.bf16.mxu0 0
  %5243 = vmatpush1.bf16.msra.mxu0 %v5217
  %5244 = vmatprep.subr.bf16.mxu0 0
  %5245 = vmatpush1.bf16.msra.mxu0 %v5236
  %5246 = vmatprep.subr.bf16.mxu0 0
  %5247 = vmatpush1.bf16.msra.mxu0 0
  %5248 = vmatprep.subr.bf16.mxu0 0
  %5249 = vmatpush1.bf16.msra.mxu0 0
  %5250 = vmatprep.subr.bf16.mxu0 0
  %5251 = vmatpush1.bf16.msra.mxu0 0
  %5252 = vmatprep.subr.bf16.mxu0 0
  %5253 = vmatpush1.bf16.msra.mxu0 0
  %5254 = vmatprep.subr.bf16.mxu0 0
  %5255 = vmatpush1.bf16.msra.mxu0 0
  %5256 = vmatprep.subr.bf16.mxu0 0
  %5257 = vmatpush1.bf16.msra.mxu0 0
  %5258 = vmatprep.subr.bf16.mxu0 0
  %5259 = vmatpush1.bf16.msra.mxu0 0
  %5260 = vmatprep.subr.bf16.mxu0 0
  %5261 = vmatpush1.bf16.msra.mxu0 0
  %5262 = vmatprep.subr.bf16.mxu0 0
  %5263 = vmatpush1.bf16.msra.mxu0 0
  %5264 = vmatprep.subr.bf16.mxu0 0
  %5265 = vmatpush1.bf16.msra.mxu0 0
  %5266 = vmatprep.subr.bf16.mxu0 0
  %5267 = vmatpush1.bf16.msra.mxu0 0
  %5268 = vmatprep.subr.bf16.mxu0 0
  %5269 = vmatpush1.bf16.msra.mxu0 0
  %5270 = vmatprep.mubr.bf16.mxu0 0
  %5271 = vmatmul.mubr.bf16.gmra.mrb[0].mxu0 %v5224
  %v5272 = vpop.f32.mrb[0].mxu0
  %v5273 = vadd.f32 0.0, %v5272
  %v5274 = vpop.f32.mrb[0].mxu0
  %v5275 = vpop.f32.mrb[0].mxu0
  %v5276 = vadd.f32 0.0, %v5275
  %v5277 = vpop.f32.mrb[0].mxu0
  %5278 = vmatprep.mubr.bf16.mxu0 0
  %5279 = vmatmul.mubr.bf16.gmra.mrb[0].mxu0 %v5227
  %v5280 = vpop.f32.mrb[0].mxu0
  %v5281 = vadd.f32 0.0, %v5280
  %v5282 = vpop.f32.mrb[0].mxu0
  %v5283 = vpop.f32.mrb[0].mxu0
  %v5284 = vadd.f32 0.0, %v5283
  %v5285 = vpop.f32.mrb[0].mxu0
  %5286 = vmatprep.mubr.bf16.mxu0 0
  %5287 = vmatmul.mubr.bf16.gmra.mrb[0].mxu0 %v5230
  %v5288 = vpop.f32.mrb[0].mxu0
  %v5289 = vadd.f32 0.0, %v5288
  %v5290 = vpop.f32.mrb[0].mxu0
  %v5291 = vpop.f32.mrb[0].mxu0
  %v5292 = vadd.f32 0.0, %v5291
  %v5293 = vpop.f32.mrb[0].mxu0
  %5294 = vmatprep.mubr.bf16.mxu0 0
  %5295 = vmatmul.mubr.bf16.gmra.mrb[0].mxu0 %v5233
  %v5296 = vpop.f32.mrb[0].mxu0
  %v5297 = vadd.f32 0.0, %v5296
  %v5298 = vpop.f32.mrb[0].mxu0
  %v5299 = vpop.f32.mrb[0].mxu0
  %v5300 = vpop.f32.mrb[0].mxu0
  %5301 = vdwg.mxu0
  %5302 = vrot.lane.b32.xlu0 %v2293, 96
  %v5303 = vpop.permute.xlu0 %5302
  %5304 = vrot.lane.b32.xlu0 %v2294, 96
  %v5305 = vpop.permute.xlu0 %5304
  %5306 = vrot.lane.b32.xlu0 %v2295, 96
  %v5307 = vpop.permute.xlu0 %5306
  %5308 = vrot.lane.b32.xlu0 %v1486, 96
  %v5309 = vpop.permute.xlu0 %5308
  %v5314 = vsel %vm3374, %v4635, 0
  %v5317 = vsel %vm3374, %v4636, 0
  %v5320 = vsel %vm3374, %v4637, 0
  %v5323 = vsel %vm3374, %v4638, 0
  %v5326 = vsel %vm4694, %v5309, 0
  %5328 = vmatprep.subr.bf16.mxu0 0
  %5329 = vmatpush1.bf16.msra.mxu0 %v5303
  %5330 = vmatprep.subr.bf16.mxu0 0
  %5331 = vmatpush1.bf16.msra.mxu0 %v5305
  %5332 = vmatprep.subr.bf16.mxu0 0
  %5333 = vmatpush1.bf16.msra.mxu0 %v5307
  %5334 = vmatprep.subr.bf16.mxu0 0
  %5335 = vmatpush1.bf16.msra.mxu0 %v5326
  %5336 = vmatprep.subr.bf16.mxu0 0
  %5337 = vmatpush1.bf16.msra.mxu0 0
  %5338 = vmatprep.subr.bf16.mxu0 0
  %5339 = vmatpush1.bf16.msra.mxu0 0
  %5340 = vmatprep.subr.bf16.mxu0 0
  %5341 = vmatpush1.bf16.msra.mxu0 0
  %5342 = vmatprep.subr.bf16.mxu0 0
  %5343 = vmatpush1.bf16.msra.mxu0 0
  %5344 = vmatprep.subr.bf16.mxu0 0
  %5345 = vmatpush1.bf16.msra.mxu0 0
  %5346 = vmatprep.subr.bf16.mxu0 0
  %5347 = vmatpush1.bf16.msra.mxu0 0
  %5348 = vmatprep.subr.bf16.mxu0 0
  %5349 = vmatpush1.bf16.msra.mxu0 0
  %5350 = vmatprep.subr.bf16.mxu0 0
  %5351 = vmatpush1.bf16.msra.mxu0 0
  %5352 = vmatprep.subr.bf16.mxu0 0
  %5353 = vmatpush1.bf16.msra.mxu0 0
  %5354 = vmatprep.subr.bf16.mxu0 0
  %5355 = vmatpush1.bf16.msra.mxu0 0
  %5356 = vmatprep.subr.bf16.mxu0 0
  %5357 = vmatpush1.bf16.msra.mxu0 0
  %5358 = vmatprep.subr.bf16.mxu0 0
  %5359 = vmatpush1.bf16.msra.mxu0 0
  %5360 = vmatprep.mubr.bf16.mxu0 0
  %5361 = vmatmul.mubr.bf16.gmra.mrb[0].mxu0 %v5314
  %v5362 = vpop.f32.mrb[0].mxu0
  %v5363 = vadd.f32 0.0, %v5362
  %v5364 = vpop.f32.mrb[0].mxu0
  %v5365 = vpop.f32.mrb[0].mxu0
  %v5366 = vadd.f32 0.0, %v5365
  %v5367 = vpop.f32.mrb[0].mxu0
  %5368 = vmatprep.mubr.bf16.mxu0 0
  %5369 = vmatmul.mubr.bf16.gmra.mrb[0].mxu0 %v5317
  %v5370 = vpop.f32.mrb[0].mxu0
  %v5371 = vadd.f32 0.0, %v5370
  %v5372 = vpop.f32.mrb[0].mxu0
  %v5373 = vpop.f32.mrb[0].mxu0
  %v5374 = vadd.f32 0.0, %v5373
  %v5375 = vpop.f32.mrb[0].mxu0
  %5376 = vmatprep.mubr.bf16.mxu0 0
  %5377 = vmatmul.mubr.bf16.gmra.mrb[0].mxu0 %v5320
  %v5378 = vpop.f32.mrb[0].mxu0
  %v5379 = vadd.f32 0.0, %v5378
  %v5380 = vpop.f32.mrb[0].mxu0
  %v5381 = vpop.f32.mrb[0].mxu0
  %v5382 = vadd.f32 0.0, %v5381
  %v5383 = vpop.f32.mrb[0].mxu0
  %5384 = vmatprep.mubr.bf16.mxu0 0
  %5385 = vmatmul.mubr.bf16.gmra.mrb[0].mxu0 %v5323
  %v5386 = vpop.f32.mrb[0].mxu0
  %v5387 = vadd.f32 0.0, %v5386
  %v5388 = vpop.f32.mrb[0].mxu0
  %v5389 = vpop.f32.mrb[0].mxu0
  %v5390 = vpop.f32.mrb[0].mxu0
  %5391 = vdwg.mxu0
  %5392 = vrot.lane.b32.xlu0 %v2399, 96
  %v5393 = vpop.permute.xlu0 %5392
  %5394 = vrot.lane.b32.xlu0 %v2400, 96
  %v5395 = vpop.permute.xlu0 %5394
  %5396 = vrot.lane.b32.xlu0 %v2401, 96
  %v5397 = vpop.permute.xlu0 %5396
  %5398 = vrot.lane.b32.xlu0 %v2402, 96
  %v5399 = vpop.permute.xlu0 %5398
  %v5404 = vsel %vm3374, %v4639, 0
  %v5407 = vsel %vm3374, %v4640, 0
  %v5410 = vsel %vm3374, %v4641, 0
  %v5413 = vsel %vm3374, %v4642, 0
  %v5416 = vsel %vm4694, %v5399, 0
  %5418 = vmatprep.subr.bf16.mxu0 0
  %5419 = vmatpush1.bf16.msra.mxu0 %v5393
  %5420 = vmatprep.subr.bf16.mxu0 0
  %5421 = vmatpush1.bf16.msra.mxu0 %v5395
  %5422 = vmatprep.subr.bf16.mxu0 0
  %5423 = vmatpush1.bf16.msra.mxu0 %v5397
  %5424 = vmatprep.subr.bf16.mxu0 0
  %5425 = vmatpush1.bf16.msra.mxu0 %v5416
  %5426 = vmatprep.subr.bf16.mxu0 0
  %5427 = vmatpush1.bf16.msra.mxu0 0
  %5428 = vmatprep.subr.bf16.mxu0 0
  %5429 = vmatpush1.bf16.msra.mxu0 0
  %5430 = vmatprep.subr.bf16.mxu0 0
  %5431 = vmatpush1.bf16.msra.mxu0 0
  %5432 = vmatprep.subr.bf16.mxu0 0
  %5433 = vmatpush1.bf16.msra.mxu0 0
  %5434 = vmatprep.subr.bf16.mxu0 0
  %5435 = vmatpush1.bf16.msra.mxu0 0
  %5436 = vmatprep.subr.bf16.mxu0 0
  %5437 = vmatpush1.bf16.msra.mxu0 0
  %5438 = vmatprep.subr.bf16.mxu0 0
  %5439 = vmatpush1.bf16.msra.mxu0 0
  %5440 = vmatprep.subr.bf16.mxu0 0
  %5441 = vmatpush1.bf16.msra.mxu0 0
  %5442 = vmatprep.subr.bf16.mxu0 0
  %5443 = vmatpush1.bf16.msra.mxu0 0
  %5444 = vmatprep.subr.bf16.mxu0 0
  %5445 = vmatpush1.bf16.msra.mxu0 0
  %5446 = vmatprep.subr.bf16.mxu0 0
  %5447 = vmatpush1.bf16.msra.mxu0 0
  %5448 = vmatprep.subr.bf16.mxu0 0
  %5449 = vmatpush1.bf16.msra.mxu0 0
  %5450 = vmatprep.mubr.bf16.mxu0 0
  %5451 = vmatmul.mubr.bf16.gmra.mrb[0].mxu0 %v5404
  %v5452 = vpop.f32.mrb[0].mxu0
  %v5453 = vadd.f32 0.0, %v5452
  %v5454 = vpop.f32.mrb[0].mxu0
  %v5455 = vpop.f32.mrb[0].mxu0
  %v5456 = vadd.f32 0.0, %v5455
  %v5457 = vpop.f32.mrb[0].mxu0
  %5458 = vmatprep.mubr.bf16.mxu0 0
  %5459 = vmatmul.mubr.bf16.gmra.mrb[0].mxu0 %v5407
  %v5460 = vpop.f32.mrb[0].mxu0
  %v5461 = vadd.f32 0.0, %v5460
  %v5462 = vpop.f32.mrb[0].mxu0
  %v5463 = vpop.f32.mrb[0].mxu0
  %v5464 = vadd.f32 0.0, %v5463
  %v5465 = vpop.f32.mrb[0].mxu0
  %5466 = vmatprep.mubr.bf16.mxu0 0
  %5467 = vmatmul.mubr.bf16.gmra.mrb[0].mxu0 %v5410
  %v5468 = vpop.f32.mrb[0].mxu0
  %v5469 = vadd.f32 0.0, %v5468
  %v5470 = vpop.f32.mrb[0].mxu0
  %v5471 = vpop.f32.mrb[0].mxu0
  %v5472 = vadd.f32 0.0, %v5471
  %v5473 = vpop.f32.mrb[0].mxu0
  %5474 = vmatprep.mubr.bf16.mxu0 0
  %5475 = vmatmul.mubr.bf16.gmra.mrb[0].mxu0 %v5413
  %v5476 = vpop.f32.mrb[0].mxu0
  %v5477 = vadd.f32 0.0, %v5476
  %v5478 = vpop.f32.mrb[0].mxu0
  %v5479 = vpop.f32.mrb[0].mxu0
  %v5480 = vpop.f32.mrb[0].mxu0
  %5481 = vdwg.mxu0
  %5482 = vrot.lane.b32.xlu0 %v2506, 96
  %v5483 = vpop.permute.xlu0 %5482
  %5484 = vrot.lane.b32.xlu0 %v2507, 96
  %v5485 = vpop.permute.xlu0 %5484
  %5486 = vrot.lane.b32.xlu0 %v2508, 96
  %v5487 = vpop.permute.xlu0 %5486
  %5488 = vrot.lane.b32.xlu0 %v2509, 96
  %v5489 = vpop.permute.xlu0 %5488
  %v5494 = vsel %vm3374, %v4643, 0
  %v5497 = vsel %vm3374, %v4644, 0
  %v5500 = vsel %vm3374, %v4645, 0
  %v5503 = vsel %vm3374, %v4646, 0
  %v5506 = vsel %vm4694, %v5489, 0
  %5508 = vmatprep.subr.bf16.mxu0 0
  %5509 = vmatpush1.bf16.msra.mxu0 %v5483
  %5510 = vmatprep.subr.bf16.mxu0 0
  %5511 = vmatpush1.bf16.msra.mxu0 %v5485
  %5512 = vmatprep.subr.bf16.mxu0 0
  %5513 = vmatpush1.bf16.msra.mxu0 %v5487
  %5514 = vmatprep.subr.bf16.mxu0 0
  %5515 = vmatpush1.bf16.msra.mxu0 %v5506
  %5516 = vmatprep.subr.bf16.mxu0 0
  %5517 = vmatpush1.bf16.msra.mxu0 0
  %5518 = vmatprep.subr.bf16.mxu0 0
  %5519 = vmatpush1.bf16.msra.mxu0 0
  %5520 = vmatprep.subr.bf16.mxu0 0
  %5521 = vmatpush1.bf16.msra.mxu0 0
  %5522 = vmatprep.subr.bf16.mxu0 0
  %5523 = vmatpush1.bf16.msra.mxu0 0
  %5524 = vmatprep.subr.bf16.mxu0 0
  %5525 = vmatpush1.bf16.msra.mxu0 0
  %5526 = vmatprep.subr.bf16.mxu0 0
  %5527 = vmatpush1.bf16.msra.mxu0 0
  %5528 = vmatprep.subr.bf16.mxu0 0
  %5529 = vmatpush1.bf16.msra.mxu0 0
  %5530 = vmatprep.subr.bf16.mxu0 0
  %5531 = vmatpush1.bf16.msra.mxu0 0
  %5532 = vmatprep.subr.bf16.mxu0 0
  %5533 = vmatpush1.bf16.msra.mxu0 0
  %5534 = vmatprep.subr.bf16.mxu0 0
  %5535 = vmatpush1.bf16.msra.mxu0 0
  %5536 = vmatprep.subr.bf16.mxu0 0
  %5537 = vmatpush1.bf16.msra.mxu0 0
  %5538 = vmatprep.subr.bf16.mxu0 0
  %5539 = vmatpush1.bf16.msra.mxu0 0
  %5540 = vmatprep.mubr.bf16.mxu0 0
  %5541 = vmatmul.mubr.bf16.gmra.mrb[0].mxu0 %v5494
  %v5542 = vpop.f32.mrb[0].mxu0
  %v5543 = vadd.f32 0.0, %v5542
  %v5544 = vpop.f32.mrb[0].mxu0
  %v5545 = vpop.f32.mrb[0].mxu0
  %v5546 = vadd.f32 0.0, %v5545
  %v5547 = vpop.f32.mrb[0].mxu0
  %5548 = vmatprep.mubr.bf16.mxu0 0
  %5549 = vmatmul.mubr.bf16.gmra.mrb[0].mxu0 %v5497
  %v5550 = vpop.f32.mrb[0].mxu0
  %v5551 = vadd.f32 0.0, %v5550
  %v5552 = vpop.f32.mrb[0].mxu0
  %v5553 = vpop.f32.mrb[0].mxu0
  %v5554 = vadd.f32 0.0, %v5553
  %v5555 = vpop.f32.mrb[0].mxu0
  %5556 = vmatprep.mubr.bf16.mxu0 0
  %5557 = vmatmul.mubr.bf16.gmra.mrb[0].mxu0 %v5500
  %v5558 = vpop.f32.mrb[0].mxu0
  %v5559 = vadd.f32 0.0, %v5558
  %v5560 = vpop.f32.mrb[0].mxu0
  %v5561 = vpop.f32.mrb[0].mxu0
  %v5562 = vadd.f32 0.0, %v5561
  %v5563 = vpop.f32.mrb[0].mxu0
  %5564 = vmatprep.mubr.bf16.mxu0 0
  %5565 = vmatmul.mubr.bf16.gmra.mrb[0].mxu0 %v5503
  %v5566 = vpop.f32.mrb[0].mxu0
  %v5567 = vadd.f32 0.0, %v5566
  %v5568 = vpop.f32.mrb[0].mxu0
  %v5569 = vpop.f32.mrb[0].mxu0
  %v5570 = vpop.f32.mrb[0].mxu0
  %5571 = vdwg.mxu0
  %5572 = vrot.lane.b32.xlu0 %v2613, 96
  %v5573 = vpop.permute.xlu0 %5572
  %5574 = vrot.lane.b32.xlu0 %v2614, 96
  %v5575 = vpop.permute.xlu0 %5574
  %5576 = vrot.lane.b32.xlu0 %v2615, 96
  %v5577 = vpop.permute.xlu0 %5576
  %5578 = vrot.lane.b32.xlu0 %v2616, 96
  %v5579 = vpop.permute.xlu0 %5578
  %v5584 = vsel %vm3374, %v4647, 0
  %v5587 = vsel %vm3374, %v4648, 0
  %v5590 = vsel %vm3374, %v4649, 0
  %v5593 = vsel %vm3374, %v4650, 0
  %v5596 = vsel %vm4694, %v5579, 0
  %5598 = vmatprep.subr.bf16.mxu0 0
  %5599 = vmatpush1.bf16.msra.mxu0 %v5573
  %5600 = vmatprep.subr.bf16.mxu0 0
  %5601 = vmatpush1.bf16.msra.mxu0 %v5575
  %5602 = vmatprep.subr.bf16.mxu0 0
  %5603 = vmatpush1.bf16.msra.mxu0 %v5577
  %5604 = vmatprep.subr.bf16.mxu0 0
  %5605 = vmatpush1.bf16.msra.mxu0 %v5596
  %5606 = vmatprep.subr.bf16.mxu0 0
  %5607 = vmatpush1.bf16.msra.mxu0 0
  %5608 = vmatprep.subr.bf16.mxu0 0
  %5609 = vmatpush1.bf16.msra.mxu0 0
  %5610 = vmatprep.subr.bf16.mxu0 0
  %5611 = vmatpush1.bf16.msra.mxu0 0
  %5612 = vmatprep.subr.bf16.mxu0 0
  %5613 = vmatpush1.bf16.msra.mxu0 0
  %5614 = vmatprep.subr.bf16.mxu0 0
  %5615 = vmatpush1.bf16.msra.mxu0 0
  %5616 = vmatprep.subr.bf16.mxu0 0
  %5617 = vmatpush1.bf16.msra.mxu0 0
  %5618 = vmatprep.subr.bf16.mxu0 0
  %5619 = vmatpush1.bf16.msra.mxu0 0
  %5620 = vmatprep.subr.bf16.mxu0 0
  %5621 = vmatpush1.bf16.msra.mxu0 0
  %5622 = vmatprep.subr.bf16.mxu0 0
  %5623 = vmatpush1.bf16.msra.mxu0 0
  %5624 = vmatprep.subr.bf16.mxu0 0
  %5625 = vmatpush1.bf16.msra.mxu0 0
  %5626 = vmatprep.subr.bf16.mxu0 0
  %5627 = vmatpush1.bf16.msra.mxu0 0
  %5628 = vmatprep.subr.bf16.mxu0 0
  %5629 = vmatpush1.bf16.msra.mxu0 0
  %5630 = vmatprep.mubr.bf16.mxu0 0
  %5631 = vmatmul.mubr.bf16.gmra.mrb[0].mxu0 %v5584
  %v5632 = vpop.f32.mrb[0].mxu0
  %v5633 = vadd.f32 0.0, %v5632
  %v5634 = vpop.f32.mrb[0].mxu0
  %v5635 = vpop.f32.mrb[0].mxu0
  %v5636 = vadd.f32 0.0, %v5635
  %v5637 = vpop.f32.mrb[0].mxu0
  %5638 = vmatprep.mubr.bf16.mxu0 0
  %5639 = vmatmul.mubr.bf16.gmra.mrb[0].mxu0 %v5587
  %v5640 = vpop.f32.mrb[0].mxu0
  %v5641 = vadd.f32 0.0, %v5640
  %v5642 = vpop.f32.mrb[0].mxu0
  %v5643 = vpop.f32.mrb[0].mxu0
  %v5644 = vadd.f32 0.0, %v5643
  %v5645 = vpop.f32.mrb[0].mxu0
  %5646 = vmatprep.mubr.bf16.mxu0 0
  %5647 = vmatmul.mubr.bf16.gmra.mrb[0].mxu0 %v5590
  %v5648 = vpop.f32.mrb[0].mxu0
  %v5649 = vadd.f32 0.0, %v5648
  %v5650 = vpop.f32.mrb[0].mxu0
  %v5651 = vpop.f32.mrb[0].mxu0
  %v5652 = vadd.f32 0.0, %v5651
  %v5653 = vpop.f32.mrb[0].mxu0
  %5654 = vmatprep.mubr.bf16.mxu0 0
  %5655 = vmatmul.mubr.bf16.gmra.mrb[0].mxu0 %v5593
  %v5656 = vpop.f32.mrb[0].mxu0
  %v5657 = vadd.f32 0.0, %v5656
  %v5658 = vpop.f32.mrb[0].mxu0
  %v5659 = vpop.f32.mrb[0].mxu0
  %v5660 = vpop.f32.mrb[0].mxu0
  %5661 = vdwg.mxu0
  %5662 = vrot.lane.b32.xlu0 %v2720, 96
  %v5663 = vpop.permute.xlu0 %5662
  %5664 = vrot.lane.b32.xlu0 %v2721, 96
  %v5665 = vpop.permute.xlu0 %5664
  %5666 = vrot.lane.b32.xlu0 %v2722, 96
  %v5667 = vpop.permute.xlu0 %5666
  %5668 = vrot.lane.b32.xlu0 %v2723, 96
  %v5669 = vpop.permute.xlu0 %5668
  %v5674 = vsel %vm3374, %v4651, 0
  %v5677 = vsel %vm3374, %v4652, 0
  %v5680 = vsel %vm3374, %v4653, 0
  %v5683 = vsel %vm3374, %v4654, 0
  %v5686 = vsel %vm4694, %v5669, 0
  %5688 = vmatprep.subr.bf16.mxu0 0
  %5689 = vmatpush1.bf16.msra.mxu0 %v5663
  %5690 = vmatprep.subr.bf16.mxu0 0
  %5691 = vmatpush1.bf16.msra.mxu0 %v5665
  %5692 = vmatprep.subr.bf16.mxu0 0
  %5693 = vmatpush1.bf16.msra.mxu0 %v5667
  %5694 = vmatprep.subr.bf16.mxu0 0
  %5695 = vmatpush1.bf16.msra.mxu0 %v5686
  %5696 = vmatprep.subr.bf16.mxu0 0
  %5697 = vmatpush1.bf16.msra.mxu0 0
  %5698 = vmatprep.subr.bf16.mxu0 0
  %5699 = vmatpush1.bf16.msra.mxu0 0
  %5700 = vmatprep.subr.bf16.mxu0 0
  %5701 = vmatpush1.bf16.msra.mxu0 0
  %5702 = vmatprep.subr.bf16.mxu0 0
  %5703 = vmatpush1.bf16.msra.mxu0 0
  %5704 = vmatprep.subr.bf16.mxu0 0
  %5705 = vmatpush1.bf16.msra.mxu0 0
  %5706 = vmatprep.subr.bf16.mxu0 0
  %5707 = vmatpush1.bf16.msra.mxu0 0
  %5708 = vmatprep.subr.bf16.mxu0 0
  %5709 = vmatpush1.bf16.msra.mxu0 0
  %5710 = vmatprep.subr.bf16.mxu0 0
  %5711 = vmatpush1.bf16.msra.mxu0 0
  %5712 = vmatprep.subr.bf16.mxu0 0
  %5713 = vmatpush1.bf16.msra.mxu0 0
  %5714 = vmatprep.subr.bf16.mxu0 0
  %5715 = vmatpush1.bf16.msra.mxu0 0
  %5716 = vmatprep.subr.bf16.mxu0 0
  %5717 = vmatpush1.bf16.msra.mxu0 0
  %5718 = vmatprep.subr.bf16.mxu0 0
  %5719 = vmatpush1.bf16.msra.mxu0 0
  %5720 = vmatprep.mubr.bf16.mxu0 0
  %5721 = vmatmul.mubr.bf16.gmra.mrb[0].mxu0 %v5674
  %v5722 = vpop.f32.mrb[0].mxu0
  %v5723 = vadd.f32 0.0, %v5722
  %v5724 = vpop.f32.mrb[0].mxu0
  %v5725 = vpop.f32.mrb[0].mxu0
  %v5726 = vadd.f32 0.0, %v5725
  %v5727 = vpop.f32.mrb[0].mxu0
  %5728 = vmatprep.mubr.bf16.mxu0 0
  %5729 = vmatmul.mubr.bf16.gmra.mrb[0].mxu0 %v5677
  %v5730 = vpop.f32.mrb[0].mxu0
  %v5731 = vadd.f32 0.0, %v5730
  %v5732 = vpop.f32.mrb[0].mxu0
  %v5733 = vpop.f32.mrb[0].mxu0
  %v5734 = vadd.f32 0.0, %v5733
  %v5735 = vpop.f32.mrb[0].mxu0
  %5736 = vmatprep.mubr.bf16.mxu0 0
  %5737 = vmatmul.mubr.bf16.gmra.mrb[0].mxu0 %v5680
  %v5738 = vpop.f32.mrb[0].mxu0
  %v5739 = vadd.f32 0.0, %v5738
  %v5740 = vpop.f32.mrb[0].mxu0
  %v5741 = vpop.f32.mrb[0].mxu0
  %v5742 = vadd.f32 0.0, %v5741
  %v5743 = vpop.f32.mrb[0].mxu0
  %5744 = vmatprep.mubr.bf16.mxu0 0
  %5745 = vmatmul.mubr.bf16.gmra.mrb[0].mxu0 %v5683
  %v5746 = vpop.f32.mrb[0].mxu0
  %v5747 = vadd.f32 0.0, %v5746
  %v5748 = vpop.f32.mrb[0].mxu0
  %v5749 = vpop.f32.mrb[0].mxu0
  %v5750 = vpop.f32.mrb[0].mxu0
  %5751 = vdwg.mxu0
  %5752 = vrot.lane.b32.xlu0 %v2827, 96
  %v5753 = vpop.permute.xlu0 %5752
  %5754 = vrot.lane.b32.xlu0 %v2828, 96
  %v5755 = vpop.permute.xlu0 %5754
  %5756 = vrot.lane.b32.xlu0 %v2829, 96
  %v5757 = vpop.permute.xlu0 %5756
  %5758 = vrot.lane.b32.xlu0 %v2830, 96
  %v5759 = vpop.permute.xlu0 %5758
  %v5764 = vsel %vm3374, %v4655, 0
  %v5767 = vsel %vm3374, %v4656, 0
  %v5770 = vsel %vm3374, %v4657, 0
  %v5773 = vsel %vm3374, %v4658, 0
  %v5776 = vsel %vm4694, %v5759, 0
  %5778 = vmatprep.subr.bf16.mxu0 0
  %5779 = vmatpush1.bf16.msra.mxu0 %v5753
  %5780 = vmatprep.subr.bf16.mxu0 0
  %5781 = vmatpush1.bf16.msra.mxu0 %v5755
  %5782 = vmatprep.subr.bf16.mxu0 0
  %5783 = vmatpush1.bf16.msra.mxu0 %v5757
  %5784 = vmatprep.subr.bf16.mxu0 0
  %5785 = vmatpush1.bf16.msra.mxu0 %v5776
  %5786 = vmatprep.subr.bf16.mxu0 0
  %5787 = vmatpush1.bf16.msra.mxu0 0
  %5788 = vmatprep.subr.bf16.mxu0 0
  %5789 = vmatpush1.bf16.msra.mxu0 0
  %5790 = vmatprep.subr.bf16.mxu0 0
  %5791 = vmatpush1.bf16.msra.mxu0 0
  %5792 = vmatprep.subr.bf16.mxu0 0
  %5793 = vmatpush1.bf16.msra.mxu0 0
  %5794 = vmatprep.subr.bf16.mxu0 0
  %5795 = vmatpush1.bf16.msra.mxu0 0
  %5796 = vmatprep.subr.bf16.mxu0 0
  %5797 = vmatpush1.bf16.msra.mxu0 0
  %5798 = vmatprep.subr.bf16.mxu0 0
  %5799 = vmatpush1.bf16.msra.mxu0 0
  %5800 = vmatprep.subr.bf16.mxu0 0
  %5801 = vmatpush1.bf16.msra.mxu0 0
  %5802 = vmatprep.subr.bf16.mxu0 0
  %5803 = vmatpush1.bf16.msra.mxu0 0
  %5804 = vmatprep.subr.bf16.mxu0 0
  %5805 = vmatpush1.bf16.msra.mxu0 0
  %5806 = vmatprep.subr.bf16.mxu0 0
  %5807 = vmatpush1.bf16.msra.mxu0 0
  %5808 = vmatprep.subr.bf16.mxu0 0
  %5809 = vmatpush1.bf16.msra.mxu0 0
  %5810 = vmatprep.mubr.bf16.mxu0 0
  %5811 = vmatmul.mubr.bf16.gmra.mrb[0].mxu0 %v5764
  %v5812 = vpop.f32.mrb[0].mxu0
  %v5813 = vadd.f32 0.0, %v5812
  %v5814 = vpop.f32.mrb[0].mxu0
  %v5815 = vpop.f32.mrb[0].mxu0
  %v5816 = vadd.f32 0.0, %v5815
  %v5817 = vpop.f32.mrb[0].mxu0
  %5818 = vmatprep.mubr.bf16.mxu0 0
  %5819 = vmatmul.mubr.bf16.gmra.mrb[0].mxu0 %v5767
  %v5820 = vpop.f32.mrb[0].mxu0
  %v5821 = vadd.f32 0.0, %v5820
  %v5822 = vpop.f32.mrb[0].mxu0
  %v5823 = vpop.f32.mrb[0].mxu0
  %v5824 = vadd.f32 0.0, %v5823
  %v5825 = vpop.f32.mrb[0].mxu0
  %5826 = vmatprep.mubr.bf16.mxu0 0
  %5827 = vmatmul.mubr.bf16.gmra.mrb[0].mxu0 %v5770
  %v5828 = vpop.f32.mrb[0].mxu0
  %v5829 = vadd.f32 0.0, %v5828
  %v5830 = vpop.f32.mrb[0].mxu0
  %v5831 = vpop.f32.mrb[0].mxu0
  %v5832 = vadd.f32 0.0, %v5831
  %v5833 = vpop.f32.mrb[0].mxu0
  %5834 = vmatprep.mubr.bf16.mxu0 0
  %5835 = vmatmul.mubr.bf16.gmra.mrb[0].mxu0 %v5773
  %v5836 = vpop.f32.mrb[0].mxu0
  %v5837 = vadd.f32 0.0, %v5836
  %v5838 = vpop.f32.mrb[0].mxu0
  %v5839 = vpop.f32.mrb[0].mxu0
  %v5840 = vpop.f32.mrb[0].mxu0
  %5841 = vdwg.mxu0
  %5842 = vrot.lane.b32.xlu0 %v2934, 96
  %v5843 = vpop.permute.xlu0 %5842
  %5844 = vrot.lane.b32.xlu0 %v2935, 96
  %v5845 = vpop.permute.xlu0 %5844
  %5846 = vrot.lane.b32.xlu0 %v2936, 96
  %v5847 = vpop.permute.xlu0 %5846
  %5848 = vrot.lane.b32.xlu0 %v2937, 96
  %v5849 = vpop.permute.xlu0 %5848
  %v5854 = vsel %vm3374, %v4659, 0
  %v5857 = vsel %vm3374, %v4660, 0
  %v5860 = vsel %vm3374, %v4661, 0
  %v5863 = vsel %vm3374, %v4662, 0
  %v5866 = vsel %vm4694, %v5849, 0
  %5868 = vmatprep.subr.bf16.mxu0 0
  %5869 = vmatpush1.bf16.msra.mxu0 %v5843
  %5870 = vmatprep.subr.bf16.mxu0 0
  %5871 = vmatpush1.bf16.msra.mxu0 %v5845
  %5872 = vmatprep.subr.bf16.mxu0 0
  %5873 = vmatpush1.bf16.msra.mxu0 %v5847
  %5874 = vmatprep.subr.bf16.mxu0 0
  %5875 = vmatpush1.bf16.msra.mxu0 %v5866
  %5876 = vmatprep.subr.bf16.mxu0 0
  %5877 = vmatpush1.bf16.msra.mxu0 0
  %5878 = vmatprep.subr.bf16.mxu0 0
  %5879 = vmatpush1.bf16.msra.mxu0 0
  %5880 = vmatprep.subr.bf16.mxu0 0
  %5881 = vmatpush1.bf16.msra.mxu0 0
  %5882 = vmatprep.subr.bf16.mxu0 0
  %5883 = vmatpush1.bf16.msra.mxu0 0
  %5884 = vmatprep.subr.bf16.mxu0 0
  %5885 = vmatpush1.bf16.msra.mxu0 0
  %5886 = vmatprep.subr.bf16.mxu0 0
  %5887 = vmatpush1.bf16.msra.mxu0 0
  %5888 = vmatprep.subr.bf16.mxu0 0
  %5889 = vmatpush1.bf16.msra.mxu0 0
  %5890 = vmatprep.subr.bf16.mxu0 0
  %5891 = vmatpush1.bf16.msra.mxu0 0
  %5892 = vmatprep.subr.bf16.mxu0 0
  %5893 = vmatpush1.bf16.msra.mxu0 0
  %5894 = vmatprep.subr.bf16.mxu0 0
  %5895 = vmatpush1.bf16.msra.mxu0 0
  %5896 = vmatprep.subr.bf16.mxu0 0
  %5897 = vmatpush1.bf16.msra.mxu0 0
  %5898 = vmatprep.subr.bf16.mxu0 0
  %5899 = vmatpush1.bf16.msra.mxu0 0
  %5900 = vmatprep.mubr.bf16.mxu0 0
  %5901 = vmatmul.mubr.bf16.gmra.mrb[0].mxu0 %v5854
  %v5902 = vpop.f32.mrb[0].mxu0
  %v5903 = vadd.f32 0.0, %v5902
  %v5904 = vpop.f32.mrb[0].mxu0
  %v5905 = vpop.f32.mrb[0].mxu0
  %v5906 = vadd.f32 0.0, %v5905
  %v5907 = vpop.f32.mrb[0].mxu0
  %5908 = vmatprep.mubr.bf16.mxu0 0
  %5909 = vmatmul.mubr.bf16.gmra.mrb[0].mxu0 %v5857
  %v5910 = vpop.f32.mrb[0].mxu0
  %v5911 = vadd.f32 0.0, %v5910
  %v5912 = vpop.f32.mrb[0].mxu0
  %v5913 = vpop.f32.mrb[0].mxu0
  %v5914 = vadd.f32 0.0, %v5913
  %v5915 = vpop.f32.mrb[0].mxu0
  %5916 = vmatprep.mubr.bf16.mxu0 0
  %5917 = vmatmul.mubr.bf16.gmra.mrb[0].mxu0 %v5860
  %v5918 = vpop.f32.mrb[0].mxu0
  %v5919 = vadd.f32 0.0, %v5918
  %v5920 = vpop.f32.mrb[0].mxu0
  %v5921 = vpop.f32.mrb[0].mxu0
  %v5922 = vadd.f32 0.0, %v5921
  %v5923 = vpop.f32.mrb[0].mxu0
  %5924 = vmatprep.mubr.bf16.mxu0 0
  %5925 = vmatmul.mubr.bf16.gmra.mrb[0].mxu0 %v5863
  %v5926 = vpop.f32.mrb[0].mxu0
  %v5927 = vadd.f32 0.0, %v5926
  %v5928 = vpop.f32.mrb[0].mxu0
  %v5929 = vpop.f32.mrb[0].mxu0
  %v5930 = vpop.f32.mrb[0].mxu0
  %5931 = vdwg.mxu0
  %5932 = vrot.lane.b32.xlu0 %v3041, 96
  %v5933 = vpop.permute.xlu0 %5932
  %5934 = vrot.lane.b32.xlu0 %v3042, 96
  %v5935 = vpop.permute.xlu0 %5934
  %5936 = vrot.lane.b32.xlu0 %v3043, 96
  %v5937 = vpop.permute.xlu0 %5936
  %5938 = vrot.lane.b32.xlu0 %v3044, 96
  %v5939 = vpop.permute.xlu0 %5938
  %v5944 = vsel %vm3374, %v4663, 0
  %v5947 = vsel %vm3374, %v4664, 0
  %v5950 = vsel %vm3374, %v4665, 0
  %v5953 = vsel %vm3374, %v4666, 0
  %v5956 = vsel %vm4694, %v5939, 0
  %5958 = vmatprep.subr.bf16.mxu0 0
  %5959 = vmatpush1.bf16.msra.mxu0 %v5933
  %5960 = vmatprep.subr.bf16.mxu0 0
  %5961 = vmatpush1.bf16.msra.mxu0 %v5935
  %5962 = vmatprep.subr.bf16.mxu0 0
  %5963 = vmatpush1.bf16.msra.mxu0 %v5937
  %5964 = vmatprep.subr.bf16.mxu0 0
  %5965 = vmatpush1.bf16.msra.mxu0 %v5956
  %5966 = vmatprep.subr.bf16.mxu0 0
  %5967 = vmatpush1.bf16.msra.mxu0 0
  %5968 = vmatprep.subr.bf16.mxu0 0
  %5969 = vmatpush1.bf16.msra.mxu0 0
  %5970 = vmatprep.subr.bf16.mxu0 0
  %5971 = vmatpush1.bf16.msra.mxu0 0
  %5972 = vmatprep.subr.bf16.mxu0 0
  %5973 = vmatpush1.bf16.msra.mxu0 0
  %5974 = vmatprep.subr.bf16.mxu0 0
  %5975 = vmatpush1.bf16.msra.mxu0 0
  %5976 = vmatprep.subr.bf16.mxu0 0
  %5977 = vmatpush1.bf16.msra.mxu0 0
  %5978 = vmatprep.subr.bf16.mxu0 0
  %5979 = vmatpush1.bf16.msra.mxu0 0
  %5980 = vmatprep.subr.bf16.mxu0 0
  %5981 = vmatpush1.bf16.msra.mxu0 0
  %5982 = vmatprep.subr.bf16.mxu0 0
  %5983 = vmatpush1.bf16.msra.mxu0 0
  %5984 = vmatprep.subr.bf16.mxu0 0
  %5985 = vmatpush1.bf16.msra.mxu0 0
  %5986 = vmatprep.subr.bf16.mxu0 0
  %5987 = vmatpush1.bf16.msra.mxu0 0
  %5988 = vmatprep.subr.bf16.mxu0 0
  %5989 = vmatpush1.bf16.msra.mxu0 0
  %5990 = vmatprep.mubr.bf16.mxu0 0
  %5991 = vmatmul.mubr.bf16.gmra.mrb[0].mxu0 %v5944
  %v5992 = vpop.f32.mrb[0].mxu0
  %v5993 = vadd.f32 0.0, %v5992
  %v5994 = vpop.f32.mrb[0].mxu0
  %v5995 = vpop.f32.mrb[0].mxu0
  %v5996 = vadd.f32 0.0, %v5995
  %v5997 = vpop.f32.mrb[0].mxu0
  %5998 = vmatprep.mubr.bf16.mxu0 0
  %5999 = vmatmul.mubr.bf16.gmra.mrb[0].mxu0 %v5947
  %v6000 = vpop.f32.mrb[0].mxu0
  %v6001 = vadd.f32 0.0, %v6000
  %v6002 = vpop.f32.mrb[0].mxu0
  %v6003 = vpop.f32.mrb[0].mxu0
  %v6004 = vadd.f32 0.0, %v6003
  %v6005 = vpop.f32.mrb[0].mxu0
  %6006 = vmatprep.mubr.bf16.mxu0 0
  %6007 = vmatmul.mubr.bf16.gmra.mrb[0].mxu0 %v5950
  %v6008 = vpop.f32.mrb[0].mxu0
  %v6009 = vadd.f32 0.0, %v6008
  %v6010 = vpop.f32.mrb[0].mxu0
  %v6011 = vpop.f32.mrb[0].mxu0
  %v6012 = vadd.f32 0.0, %v6011
  %v6013 = vpop.f32.mrb[0].mxu0
  %6014 = vmatprep.mubr.bf16.mxu0 0
  %6015 = vmatmul.mubr.bf16.gmra.mrb[0].mxu0 %v5953
  %v6016 = vpop.f32.mrb[0].mxu0
  %v6017 = vadd.f32 0.0, %v6016
  %v6018 = vpop.f32.mrb[0].mxu0
  %v6019 = vpop.f32.mrb[0].mxu0
  %v6020 = vpop.f32.mrb[0].mxu0
  %6021 = vdwg.mxu0
  %6022 = vrot.lane.b32.xlu0 %v3148, 96
  %v6023 = vpop.permute.xlu0 %6022
  %6024 = vrot.lane.b32.xlu0 %v3149, 96
  %v6025 = vpop.permute.xlu0 %6024
  %6026 = vrot.lane.b32.xlu0 %v3150, 96
  %v6027 = vpop.permute.xlu0 %6026
  %6028 = vrot.lane.b32.xlu0 %v3151, 96
  %v6029 = vpop.permute.xlu0 %6028
  %v6034 = vsel %vm3374, %v4667, 0
  %v6037 = vsel %vm3374, %v4668, 0
  %v6040 = vsel %vm3374, %v4669, 0
  %v6043 = vsel %vm3374, %v4670, 0
  %v6046 = vsel %vm4694, %v6029, 0
  %6048 = vmatprep.subr.bf16.mxu0 0
  %6049 = vmatpush1.bf16.msra.mxu0 %v6023
  %6050 = vmatprep.subr.bf16.mxu0 0
  %6051 = vmatpush1.bf16.msra.mxu0 %v6025
  %6052 = vmatprep.subr.bf16.mxu0 0
  %6053 = vmatpush1.bf16.msra.mxu0 %v6027
  %6054 = vmatprep.subr.bf16.mxu0 0
  %6055 = vmatpush1.bf16.msra.mxu0 %v6046
  %6056 = vmatprep.subr.bf16.mxu0 0
  %6057 = vmatpush1.bf16.msra.mxu0 0
  %6058 = vmatprep.subr.bf16.mxu0 0
  %6059 = vmatpush1.bf16.msra.mxu0 0
  %6060 = vmatprep.subr.bf16.mxu0 0
  %6061 = vmatpush1.bf16.msra.mxu0 0
  %6062 = vmatprep.subr.bf16.mxu0 0
  %6063 = vmatpush1.bf16.msra.mxu0 0
  %6064 = vmatprep.subr.bf16.mxu0 0
  %6065 = vmatpush1.bf16.msra.mxu0 0
  %6066 = vmatprep.subr.bf16.mxu0 0
  %6067 = vmatpush1.bf16.msra.mxu0 0
  %6068 = vmatprep.subr.bf16.mxu0 0
  %6069 = vmatpush1.bf16.msra.mxu0 0
  %6070 = vmatprep.subr.bf16.mxu0 0
  %6071 = vmatpush1.bf16.msra.mxu0 0
  %6072 = vmatprep.subr.bf16.mxu0 0
  %6073 = vmatpush1.bf16.msra.mxu0 0
  %6074 = vmatprep.subr.bf16.mxu0 0
  %6075 = vmatpush1.bf16.msra.mxu0 0
  %6076 = vmatprep.subr.bf16.mxu0 0
  %6077 = vmatpush1.bf16.msra.mxu0 0
  %6078 = vmatprep.subr.bf16.mxu0 0
  %6079 = vmatpush1.bf16.msra.mxu0 0
  %6080 = vmatprep.mubr.bf16.mxu0 0
  %6081 = vmatmul.mubr.bf16.gmra.mrb[0].mxu0 %v6034
  %v6082 = vpop.f32.mrb[0].mxu0
  %v6083 = vadd.f32 0.0, %v6082
  %v6084 = vpop.f32.mrb[0].mxu0
  %v6085 = vpop.f32.mrb[0].mxu0
  %v6086 = vadd.f32 0.0, %v6085
  %v6087 = vpop.f32.mrb[0].mxu0
  %6088 = vmatprep.mubr.bf16.mxu0 0
  %6089 = vmatmul.mubr.bf16.gmra.mrb[0].mxu0 %v6037
  %v6090 = vpop.f32.mrb[0].mxu0
  %v6091 = vadd.f32 0.0, %v6090
  %v6092 = vpop.f32.mrb[0].mxu0
  %v6093 = vpop.f32.mrb[0].mxu0
  %v6094 = vadd.f32 0.0, %v6093
  %v6095 = vpop.f32.mrb[0].mxu0
  %6096 = vmatprep.mubr.bf16.mxu0 0
  %6097 = vmatmul.mubr.bf16.gmra.mrb[0].mxu0 %v6040
  %v6098 = vpop.f32.mrb[0].mxu0
  %v6099 = vadd.f32 0.0, %v6098
  %v6100 = vpop.f32.mrb[0].mxu0
  %v6101 = vpop.f32.mrb[0].mxu0
  %v6102 = vadd.f32 0.0, %v6101
  %v6103 = vpop.f32.mrb[0].mxu0
  %6104 = vmatprep.mubr.bf16.mxu0 0
  %6105 = vmatmul.mubr.bf16.gmra.mrb[0].mxu0 %v6043
  %v6106 = vpop.f32.mrb[0].mxu0
  %v6107 = vadd.f32 0.0, %v6106
  %v6108 = vpop.f32.mrb[0].mxu0
  %v6109 = vpop.f32.mrb[0].mxu0
  %v6110 = vpop.f32.mrb[0].mxu0
  %6111 = vdwg.mxu0
  %v6112 = vpack.c.bf16 %v4736, %v4733
  %v6113 = vpack.c.bf16 %v4744, %v4741
  %v6114 = vpack.c.bf16 %v4752, %v4749
  %v6115 = vpack.c.bf16 %v4823, %v4757
  %v6116 = vpack.c.bf16 %v4831, %v4826
  %v6117 = vpack.c.bf16 %v4839, %v4834
  %v6118 = vpack.c.bf16 %v4847, %v4842
  %v6119 = vpack.c.bf16 %v4916, %v4913
  %v6120 = vpack.c.bf16 %v4924, %v4921
  %v6121 = vpack.c.bf16 %v4932, %v4929
  %v6122 = vpack.c.bf16 %v5003, %v4937
  %v6123 = vpack.c.bf16 %v5011, %v5006
  %v6124 = vpack.c.bf16 %v5019, %v5014
  %v6125 = vpack.c.bf16 %v5027, %v5022
  %v6126 = vpack.c.bf16 %v5096, %v5093
  %v6127 = vpack.c.bf16 %v5104, %v5101
  %v6128 = vpack.c.bf16 %v5112, %v5109
  %v6129 = vpack.c.bf16 %v5183, %v5117
  %v6130 = vpack.c.bf16 %v5191, %v5186
  %v6131 = vpack.c.bf16 %v5199, %v5194
  %v6132 = vpack.c.bf16 %v5207, %v5202
  %v6133 = vpack.c.bf16 %v5276, %v5273
  %v6134 = vpack.c.bf16 %v5284, %v5281
  %v6135 = vpack.c.bf16 %v5292, %v5289
  %v6136 = vpack.c.bf16 %v5363, %v5297
  %v6137 = vpack.c.bf16 %v5371, %v5366
  %v6138 = vpack.c.bf16 %v5379, %v5374
  %v6139 = vpack.c.bf16 %v5387, %v5382
  %v6140 = vld [vmem:[%s2] sm:$0xf]
  %v6141 = vpack.c.bf16 %v5456, %v5453
  %v6142 = vpack.c.bf16 %v5464, %v5461
  %v6143 = vpack.c.bf16 %v5472, %v5469
  %v6144 = vpack.c.bf16 %v5543, %v5477
  %v6145 = vpack.c.bf16 %v5551, %v5546
  %v6146 = vpack.c.bf16 %v5559, %v5554
  %v6147 = vpack.c.bf16 %v5567, %v5562
  %v6148 = vpack.c.bf16 %v5636, %v5633
  %v6149 = vpack.c.bf16 %v5644, %v5641
  %v6150 = vpack.c.bf16 %v5652, %v5649
  %v6151 = vpack.c.bf16 %v5723, %v5657
  %v6152 = vpack.c.bf16 %v5731, %v5726
  %v6153 = vpack.c.bf16 %v5739, %v5734
  %v6154 = vpack.c.bf16 %v5747, %v5742
  %v6155 = vpack.c.bf16 %v5816, %v5813
  %v6156 = vpack.c.bf16 %v5824, %v5821
  %v6157 = vpack.c.bf16 %v5832, %v5829
  %v6158 = vpack.c.bf16 %v5903, %v5837
  %v6159 = vpack.c.bf16 %v5911, %v5906
  %v6160 = vpack.c.bf16 %v5919, %v5914
  %v6161 = vpack.c.bf16 %v5927, %v5922
  %v6162 = vpack.c.bf16 %v5996, %v5993
  %v6163 = vpack.c.bf16 %v6004, %v6001
  %v6164 = vpack.c.bf16 %v6012, %v6009
  %v6165 = vpack.c.bf16 %v6083, %v6017
  %v6166 = vpack.c.bf16 %v6091, %v6086
  %v6167 = vpack.c.bf16 %v6099, %v6094
  %v6168 = vpack.c.bf16 %v6107, %v6102
  %s6169 = scalar_lea.vmem %s2, 4
  %v6170 = vld [vmem:[%s6169] sm:$0xf]
  %v6172 = vsel %vm1610, %v6141, 0
  %v6175 = vsel %vm1610, %v6142, 0
  %v6178 = vsel %vm1610, %v6143, 0
  %v6181 = vsel %vm1610, %v6144, 0
  %v6184 = vsel %vm1610, %v6145, 0
  %v6187 = vsel %vm1610, %v6146, 0
  %v6190 = vsel %vm1610, %v6147, 0
  %v6193 = vsel %vm1610, %v6148, 0
  %v6196 = vsel %vm1610, %v6149, 0
  %v6199 = vsel %vm1610, %v6150, 0
  %v6202 = vsel %vm1610, %v6151, 0
  %v6205 = vsel %vm1610, %v6152, 0
  %v6208 = vsel %vm1610, %v6153, 0
  %v6211 = vsel %vm1610, %v6154, 0
  %v6214 = vsel %vm1610, %v6155, 0
  %v6217 = vsel %vm1610, %v6156, 0
  %v6220 = vsel %vm1610, %v6157, 0
  %v6223 = vsel %vm1610, %v6158, 0
  %v6226 = vsel %vm1610, %v6159, 0
  %v6229 = vsel %vm1610, %v6160, 0
  %v6232 = vsel %vm1610, %v6161, 0
  %v6235 = vsel %vm1610, %v6162, 0
  %v6238 = vsel %vm1610, %v6163, 0
  %v6241 = vsel %vm1610, %v6164, 0
  %v6244 = vsel %vm1610, %v6165, 0
  %v6247 = vsel %vm1610, %v6166, 0
  %v6250 = vsel %vm1610, %v6167, 0
  %v6253 = vsel %vm1610, %v6168, 0
  %v6256 = vsel %vm4694, %v6170, 0
  %6258 = vmatprep.subr.bf16.mxu0 0
  %6259 = vmatpush1.bf16.msra.mxu0 %v6256
  %6260 = vmatprep.subr.bf16.mxu0 0
  %6261 = vmatpush1.bf16.msra.mxu0 0
  %6262 = vmatprep.subr.bf16.mxu0 0
  %6263 = vmatpush1.bf16.msra.mxu0 0
  %6264 = vmatprep.subr.bf16.mxu0 0
  %6265 = vmatpush1.bf16.msra.mxu0 0
  %6266 = vmatprep.subr.bf16.mxu0 0
  %6267 = vmatpush1.bf16.msra.mxu0 0
  %6268 = vmatprep.subr.bf16.mxu0 0
  %6269 = vmatpush1.bf16.msra.mxu0 0
  %6270 = vmatprep.subr.bf16.mxu0 0
  %6271 = vmatpush1.bf16.msra.mxu0 0
  %6272 = vmatprep.subr.bf16.mxu0 0
  %6273 = vmatpush1.bf16.msra.mxu0 0
  %6274 = vmatprep.subr.bf16.mxu0 0
  %6275 = vmatpush1.bf16.msra.mxu0 0
  %6276 = vmatprep.subr.bf16.mxu0 0
  %6277 = vmatpush1.bf16.msra.mxu0 0
  %6278 = vmatprep.subr.bf16.mxu0 0
  %6279 = vmatpush1.bf16.msra.mxu0 0
  %6280 = vmatprep.subr.bf16.mxu0 0
  %6281 = vmatpush1.bf16.msra.mxu0 0
  %6282 = vmatprep.subr.bf16.mxu0 0
  %6283 = vmatpush1.bf16.msra.mxu0 0
  %6284 = vmatprep.subr.bf16.mxu0 0
  %6285 = vmatpush1.bf16.msra.mxu0 0
  %6286 = vmatprep.subr.bf16.mxu0 0
  %6287 = vmatpush1.bf16.msra.mxu0 0
  %6288 = vmatprep.subr.bf16.mxu0 0
  %6289 = vmatpush1.bf16.msra.mxu0 0
  %6290 = vmatprep.mubr.bf16.mxu0 0
  %6291 = vmatmul.mubr.bf16.gmra.mrb[0].mxu0 %v6172
  %v6292 = vpop.f32.mrb[0].mxu0
  %v6293 = vadd.f32 0.0, %v6292
  %v6294 = vpop.f32.mrb[0].mxu0
  %v6295 = vpop.f32.mrb[0].mxu0
  %v6296 = vadd.f32 0.0, %v6295
  %v6297 = vpop.f32.mrb[0].mxu0
  %6298 = vmatprep.mubr.bf16.mxu0 0
  %6299 = vmatmul.mubr.bf16.gmra.mrb[0].mxu0 %v6175
  %v6300 = vpop.f32.mrb[0].mxu0
  %v6301 = vadd.f32 0.0, %v6300
  %v6302 = vpop.f32.mrb[0].mxu0
  %v6303 = vpop.f32.mrb[0].mxu0
  %v6304 = vadd.f32 0.0, %v6303
  %v6305 = vpop.f32.mrb[0].mxu0
  %6306 = vmatprep.mubr.bf16.mxu0 0
  %6307 = vmatmul.mubr.bf16.gmra.mrb[0].mxu0 %v6178
  %v6308 = vpop.f32.mrb[0].mxu0
  %v6309 = vadd.f32 0.0, %v6308
  %v6310 = vpop.f32.mrb[0].mxu0
  %v6311 = vpop.f32.mrb[0].mxu0
  %v6312 = vadd.f32 0.0, %v6311
  %v6313 = vpop.f32.mrb[0].mxu0
  %6314 = vmatprep.mubr.bf16.mxu0 0
  %6315 = vmatmul.mubr.bf16.gmra.mrb[0].mxu0 %v6181
  %v6316 = vpop.f32.mrb[0].mxu0
  %v6317 = vadd.f32 0.0, %v6316
  %v6318 = vpop.f32.mrb[0].mxu0
  %v6319 = vpop.f32.mrb[0].mxu0
  %v6320 = vadd.f32 0.0, %v6319
  %v6321 = vpop.f32.mrb[0].mxu0
  %6322 = vmatprep.mubr.bf16.mxu0 0
  %6323 = vmatmul.mubr.bf16.gmra.mrb[0].mxu0 %v6184
  %v6324 = vpop.f32.mrb[0].mxu0
  %v6325 = vadd.f32 0.0, %v6324
  %v6326 = vpop.f32.mrb[0].mxu0
  %v6327 = vpop.f32.mrb[0].mxu0
  %v6328 = vadd.f32 0.0, %v6327
  %v6329 = vpop.f32.mrb[0].mxu0
  %6330 = vmatprep.mubr.bf16.mxu0 0
  %6331 = vmatmul.mubr.bf16.gmra.mrb[0].mxu0 %v6187
  %v6332 = vpop.f32.mrb[0].mxu0
  %v6333 = vadd.f32 0.0, %v6332
  %v6334 = vpop.f32.mrb[0].mxu0
  %v6335 = vpop.f32.mrb[0].mxu0
  %v6336 = vadd.f32 0.0, %v6335
  %v6337 = vpop.f32.mrb[0].mxu0
  %6338 = vmatprep.mubr.bf16.mxu0 0
  %6339 = vmatmul.mubr.bf16.gmra.mrb[0].mxu0 %v6190
  %v6340 = vpop.f32.mrb[0].mxu0
  %v6341 = vadd.f32 0.0, %v6340
  %v6342 = vpop.f32.mrb[0].mxu0
  %v6343 = vpop.f32.mrb[0].mxu0
  %v6344 = vadd.f32 0.0, %v6343
  %v6345 = vpop.f32.mrb[0].mxu0
  %6346 = vmatprep.mubr.bf16.mxu0 0
  %6347 = vmatmul.mubr.bf16.gmra.mrb[0].mxu0 %v6193
  %v6348 = vpop.f32.mrb[0].mxu0
  %v6349 = vadd.f32 0.0, %v6348
  %v6350 = vpop.f32.mrb[0].mxu0
  %v6351 = vpop.f32.mrb[0].mxu0
  %v6352 = vadd.f32 0.0, %v6351
  %v6353 = vpop.f32.mrb[0].mxu0
  %6354 = vmatprep.mubr.bf16.mxu0 0
  %6355 = vmatmul.mubr.bf16.gmra.mrb[0].mxu0 %v6196
  %v6356 = vpop.f32.mrb[0].mxu0
  %v6357 = vadd.f32 0.0, %v6356
  %v6358 = vpop.f32.mrb[0].mxu0
  %v6359 = vpop.f32.mrb[0].mxu0
  %v6360 = vadd.f32 0.0, %v6359
  %v6361 = vpop.f32.mrb[0].mxu0
  %6362 = vmatprep.mubr.bf16.mxu0 0
  %6363 = vmatmul.mubr.bf16.gmra.mrb[0].mxu0 %v6199
  %v6364 = vpop.f32.mrb[0].mxu0
  %v6365 = vadd.f32 0.0, %v6364
  %v6366 = vpop.f32.mrb[0].mxu0
  %v6367 = vpop.f32.mrb[0].mxu0
  %v6368 = vadd.f32 0.0, %v6367
  %v6369 = vpop.f32.mrb[0].mxu0
  %6370 = vmatprep.mubr.bf16.mxu0 0
  %6371 = vmatmul.mubr.bf16.gmra.mrb[0].mxu0 %v6202
  %v6372 = vpop.f32.mrb[0].mxu0
  %v6373 = vadd.f32 0.0, %v6372
  %v6374 = vpop.f32.mrb[0].mxu0
  %v6375 = vpop.f32.mrb[0].mxu0
  %v6376 = vadd.f32 0.0, %v6375
  %v6377 = vpop.f32.mrb[0].mxu0
  %6378 = vmatprep.mubr.bf16.mxu0 0
  %6379 = vmatmul.mubr.bf16.gmra.mrb[0].mxu0 %v6205
  %v6380 = vpop.f32.mrb[0].mxu0
  %v6381 = vadd.f32 0.0, %v6380
  %v6382 = vpop.f32.mrb[0].mxu0
  %v6383 = vpop.f32.mrb[0].mxu0
  %v6384 = vadd.f32 0.0, %v6383
  %v6385 = vpop.f32.mrb[0].mxu0
  %6386 = vmatprep.mubr.bf16.mxu0 0
  %6387 = vmatmul.mubr.bf16.gmra.mrb[0].mxu0 %v6208
  %v6388 = vpop.f32.mrb[0].mxu0
  %v6389 = vadd.f32 0.0, %v6388
  %v6390 = vpop.f32.mrb[0].mxu0
  %v6391 = vpop.f32.mrb[0].mxu0
  %v6392 = vadd.f32 0.0, %v6391
  %v6393 = vpop.f32.mrb[0].mxu0
  %6394 = vmatprep.mubr.bf16.mxu0 0
  %6395 = vmatmul.mubr.bf16.gmra.mrb[0].mxu0 %v6211
  %v6396 = vpop.f32.mrb[0].mxu0
  %v6397 = vadd.f32 0.0, %v6396
  %v6398 = vpop.f32.mrb[0].mxu0
  %v6399 = vpop.f32.mrb[0].mxu0
  %v6400 = vadd.f32 0.0, %v6399
  %v6401 = vpop.f32.mrb[0].mxu0
  %6402 = vmatprep.mubr.bf16.mxu0 0
  %6403 = vmatmul.mubr.bf16.gmra.mrb[0].mxu0 %v6214
  %v6404 = vpop.f32.mrb[0].mxu0
  %v6405 = vadd.f32 0.0, %v6404
  %v6406 = vpop.f32.mrb[0].mxu0
  %v6407 = vpop.f32.mrb[0].mxu0
  %v6408 = vadd.f32 0.0, %v6407
  %v6409 = vpop.f32.mrb[0].mxu0
  %6410 = vmatprep.mubr.bf16.mxu0 0
  %6411 = vmatmul.mubr.bf16.gmra.mrb[0].mxu0 %v6217
  %v6412 = vpop.f32.mrb[0].mxu0
  %v6413 = vadd.f32 0.0, %v6412
  %v6414 = vpop.f32.mrb[0].mxu0
  %v6415 = vpop.f32.mrb[0].mxu0
  %v6416 = vadd.f32 0.0, %v6415
  %v6417 = vpop.f32.mrb[0].mxu0
  %6418 = vmatprep.mubr.bf16.mxu0 0
  %6419 = vmatmul.mubr.bf16.gmra.mrb[0].mxu0 %v6220
  %v6420 = vpop.f32.mrb[0].mxu0
  %v6421 = vadd.f32 0.0, %v6420
  %v6422 = vpop.f32.mrb[0].mxu0
  %v6423 = vpop.f32.mrb[0].mxu0
  %v6424 = vadd.f32 0.0, %v6423
  %v6425 = vpop.f32.mrb[0].mxu0
  %6426 = vmatprep.mubr.bf16.mxu0 0
  %6427 = vmatmul.mubr.bf16.gmra.mrb[0].mxu0 %v6223
  %v6428 = vpop.f32.mrb[0].mxu0
  %v6429 = vadd.f32 0.0, %v6428
  %v6430 = vpop.f32.mrb[0].mxu0
  %v6431 = vpop.f32.mrb[0].mxu0
  %v6432 = vadd.f32 0.0, %v6431
  %v6433 = vpop.f32.mrb[0].mxu0
  %6434 = vmatprep.mubr.bf16.mxu0 0
  %6435 = vmatmul.mubr.bf16.gmra.mrb[0].mxu0 %v6226
  %v6436 = vpop.f32.mrb[0].mxu0
  %v6437 = vadd.f32 0.0, %v6436
  %v6438 = vpop.f32.mrb[0].mxu0
  %v6439 = vpop.f32.mrb[0].mxu0
  %v6440 = vadd.f32 0.0, %v6439
  %v6441 = vpop.f32.mrb[0].mxu0
  %6442 = vmatprep.mubr.bf16.mxu0 0
  %6443 = vmatmul.mubr.bf16.gmra.mrb[0].mxu0 %v6229
  %v6444 = vpop.f32.mrb[0].mxu0
  %v6445 = vadd.f32 0.0, %v6444
  %v6446 = vpop.f32.mrb[0].mxu0
  %v6447 = vpop.f32.mrb[0].mxu0
  %v6448 = vadd.f32 0.0, %v6447
  %v6449 = vpop.f32.mrb[0].mxu0
  %6450 = vmatprep.mubr.bf16.mxu0 0
  %6451 = vmatmul.mubr.bf16.gmra.mrb[0].mxu0 %v6232
  %v6452 = vpop.f32.mrb[0].mxu0
  %v6453 = vadd.f32 0.0, %v6452
  %v6454 = vpop.f32.mrb[0].mxu0
  %v6455 = vpop.f32.mrb[0].mxu0
  %v6456 = vadd.f32 0.0, %v6455
  %v6457 = vpop.f32.mrb[0].mxu0
  %6458 = vmatprep.mubr.bf16.mxu0 0
  %6459 = vmatmul.mubr.bf16.gmra.mrb[0].mxu0 %v6235
  %v6460 = vpop.f32.mrb[0].mxu0
  %v6461 = vadd.f32 0.0, %v6460
  %v6462 = vpop.f32.mrb[0].mxu0
  %v6463 = vpop.f32.mrb[0].mxu0
  %v6464 = vadd.f32 0.0, %v6463
  %v6465 = vpop.f32.mrb[0].mxu0
  %6466 = vmatprep.mubr.bf16.mxu0 0
  %6467 = vmatmul.mubr.bf16.gmra.mrb[0].mxu0 %v6238
  %v6468 = vpop.f32.mrb[0].mxu0
  %v6469 = vadd.f32 0.0, %v6468
  %v6470 = vpop.f32.mrb[0].mxu0
  %v6471 = vpop.f32.mrb[0].mxu0
  %v6472 = vadd.f32 0.0, %v6471
  %v6473 = vpop.f32.mrb[0].mxu0
  %6474 = vmatprep.mubr.bf16.mxu0 0
  %6475 = vmatmul.mubr.bf16.gmra.mrb[0].mxu0 %v6241
  %v6476 = vpop.f32.mrb[0].mxu0
  %v6477 = vadd.f32 0.0, %v6476
  %v6478 = vpop.f32.mrb[0].mxu0
  %v6479 = vpop.f32.mrb[0].mxu0
  %v6480 = vadd.f32 0.0, %v6479
  %v6481 = vpop.f32.mrb[0].mxu0
  %6482 = vmatprep.mubr.bf16.mxu0 0
  %6483 = vmatmul.mubr.bf16.gmra.mrb[0].mxu0 %v6244
  %v6484 = vpop.f32.mrb[0].mxu0
  %v6485 = vadd.f32 0.0, %v6484
  %v6486 = vpop.f32.mrb[0].mxu0
  %v6487 = vpop.f32.mrb[0].mxu0
  %v6488 = vadd.f32 0.0, %v6487
  %v6489 = vpop.f32.mrb[0].mxu0
  %6490 = vmatprep.mubr.bf16.mxu0 0
  %6491 = vmatmul.mubr.bf16.gmra.mrb[0].mxu0 %v6247
  %v6492 = vpop.f32.mrb[0].mxu0
  %v6493 = vadd.f32 0.0, %v6492
  %v6494 = vpop.f32.mrb[0].mxu0
  %v6495 = vpop.f32.mrb[0].mxu0
  %v6496 = vadd.f32 0.0, %v6495
  %v6497 = vpop.f32.mrb[0].mxu0
  %6498 = vmatprep.mubr.bf16.mxu0 0
  %6499 = vmatmul.mubr.bf16.gmra.mrb[0].mxu0 %v6250
  %v6500 = vpop.f32.mrb[0].mxu0
  %v6501 = vadd.f32 0.0, %v6500
  %v6502 = vpop.f32.mrb[0].mxu0
  %v6503 = vpop.f32.mrb[0].mxu0
  %v6504 = vadd.f32 0.0, %v6503
  %v6505 = vpop.f32.mrb[0].mxu0
  %6506 = vmatprep.mubr.bf16.mxu0 0
  %6507 = vmatmul.mubr.bf16.gmra.mrb[0].mxu0 %v6253
  %v6508 = vpop.f32.mrb[0].mxu0
  %v6509 = vadd.f32 0.0, %v6508
  %v6510 = vpop.f32.mrb[0].mxu0
  %v6511 = vpop.f32.mrb[0].mxu0
  %v6512 = vadd.f32 0.0, %v6511
  %v6513 = vpop.f32.mrb[0].mxu0
  %6514 = vdwg.mxu0
  %v6516 = vsel %vm1610, %v6112, 0
  %v6519 = vsel %vm1610, %v6113, 0
  %v6522 = vsel %vm1610, %v6114, 0
  %v6525 = vsel %vm1610, %v6115, 0
  %v6528 = vsel %vm1610, %v6116, 0
  %v6531 = vsel %vm1610, %v6117, 0
  %v6534 = vsel %vm1610, %v6118, 0
  %v6537 = vsel %vm1610, %v6119, 0
  %v6540 = vsel %vm1610, %v6120, 0
  %v6543 = vsel %vm1610, %v6121, 0
  %v6546 = vsel %vm1610, %v6122, 0
  %v6549 = vsel %vm1610, %v6123, 0
  %v6552 = vsel %vm1610, %v6124, 0
  %v6555 = vsel %vm1610, %v6125, 0
  %v6558 = vsel %vm1610, %v6126, 0
  %v6561 = vsel %vm1610, %v6127, 0
  %v6564 = vsel %vm1610, %v6128, 0
  %v6567 = vsel %vm1610, %v6129, 0
  %v6570 = vsel %vm1610, %v6130, 0
  %v6573 = vsel %vm1610, %v6131, 0
  %v6576 = vsel %vm1610, %v6132, 0
  %v6579 = vsel %vm1610, %v6133, 0
  %v6582 = vsel %vm1610, %v6134, 0
  %v6585 = vsel %vm1610, %v6135, 0
  %v6588 = vsel %vm1610, %v6136, 0
  %v6591 = vsel %vm1610, %v6137, 0
  %v6594 = vsel %vm1610, %v6138, 0
  %v6597 = vsel %vm1610, %v6139, 0
  %v6600 = vsel %vm4694, %v6140, 0
  %6602 = vmatprep.subr.bf16.mxu0 0
  %6603 = vmatpush1.bf16.msra.mxu0 %v6600
  %6604 = vmatprep.subr.bf16.mxu0 0
  %6605 = vmatpush1.bf16.msra.mxu0 0
  %6606 = vmatprep.subr.bf16.mxu0 0
  %6607 = vmatpush1.bf16.msra.mxu0 0
  %6608 = vmatprep.subr.bf16.mxu0 0
  %6609 = vmatpush1.bf16.msra.mxu0 0
  %6610 = vmatprep.subr.bf16.mxu0 0
  %6611 = vmatpush1.bf16.msra.mxu0 0
  %6612 = vmatprep.subr.bf16.mxu0 0
  %6613 = vmatpush1.bf16.msra.mxu0 0
  %6614 = vmatprep.subr.bf16.mxu0 0
  %6615 = vmatpush1.bf16.msra.mxu0 0
  %6616 = vmatprep.subr.bf16.mxu0 0
  %6617 = vmatpush1.bf16.msra.mxu0 0
  %6618 = vmatprep.subr.bf16.mxu0 0
  %6619 = vmatpush1.bf16.msra.mxu0 0
  %6620 = vmatprep.subr.bf16.mxu0 0
  %6621 = vmatpush1.bf16.msra.mxu0 0
  %6622 = vmatprep.subr.bf16.mxu0 0
  %6623 = vmatpush1.bf16.msra.mxu0 0
  %6624 = vmatprep.subr.bf16.mxu0 0
  %6625 = vmatpush1.bf16.msra.mxu0 0
  %6626 = vmatprep.subr.bf16.mxu0 0
  %6627 = vmatpush1.bf16.msra.mxu0 0
  %6628 = vmatprep.subr.bf16.mxu0 0
  %6629 = vmatpush1.bf16.msra.mxu0 0
  %6630 = vmatprep.subr.bf16.mxu0 0
  %6631 = vmatpush1.bf16.msra.mxu0 0
  %6632 = vmatprep.subr.bf16.mxu0 0
  %6633 = vmatpush1.bf16.msra.mxu0 0
  %6634 = vmatprep.mubr.bf16.mxu0 0
  %6635 = vmatmul.mubr.bf16.gmra.mrb[0].mxu0 %v6516
  %v6636 = vpop.f32.mrb[0].mxu0
  %v6637 = vadd.f32 %v6293, %v6636
  %v6638 = vpop.f32.mrb[0].mxu0
  %v6639 = vpop.f32.mrb[0].mxu0
  %v6640 = vadd.f32 %v6296, %v6639
  %v6641 = vpop.f32.mrb[0].mxu0
  %6642 = vmatprep.mubr.bf16.mxu0 0
  %6643 = vmatmul.mubr.bf16.gmra.mrb[0].mxu0 %v6519
  %v6644 = vpop.f32.mrb[0].mxu0
  %v6645 = vadd.f32 %v6301, %v6644
  %v6646 = vpop.f32.mrb[0].mxu0
  %v6647 = vpop.f32.mrb[0].mxu0
  %v6648 = vadd.f32 %v6304, %v6647
  %v6649 = vpop.f32.mrb[0].mxu0
  %6650 = vmatprep.mubr.bf16.mxu0 0
  %6651 = vmatmul.mubr.bf16.gmra.mrb[0].mxu0 %v6522
  %v6652 = vpop.f32.mrb[0].mxu0
  %v6653 = vadd.f32 %v6309, %v6652
  %v6654 = vpop.f32.mrb[0].mxu0
  %v6655 = vpop.f32.mrb[0].mxu0
  %v6656 = vadd.f32 %v6312, %v6655
  %v6657 = vpop.f32.mrb[0].mxu0
  %6658 = vmatprep.mubr.bf16.mxu0 0
  %6659 = vmatmul.mubr.bf16.gmra.mrb[0].mxu0 %v6525
  %v6660 = vpop.f32.mrb[0].mxu0
  %v6661 = vadd.f32 %v6317, %v6660
  %v6662 = vpop.f32.mrb[0].mxu0
  %v6663 = vpop.f32.mrb[0].mxu0
  %v6664 = vadd.f32 %v6320, %v6663
  %v6665 = vpop.f32.mrb[0].mxu0
  %6666 = vmatprep.mubr.bf16.mxu0 0
  %6667 = vmatmul.mubr.bf16.gmra.mrb[0].mxu0 %v6528
  %v6668 = vpop.f32.mrb[0].mxu0
  %v6669 = vadd.f32 %v6325, %v6668
  %v6670 = vpop.f32.mrb[0].mxu0
  %v6671 = vpop.f32.mrb[0].mxu0
  %v6672 = vadd.f32 %v6328, %v6671
  %v6673 = vpop.f32.mrb[0].mxu0
  %6674 = vmatprep.mubr.bf16.mxu0 0
  %6675 = vmatmul.mubr.bf16.gmra.mrb[0].mxu0 %v6531
  %v6676 = vpop.f32.mrb[0].mxu0
  %v6677 = vadd.f32 %v6333, %v6676
  %v6678 = vpop.f32.mrb[0].mxu0
  %v6679 = vpop.f32.mrb[0].mxu0
  %v6680 = vadd.f32 %v6336, %v6679
  %v6681 = vpop.f32.mrb[0].mxu0
  %6682 = vmatprep.mubr.bf16.mxu0 0
  %6683 = vmatmul.mubr.bf16.gmra.mrb[0].mxu0 %v6534
  %v6684 = vpop.f32.mrb[0].mxu0
  %v6685 = vadd.f32 %v6341, %v6684
  %v6686 = vpop.f32.mrb[0].mxu0
  %v6687 = vpop.f32.mrb[0].mxu0
  %v6688 = vadd.f32 %v6344, %v6687
  %v6689 = vpop.f32.mrb[0].mxu0
  %6690 = vmatprep.mubr.bf16.mxu0 0
  %6691 = vmatmul.mubr.bf16.gmra.mrb[0].mxu0 %v6537
  %v6692 = vpop.f32.mrb[0].mxu0
  %v6693 = vadd.f32 %v6349, %v6692
  %v6694 = vpop.f32.mrb[0].mxu0
  %v6695 = vpop.f32.mrb[0].mxu0
  %v6696 = vadd.f32 %v6352, %v6695
  %v6697 = vpop.f32.mrb[0].mxu0
  %6698 = vmatprep.mubr.bf16.mxu0 0
  %6699 = vmatmul.mubr.bf16.gmra.mrb[0].mxu0 %v6540
  %v6700 = vpop.f32.mrb[0].mxu0
  %v6701 = vadd.f32 %v6357, %v6700
  %v6702 = vpop.f32.mrb[0].mxu0
  %v6703 = vpop.f32.mrb[0].mxu0
  %v6704 = vadd.f32 %v6360, %v6703
  %v6705 = vpop.f32.mrb[0].mxu0
  %6706 = vmatprep.mubr.bf16.mxu0 0
  %6707 = vmatmul.mubr.bf16.gmra.mrb[0].mxu0 %v6543
  %v6708 = vpop.f32.mrb[0].mxu0
  %v6709 = vadd.f32 %v6365, %v6708
  %v6710 = vpop.f32.mrb[0].mxu0
  %v6711 = vpop.f32.mrb[0].mxu0
  %v6712 = vadd.f32 %v6368, %v6711
  %v6713 = vpop.f32.mrb[0].mxu0
  %6714 = vmatprep.mubr.bf16.mxu0 0
  %6715 = vmatmul.mubr.bf16.gmra.mrb[0].mxu0 %v6546
  %v6716 = vpop.f32.mrb[0].mxu0
  %v6717 = vadd.f32 %v6373, %v6716
  %v6718 = vpop.f32.mrb[0].mxu0
  %v6719 = vpop.f32.mrb[0].mxu0
  %v6720 = vadd.f32 %v6376, %v6719
  %v6721 = vpop.f32.mrb[0].mxu0
  %6722 = vmatprep.mubr.bf16.mxu0 0
  %6723 = vmatmul.mubr.bf16.gmra.mrb[0].mxu0 %v6549
  %v6724 = vpop.f32.mrb[0].mxu0
  %v6725 = vadd.f32 %v6381, %v6724
  %v6726 = vpop.f32.mrb[0].mxu0
  %v6727 = vpop.f32.mrb[0].mxu0
  %v6728 = vadd.f32 %v6384, %v6727
  %v6729 = vpop.f32.mrb[0].mxu0
  %6730 = vmatprep.mubr.bf16.mxu0 0
  %6731 = vmatmul.mubr.bf16.gmra.mrb[0].mxu0 %v6552
  %v6732 = vpop.f32.mrb[0].mxu0
  %v6733 = vadd.f32 %v6389, %v6732
  %v6734 = vpop.f32.mrb[0].mxu0
  %v6735 = vpop.f32.mrb[0].mxu0
  %v6736 = vadd.f32 %v6392, %v6735
  %v6737 = vpop.f32.mrb[0].mxu0
  %6738 = vmatprep.mubr.bf16.mxu0 0
  %6739 = vmatmul.mubr.bf16.gmra.mrb[0].mxu0 %v6555
  %v6740 = vpop.f32.mrb[0].mxu0
  %v6741 = vadd.f32 %v6397, %v6740
  %v6742 = vpop.f32.mrb[0].mxu0
  %v6743 = vpop.f32.mrb[0].mxu0
  %v6744 = vadd.f32 %v6400, %v6743
  %v6745 = vpop.f32.mrb[0].mxu0
  %6746 = vmatprep.mubr.bf16.mxu0 0
  %6747 = vmatmul.mubr.bf16.gmra.mrb[0].mxu0 %v6558
  %v6748 = vpop.f32.mrb[0].mxu0
  %v6749 = vadd.f32 %v6405, %v6748
  %v6750 = vpop.f32.mrb[0].mxu0
  %v6751 = vpop.f32.mrb[0].mxu0
  %v6752 = vadd.f32 %v6408, %v6751
  %v6753 = vpop.f32.mrb[0].mxu0
  %6754 = vmatprep.mubr.bf16.mxu0 0
  %6755 = vmatmul.mubr.bf16.gmra.mrb[0].mxu0 %v6561
  %v6756 = vpop.f32.mrb[0].mxu0
  %v6757 = vadd.f32 %v6413, %v6756
  %v6758 = vpop.f32.mrb[0].mxu0
  %v6759 = vpop.f32.mrb[0].mxu0
  %v6760 = vadd.f32 %v6416, %v6759
  %v6761 = vpop.f32.mrb[0].mxu0
  %6762 = vmatprep.mubr.bf16.mxu0 0
  %6763 = vmatmul.mubr.bf16.gmra.mrb[0].mxu0 %v6564
  %v6764 = vpop.f32.mrb[0].mxu0
  %v6765 = vadd.f32 %v6421, %v6764
  %v6766 = vpop.f32.mrb[0].mxu0
  %v6767 = vpop.f32.mrb[0].mxu0
  %v6768 = vadd.f32 %v6424, %v6767
  %v6769 = vpop.f32.mrb[0].mxu0
  %6770 = vmatprep.mubr.bf16.mxu0 0
  %6771 = vmatmul.mubr.bf16.gmra.mrb[0].mxu0 %v6567
  %v6772 = vpop.f32.mrb[0].mxu0
  %v6773 = vadd.f32 %v6429, %v6772
  %v6774 = vpop.f32.mrb[0].mxu0
  %v6775 = vpop.f32.mrb[0].mxu0
  %v6776 = vadd.f32 %v6432, %v6775
  %v6777 = vpop.f32.mrb[0].mxu0
  %6778 = vmatprep.mubr.bf16.mxu0 0
  %6779 = vmatmul.mubr.bf16.gmra.mrb[0].mxu0 %v6570
  %v6780 = vpop.f32.mrb[0].mxu0
  %v6781 = vadd.f32 %v6437, %v6780
  %v6782 = vpop.f32.mrb[0].mxu0
  %v6783 = vpop.f32.mrb[0].mxu0
  %v6784 = vadd.f32 %v6440, %v6783
  %v6785 = vpop.f32.mrb[0].mxu0
  %6786 = vmatprep.mubr.bf16.mxu0 0
  %6787 = vmatmul.mubr.bf16.gmra.mrb[0].mxu0 %v6573
  %v6788 = vpop.f32.mrb[0].mxu0
  %v6789 = vadd.f32 %v6445, %v6788
  %v6790 = vpop.f32.mrb[0].mxu0
  %v6791 = vpop.f32.mrb[0].mxu0
  %v6792 = vadd.f32 %v6448, %v6791
  %v6793 = vpop.f32.mrb[0].mxu0
  %6794 = vmatprep.mubr.bf16.mxu0 0
  %6795 = vmatmul.mubr.bf16.gmra.mrb[0].mxu0 %v6576
  %v6796 = vpop.f32.mrb[0].mxu0
  %v6797 = vadd.f32 %v6453, %v6796
  %v6798 = vpop.f32.mrb[0].mxu0
  %v6799 = vpop.f32.mrb[0].mxu0
  %v6800 = vadd.f32 %v6456, %v6799
  %v6801 = vpop.f32.mrb[0].mxu0
  %6802 = vmatprep.mubr.bf16.mxu0 0
  %6803 = vmatmul.mubr.bf16.gmra.mrb[0].mxu0 %v6579
  %v6804 = vpop.f32.mrb[0].mxu0
  %v6805 = vadd.f32 %v6461, %v6804
  %v6806 = vpop.f32.mrb[0].mxu0
  %v6807 = vpop.f32.mrb[0].mxu0
  %v6808 = vadd.f32 %v6464, %v6807
  %v6809 = vpop.f32.mrb[0].mxu0
  %6810 = vmatprep.mubr.bf16.mxu0 0
  %6811 = vmatmul.mubr.bf16.gmra.mrb[0].mxu0 %v6582
  %v6812 = vpop.f32.mrb[0].mxu0
  %v6813 = vadd.f32 %v6469, %v6812
  %v6814 = vpop.f32.mrb[0].mxu0
  %v6815 = vpop.f32.mrb[0].mxu0
  %v6816 = vadd.f32 %v6472, %v6815
  %v6817 = vpop.f32.mrb[0].mxu0
  %6818 = vmatprep.mubr.bf16.mxu0 0
  %6819 = vmatmul.mubr.bf16.gmra.mrb[0].mxu0 %v6585
  %v6820 = vpop.f32.mrb[0].mxu0
  %v6821 = vadd.f32 %v6477, %v6820
  %v6822 = vpop.f32.mrb[0].mxu0
  %v6823 = vpop.f32.mrb[0].mxu0
  %v6824 = vadd.f32 %v6480, %v6823
  %v6825 = vpop.f32.mrb[0].mxu0
  %6826 = vmatprep.mubr.bf16.mxu0 0
  %6827 = vmatmul.mubr.bf16.gmra.mrb[0].mxu0 %v6588
  %v6828 = vpop.f32.mrb[0].mxu0
  %v6829 = vadd.f32 %v6485, %v6828
  %v6830 = vpop.f32.mrb[0].mxu0
  %v6831 = vpop.f32.mrb[0].mxu0
  %v6832 = vadd.f32 %v6488, %v6831
  %v6833 = vpop.f32.mrb[0].mxu0
  %6834 = vmatprep.mubr.bf16.mxu0 0
  %6835 = vmatmul.mubr.bf16.gmra.mrb[0].mxu0 %v6591
  %v6836 = vpop.f32.mrb[0].mxu0
  %v6837 = vadd.f32 %v6493, %v6836
  %v6838 = vpop.f32.mrb[0].mxu0
  %v6839 = vpop.f32.mrb[0].mxu0
  %v6840 = vadd.f32 %v6496, %v6839
  %v6841 = vpop.f32.mrb[0].mxu0
  %6842 = vmatprep.mubr.bf16.mxu0 0
  %6843 = vmatmul.mubr.bf16.gmra.mrb[0].mxu0 %v6594
  %v6844 = vpop.f32.mrb[0].mxu0
  %v6845 = vadd.f32 %v6501, %v6844
  %v6846 = vpop.f32.mrb[0].mxu0
  %v6847 = vpop.f32.mrb[0].mxu0
  %v6848 = vadd.f32 %v6504, %v6847
  %v6849 = vpop.f32.mrb[0].mxu0
  %6850 = vmatprep.mubr.bf16.mxu0 0
  %6851 = vmatmul.mubr.bf16.gmra.mrb[0].mxu0 %v6597
  %v6852 = vpop.f32.mrb[0].mxu0
  %v6853 = vadd.f32 %v6509, %v6852
  %v6854 = vpop.f32.mrb[0].mxu0
  %v6855 = vpop.f32.mrb[0].mxu0
  %v6856 = vadd.f32 %v6512, %v6855
  %v6857 = vpop.f32.mrb[0].mxu0
  %6858 = vdwg.mxu0
  %v6859 = vlaneseq
  %v6860 = vshrl.u32 %v6859, 7
  %v6861 = vsub.s32 4, %v6860
  %v6862 = vrot.slane %v83, %v6861
  %v6863 = vadd.f32 %v6637, %v6862
  %v6864 = vadd.f32 %v6640, %v6862
  %v6865 = vadd.f32 %v6645, %v6862
  %v6866 = vadd.f32 %v6648, %v6862
  %v6867 = vadd.f32 %v6653, %v6862
  %v6868 = vadd.f32 %v6656, %v6862
  %v6869 = vadd.f32 %v6661, %v6862
  %v6870 = vadd.f32 %v6664, %v6862
  %v6871 = vadd.f32 %v6669, %v6862
  %v6872 = vadd.f32 %v6672, %v6862
  %v6873 = vadd.f32 %v6677, %v6862
  %v6874 = vadd.f32 %v6680, %v6862
  %v6875 = vadd.f32 %v6685, %v6862
  %v6876 = vadd.f32 %v6688, %v6862
  %v6877 = vadd.f32 %v6693, %v6862
  %v6878 = vadd.f32 %v6696, %v6862
  %v6879 = vadd.f32 %v6701, %v6862
  %v6880 = vadd.f32 %v6704, %v6862
  %v6881 = vadd.f32 %v6709, %v6862
  %v6882 = vadd.f32 %v6712, %v6862
  %v6883 = vadd.f32 %v6717, %v6862
  %v6884 = vadd.f32 %v6720, %v6862
  %v6885 = vadd.f32 %v6725, %v6862
  %v6886 = vadd.f32 %v6728, %v6862
  %v6887 = vadd.f32 %v6733, %v6862
  %v6888 = vadd.f32 %v6736, %v6862
  %v6889 = vadd.f32 %v6741, %v6862
  %v6890 = vadd.f32 %v6744, %v6862
  %v6891 = vadd.f32 %v6749, %v6862
  %v6892 = vadd.f32 %v6752, %v6862
  %v6893 = vadd.f32 %v6757, %v6862
  %v6894 = vadd.f32 %v6760, %v6862
  %v6895 = vadd.f32 %v6765, %v6862
  %v6896 = vadd.f32 %v6768, %v6862
  %v6897 = vadd.f32 %v6773, %v6862
  %v6898 = vadd.f32 %v6776, %v6862
  %v6899 = vadd.f32 %v6781, %v6862
  %v6900 = vadd.f32 %v6784, %v6862
  %v6901 = vadd.f32 %v6789, %v6862
  %v6902 = vadd.f32 %v6792, %v6862
  %v6903 = vadd.f32 %v6797, %v6862
  %v6904 = vadd.f32 %v6800, %v6862
  %v6905 = vadd.f32 %v6805, %v6862
  %v6906 = vadd.f32 %v6808, %v6862
  %v6907 = vadd.f32 %v6813, %v6862
  %v6908 = vadd.f32 %v6816, %v6862
  %v6909 = vadd.f32 %v6821, %v6862
  %v6910 = vadd.f32 %v6824, %v6862
  %v6911 = vadd.f32 %v6829, %v6862
  %v6912 = vadd.f32 %v6832, %v6862
  %v6913 = vadd.f32 %v6837, %v6862
  %v6914 = vadd.f32 %v6840, %v6862
  %v6915 = vadd.f32 %v6845, %v6862
  %v6916 = vadd.f32 %v6848, %v6862
  %v6917 = vadd.f32 %v6853, %v6862
  %v6918 = vadd.f32 %v6856, %v6862
  %v6919 = vadd.f32 %v6863, %v27
  %v6920 = vadd.f32 %v6864, %v28
  %v6921 = vadd.f32 %v6865, %v29
  %v6922 = vadd.f32 %v6866, %v30
  %v6923 = vadd.f32 %v6867, %v31
  %v6924 = vadd.f32 %v6868, %v32
  %v6925 = vadd.f32 %v6869, %v33
  %v6926 = vadd.f32 %v6870, %v34
  %v6927 = vadd.f32 %v6871, %v35
  %v6928 = vadd.f32 %v6872, %v36
  %v6929 = vadd.f32 %v6873, %v37
  %v6930 = vadd.f32 %v6874, %v38
  %v6931 = vadd.f32 %v6875, %v39
  %v6932 = vadd.f32 %v6876, %v40
  %v6933 = vadd.f32 %v6877, %v41
  %v6934 = vadd.f32 %v6878, %v42
  %v6935 = vadd.f32 %v6879, %v43
  %v6936 = vadd.f32 %v6880, %v44
  %v6937 = vadd.f32 %v6881, %v45
  %v6938 = vadd.f32 %v6882, %v46
  %v6939 = vadd.f32 %v6883, %v47
  %v6940 = vadd.f32 %v6884, %v48
  %v6941 = vadd.f32 %v6885, %v49
  %v6942 = vadd.f32 %v6886, %v50
  %v6943 = vadd.f32 %v6887, %v51
  %v6944 = vadd.f32 %v6888, %v52
  %v6945 = vadd.f32 %v6889, %v53
  %v6946 = vadd.f32 %v6890, %v54
  %v6947 = vadd.f32 %v6891, %v55
  %v6948 = vadd.f32 %v6892, %v56
  %v6949 = vadd.f32 %v6893, %v57
  %v6950 = vadd.f32 %v6894, %v58
  %v6951 = vadd.f32 %v6895, %v59
  %v6952 = vadd.f32 %v6896, %v60
  %v6953 = vadd.f32 %v6897, %v61
  %v6954 = vadd.f32 %v6898, %v62
  %v6955 = vadd.f32 %v6899, %v63
  %v6956 = vadd.f32 %v6900, %v64
  %v6957 = vadd.f32 %v6901, %v65
  %v6958 = vadd.f32 %v6902, %v66
  %v6959 = vadd.f32 %v6903, %v67
  %v6960 = vadd.f32 %v6904, %v68
  %v6961 = vadd.f32 %v6905, %v69
  %v6962 = vadd.f32 %v6906, %v70
  %v6963 = vadd.f32 %v6907, %v71
  %v6964 = vadd.f32 %v6908, %v72
  %v6965 = vadd.f32 %v6909, %v73
  %v6966 = vadd.f32 %v6910, %v74
  %v6967 = vadd.f32 %v6911, %v75
  %v6968 = vadd.f32 %v6912, %v76
  %v6969 = vadd.f32 %v6913, %v77
  %v6970 = vadd.f32 %v6914, %v78
  %v6971 = vadd.f32 %v6915, %v79
  %v6972 = vadd.f32 %v6916, %v80
  %v6973 = vadd.f32 %v6917, %v81
  %v6974 = vadd.f32 %v6918, %v82
  %v6975 = vsel %vm84, %v6919, 0.0
  %6976 = vadd.xlane.f32.xlu0 %v6975
  %v6977 = vpop.xlane.xlu0 %6976
  %v6978 = vsel %vm84, %v6920, 0.0
  %6979 = vadd.xlane.f32.xlu0 %v6978
  %v6980 = vpop.xlane.xlu0 %6979
  %v6981 = vsel %vm84, %v6921, 0.0
  %6982 = vadd.xlane.f32.xlu0 %v6981
  %v6983 = vpop.xlane.xlu0 %6982
  %v6984 = vsel %vm84, %v6922, 0.0
  %6985 = vadd.xlane.f32.xlu0 %v6984
  %v6986 = vpop.xlane.xlu0 %6985
  %v6987 = vsel %vm84, %v6923, 0.0
  %6988 = vadd.xlane.f32.xlu0 %v6987
  %v6989 = vpop.xlane.xlu0 %6988
  %v6990 = vsel %vm84, %v6924, 0.0
  %6991 = vadd.xlane.f32.xlu0 %v6990
  %v6992 = vpop.xlane.xlu0 %6991
  %v6993 = vsel %vm84, %v6925, 0.0
  %6994 = vadd.xlane.f32.xlu0 %v6993
  %v6995 = vpop.xlane.xlu0 %6994
  %v6996 = vsel %vm84, %v6926, 0.0
  %6997 = vadd.xlane.f32.xlu0 %v6996
  %v6998 = vpop.xlane.xlu0 %6997
  %v6999 = vsel %vm84, %v6927, 0.0
  %7000 = vadd.xlane.f32.xlu0 %v6999
  %v7001 = vpop.xlane.xlu0 %7000
  %v7002 = vsel %vm84, %v6928, 0.0
  %7003 = vadd.xlane.f32.xlu0 %v7002
  %v7004 = vpop.xlane.xlu0 %7003
  %v7005 = vsel %vm84, %v6929, 0.0
  %7006 = vadd.xlane.f32.xlu0 %v7005
  %v7007 = vpop.xlane.xlu0 %7006
  %v7008 = vsel %vm84, %v6930, 0.0
  %7009 = vadd.xlane.f32.xlu0 %v7008
  %v7010 = vpop.xlane.xlu0 %7009
  %v7011 = vsel %vm84, %v6931, 0.0
  %7012 = vadd.xlane.f32.xlu0 %v7011
  %v7013 = vpop.xlane.xlu0 %7012
  %v7014 = vsel %vm84, %v6932, 0.0
  %7015 = vadd.xlane.f32.xlu0 %v7014
  %v7016 = vpop.xlane.xlu0 %7015
  %v7017 = vsel %vm84, %v6933, 0.0
  %7018 = vadd.xlane.f32.xlu0 %v7017
  %v7019 = vpop.xlane.xlu0 %7018
  %v7020 = vsel %vm84, %v6934, 0.0
  %7021 = vadd.xlane.f32.xlu0 %v7020
  %v7022 = vpop.xlane.xlu0 %7021
  %v7023 = vsel %vm84, %v6935, 0.0
  %7024 = vadd.xlane.f32.xlu0 %v7023
  %v7025 = vpop.xlane.xlu0 %7024
  %v7026 = vsel %vm84, %v6936, 0.0
  %7027 = vadd.xlane.f32.xlu0 %v7026
  %v7028 = vpop.xlane.xlu0 %7027
  %v7029 = vsel %vm84, %v6937, 0.0
  %7030 = vadd.xlane.f32.xlu0 %v7029
  %v7031 = vpop.xlane.xlu0 %7030
  %v7032 = vsel %vm84, %v6938, 0.0
  %7033 = vadd.xlane.f32.xlu0 %v7032
  %v7034 = vpop.xlane.xlu0 %7033
  %v7035 = vsel %vm84, %v6939, 0.0
  %7036 = vadd.xlane.f32.xlu0 %v7035
  %v7037 = vpop.xlane.xlu0 %7036
  %v7038 = vsel %vm84, %v6940, 0.0
  %7039 = vadd.xlane.f32.xlu0 %v7038
  %v7040 = vpop.xlane.xlu0 %7039
  %v7041 = vsel %vm84, %v6941, 0.0
  %7042 = vadd.xlane.f32.xlu0 %v7041
  %v7043 = vpop.xlane.xlu0 %7042
  %v7044 = vsel %vm84, %v6942, 0.0
  %7045 = vadd.xlane.f32.xlu0 %v7044
  %v7046 = vpop.xlane.xlu0 %7045
  %v7047 = vsel %vm84, %v6943, 0.0
  %7048 = vadd.xlane.f32.xlu0 %v7047
  %v7049 = vpop.xlane.xlu0 %7048
  %v7050 = vsel %vm84, %v6944, 0.0
  %7051 = vadd.xlane.f32.xlu0 %v7050
  %v7052 = vpop.xlane.xlu0 %7051
  %v7053 = vsel %vm84, %v6945, 0.0
  %7054 = vadd.xlane.f32.xlu0 %v7053
  %v7055 = vpop.xlane.xlu0 %7054
  %v7056 = vsel %vm84, %v6946, 0.0
  %7057 = vadd.xlane.f32.xlu0 %v7056
  %v7058 = vpop.xlane.xlu0 %7057
  %v7059 = vsel %vm84, %v6947, 0.0
  %7060 = vadd.xlane.f32.xlu0 %v7059
  %v7061 = vpop.xlane.xlu0 %7060
  %v7062 = vsel %vm84, %v6948, 0.0
  %7063 = vadd.xlane.f32.xlu0 %v7062
  %v7064 = vpop.xlane.xlu0 %7063
  %v7065 = vsel %vm84, %v6949, 0.0
  %7066 = vadd.xlane.f32.xlu0 %v7065
  %v7067 = vpop.xlane.xlu0 %7066
  %v7068 = vsel %vm84, %v6950, 0.0
  %7069 = vadd.xlane.f32.xlu0 %v7068
  %v7070 = vpop.xlane.xlu0 %7069
  %v7071 = vsel %vm84, %v6951, 0.0
  %7072 = vadd.xlane.f32.xlu0 %v7071
  %v7073 = vpop.xlane.xlu0 %7072
  %v7074 = vsel %vm84, %v6952, 0.0
  %7075 = vadd.xlane.f32.xlu0 %v7074
  %v7076 = vpop.xlane.xlu0 %7075
  %v7077 = vsel %vm84, %v6953, 0.0
  %7078 = vadd.xlane.f32.xlu0 %v7077
  %v7079 = vpop.xlane.xlu0 %7078
  %v7080 = vsel %vm84, %v6954, 0.0
  %7081 = vadd.xlane.f32.xlu0 %v7080
  %v7082 = vpop.xlane.xlu0 %7081
  %v7083 = vsel %vm84, %v6955, 0.0
  %7084 = vadd.xlane.f32.xlu0 %v7083
  %v7085 = vpop.xlane.xlu0 %7084
  %v7086 = vsel %vm84, %v6956, 0.0
  %7087 = vadd.xlane.f32.xlu0 %v7086
  %v7088 = vpop.xlane.xlu0 %7087
  %v7089 = vsel %vm84, %v6957, 0.0
  %7090 = vadd.xlane.f32.xlu0 %v7089
  %v7091 = vpop.xlane.xlu0 %7090
  %v7092 = vsel %vm84, %v6958, 0.0
  %7093 = vadd.xlane.f32.xlu0 %v7092
  %v7094 = vpop.xlane.xlu0 %7093
  %v7095 = vsel %vm84, %v6959, 0.0
  %7096 = vadd.xlane.f32.xlu0 %v7095
  %v7097 = vpop.xlane.xlu0 %7096
  %v7098 = vsel %vm84, %v6960, 0.0
  %7099 = vadd.xlane.f32.xlu0 %v7098
  %v7100 = vpop.xlane.xlu0 %7099
  %v7101 = vsel %vm84, %v6961, 0.0
  %7102 = vadd.xlane.f32.xlu0 %v7101
  %v7103 = vpop.xlane.xlu0 %7102
  %v7104 = vsel %vm84, %v6962, 0.0
  %7105 = vadd.xlane.f32.xlu0 %v7104
  %v7106 = vpop.xlane.xlu0 %7105
  %v7107 = vsel %vm84, %v6963, 0.0
  %7108 = vadd.xlane.f32.xlu0 %v7107
  %v7109 = vpop.xlane.xlu0 %7108
  %v7110 = vsel %vm84, %v6964, 0.0
  %7111 = vadd.xlane.f32.xlu0 %v7110
  %v7112 = vpop.xlane.xlu0 %7111
  %v7113 = vsel %vm84, %v6965, 0.0
  %7114 = vadd.xlane.f32.xlu0 %v7113
  %v7115 = vpop.xlane.xlu0 %7114
  %v7116 = vsel %vm84, %v6966, 0.0
  %7117 = vadd.xlane.f32.xlu0 %v7116
  %v7118 = vpop.xlane.xlu0 %7117
  %v7119 = vsel %vm84, %v6967, 0.0
  %7120 = vadd.xlane.f32.xlu0 %v7119
  %v7121 = vpop.xlane.xlu0 %7120
  %v7122 = vsel %vm84, %v6968, 0.0
  %7123 = vadd.xlane.f32.xlu0 %v7122
  %v7124 = vpop.xlane.xlu0 %7123
  %v7125 = vsel %vm84, %v6969, 0.0
  %7126 = vadd.xlane.f32.xlu0 %v7125
  %v7127 = vpop.xlane.xlu0 %7126
  %v7128 = vsel %vm84, %v6970, 0.0
  %7129 = vadd.xlane.f32.xlu0 %v7128
  %v7130 = vpop.xlane.xlu0 %7129
  %v7131 = vsel %vm84, %v6971, 0.0
  %7132 = vadd.xlane.f32.xlu0 %v7131
  %v7133 = vpop.xlane.xlu0 %7132
  %v7134 = vsel %vm84, %v6972, 0.0
  %7135 = vadd.xlane.f32.xlu0 %v7134
  %v7136 = vpop.xlane.xlu0 %7135
  %v7137 = vsel %vm84, %v6973, 0.0
  %7138 = vadd.xlane.f32.xlu0 %v7137
  %v7139 = vpop.xlane.xlu0 %7138
  %v7140 = vsel %vm84, %v6974, 0.0
  %7141 = vadd.xlane.f32.xlu0 %v7140
  %v7142 = vpop.xlane.xlu0 %7141
  %v7143 = vmul.f32 %v6977, %v253
  %v7144 = vmul.f32 %v6980, %v253
  %v7145 = vmul.f32 %v6983, %v253
  %v7146 = vmul.f32 %v6986, %v253
  %v7147 = vmul.f32 %v6989, %v253
  %v7148 = vmul.f32 %v6992, %v253
  %v7149 = vmul.f32 %v6995, %v253
  %v7150 = vmul.f32 %v6998, %v253
  %v7151 = vmul.f32 %v7001, %v253
  %v7152 = vmul.f32 %v7004, %v253
  %v7153 = vmul.f32 %v7007, %v253
  %v7154 = vmul.f32 %v7010, %v253
  %v7155 = vmul.f32 %v7013, %v253
  %v7156 = vmul.f32 %v7016, %v253
  %v7157 = vmul.f32 %v7019, %v253
  %v7158 = vmul.f32 %v7022, %v253
  %v7159 = vmul.f32 %v7025, %v253
  %v7160 = vmul.f32 %v7028, %v253
  %v7161 = vmul.f32 %v7031, %v253
  %v7162 = vmul.f32 %v7034, %v253
  %v7163 = vmul.f32 %v7037, %v253
  %v7164 = vmul.f32 %v7040, %v253
  %v7165 = vmul.f32 %v7043, %v253
  %v7166 = vmul.f32 %v7046, %v253
  %v7167 = vmul.f32 %v7049, %v253
  %v7168 = vmul.f32 %v7052, %v253
  %v7169 = vmul.f32 %v7055, %v253
  %v7170 = vmul.f32 %v7058, %v253
  %v7171 = vmul.f32 %v7061, %v253
  %v7172 = vmul.f32 %v7064, %v253
  %v7173 = vmul.f32 %v7067, %v253
  %v7174 = vmul.f32 %v7070, %v253
  %v7175 = vmul.f32 %v7073, %v253
  %v7176 = vmul.f32 %v7076, %v253
  %v7177 = vmul.f32 %v7079, %v253
  %v7178 = vmul.f32 %v7082, %v253
  %v7179 = vmul.f32 %v7085, %v253
  %v7180 = vmul.f32 %v7088, %v253
  %v7181 = vmul.f32 %v7091, %v253
  %v7182 = vmul.f32 %v7094, %v253
  %v7183 = vmul.f32 %v7097, %v253
  %v7184 = vmul.f32 %v7100, %v253
  %v7185 = vmul.f32 %v7103, %v253
  %v7186 = vmul.f32 %v7106, %v253
  %v7187 = vmul.f32 %v7109, %v253
  %v7188 = vmul.f32 %v7112, %v253
  %v7189 = vmul.f32 %v7115, %v253
  %v7190 = vmul.f32 %v7118, %v253
  %v7191 = vmul.f32 %v7121, %v253
  %v7192 = vmul.f32 %v7124, %v253
  %v7193 = vmul.f32 %v7127, %v253
  %v7194 = vmul.f32 %v7130, %v253
  %v7195 = vmul.f32 %v7133, %v253
  %v7196 = vmul.f32 %v7136, %v253
  %v7197 = vmul.f32 %v7139, %v253
  %v7198 = vmul.f32 %v7142, %v253
  %v7199 = vsub.f32 %v6919, %v7143
  %v7200 = vsub.f32 %v6920, %v7144
  %v7201 = vsub.f32 %v6921, %v7145
  %v7202 = vsub.f32 %v6922, %v7146
  %v7203 = vsub.f32 %v6923, %v7147
  %v7204 = vsub.f32 %v6924, %v7148
  %v7205 = vsub.f32 %v6925, %v7149
  %v7206 = vsub.f32 %v6926, %v7150
  %v7207 = vsub.f32 %v6927, %v7151
  %v7208 = vsub.f32 %v6928, %v7152
  %v7209 = vsub.f32 %v6929, %v7153
  %v7210 = vsub.f32 %v6930, %v7154
  %v7211 = vsub.f32 %v6931, %v7155
  %v7212 = vsub.f32 %v6932, %v7156
  %v7213 = vsub.f32 %v6933, %v7157
  %v7214 = vsub.f32 %v6934, %v7158
  %v7215 = vsub.f32 %v6935, %v7159
  %v7216 = vsub.f32 %v6936, %v7160
  %v7217 = vsub.f32 %v6937, %v7161
  %v7218 = vsub.f32 %v6938, %v7162
  %v7219 = vsub.f32 %v6939, %v7163
  %v7220 = vsub.f32 %v6940, %v7164
  %v7221 = vsub.f32 %v6941, %v7165
  %v7222 = vsub.f32 %v6942, %v7166
  %v7223 = vsub.f32 %v6943, %v7167
  %v7224 = vsub.f32 %v6944, %v7168
  %v7225 = vsub.f32 %v6945, %v7169
  %v7226 = vsub.f32 %v6946, %v7170
  %v7227 = vsub.f32 %v6947, %v7171
  %v7228 = vsub.f32 %v6948, %v7172
  %v7229 = vsub.f32 %v6949, %v7173
  %v7230 = vsub.f32 %v6950, %v7174
  %v7231 = vsub.f32 %v6951, %v7175
  %v7232 = vsub.f32 %v6952, %v7176
  %v7233 = vsub.f32 %v6953, %v7177
  %v7234 = vsub.f32 %v6954, %v7178
  %v7235 = vsub.f32 %v6955, %v7179
  %v7236 = vsub.f32 %v6956, %v7180
  %v7237 = vsub.f32 %v6957, %v7181
  %v7238 = vsub.f32 %v6958, %v7182
  %v7239 = vsub.f32 %v6959, %v7183
  %v7240 = vsub.f32 %v6960, %v7184
  %v7241 = vsub.f32 %v6961, %v7185
  %v7242 = vsub.f32 %v6962, %v7186
  %v7243 = vsub.f32 %v6963, %v7187
  %v7244 = vsub.f32 %v6964, %v7188
  %v7245 = vsub.f32 %v6965, %v7189
  %v7246 = vsub.f32 %v6966, %v7190
  %v7247 = vsub.f32 %v6967, %v7191
  %v7248 = vsub.f32 %v6968, %v7192
  %v7249 = vsub.f32 %v6969, %v7193
  %v7250 = vsub.f32 %v6970, %v7194
  %v7251 = vsub.f32 %v6971, %v7195
  %v7252 = vsub.f32 %v6972, %v7196
  %v7253 = vsub.f32 %v6973, %v7197
  %v7254 = vsub.f32 %v6974, %v7198
  %v7255 = vmul.f32 %v7199, %v7199
  %v7256 = vmul.f32 %v7200, %v7200
  %v7257 = vmul.f32 %v7201, %v7201
  %v7258 = vmul.f32 %v7202, %v7202
  %v7259 = vmul.f32 %v7203, %v7203
  %v7260 = vmul.f32 %v7204, %v7204
  %v7261 = vmul.f32 %v7205, %v7205
  %v7262 = vmul.f32 %v7206, %v7206
  %v7263 = vmul.f32 %v7207, %v7207
  %v7264 = vmul.f32 %v7208, %v7208
  %v7265 = vmul.f32 %v7209, %v7209
  %v7266 = vmul.f32 %v7210, %v7210
  %v7267 = vmul.f32 %v7211, %v7211
  %v7268 = vmul.f32 %v7212, %v7212
  %v7269 = vmul.f32 %v7213, %v7213
  %v7270 = vmul.f32 %v7214, %v7214
  %v7271 = vmul.f32 %v7215, %v7215
  %v7272 = vmul.f32 %v7216, %v7216
  %v7273 = vmul.f32 %v7217, %v7217
  %v7274 = vmul.f32 %v7218, %v7218
  %v7275 = vmul.f32 %v7219, %v7219
  %v7276 = vmul.f32 %v7220, %v7220
  %v7277 = vmul.f32 %v7221, %v7221
  %v7278 = vmul.f32 %v7222, %v7222
  %v7279 = vmul.f32 %v7223, %v7223
  %v7280 = vmul.f32 %v7224, %v7224
  %v7281 = vmul.f32 %v7225, %v7225
  %v7282 = vmul.f32 %v7226, %v7226
  %v7283 = vmul.f32 %v7227, %v7227
  %v7284 = vmul.f32 %v7228, %v7228
  %v7285 = vmul.f32 %v7229, %v7229
  %v7286 = vmul.f32 %v7230, %v7230
  %v7287 = vmul.f32 %v7231, %v7231
  %v7288 = vmul.f32 %v7232, %v7232
  %v7289 = vmul.f32 %v7233, %v7233
  %v7290 = vmul.f32 %v7234, %v7234
  %v7291 = vmul.f32 %v7235, %v7235
  %v7292 = vmul.f32 %v7236, %v7236
  %v7293 = vmul.f32 %v7237, %v7237
  %v7294 = vmul.f32 %v7238, %v7238
  %v7295 = vmul.f32 %v7239, %v7239
  %v7296 = vmul.f32 %v7240, %v7240
  %v7297 = vmul.f32 %v7241, %v7241
  %v7298 = vmul.f32 %v7242, %v7242
  %v7299 = vmul.f32 %v7243, %v7243
  %v7300 = vmul.f32 %v7244, %v7244
  %v7301 = vmul.f32 %v7245, %v7245
  %v7302 = vmul.f32 %v7246, %v7246
  %v7303 = vmul.f32 %v7247, %v7247
  %v7304 = vmul.f32 %v7248, %v7248
  %v7305 = vmul.f32 %v7249, %v7249
  %v7306 = vmul.f32 %v7250, %v7250
  %v7307 = vmul.f32 %v7251, %v7251
  %v7308 = vmul.f32 %v7252, %v7252
  %v7309 = vmul.f32 %v7253, %v7253
  %v7310 = vmul.f32 %v7254, %v7254
  %v7311 = vsel %vm84, %v7255, 0.0
  %7312 = vadd.xlane.f32.xlu0 %v7311
  %v7313 = vpop.xlane.xlu0 %7312
  %v7314 = vsel %vm84, %v7256, 0.0
  %7315 = vadd.xlane.f32.xlu0 %v7314
  %v7316 = vpop.xlane.xlu0 %7315
  %v7317 = vsel %vm84, %v7257, 0.0
  %7318 = vadd.xlane.f32.xlu0 %v7317
  %v7319 = vpop.xlane.xlu0 %7318
  %v7320 = vsel %vm84, %v7258, 0.0
  %7321 = vadd.xlane.f32.xlu0 %v7320
  %v7322 = vpop.xlane.xlu0 %7321
  %v7323 = vsel %vm84, %v7259, 0.0
  %7324 = vadd.xlane.f32.xlu0 %v7323
  %v7325 = vpop.xlane.xlu0 %7324
  %v7326 = vsel %vm84, %v7260, 0.0
  %7327 = vadd.xlane.f32.xlu0 %v7326
  %v7328 = vpop.xlane.xlu0 %7327
  %v7329 = vsel %vm84, %v7261, 0.0
  %7330 = vadd.xlane.f32.xlu0 %v7329
  %v7331 = vpop.xlane.xlu0 %7330
  %v7332 = vsel %vm84, %v7262, 0.0
  %7333 = vadd.xlane.f32.xlu0 %v7332
  %v7334 = vpop.xlane.xlu0 %7333
  %v7335 = vsel %vm84, %v7263, 0.0
  %7336 = vadd.xlane.f32.xlu0 %v7335
  %v7337 = vpop.xlane.xlu0 %7336
  %v7338 = vsel %vm84, %v7264, 0.0
  %7339 = vadd.xlane.f32.xlu0 %v7338
  %v7340 = vpop.xlane.xlu0 %7339
  %v7341 = vsel %vm84, %v7265, 0.0
  %7342 = vadd.xlane.f32.xlu0 %v7341
  %v7343 = vpop.xlane.xlu0 %7342
  %v7344 = vsel %vm84, %v7266, 0.0
  %7345 = vadd.xlane.f32.xlu0 %v7344
  %v7346 = vpop.xlane.xlu0 %7345
  %v7347 = vsel %vm84, %v7267, 0.0
  %7348 = vadd.xlane.f32.xlu0 %v7347
  %v7349 = vpop.xlane.xlu0 %7348
  %v7350 = vsel %vm84, %v7268, 0.0
  %7351 = vadd.xlane.f32.xlu0 %v7350
  %v7352 = vpop.xlane.xlu0 %7351
  %v7353 = vsel %vm84, %v7269, 0.0
  %7354 = vadd.xlane.f32.xlu0 %v7353
  %v7355 = vpop.xlane.xlu0 %7354
  %v7356 = vsel %vm84, %v7270, 0.0
  %7357 = vadd.xlane.f32.xlu0 %v7356
  %v7358 = vpop.xlane.xlu0 %7357
  %v7359 = vsel %vm84, %v7271, 0.0
  %7360 = vadd.xlane.f32.xlu0 %v7359
  %v7361 = vpop.xlane.xlu0 %7360
  %v7362 = vsel %vm84, %v7272, 0.0
  %7363 = vadd.xlane.f32.xlu0 %v7362
  %v7364 = vpop.xlane.xlu0 %7363
  %v7365 = vsel %vm84, %v7273, 0.0
  %7366 = vadd.xlane.f32.xlu0 %v7365
  %v7367 = vpop.xlane.xlu0 %7366
  %v7368 = vsel %vm84, %v7274, 0.0
  %7369 = vadd.xlane.f32.xlu0 %v7368
  %v7370 = vpop.xlane.xlu0 %7369
  %v7371 = vsel %vm84, %v7275, 0.0
  %7372 = vadd.xlane.f32.xlu0 %v7371
  %v7373 = vpop.xlane.xlu0 %7372
  %v7374 = vsel %vm84, %v7276, 0.0
  %7375 = vadd.xlane.f32.xlu0 %v7374
  %v7376 = vpop.xlane.xlu0 %7375
  %v7377 = vsel %vm84, %v7277, 0.0
  %7378 = vadd.xlane.f32.xlu0 %v7377
  %v7379 = vpop.xlane.xlu0 %7378
  %v7380 = vsel %vm84, %v7278, 0.0
  %7381 = vadd.xlane.f32.xlu0 %v7380
  %v7382 = vpop.xlane.xlu0 %7381
  %v7383 = vsel %vm84, %v7279, 0.0
  %7384 = vadd.xlane.f32.xlu0 %v7383
  %v7385 = vpop.xlane.xlu0 %7384
  %v7386 = vsel %vm84, %v7280, 0.0
  %7387 = vadd.xlane.f32.xlu0 %v7386
  %v7388 = vpop.xlane.xlu0 %7387
  %v7389 = vsel %vm84, %v7281, 0.0
  %7390 = vadd.xlane.f32.xlu0 %v7389
  %v7391 = vpop.xlane.xlu0 %7390
  %v7392 = vsel %vm84, %v7282, 0.0
  %7393 = vadd.xlane.f32.xlu0 %v7392
  %v7394 = vpop.xlane.xlu0 %7393
  %v7395 = vsel %vm84, %v7283, 0.0
  %7396 = vadd.xlane.f32.xlu0 %v7395
  %v7397 = vpop.xlane.xlu0 %7396
  %v7398 = vsel %vm84, %v7284, 0.0
  %7399 = vadd.xlane.f32.xlu0 %v7398
  %v7400 = vpop.xlane.xlu0 %7399
  %v7401 = vsel %vm84, %v7285, 0.0
  %7402 = vadd.xlane.f32.xlu0 %v7401
  %v7403 = vpop.xlane.xlu0 %7402
  %v7404 = vsel %vm84, %v7286, 0.0
  %7405 = vadd.xlane.f32.xlu0 %v7404
  %v7406 = vpop.xlane.xlu0 %7405
  %v7407 = vsel %vm84, %v7287, 0.0
  %7408 = vadd.xlane.f32.xlu0 %v7407
  %v7409 = vpop.xlane.xlu0 %7408
  %v7410 = vsel %vm84, %v7288, 0.0
  %7411 = vadd.xlane.f32.xlu0 %v7410
  %v7412 = vpop.xlane.xlu0 %7411
  %v7413 = vsel %vm84, %v7289, 0.0
  %7414 = vadd.xlane.f32.xlu0 %v7413
  %v7415 = vpop.xlane.xlu0 %7414
  %v7416 = vsel %vm84, %v7290, 0.0
  %7417 = vadd.xlane.f32.xlu0 %v7416
  %v7418 = vpop.xlane.xlu0 %7417
  %v7419 = vsel %vm84, %v7291, 0.0
  %7420 = vadd.xlane.f32.xlu0 %v7419
  %v7421 = vpop.xlane.xlu0 %7420
  %v7422 = vsel %vm84, %v7292, 0.0
  %7423 = vadd.xlane.f32.xlu0 %v7422
  %v7424 = vpop.xlane.xlu0 %7423
  %v7425 = vsel %vm84, %v7293, 0.0
  %7426 = vadd.xlane.f32.xlu0 %v7425
  %v7427 = vpop.xlane.xlu0 %7426
  %v7428 = vsel %vm84, %v7294, 0.0
  %7429 = vadd.xlane.f32.xlu0 %v7428
  %v7430 = vpop.xlane.xlu0 %7429
  %v7431 = vsel %vm84, %v7295, 0.0
  %7432 = vadd.xlane.f32.xlu0 %v7431
  %v7433 = vpop.xlane.xlu0 %7432
  %v7434 = vsel %vm84, %v7296, 0.0
  %7435 = vadd.xlane.f32.xlu0 %v7434
  %v7436 = vpop.xlane.xlu0 %7435
  %v7437 = vsel %vm84, %v7297, 0.0
  %7438 = vadd.xlane.f32.xlu0 %v7437
  %v7439 = vpop.xlane.xlu0 %7438
  %v7440 = vsel %vm84, %v7298, 0.0
  %7441 = vadd.xlane.f32.xlu0 %v7440
  %v7442 = vpop.xlane.xlu0 %7441
  %v7443 = vsel %vm84, %v7299, 0.0
  %7444 = vadd.xlane.f32.xlu0 %v7443
  %v7445 = vpop.xlane.xlu0 %7444
  %v7446 = vsel %vm84, %v7300, 0.0
  %7447 = vadd.xlane.f32.xlu0 %v7446
  %v7448 = vpop.xlane.xlu0 %7447
  %v7449 = vsel %vm84, %v7301, 0.0
  %7450 = vadd.xlane.f32.xlu0 %v7449
  %v7451 = vpop.xlane.xlu0 %7450
  %v7452 = vsel %vm84, %v7302, 0.0
  %7453 = vadd.xlane.f32.xlu0 %v7452
  %v7454 = vpop.xlane.xlu0 %7453
  %v7455 = vsel %vm84, %v7303, 0.0
  %7456 = vadd.xlane.f32.xlu0 %v7455
  %v7457 = vpop.xlane.xlu0 %7456
  %v7458 = vsel %vm84, %v7304, 0.0
  %7459 = vadd.xlane.f32.xlu0 %v7458
  %v7460 = vpop.xlane.xlu0 %7459
  %v7461 = vsel %vm84, %v7305, 0.0
  %7462 = vadd.xlane.f32.xlu0 %v7461
  %v7463 = vpop.xlane.xlu0 %7462
  %v7464 = vsel %vm84, %v7306, 0.0
  %7465 = vadd.xlane.f32.xlu0 %v7464
  %v7466 = vpop.xlane.xlu0 %7465
  %v7467 = vsel %vm84, %v7307, 0.0
  %7468 = vadd.xlane.f32.xlu0 %v7467
  %v7469 = vpop.xlane.xlu0 %7468
  %v7470 = vsel %vm84, %v7308, 0.0
  %7471 = vadd.xlane.f32.xlu0 %v7470
  %v7472 = vpop.xlane.xlu0 %7471
  %v7473 = vsel %vm84, %v7309, 0.0
  %7474 = vadd.xlane.f32.xlu0 %v7473
  %v7475 = vpop.xlane.xlu0 %7474
  %v7476 = vsel %vm84, %v7310, 0.0
  %7477 = vadd.xlane.f32.xlu0 %v7476
  %v7478 = vpop.xlane.xlu0 %7477
  %v7479 = vmul.f32 %v7313, %v253
  %v7480 = vmul.f32 %v7316, %v253
  %v7481 = vmul.f32 %v7319, %v253
  %v7482 = vmul.f32 %v7322, %v253
  %v7483 = vmul.f32 %v7325, %v253
  %v7484 = vmul.f32 %v7328, %v253
  %v7485 = vmul.f32 %v7331, %v253
  %v7486 = vmul.f32 %v7334, %v253
  %v7487 = vmul.f32 %v7337, %v253
  %v7488 = vmul.f32 %v7340, %v253
  %v7489 = vmul.f32 %v7343, %v253
  %v7490 = vmul.f32 %v7346, %v253
  %v7491 = vmul.f32 %v7349, %v253
  %v7492 = vmul.f32 %v7352, %v253
  %v7493 = vmul.f32 %v7355, %v253
  %v7494 = vmul.f32 %v7358, %v253
  %v7495 = vmul.f32 %v7361, %v253
  %v7496 = vmul.f32 %v7364, %v253
  %v7497 = vmul.f32 %v7367, %v253
  %v7498 = vmul.f32 %v7370, %v253
  %v7499 = vmul.f32 %v7373, %v253
  %v7500 = vmul.f32 %v7376, %v253
  %v7501 = vmul.f32 %v7379, %v253
  %v7502 = vmul.f32 %v7382, %v253
  %v7503 = vmul.f32 %v7385, %v253
  %v7504 = vmul.f32 %v7388, %v253
  %v7505 = vmul.f32 %v7391, %v253
  %v7506 = vmul.f32 %v7394, %v253
  %v7507 = vmul.f32 %v7397, %v253
  %v7508 = vmul.f32 %v7400, %v253
  %v7509 = vmul.f32 %v7403, %v253
  %v7510 = vmul.f32 %v7406, %v253
  %v7511 = vmul.f32 %v7409, %v253
  %v7512 = vmul.f32 %v7412, %v253
  %v7513 = vmul.f32 %v7415, %v253
  %v7514 = vmul.f32 %v7418, %v253
  %v7515 = vmul.f32 %v7421, %v253
  %v7516 = vmul.f32 %v7424, %v253
  %v7517 = vmul.f32 %v7427, %v253
  %v7518 = vmul.f32 %v7430, %v253
  %v7519 = vmul.f32 %v7433, %v253
  %v7520 = vmul.f32 %v7436, %v253
  %v7521 = vmul.f32 %v7439, %v253
  %v7522 = vmul.f32 %v7442, %v253
  %v7523 = vmul.f32 %v7445, %v253
  %v7524 = vmul.f32 %v7448, %v253
  %v7525 = vmul.f32 %v7451, %v253
  %v7526 = vmul.f32 %v7454, %v253
  %v7527 = vmul.f32 %v7457, %v253
  %v7528 = vmul.f32 %v7460, %v253
  %v7529 = vmul.f32 %v7463, %v253
  %v7530 = vmul.f32 %v7466, %v253
  %v7531 = vmul.f32 %v7469, %v253
  %v7532 = vmul.f32 %v7472, %v253
  %v7533 = vmul.f32 %v7475, %v253
  %v7534 = vmul.f32 %v7478, %v253
  %v7535 = vadd.f32 %v7479, 1e-05
  %v7536 = vadd.f32 %v7480, 1e-05
  %v7537 = vadd.f32 %v7481, 1e-05
  %v7538 = vadd.f32 %v7482, 1e-05
  %v7539 = vadd.f32 %v7483, 1e-05
  %v7540 = vadd.f32 %v7484, 1e-05
  %v7541 = vadd.f32 %v7485, 1e-05
  %v7542 = vadd.f32 %v7486, 1e-05
  %v7543 = vadd.f32 %v7487, 1e-05
  %v7544 = vadd.f32 %v7488, 1e-05
  %v7545 = vadd.f32 %v7489, 1e-05
  %v7546 = vadd.f32 %v7490, 1e-05
  %v7547 = vadd.f32 %v7491, 1e-05
  %v7548 = vadd.f32 %v7492, 1e-05
  %v7549 = vadd.f32 %v7493, 1e-05
  %v7550 = vadd.f32 %v7494, 1e-05
  %v7551 = vadd.f32 %v7495, 1e-05
  %v7552 = vadd.f32 %v7496, 1e-05
  %v7553 = vadd.f32 %v7497, 1e-05
  %v7554 = vadd.f32 %v7498, 1e-05
  %v7555 = vadd.f32 %v7499, 1e-05
  %v7556 = vadd.f32 %v7500, 1e-05
  %v7557 = vadd.f32 %v7501, 1e-05
  %v7558 = vadd.f32 %v7502, 1e-05
  %v7559 = vadd.f32 %v7503, 1e-05
  %v7560 = vadd.f32 %v7504, 1e-05
  %v7561 = vadd.f32 %v7505, 1e-05
  %v7562 = vadd.f32 %v7506, 1e-05
  %v7563 = vadd.f32 %v7507, 1e-05
  %v7564 = vadd.f32 %v7508, 1e-05
  %v7565 = vadd.f32 %v7509, 1e-05
  %v7566 = vadd.f32 %v7510, 1e-05
  %v7567 = vadd.f32 %v7511, 1e-05
  %v7568 = vadd.f32 %v7512, 1e-05
  %v7569 = vadd.f32 %v7513, 1e-05
  %v7570 = vadd.f32 %v7514, 1e-05
  %v7571 = vadd.f32 %v7515, 1e-05
  %v7572 = vadd.f32 %v7516, 1e-05
  %v7573 = vadd.f32 %v7517, 1e-05
  %v7574 = vadd.f32 %v7518, 1e-05
  %v7575 = vadd.f32 %v7519, 1e-05
  %v7576 = vadd.f32 %v7520, 1e-05
  %v7577 = vadd.f32 %v7521, 1e-05
  %v7578 = vadd.f32 %v7522, 1e-05
  %v7579 = vadd.f32 %v7523, 1e-05
  %v7580 = vadd.f32 %v7524, 1e-05
  %v7581 = vadd.f32 %v7525, 1e-05
  %v7582 = vadd.f32 %v7526, 1e-05
  %v7583 = vadd.f32 %v7527, 1e-05
  %v7584 = vadd.f32 %v7528, 1e-05
  %v7585 = vadd.f32 %v7529, 1e-05
  %v7586 = vadd.f32 %v7530, 1e-05
  %v7587 = vadd.f32 %v7531, 1e-05
  %v7588 = vadd.f32 %v7532, 1e-05
  %v7589 = vadd.f32 %v7533, 1e-05
  %v7590 = vadd.f32 %v7534, 1e-05
  %v7591 = vrsqrt.pop %v7535
  %v7592 = vrsqrt.pop %v7536
  %v7593 = vrsqrt.pop %v7537
  %v7594 = vrsqrt.pop %v7538
  %v7595 = vrsqrt.pop %v7539
  %v7596 = vrsqrt.pop %v7540
  %v7597 = vrsqrt.pop %v7541
  %v7598 = vrsqrt.pop %v7542
  %v7599 = vrsqrt.pop %v7543
  %v7600 = vrsqrt.pop %v7544
  %v7601 = vrsqrt.pop %v7545
  %v7602 = vrsqrt.pop %v7546
  %v7603 = vrsqrt.pop %v7547
  %v7604 = vrsqrt.pop %v7548
  %v7605 = vrsqrt.pop %v7549
  %v7606 = vrsqrt.pop %v7550
  %v7607 = vrsqrt.pop %v7551
  %v7608 = vrsqrt.pop %v7552
  %v7609 = vrsqrt.pop %v7553
  %v7610 = vrsqrt.pop %v7554
  %v7611 = vrsqrt.pop %v7555
  %v7612 = vrsqrt.pop %v7556
  %v7613 = vrsqrt.pop %v7557
  %v7614 = vrsqrt.pop %v7558
  %v7615 = vrsqrt.pop %v7559
  %v7616 = vrsqrt.pop %v7560
  %v7617 = vrsqrt.pop %v7561
  %v7618 = vrsqrt.pop %v7562
  %v7619 = vrsqrt.pop %v7563
  %v7620 = vrsqrt.pop %v7564
  %v7621 = vrsqrt.pop %v7565
  %v7622 = vrsqrt.pop %v7566
  %v7623 = vrsqrt.pop %v7567
  %v7624 = vrsqrt.pop %v7568
  %v7625 = vrsqrt.pop %v7569
  %v7626 = vrsqrt.pop %v7570
  %v7627 = vrsqrt.pop %v7571
  %v7628 = vrsqrt.pop %v7572
  %v7629 = vrsqrt.pop %v7573
  %v7630 = vrsqrt.pop %v7574
  %v7631 = vrsqrt.pop %v7575
  %v7632 = vrsqrt.pop %v7576
  %v7633 = vrsqrt.pop %v7577
  %v7634 = vrsqrt.pop %v7578
  %v7635 = vrsqrt.pop %v7579
  %v7636 = vrsqrt.pop %v7580
  %v7637 = vrsqrt.pop %v7581
  %v7638 = vrsqrt.pop %v7582
  %v7639 = vrsqrt.pop %v7583
  %v7640 = vrsqrt.pop %v7584
  %v7641 = vrsqrt.pop %v7585
  %v7642 = vrsqrt.pop %v7586
  %v7643 = vrsqrt.pop %v7587
  %v7644 = vrsqrt.pop %v7588
  %v7645 = vrsqrt.pop %v7589
  %v7646 = vrsqrt.pop %v7590
  %v7647 = vmul.f32 %v7199, %v7591
  %v7648 = vmul.f32 %v7200, %v7592
  %v7649 = vmul.f32 %v7201, %v7593
  %v7650 = vmul.f32 %v7202, %v7594
  %v7651 = vmul.f32 %v7203, %v7595
  %v7652 = vmul.f32 %v7204, %v7596
  %v7653 = vmul.f32 %v7205, %v7597
  %v7654 = vmul.f32 %v7206, %v7598
  %v7655 = vmul.f32 %v7207, %v7599
  %v7656 = vmul.f32 %v7208, %v7600
  %v7657 = vmul.f32 %v7209, %v7601
  %v7658 = vmul.f32 %v7210, %v7602
  %v7659 = vmul.f32 %v7211, %v7603
  %v7660 = vmul.f32 %v7212, %v7604
  %v7661 = vmul.f32 %v7213, %v7605
  %v7662 = vmul.f32 %v7214, %v7606
  %v7663 = vmul.f32 %v7215, %v7607
  %v7664 = vmul.f32 %v7216, %v7608
  %v7665 = vmul.f32 %v7217, %v7609
  %v7666 = vmul.f32 %v7218, %v7610
  %v7667 = vmul.f32 %v7219, %v7611
  %v7668 = vmul.f32 %v7220, %v7612
  %v7669 = vmul.f32 %v7221, %v7613
  %v7670 = vmul.f32 %v7222, %v7614
  %v7671 = vmul.f32 %v7223, %v7615
  %v7672 = vmul.f32 %v7224, %v7616
  %v7673 = vmul.f32 %v7225, %v7617
  %v7674 = vmul.f32 %v7226, %v7618
  %v7675 = vmul.f32 %v7227, %v7619
  %v7676 = vmul.f32 %v7228, %v7620
  %v7677 = vmul.f32 %v7229, %v7621
  %v7678 = vmul.f32 %v7230, %v7622
  %v7679 = vmul.f32 %v7231, %v7623
  %v7680 = vmul.f32 %v7232, %v7624
  %v7681 = vmul.f32 %v7233, %v7625
  %v7682 = vmul.f32 %v7234, %v7626
  %v7683 = vmul.f32 %v7235, %v7627
  %v7684 = vmul.f32 %v7236, %v7628
  %v7685 = vmul.f32 %v7237, %v7629
  %v7686 = vmul.f32 %v7238, %v7630
  %v7687 = vmul.f32 %v7239, %v7631
  %v7688 = vmul.f32 %v7240, %v7632
  %v7689 = vmul.f32 %v7241, %v7633
  %v7690 = vmul.f32 %v7242, %v7634
  %v7691 = vmul.f32 %v7243, %v7635
  %v7692 = vmul.f32 %v7244, %v7636
  %v7693 = vmul.f32 %v7245, %v7637
  %v7694 = vmul.f32 %v7246, %v7638
  %v7695 = vmul.f32 %v7247, %v7639
  %v7696 = vmul.f32 %v7248, %v7640
  %v7697 = vmul.f32 %v7249, %v7641
  %v7698 = vmul.f32 %v7250, %v7642
  %v7699 = vmul.f32 %v7251, %v7643
  %v7700 = vmul.f32 %v7252, %v7644
  %v7701 = vmul.f32 %v7253, %v7645
  %v7702 = vmul.f32 %v7254, %v7646
  %v7703 = vlaneseq
  %v7704 = vshrl.u32 %v7703, 7
  %v7705 = vsub.s32 2, %v7704
  %v7706 = vrot.slane %v83, %v7705
  %v7707 = vmul.f32 %v7647, %v7706
  %v7708 = vmul.f32 %v7648, %v7706
  %v7709 = vmul.f32 %v7649, %v7706
  %v7710 = vmul.f32 %v7650, %v7706
  %v7711 = vmul.f32 %v7651, %v7706
  %v7712 = vmul.f32 %v7652, %v7706
  %v7713 = vmul.f32 %v7653, %v7706
  %v7714 = vmul.f32 %v7654, %v7706
  %v7715 = vmul.f32 %v7655, %v7706
  %v7716 = vmul.f32 %v7656, %v7706
  %v7717 = vmul.f32 %v7657, %v7706
  %v7718 = vmul.f32 %v7658, %v7706
  %v7719 = vmul.f32 %v7659, %v7706
  %v7720 = vmul.f32 %v7660, %v7706
  %v7721 = vmul.f32 %v7661, %v7706
  %v7722 = vmul.f32 %v7662, %v7706
  %v7723 = vmul.f32 %v7663, %v7706
  %v7724 = vmul.f32 %v7664, %v7706
  %v7725 = vmul.f32 %v7665, %v7706
  %v7726 = vmul.f32 %v7666, %v7706
  %v7727 = vmul.f32 %v7667, %v7706
  %v7728 = vmul.f32 %v7668, %v7706
  %v7729 = vmul.f32 %v7669, %v7706
  %v7730 = vmul.f32 %v7670, %v7706
  %v7731 = vmul.f32 %v7671, %v7706
  %v7732 = vmul.f32 %v7672, %v7706
  %v7733 = vmul.f32 %v7673, %v7706
  %v7734 = vmul.f32 %v7674, %v7706
  %v7735 = vmul.f32 %v7675, %v7706
  %v7736 = vmul.f32 %v7676, %v7706
  %v7737 = vmul.f32 %v7677, %v7706
  %v7738 = vmul.f32 %v7678, %v7706
  %v7739 = vmul.f32 %v7679, %v7706
  %v7740 = vmul.f32 %v7680, %v7706
  %v7741 = vmul.f32 %v7681, %v7706
  %v7742 = vmul.f32 %v7682, %v7706
  %v7743 = vmul.f32 %v7683, %v7706
  %v7744 = vmul.f32 %v7684, %v7706
  %v7745 = vmul.f32 %v7685, %v7706
  %v7746 = vmul.f32 %v7686, %v7706
  %v7747 = vmul.f32 %v7687, %v7706
  %v7748 = vmul.f32 %v7688, %v7706
  %v7749 = vmul.f32 %v7689, %v7706
  %v7750 = vmul.f32 %v7690, %v7706
  %v7751 = vmul.f32 %v7691, %v7706
  %v7752 = vmul.f32 %v7692, %v7706
  %v7753 = vmul.f32 %v7693, %v7706
  %v7754 = vmul.f32 %v7694, %v7706
  %v7755 = vmul.f32 %v7695, %v7706
  %v7756 = vmul.f32 %v7696, %v7706
  %v7757 = vmul.f32 %v7697, %v7706
  %v7758 = vmul.f32 %v7698, %v7706
  %v7759 = vmul.f32 %v7699, %v7706
  %v7760 = vmul.f32 %v7700, %v7706
  %v7761 = vmul.f32 %v7701, %v7706
  %v7762 = vmul.f32 %v7702, %v7706
  %v7763 = vlaneseq
  %v7764 = vshrl.u32 %v7763, 7
  %v7765 = vsub.s32 3, %v7764
  %v7766 = vrot.slane %v83, %v7765
  %v7767 = vadd.f32 %v7707, %v7766
  %v7768 = vadd.f32 %v7708, %v7766
  %v7769 = vadd.f32 %v7709, %v7766
  %v7770 = vadd.f32 %v7710, %v7766
  %v7771 = vadd.f32 %v7711, %v7766
  %v7772 = vadd.f32 %v7712, %v7766
  %v7773 = vadd.f32 %v7713, %v7766
  %v7774 = vadd.f32 %v7714, %v7766
  %v7775 = vadd.f32 %v7715, %v7766
  %v7776 = vadd.f32 %v7716, %v7766
  %v7777 = vadd.f32 %v7717, %v7766
  %v7778 = vadd.f32 %v7718, %v7766
  %v7779 = vadd.f32 %v7719, %v7766
  %v7780 = vadd.f32 %v7720, %v7766
  %v7781 = vadd.f32 %v7721, %v7766
  %v7782 = vadd.f32 %v7722, %v7766
  %v7783 = vadd.f32 %v7723, %v7766
  %v7784 = vadd.f32 %v7724, %v7766
  %v7785 = vadd.f32 %v7725, %v7766
  %v7786 = vadd.f32 %v7726, %v7766
  %v7787 = vadd.f32 %v7727, %v7766
  %v7788 = vadd.f32 %v7728, %v7766
  %v7789 = vadd.f32 %v7729, %v7766
  %v7790 = vadd.f32 %v7730, %v7766
  %v7791 = vadd.f32 %v7731, %v7766
  %v7792 = vadd.f32 %v7732, %v7766
  %v7793 = vadd.f32 %v7733, %v7766
  %v7794 = vadd.f32 %v7734, %v7766
  %v7795 = vadd.f32 %v7735, %v7766
  %v7796 = vadd.f32 %v7736, %v7766
  %v7797 = vadd.f32 %v7737, %v7766
  %v7798 = vadd.f32 %v7738, %v7766
  %v7799 = vadd.f32 %v7739, %v7766
  %v7800 = vadd.f32 %v7740, %v7766
  %v7801 = vadd.f32 %v7741, %v7766
  %v7802 = vadd.f32 %v7742, %v7766
  %v7803 = vadd.f32 %v7743, %v7766
  %v7804 = vadd.f32 %v7744, %v7766
  %v7805 = vadd.f32 %v7745, %v7766
  %v7806 = vadd.f32 %v7746, %v7766
  %v7807 = vadd.f32 %v7747, %v7766
  %v7808 = vadd.f32 %v7748, %v7766
  %v7809 = vadd.f32 %v7749, %v7766
  %v7810 = vadd.f32 %v7750, %v7766
  %v7811 = vadd.f32 %v7751, %v7766
  %v7812 = vadd.f32 %v7752, %v7766
  %v7813 = vadd.f32 %v7753, %v7766
  %v7814 = vadd.f32 %v7754, %v7766
  %v7815 = vadd.f32 %v7755, %v7766
  %v7816 = vadd.f32 %v7756, %v7766
  %v7817 = vadd.f32 %v7757, %v7766
  %v7818 = vadd.f32 %v7758, %v7766
  %v7819 = vadd.f32 %v7759, %v7766
  %v7820 = vadd.f32 %v7760, %v7766
  %v7821 = vadd.f32 %v7761, %v7766
  %v7822 = vadd.f32 %v7762, %v7766
  %v7823 = vpack.c.bf16 %v7768, %v7767
  %v7824 = vpack.c.bf16 %v7770, %v7769
  %v7825 = vpack.c.bf16 %v7772, %v7771
  %v7826 = vpack.c.bf16 %v7774, %v7773
  %v7827 = vpack.c.bf16 %v7776, %v7775
  %v7828 = vpack.c.bf16 %v7778, %v7777
  %v7829 = vpack.c.bf16 %v7780, %v7779
  %v7830 = vpack.c.bf16 %v7782, %v7781
  %v7831 = vpack.c.bf16 %v7784, %v7783
  %v7832 = vpack.c.bf16 %v7786, %v7785
  %v7833 = vpack.c.bf16 %v7788, %v7787
  %v7834 = vpack.c.bf16 %v7790, %v7789
  %v7835 = vpack.c.bf16 %v7792, %v7791
  %v7836 = vpack.c.bf16 %v7794, %v7793
  %v7837 = vpack.c.bf16 %v7796, %v7795
  %v7838 = vpack.c.bf16 %v7798, %v7797
  %v7839 = vpack.c.bf16 %v7800, %v7799
  %v7840 = vpack.c.bf16 %v7802, %v7801
  %v7841 = vpack.c.bf16 %v7804, %v7803
  %v7842 = vpack.c.bf16 %v7806, %v7805
  %v7843 = vpack.c.bf16 %v7808, %v7807
  %v7844 = vpack.c.bf16 %v7810, %v7809
  %v7845 = vpack.c.bf16 %v7812, %v7811
  %v7846 = vpack.c.bf16 %v7814, %v7813
  %v7847 = vpack.c.bf16 %v7816, %v7815
  %v7848 = vpack.c.bf16 %v7818, %v7817
  %v7849 = vpack.c.bf16 %v7820, %v7819
  %v7850 = vpack.c.bf16 %v7822, %v7821
  %v7851 = vld [vmem:[%s4] sm:$0xf]
  %v7852 = vld [vmem:[%s4 + $0x4] sm:$0xf]
  %v7853 = vld [vmem:[%s4 + $0x8] sm:$0xf]
  %v7854 = vld [vmem:[%s4 + $0xc] sm:$0xf]
  %v7855 = vlaneseq
  %v7856 = vshrl.u32 %v7855, 7
  %v7857 = vsub.s32 6, %v7856
  %v7858 = vrot.slane %v83, %v7857
  %v7863 = vunpack.c.l.b16 %v7851
  %v7864 = vunpack.c.l.b16 %v7852
  %v7865 = vunpack.c.l.b16 %v7853
  %v7866 = vunpack.c.l.b16 %v7854
  %v7867 = vpack.c.b16 %v7864, %v7863
  %v7868 = vpack.c.b16 %v7866, %v7865
  %v7872 = vsel %vm84, %v7823, 0
  %v7875 = vsel %vm84, %v7824, 0
  %v7878 = vsel %vm84, %v7825, 0
  %v7881 = vsel %vm84, %v7826, 0
  %v7884 = vsel %vm84, %v7827, 0
  %v7887 = vsel %vm84, %v7828, 0
  %v7890 = vsel %vm84, %v7829, 0
  %v7893 = vsel %vm84, %v7830, 0
  %v7896 = vsel %vm84, %v7831, 0
  %v7899 = vsel %vm84, %v7832, 0
  %v7902 = vsel %vm84, %v7833, 0
  %v7905 = vsel %vm84, %v7834, 0
  %v7908 = vsel %vm84, %v7835, 0
  %v7911 = vsel %vm84, %v7836, 0
  %v7914 = vsel %vm84, %v7837, 0
  %v7917 = vsel %vm84, %v7838, 0
  %v7920 = vsel %vm84, %v7839, 0
  %v7923 = vsel %vm84, %v7840, 0
  %v7926 = vsel %vm84, %v7841, 0
  %v7929 = vsel %vm84, %v7842, 0
  %v7932 = vsel %vm84, %v7843, 0
  %v7935 = vsel %vm84, %v7844, 0
  %v7938 = vsel %vm84, %v7845, 0
  %v7941 = vsel %vm84, %v7846, 0
  %v7944 = vsel %vm84, %v7847, 0
  %v7947 = vsel %vm84, %v7848, 0
  %v7950 = vsel %vm84, %v7849, 0
  %v7953 = vsel %vm84, %v7850, 0
  %7955 = vmatprep.subr.bf16.mxu0 0
  %7956 = vmatpush1.bf16.msra.mxu0 %v7867
  %7957 = vmatprep.subr.bf16.mxu0 0
  %7958 = vmatpush1.bf16.msra.mxu0 %v7868
  %7959 = vmatprep.subr.bf16.mxu0 0
  %7960 = vmatpush1.bf16.msra.mxu0 0
  %7961 = vmatprep.subr.bf16.mxu0 0
  %7962 = vmatpush1.bf16.msra.mxu0 0
  %7963 = vmatprep.subr.bf16.mxu0 0
  %7964 = vmatpush1.bf16.msra.mxu0 0
  %7965 = vmatprep.subr.bf16.mxu0 0
  %7966 = vmatpush1.bf16.msra.mxu0 0
  %7967 = vmatprep.subr.bf16.mxu0 0
  %7968 = vmatpush1.bf16.msra.mxu0 0
  %7969 = vmatprep.subr.bf16.mxu0 0
  %7970 = vmatpush1.bf16.msra.mxu0 0
  %7971 = vmatprep.subr.bf16.mxu0 0
  %7972 = vmatpush1.bf16.msra.mxu0 0
  %7973 = vmatprep.subr.bf16.mxu0 0
  %7974 = vmatpush1.bf16.msra.mxu0 0
  %7975 = vmatprep.subr.bf16.mxu0 0
  %7976 = vmatpush1.bf16.msra.mxu0 0
  %7977 = vmatprep.subr.bf16.mxu0 0
  %7978 = vmatpush1.bf16.msra.mxu0 0
  %7979 = vmatprep.subr.bf16.mxu0 0
  %7980 = vmatpush1.bf16.msra.mxu0 0
  %7981 = vmatprep.subr.bf16.mxu0 0
  %7982 = vmatpush1.bf16.msra.mxu0 0
  %7983 = vmatprep.subr.bf16.mxu0 0
  %7984 = vmatpush1.bf16.msra.mxu0 0
  %7985 = vmatprep.subr.bf16.mxu0 0
  %7986 = vmatpush1.bf16.msra.mxu0 0
  %7987 = vmatprep.mubr.bf16.mxu0 0
  %7988 = vmatmul.mubr.bf16.gmra.mrb[0].mxu0 %v7872
  %v7989 = vpop.f32.mrb[0].mxu0
  %v7990 = vadd.f32 %v7858, %v7989
  %v7991 = vpop.f32.mrb[0].mxu0
  %v7992 = vpop.f32.mrb[0].mxu0
  %v7993 = vadd.f32 %v7858, %v7992
  %v7994 = vpop.f32.mrb[0].mxu0
  %7995 = vmatprep.mubr.bf16.mxu0 0
  %7996 = vmatmul.mubr.bf16.gmra.mrb[0].mxu0 %v7875
  %v7997 = vpop.f32.mrb[0].mxu0
  %v7998 = vadd.f32 %v7858, %v7997
  %v7999 = vpop.f32.mrb[0].mxu0
  %v8000 = vpop.f32.mrb[0].mxu0
  %v8001 = vadd.f32 %v7858, %v8000
  %v8002 = vpop.f32.mrb[0].mxu0
  %8003 = vmatprep.mubr.bf16.mxu0 0
  %8004 = vmatmul.mubr.bf16.gmra.mrb[0].mxu0 %v7878
  %v8005 = vpop.f32.mrb[0].mxu0
  %v8006 = vadd.f32 %v7858, %v8005
  %v8007 = vpop.f32.mrb[0].mxu0
  %v8008 = vpop.f32.mrb[0].mxu0
  %v8009 = vadd.f32 %v7858, %v8008
  %v8010 = vpop.f32.mrb[0].mxu0
  %8011 = vmatprep.mubr.bf16.mxu0 0
  %8012 = vmatmul.mubr.bf16.gmra.mrb[0].mxu0 %v7881
  %v8013 = vpop.f32.mrb[0].mxu0
  %v8014 = vadd.f32 %v7858, %v8013
  %v8015 = vpop.f32.mrb[0].mxu0
  %v8016 = vpop.f32.mrb[0].mxu0
  %v8017 = vadd.f32 %v7858, %v8016
  %v8018 = vpop.f32.mrb[0].mxu0
  %8019 = vmatprep.mubr.bf16.mxu0 0
  %8020 = vmatmul.mubr.bf16.gmra.mrb[0].mxu0 %v7884
  %v8021 = vpop.f32.mrb[0].mxu0
  %v8022 = vadd.f32 %v7858, %v8021
  %v8023 = vpop.f32.mrb[0].mxu0
  %v8024 = vpop.f32.mrb[0].mxu0
  %v8025 = vadd.f32 %v7858, %v8024
  %v8026 = vpop.f32.mrb[0].mxu0
  %8027 = vmatprep.mubr.bf16.mxu0 0
  %8028 = vmatmul.mubr.bf16.gmra.mrb[0].mxu0 %v7887
  %v8029 = vpop.f32.mrb[0].mxu0
  %v8030 = vadd.f32 %v7858, %v8029
  %v8031 = vpop.f32.mrb[0].mxu0
  %v8032 = vpop.f32.mrb[0].mxu0
  %v8033 = vadd.f32 %v7858, %v8032
  %v8034 = vpop.f32.mrb[0].mxu0
  %8035 = vmatprep.mubr.bf16.mxu0 0
  %8036 = vmatmul.mubr.bf16.gmra.mrb[0].mxu0 %v7890
  %v8037 = vpop.f32.mrb[0].mxu0
  %v8038 = vadd.f32 %v7858, %v8037
  %v8039 = vpop.f32.mrb[0].mxu0
  %v8040 = vpop.f32.mrb[0].mxu0
  %v8041 = vadd.f32 %v7858, %v8040
  %v8042 = vpop.f32.mrb[0].mxu0
  %8043 = vmatprep.mubr.bf16.mxu0 0
  %8044 = vmatmul.mubr.bf16.gmra.mrb[0].mxu0 %v7893
  %v8045 = vpop.f32.mrb[0].mxu0
  %v8046 = vadd.f32 %v7858, %v8045
  %v8047 = vpop.f32.mrb[0].mxu0
  %v8048 = vpop.f32.mrb[0].mxu0
  %v8049 = vadd.f32 %v7858, %v8048
  %v8050 = vpop.f32.mrb[0].mxu0
  %8051 = vmatprep.mubr.bf16.mxu0 0
  %8052 = vmatmul.mubr.bf16.gmra.mrb[0].mxu0 %v7896
  %v8053 = vpop.f32.mrb[0].mxu0
  %v8054 = vadd.f32 %v7858, %v8053
  %v8055 = vpop.f32.mrb[0].mxu0
  %v8056 = vpop.f32.mrb[0].mxu0
  %v8057 = vadd.f32 %v7858, %v8056
  %v8058 = vpop.f32.mrb[0].mxu0
  %8059 = vmatprep.mubr.bf16.mxu0 0
  %8060 = vmatmul.mubr.bf16.gmra.mrb[0].mxu0 %v7899
  %v8061 = vpop.f32.mrb[0].mxu0
  %v8062 = vadd.f32 %v7858, %v8061
  %v8063 = vpop.f32.mrb[0].mxu0
  %v8064 = vpop.f32.mrb[0].mxu0
  %v8065 = vadd.f32 %v7858, %v8064
  %v8066 = vpop.f32.mrb[0].mxu0
  %8067 = vmatprep.mubr.bf16.mxu0 0
  %8068 = vmatmul.mubr.bf16.gmra.mrb[0].mxu0 %v7902
  %v8069 = vpop.f32.mrb[0].mxu0
  %v8070 = vadd.f32 %v7858, %v8069
  %v8071 = vpop.f32.mrb[0].mxu0
  %v8072 = vpop.f32.mrb[0].mxu0
  %v8073 = vadd.f32 %v7858, %v8072
  %v8074 = vpop.f32.mrb[0].mxu0
  %8075 = vmatprep.mubr.bf16.mxu0 0
  %8076 = vmatmul.mubr.bf16.gmra.mrb[0].mxu0 %v7905
  %v8077 = vpop.f32.mrb[0].mxu0
  %v8078 = vadd.f32 %v7858, %v8077
  %v8079 = vpop.f32.mrb[0].mxu0
  %v8080 = vpop.f32.mrb[0].mxu0
  %v8081 = vadd.f32 %v7858, %v8080
  %v8082 = vpop.f32.mrb[0].mxu0
  %8083 = vmatprep.mubr.bf16.mxu0 0
  %8084 = vmatmul.mubr.bf16.gmra.mrb[0].mxu0 %v7908
  %v8085 = vpop.f32.mrb[0].mxu0
  %v8086 = vadd.f32 %v7858, %v8085
  %v8087 = vpop.f32.mrb[0].mxu0
  %v8088 = vpop.f32.mrb[0].mxu0
  %v8089 = vadd.f32 %v7858, %v8088
  %v8090 = vpop.f32.mrb[0].mxu0
  %8091 = vmatprep.mubr.bf16.mxu0 0
  %8092 = vmatmul.mubr.bf16.gmra.mrb[0].mxu0 %v7911
  %v8093 = vpop.f32.mrb[0].mxu0
  %v8094 = vadd.f32 %v7858, %v8093
  %v8095 = vpop.f32.mrb[0].mxu0
  %v8096 = vpop.f32.mrb[0].mxu0
  %v8097 = vadd.f32 %v7858, %v8096
  %v8098 = vpop.f32.mrb[0].mxu0
  %8099 = vmatprep.mubr.bf16.mxu0 0
  %8100 = vmatmul.mubr.bf16.gmra.mrb[0].mxu0 %v7914
  %v8101 = vpop.f32.mrb[0].mxu0
  %v8102 = vadd.f32 %v7858, %v8101
  %v8103 = vpop.f32.mrb[0].mxu0
  %v8104 = vpop.f32.mrb[0].mxu0
  %v8105 = vadd.f32 %v7858, %v8104
  %v8106 = vpop.f32.mrb[0].mxu0
  %8107 = vmatprep.mubr.bf16.mxu0 0
  %8108 = vmatmul.mubr.bf16.gmra.mrb[0].mxu0 %v7917
  %v8109 = vpop.f32.mrb[0].mxu0
  %v8110 = vadd.f32 %v7858, %v8109
  %v8111 = vpop.f32.mrb[0].mxu0
  %v8112 = vpop.f32.mrb[0].mxu0
  %v8113 = vadd.f32 %v7858, %v8112
  %v8114 = vpop.f32.mrb[0].mxu0
  %8115 = vmatprep.mubr.bf16.mxu0 0
  %8116 = vmatmul.mubr.bf16.gmra.mrb[0].mxu0 %v7920
  %v8117 = vpop.f32.mrb[0].mxu0
  %v8118 = vadd.f32 %v7858, %v8117
  %v8119 = vpop.f32.mrb[0].mxu0
  %v8120 = vpop.f32.mrb[0].mxu0
  %v8121 = vadd.f32 %v7858, %v8120
  %v8122 = vpop.f32.mrb[0].mxu0
  %8123 = vmatprep.mubr.bf16.mxu0 0
  %8124 = vmatmul.mubr.bf16.gmra.mrb[0].mxu0 %v7923
  %v8125 = vpop.f32.mrb[0].mxu0
  %v8126 = vadd.f32 %v7858, %v8125
  %v8127 = vpop.f32.mrb[0].mxu0
  %v8128 = vpop.f32.mrb[0].mxu0
  %v8129 = vadd.f32 %v7858, %v8128
  %v8130 = vpop.f32.mrb[0].mxu0
  %8131 = vmatprep.mubr.bf16.mxu0 0
  %8132 = vmatmul.mubr.bf16.gmra.mrb[0].mxu0 %v7926
  %v8133 = vpop.f32.mrb[0].mxu0
  %v8134 = vadd.f32 %v7858, %v8133
  %v8135 = vpop.f32.mrb[0].mxu0
  %v8136 = vpop.f32.mrb[0].mxu0
  %v8137 = vadd.f32 %v7858, %v8136
  %v8138 = vpop.f32.mrb[0].mxu0
  %8139 = vmatprep.mubr.bf16.mxu0 0
  %8140 = vmatmul.mubr.bf16.gmra.mrb[0].mxu0 %v7929
  %v8141 = vpop.f32.mrb[0].mxu0
  %v8142 = vadd.f32 %v7858, %v8141
  %v8143 = vpop.f32.mrb[0].mxu0
  %v8144 = vpop.f32.mrb[0].mxu0
  %v8145 = vadd.f32 %v7858, %v8144
  %v8146 = vpop.f32.mrb[0].mxu0
  %8147 = vmatprep.mubr.bf16.mxu0 0
  %8148 = vmatmul.mubr.bf16.gmra.mrb[0].mxu0 %v7932
  %v8149 = vpop.f32.mrb[0].mxu0
  %v8150 = vadd.f32 %v7858, %v8149
  %v8151 = vpop.f32.mrb[0].mxu0
  %v8152 = vpop.f32.mrb[0].mxu0
  %v8153 = vadd.f32 %v7858, %v8152
  %v8154 = vpop.f32.mrb[0].mxu0
  %8155 = vmatprep.mubr.bf16.mxu0 0
  %8156 = vmatmul.mubr.bf16.gmra.mrb[0].mxu0 %v7935
  %v8157 = vpop.f32.mrb[0].mxu0
  %v8158 = vadd.f32 %v7858, %v8157
  %v8159 = vpop.f32.mrb[0].mxu0
  %v8160 = vpop.f32.mrb[0].mxu0
  %v8161 = vadd.f32 %v7858, %v8160
  %v8162 = vpop.f32.mrb[0].mxu0
  %8163 = vmatprep.mubr.bf16.mxu0 0
  %8164 = vmatmul.mubr.bf16.gmra.mrb[0].mxu0 %v7938
  %v8165 = vpop.f32.mrb[0].mxu0
  %v8166 = vadd.f32 %v7858, %v8165
  %v8167 = vpop.f32.mrb[0].mxu0
  %v8168 = vpop.f32.mrb[0].mxu0
  %v8169 = vadd.f32 %v7858, %v8168
  %v8170 = vpop.f32.mrb[0].mxu0
  %8171 = vmatprep.mubr.bf16.mxu0 0
  %8172 = vmatmul.mubr.bf16.gmra.mrb[0].mxu0 %v7941
  %v8173 = vpop.f32.mrb[0].mxu0
  %v8174 = vadd.f32 %v7858, %v8173
  %v8175 = vpop.f32.mrb[0].mxu0
  %v8176 = vpop.f32.mrb[0].mxu0
  %v8177 = vadd.f32 %v7858, %v8176
  %v8178 = vpop.f32.mrb[0].mxu0
  %8179 = vmatprep.mubr.bf16.mxu0 0
  %8180 = vmatmul.mubr.bf16.gmra.mrb[0].mxu0 %v7944
  %v8181 = vpop.f32.mrb[0].mxu0
  %v8182 = vadd.f32 %v7858, %v8181
  %v8183 = vpop.f32.mrb[0].mxu0
  %v8184 = vpop.f32.mrb[0].mxu0
  %v8185 = vadd.f32 %v7858, %v8184
  %v8186 = vpop.f32.mrb[0].mxu0
  %8187 = vmatprep.mubr.bf16.mxu0 0
  %8188 = vmatmul.mubr.bf16.gmra.mrb[0].mxu0 %v7947
  %v8189 = vpop.f32.mrb[0].mxu0
  %v8190 = vadd.f32 %v7858, %v8189
  %v8191 = vpop.f32.mrb[0].mxu0
  %v8192 = vpop.f32.mrb[0].mxu0
  %v8193 = vadd.f32 %v7858, %v8192
  %v8194 = vpop.f32.mrb[0].mxu0
  %8195 = vmatprep.mubr.bf16.mxu0 0
  %8196 = vmatmul.mubr.bf16.gmra.mrb[0].mxu0 %v7950
  %v8197 = vpop.f32.mrb[0].mxu0
  %v8198 = vadd.f32 %v7858, %v8197
  %v8199 = vpop.f32.mrb[0].mxu0
  %v8200 = vpop.f32.mrb[0].mxu0
  %v8201 = vadd.f32 %v7858, %v8200
  %v8202 = vpop.f32.mrb[0].mxu0
  %8203 = vmatprep.mubr.bf16.mxu0 0
  %8204 = vmatmul.mubr.bf16.gmra.mrb[0].mxu0 %v7953
  %v8205 = vpop.f32.mrb[0].mxu0
  %v8206 = vadd.f32 %v7858, %v8205
  %v8207 = vpop.f32.mrb[0].mxu0
  %v8208 = vpop.f32.mrb[0].mxu0
  %v8209 = vadd.f32 %v7858, %v8208
  %v8210 = vpop.f32.mrb[0].mxu0
  %8211 = vdwg.mxu0
  %v8212 = vmul.f32 %v7990, %v7990
  %v8213 = vmul.f32 %v7993, %v7993
  %v8214 = vmul.f32 %v7998, %v7998
  %v8215 = vmul.f32 %v8001, %v8001
  %v8216 = vmul.f32 %v8006, %v8006
  %v8217 = vmul.f32 %v8009, %v8009
  %v8218 = vmul.f32 %v8014, %v8014
  %v8219 = vmul.f32 %v8017, %v8017
  %v8220 = vmul.f32 %v8022, %v8022
  %v8221 = vmul.f32 %v8025, %v8025
  %v8222 = vmul.f32 %v8030, %v8030
  %v8223 = vmul.f32 %v8033, %v8033
  %v8224 = vmul.f32 %v8038, %v8038
  %v8225 = vmul.f32 %v8041, %v8041
  %v8226 = vmul.f32 %v8046, %v8046
  %v8227 = vmul.f32 %v8049, %v8049
  %v8228 = vmul.f32 %v8054, %v8054
  %v8229 = vmul.f32 %v8057, %v8057
  %v8230 = vmul.f32 %v8062, %v8062
  %v8231 = vmul.f32 %v8065, %v8065
  %v8232 = vmul.f32 %v8070, %v8070
  %v8233 = vmul.f32 %v8073, %v8073
  %v8234 = vmul.f32 %v8078, %v8078
  %v8235 = vmul.f32 %v8081, %v8081
  %v8236 = vmul.f32 %v8086, %v8086
  %v8237 = vmul.f32 %v8089, %v8089
  %v8238 = vmul.f32 %v8094, %v8094
  %v8239 = vmul.f32 %v8097, %v8097
  %v8240 = vmul.f32 %v8102, %v8102
  %v8241 = vmul.f32 %v8105, %v8105
  %v8242 = vmul.f32 %v8110, %v8110
  %v8243 = vmul.f32 %v8113, %v8113
  %v8244 = vmul.f32 %v8118, %v8118
  %v8245 = vmul.f32 %v8121, %v8121
  %v8246 = vmul.f32 %v8126, %v8126
  %v8247 = vmul.f32 %v8129, %v8129
  %v8248 = vmul.f32 %v8134, %v8134
  %v8249 = vmul.f32 %v8137, %v8137
  %v8250 = vmul.f32 %v8142, %v8142
  %v8251 = vmul.f32 %v8145, %v8145
  %v8252 = vmul.f32 %v8150, %v8150
  %v8253 = vmul.f32 %v8153, %v8153
  %v8254 = vmul.f32 %v8158, %v8158
  %v8255 = vmul.f32 %v8161, %v8161
  %v8256 = vmul.f32 %v8166, %v8166
  %v8257 = vmul.f32 %v8169, %v8169
  %v8258 = vmul.f32 %v8174, %v8174
  %v8259 = vmul.f32 %v8177, %v8177
  %v8260 = vmul.f32 %v8182, %v8182
  %v8261 = vmul.f32 %v8185, %v8185
  %v8262 = vmul.f32 %v8190, %v8190
  %v8263 = vmul.f32 %v8193, %v8193
  %v8264 = vmul.f32 %v8198, %v8198
  %v8265 = vmul.f32 %v8201, %v8201
  %v8266 = vmul.f32 %v8206, %v8206
  %v8267 = vmul.f32 %v8209, %v8209
  %v8268 = vmul.f32 %v7990, %v8212
  %v8269 = vmul.f32 %v7993, %v8213
  %v8270 = vmul.f32 %v7998, %v8214
  %v8271 = vmul.f32 %v8001, %v8215
  %v8272 = vmul.f32 %v8006, %v8216
  %v8273 = vmul.f32 %v8009, %v8217
  %v8274 = vmul.f32 %v8014, %v8218
  %v8275 = vmul.f32 %v8017, %v8219
  %v8276 = vmul.f32 %v8022, %v8220
  %v8277 = vmul.f32 %v8025, %v8221
  %v8278 = vmul.f32 %v8030, %v8222
  %v8279 = vmul.f32 %v8033, %v8223
  %v8280 = vmul.f32 %v8038, %v8224
  %v8281 = vmul.f32 %v8041, %v8225
  %v8282 = vmul.f32 %v8046, %v8226
  %v8283 = vmul.f32 %v8049, %v8227
  %v8284 = vmul.f32 %v8054, %v8228
  %v8285 = vmul.f32 %v8057, %v8229
  %v8286 = vmul.f32 %v8062, %v8230
  %v8287 = vmul.f32 %v8065, %v8231
  %v8288 = vmul.f32 %v8070, %v8232
  %v8289 = vmul.f32 %v8073, %v8233
  %v8290 = vmul.f32 %v8078, %v8234
  %v8291 = vmul.f32 %v8081, %v8235
  %v8292 = vmul.f32 %v8086, %v8236
  %v8293 = vmul.f32 %v8089, %v8237
  %v8294 = vmul.f32 %v8094, %v8238
  %v8295 = vmul.f32 %v8097, %v8239
  %v8296 = vmul.f32 %v8102, %v8240
  %v8297 = vmul.f32 %v8105, %v8241
  %v8298 = vmul.f32 %v8110, %v8242
  %v8299 = vmul.f32 %v8113, %v8243
  %v8300 = vmul.f32 %v8118, %v8244
  %v8301 = vmul.f32 %v8121, %v8245
  %v8302 = vmul.f32 %v8126, %v8246
  %v8303 = vmul.f32 %v8129, %v8247
  %v8304 = vmul.f32 %v8134, %v8248
  %v8305 = vmul.f32 %v8137, %v8249
  %v8306 = vmul.f32 %v8142, %v8250
  %v8307 = vmul.f32 %v8145, %v8251
  %v8308 = vmul.f32 %v8150, %v8252
  %v8309 = vmul.f32 %v8153, %v8253
  %v8310 = vmul.f32 %v8158, %v8254
  %v8311 = vmul.f32 %v8161, %v8255
  %v8312 = vmul.f32 %v8166, %v8256
  %v8313 = vmul.f32 %v8169, %v8257
  %v8314 = vmul.f32 %v8174, %v8258
  %v8315 = vmul.f32 %v8177, %v8259
  %v8316 = vmul.f32 %v8182, %v8260
  %v8317 = vmul.f32 %v8185, %v8261
  %v8318 = vmul.f32 %v8190, %v8262
  %v8319 = vmul.f32 %v8193, %v8263
  %v8320 = vmul.f32 %v8198, %v8264
  %v8321 = vmul.f32 %v8201, %v8265
  %v8322 = vmul.f32 %v8206, %v8266
  %v8323 = vmul.f32 %v8209, %v8267
  %v8324 = vmul.f32 %v8268, 0.044715
  %v8325 = vmul.f32 %v8269, 0.044715
  %v8326 = vmul.f32 %v8270, 0.044715
  %v8327 = vmul.f32 %v8271, 0.044715
  %v8328 = vmul.f32 %v8272, 0.044715
  %v8329 = vmul.f32 %v8273, 0.044715
  %v8330 = vmul.f32 %v8274, 0.044715
  %v8331 = vmul.f32 %v8275, 0.044715
  %v8332 = vmul.f32 %v8276, 0.044715
  %v8333 = vmul.f32 %v8277, 0.044715
  %v8334 = vmul.f32 %v8278, 0.044715
  %v8335 = vmul.f32 %v8279, 0.044715
  %v8336 = vmul.f32 %v8280, 0.044715
  %v8337 = vmul.f32 %v8281, 0.044715
  %v8338 = vmul.f32 %v8282, 0.044715
  %v8339 = vmul.f32 %v8283, 0.044715
  %v8340 = vmul.f32 %v8284, 0.044715
  %v8341 = vmul.f32 %v8285, 0.044715
  %v8342 = vmul.f32 %v8286, 0.044715
  %v8343 = vmul.f32 %v8287, 0.044715
  %v8344 = vmul.f32 %v8288, 0.044715
  %v8345 = vmul.f32 %v8289, 0.044715
  %v8346 = vmul.f32 %v8290, 0.044715
  %v8347 = vmul.f32 %v8291, 0.044715
  %v8348 = vmul.f32 %v8292, 0.044715
  %v8349 = vmul.f32 %v8293, 0.044715
  %v8350 = vmul.f32 %v8294, 0.044715
  %v8351 = vmul.f32 %v8295, 0.044715
  %v8352 = vmul.f32 %v8296, 0.044715
  %v8353 = vmul.f32 %v8297, 0.044715
  %v8354 = vmul.f32 %v8298, 0.044715
  %v8355 = vmul.f32 %v8299, 0.044715
  %v8356 = vmul.f32 %v8300, 0.044715
  %v8357 = vmul.f32 %v8301, 0.044715
  %v8358 = vmul.f32 %v8302, 0.044715
  %v8359 = vmul.f32 %v8303, 0.044715
  %v8360 = vmul.f32 %v8304, 0.044715
  %v8361 = vmul.f32 %v8305, 0.044715
  %v8362 = vmul.f32 %v8306, 0.044715
  %v8363 = vmul.f32 %v8307, 0.044715
  %v8364 = vmul.f32 %v8308, 0.044715
  %v8365 = vmul.f32 %v8309, 0.044715
  %v8366 = vmul.f32 %v8310, 0.044715
  %v8367 = vmul.f32 %v8311, 0.044715
  %v8368 = vmul.f32 %v8312, 0.044715
  %v8369 = vmul.f32 %v8313, 0.044715
  %v8370 = vmul.f32 %v8314, 0.044715
  %v8371 = vmul.f32 %v8315, 0.044715
  %v8372 = vmul.f32 %v8316, 0.044715
  %v8373 = vmul.f32 %v8317, 0.044715
  %v8374 = vmul.f32 %v8318, 0.044715
  %v8375 = vmul.f32 %v8319, 0.044715
  %v8376 = vmul.f32 %v8320, 0.044715
  %v8377 = vmul.f32 %v8321, 0.044715
  %v8378 = vmul.f32 %v8322, 0.044715
  %v8379 = vmul.f32 %v8323, 0.044715
  %v8380 = vadd.f32 %v7990, %v8324
  %v8381 = vadd.f32 %v7993, %v8325
  %v8382 = vadd.f32 %v7998, %v8326
  %v8383 = vadd.f32 %v8001, %v8327
  %v8384 = vadd.f32 %v8006, %v8328
  %v8385 = vadd.f32 %v8009, %v8329
  %v8386 = vadd.f32 %v8014, %v8330
  %v8387 = vadd.f32 %v8017, %v8331
  %v8388 = vadd.f32 %v8022, %v8332
  %v8389 = vadd.f32 %v8025, %v8333
  %v8390 = vadd.f32 %v8030, %v8334
  %v8391 = vadd.f32 %v8033, %v8335
  %v8392 = vadd.f32 %v8038, %v8336
  %v8393 = vadd.f32 %v8041, %v8337
  %v8394 = vadd.f32 %v8046, %v8338
  %v8395 = vadd.f32 %v8049, %v8339
  %v8396 = vadd.f32 %v8054, %v8340
  %v8397 = vadd.f32 %v8057, %v8341
  %v8398 = vadd.f32 %v8062, %v8342
  %v8399 = vadd.f32 %v8065, %v8343
  %v8400 = vadd.f32 %v8070, %v8344
  %v8401 = vadd.f32 %v8073, %v8345
  %v8402 = vadd.f32 %v8078, %v8346
  %v8403 = vadd.f32 %v8081, %v8347
  %v8404 = vadd.f32 %v8086, %v8348
  %v8405 = vadd.f32 %v8089, %v8349
  %v8406 = vadd.f32 %v8094, %v8350
  %v8407 = vadd.f32 %v8097, %v8351
  %v8408 = vadd.f32 %v8102, %v8352
  %v8409 = vadd.f32 %v8105, %v8353
  %v8410 = vadd.f32 %v8110, %v8354
  %v8411 = vadd.f32 %v8113, %v8355
  %v8412 = vadd.f32 %v8118, %v8356
  %v8413 = vadd.f32 %v8121, %v8357
  %v8414 = vadd.f32 %v8126, %v8358
  %v8415 = vadd.f32 %v8129, %v8359
  %v8416 = vadd.f32 %v8134, %v8360
  %v8417 = vadd.f32 %v8137, %v8361
  %v8418 = vadd.f32 %v8142, %v8362
  %v8419 = vadd.f32 %v8145, %v8363
  %v8420 = vadd.f32 %v8150, %v8364
  %v8421 = vadd.f32 %v8153, %v8365
  %v8422 = vadd.f32 %v8158, %v8366
  %v8423 = vadd.f32 %v8161, %v8367
  %v8424 = vadd.f32 %v8166, %v8368
  %v8425 = vadd.f32 %v8169, %v8369
  %v8426 = vadd.f32 %v8174, %v8370
  %v8427 = vadd.f32 %v8177, %v8371
  %v8428 = vadd.f32 %v8182, %v8372
  %v8429 = vadd.f32 %v8185, %v8373
  %v8430 = vadd.f32 %v8190, %v8374
  %v8431 = vadd.f32 %v8193, %v8375
  %v8432 = vadd.f32 %v8198, %v8376
  %v8433 = vadd.f32 %v8201, %v8377
  %v8434 = vadd.f32 %v8206, %v8378
  %v8435 = vadd.f32 %v8209, %v8379
  %v8436 = vmul.f32 %v8380, 0.7978846
  %v8437 = vmul.f32 %v8381, 0.7978846
  %v8438 = vmul.f32 %v8382, 0.7978846
  %v8439 = vmul.f32 %v8383, 0.7978846
  %v8440 = vmul.f32 %v8384, 0.7978846
  %v8441 = vmul.f32 %v8385, 0.7978846
  %v8442 = vmul.f32 %v8386, 0.7978846
  %v8443 = vmul.f32 %v8387, 0.7978846
  %v8444 = vmul.f32 %v8388, 0.7978846
  %v8445 = vmul.f32 %v8389, 0.7978846
  %v8446 = vmul.f32 %v8390, 0.7978846
  %v8447 = vmul.f32 %v8391, 0.7978846
  %v8448 = vmul.f32 %v8392, 0.7978846
  %v8449 = vmul.f32 %v8393, 0.7978846
  %v8450 = vmul.f32 %v8394, 0.7978846
  %v8451 = vmul.f32 %v8395, 0.7978846
  %v8452 = vmul.f32 %v8396, 0.7978846
  %v8453 = vmul.f32 %v8397, 0.7978846
  %v8454 = vmul.f32 %v8398, 0.7978846
  %v8455 = vmul.f32 %v8399, 0.7978846
  %v8456 = vmul.f32 %v8400, 0.7978846
  %v8457 = vmul.f32 %v8401, 0.7978846
  %v8458 = vmul.f32 %v8402, 0.7978846
  %v8459 = vmul.f32 %v8403, 0.7978846
  %v8460 = vmul.f32 %v8404, 0.7978846
  %v8461 = vmul.f32 %v8405, 0.7978846
  %v8462 = vmul.f32 %v8406, 0.7978846
  %v8463 = vmul.f32 %v8407, 0.7978846
  %v8464 = vmul.f32 %v8408, 0.7978846
  %v8465 = vmul.f32 %v8409, 0.7978846
  %v8466 = vmul.f32 %v8410, 0.7978846
  %v8467 = vmul.f32 %v8411, 0.7978846
  %v8468 = vmul.f32 %v8412, 0.7978846
  %v8469 = vmul.f32 %v8413, 0.7978846
  %v8470 = vmul.f32 %v8414, 0.7978846
  %v8471 = vmul.f32 %v8415, 0.7978846
  %v8472 = vmul.f32 %v8416, 0.7978846
  %v8473 = vmul.f32 %v8417, 0.7978846
  %v8474 = vmul.f32 %v8418, 0.7978846
  %v8475 = vmul.f32 %v8419, 0.7978846
  %v8476 = vmul.f32 %v8420, 0.7978846
  %v8477 = vmul.f32 %v8421, 0.7978846
  %v8478 = vmul.f32 %v8422, 0.7978846
  %v8479 = vmul.f32 %v8423, 0.7978846
  %v8480 = vmul.f32 %v8424, 0.7978846
  %v8481 = vmul.f32 %v8425, 0.7978846
  %v8482 = vmul.f32 %v8426, 0.7978846
  %v8483 = vmul.f32 %v8427, 0.7978846
  %v8484 = vmul.f32 %v8428, 0.7978846
  %v8485 = vmul.f32 %v8429, 0.7978846
  %v8486 = vmul.f32 %v8430, 0.7978846
  %v8487 = vmul.f32 %v8431, 0.7978846
  %v8488 = vmul.f32 %v8432, 0.7978846
  %v8489 = vmul.f32 %v8433, 0.7978846
  %v8490 = vmul.f32 %v8434, 0.7978846
  %v8491 = vmul.f32 %v8435, 0.7978846
  %v8492 = vtanh.pop %v8436
  %v8493 = vtanh.pop %v8437
  %v8494 = vtanh.pop %v8438
  %v8495 = vtanh.pop %v8439
  %v8496 = vtanh.pop %v8440
  %v8497 = vtanh.pop %v8441
  %v8498 = vtanh.pop %v8442
  %v8499 = vtanh.pop %v8443
  %v8500 = vtanh.pop %v8444
  %v8501 = vtanh.pop %v8445
  %v8502 = vtanh.pop %v8446
  %v8503 = vtanh.pop %v8447
  %v8504 = vtanh.pop %v8448
  %v8505 = vtanh.pop %v8449
  %v8506 = vtanh.pop %v8450
  %v8507 = vtanh.pop %v8451
  %v8508 = vtanh.pop %v8452
  %v8509 = vtanh.pop %v8453
  %v8510 = vtanh.pop %v8454
  %v8511 = vtanh.pop %v8455
  %v8512 = vtanh.pop %v8456
  %v8513 = vtanh.pop %v8457
  %v8514 = vtanh.pop %v8458
  %v8515 = vtanh.pop %v8459
  %v8516 = vtanh.pop %v8460
  %v8517 = vtanh.pop %v8461
  %v8518 = vtanh.pop %v8462
  %v8519 = vtanh.pop %v8463
  %v8520 = vtanh.pop %v8464
  %v8521 = vtanh.pop %v8465
  %v8522 = vtanh.pop %v8466
  %v8523 = vtanh.pop %v8467
  %v8524 = vtanh.pop %v8468
  %v8525 = vtanh.pop %v8469
  %v8526 = vtanh.pop %v8470
  %v8527 = vtanh.pop %v8471
  %v8528 = vtanh.pop %v8472
  %v8529 = vtanh.pop %v8473
  %v8530 = vtanh.pop %v8474
  %v8531 = vtanh.pop %v8475
  %v8532 = vtanh.pop %v8476
  %v8533 = vtanh.pop %v8477
  %v8534 = vtanh.pop %v8478
  %v8535 = vtanh.pop %v8479
  %v8536 = vtanh.pop %v8480
  %v8537 = vtanh.pop %v8481
  %v8538 = vtanh.pop %v8482
  %v8539 = vtanh.pop %v8483
  %v8540 = vtanh.pop %v8484
  %v8541 = vtanh.pop %v8485
  %v8542 = vtanh.pop %v8486
  %v8543 = vtanh.pop %v8487
  %v8544 = vtanh.pop %v8488
  %v8545 = vtanh.pop %v8489
  %v8546 = vtanh.pop %v8490
  %v8547 = vtanh.pop %v8491
  %v8548 = vadd.f32 %v8492, 1.0
  %v8549 = vadd.f32 %v8493, 1.0
  %v8550 = vadd.f32 %v8494, 1.0
  %v8551 = vadd.f32 %v8495, 1.0
  %v8552 = vadd.f32 %v8496, 1.0
  %v8553 = vadd.f32 %v8497, 1.0
  %v8554 = vadd.f32 %v8498, 1.0
  %v8555 = vadd.f32 %v8499, 1.0
  %v8556 = vadd.f32 %v8500, 1.0
  %v8557 = vadd.f32 %v8501, 1.0
  %v8558 = vadd.f32 %v8502, 1.0
  %v8559 = vadd.f32 %v8503, 1.0
  %v8560 = vadd.f32 %v8504, 1.0
  %v8561 = vadd.f32 %v8505, 1.0
  %v8562 = vadd.f32 %v8506, 1.0
  %v8563 = vadd.f32 %v8507, 1.0
  %v8564 = vadd.f32 %v8508, 1.0
  %v8565 = vadd.f32 %v8509, 1.0
  %v8566 = vadd.f32 %v8510, 1.0
  %v8567 = vadd.f32 %v8511, 1.0
  %v8568 = vadd.f32 %v8512, 1.0
  %v8569 = vadd.f32 %v8513, 1.0
  %v8570 = vadd.f32 %v8514, 1.0
  %v8571 = vadd.f32 %v8515, 1.0
  %v8572 = vadd.f32 %v8516, 1.0
  %v8573 = vadd.f32 %v8517, 1.0
  %v8574 = vadd.f32 %v8518, 1.0
  %v8575 = vadd.f32 %v8519, 1.0
  %v8576 = vadd.f32 %v8520, 1.0
  %v8577 = vadd.f32 %v8521, 1.0
  %v8578 = vadd.f32 %v8522, 1.0
  %v8579 = vadd.f32 %v8523, 1.0
  %v8580 = vadd.f32 %v8524, 1.0
  %v8581 = vadd.f32 %v8525, 1.0
  %v8582 = vadd.f32 %v8526, 1.0
  %v8583 = vadd.f32 %v8527, 1.0
  %v8584 = vadd.f32 %v8528, 1.0
  %v8585 = vadd.f32 %v8529, 1.0
  %v8586 = vadd.f32 %v8530, 1.0
  %v8587 = vadd.f32 %v8531, 1.0
  %v8588 = vadd.f32 %v8532, 1.0
  %v8589 = vadd.f32 %v8533, 1.0
  %v8590 = vadd.f32 %v8534, 1.0
  %v8591 = vadd.f32 %v8535, 1.0
  %v8592 = vadd.f32 %v8536, 1.0
  %v8593 = vadd.f32 %v8537, 1.0
  %v8594 = vadd.f32 %v8538, 1.0
  %v8595 = vadd.f32 %v8539, 1.0
  %v8596 = vadd.f32 %v8540, 1.0
  %v8597 = vadd.f32 %v8541, 1.0
  %v8598 = vadd.f32 %v8542, 1.0
  %v8599 = vadd.f32 %v8543, 1.0
  %v8600 = vadd.f32 %v8544, 1.0
  %v8601 = vadd.f32 %v8545, 1.0
  %v8602 = vadd.f32 %v8546, 1.0
  %v8603 = vadd.f32 %v8547, 1.0
  %v8604 = vmul.f32 %v8548, 0.5
  %v8605 = vmul.f32 %v8549, 0.5
  %v8606 = vmul.f32 %v8550, 0.5
  %v8607 = vmul.f32 %v8551, 0.5
  %v8608 = vmul.f32 %v8552, 0.5
  %v8609 = vmul.f32 %v8553, 0.5
  %v8610 = vmul.f32 %v8554, 0.5
  %v8611 = vmul.f32 %v8555, 0.5
  %v8612 = vmul.f32 %v8556, 0.5
  %v8613 = vmul.f32 %v8557, 0.5
  %v8614 = vmul.f32 %v8558, 0.5
  %v8615 = vmul.f32 %v8559, 0.5
  %v8616 = vmul.f32 %v8560, 0.5
  %v8617 = vmul.f32 %v8561, 0.5
  %v8618 = vmul.f32 %v8562, 0.5
  %v8619 = vmul.f32 %v8563, 0.5
  %v8620 = vmul.f32 %v8564, 0.5
  %v8621 = vmul.f32 %v8565, 0.5
  %v8622 = vmul.f32 %v8566, 0.5
  %v8623 = vmul.f32 %v8567, 0.5
  %v8624 = vmul.f32 %v8568, 0.5
  %v8625 = vmul.f32 %v8569, 0.5
  %v8626 = vmul.f32 %v8570, 0.5
  %v8627 = vmul.f32 %v8571, 0.5
  %v8628 = vmul.f32 %v8572, 0.5
  %v8629 = vmul.f32 %v8573, 0.5
  %v8630 = vmul.f32 %v8574, 0.5
  %v8631 = vmul.f32 %v8575, 0.5
  %v8632 = vmul.f32 %v8576, 0.5
  %v8633 = vmul.f32 %v8577, 0.5
  %v8634 = vmul.f32 %v8578, 0.5
  %v8635 = vmul.f32 %v8579, 0.5
  %v8636 = vmul.f32 %v8580, 0.5
  %v8637 = vmul.f32 %v8581, 0.5
  %v8638 = vmul.f32 %v8582, 0.5
  %v8639 = vmul.f32 %v8583, 0.5
  %v8640 = vmul.f32 %v8584, 0.5
  %v8641 = vmul.f32 %v8585, 0.5
  %v8642 = vmul.f32 %v8586, 0.5
  %v8643 = vmul.f32 %v8587, 0.5
  %v8644 = vmul.f32 %v8588, 0.5
  %v8645 = vmul.f32 %v8589, 0.5
  %v8646 = vmul.f32 %v8590, 0.5
  %v8647 = vmul.f32 %v8591, 0.5
  %v8648 = vmul.f32 %v8592, 0.5
  %v8649 = vmul.f32 %v8593, 0.5
  %v8650 = vmul.f32 %v8594, 0.5
  %v8651 = vmul.f32 %v8595, 0.5
  %v8652 = vmul.f32 %v8596, 0.5
  %v8653 = vmul.f32 %v8597, 0.5
  %v8654 = vmul.f32 %v8598, 0.5
  %v8655 = vmul.f32 %v8599, 0.5
  %v8656 = vmul.f32 %v8600, 0.5
  %v8657 = vmul.f32 %v8601, 0.5
  %v8658 = vmul.f32 %v8602, 0.5
  %v8659 = vmul.f32 %v8603, 0.5
  %v8660 = vmul.f32 %v7990, %v8604
  %v8661 = vmul.f32 %v7993, %v8605
  %v8662 = vmul.f32 %v7998, %v8606
  %v8663 = vmul.f32 %v8001, %v8607
  %v8664 = vmul.f32 %v8006, %v8608
  %v8665 = vmul.f32 %v8009, %v8609
  %v8666 = vmul.f32 %v8014, %v8610
  %v8667 = vmul.f32 %v8017, %v8611
  %v8668 = vmul.f32 %v8022, %v8612
  %v8669 = vmul.f32 %v8025, %v8613
  %v8670 = vmul.f32 %v8030, %v8614
  %v8671 = vmul.f32 %v8033, %v8615
  %v8672 = vmul.f32 %v8038, %v8616
  %v8673 = vmul.f32 %v8041, %v8617
  %v8674 = vmul.f32 %v8046, %v8618
  %v8675 = vmul.f32 %v8049, %v8619
  %v8676 = vmul.f32 %v8054, %v8620
  %v8677 = vmul.f32 %v8057, %v8621
  %v8678 = vmul.f32 %v8062, %v8622
  %v8679 = vmul.f32 %v8065, %v8623
  %v8680 = vmul.f32 %v8070, %v8624
  %v8681 = vmul.f32 %v8073, %v8625
  %v8682 = vmul.f32 %v8078, %v8626
  %v8683 = vmul.f32 %v8081, %v8627
  %v8684 = vmul.f32 %v8086, %v8628
  %v8685 = vmul.f32 %v8089, %v8629
  %v8686 = vmul.f32 %v8094, %v8630
  %v8687 = vmul.f32 %v8097, %v8631
  %v8688 = vmul.f32 %v8102, %v8632
  %v8689 = vmul.f32 %v8105, %v8633
  %v8690 = vmul.f32 %v8110, %v8634
  %v8691 = vmul.f32 %v8113, %v8635
  %v8692 = vmul.f32 %v8118, %v8636
  %v8693 = vmul.f32 %v8121, %v8637
  %v8694 = vmul.f32 %v8126, %v8638
  %v8695 = vmul.f32 %v8129, %v8639
  %v8696 = vmul.f32 %v8134, %v8640
  %v8697 = vmul.f32 %v8137, %v8641
  %v8698 = vmul.f32 %v8142, %v8642
  %v8699 = vmul.f32 %v8145, %v8643
  %v8700 = vmul.f32 %v8150, %v8644
  %v8701 = vmul.f32 %v8153, %v8645
  %v8702 = vmul.f32 %v8158, %v8646
  %v8703 = vmul.f32 %v8161, %v8647
  %v8704 = vmul.f32 %v8166, %v8648
  %v8705 = vmul.f32 %v8169, %v8649
  %v8706 = vmul.f32 %v8174, %v8650
  %v8707 = vmul.f32 %v8177, %v8651
  %v8708 = vmul.f32 %v8182, %v8652
  %v8709 = vmul.f32 %v8185, %v8653
  %v8710 = vmul.f32 %v8190, %v8654
  %v8711 = vmul.f32 %v8193, %v8655
  %v8712 = vmul.f32 %v8198, %v8656
  %v8713 = vmul.f32 %v8201, %v8657
  %v8714 = vmul.f32 %v8206, %v8658
  %v8715 = vmul.f32 %v8209, %v8659
  %v8716 = vpack.c.bf16 %v8661, %v8660
  %v8717 = vpack.c.bf16 %v8663, %v8662
  %v8718 = vpack.c.bf16 %v8665, %v8664
  %v8719 = vpack.c.bf16 %v8667, %v8666
  %v8720 = vpack.c.bf16 %v8669, %v8668
  %v8721 = vpack.c.bf16 %v8671, %v8670
  %v8722 = vpack.c.bf16 %v8673, %v8672
  %v8723 = vpack.c.bf16 %v8675, %v8674
  %v8724 = vpack.c.bf16 %v8677, %v8676
  %v8725 = vpack.c.bf16 %v8679, %v8678
  %v8726 = vpack.c.bf16 %v8681, %v8680
  %v8727 = vpack.c.bf16 %v8683, %v8682
  %v8728 = vpack.c.bf16 %v8685, %v8684
  %v8729 = vpack.c.bf16 %v8687, %v8686
  %v8730 = vpack.c.bf16 %v8689, %v8688
  %v8731 = vpack.c.bf16 %v8691, %v8690
  %v8732 = vpack.c.bf16 %v8693, %v8692
  %v8733 = vpack.c.bf16 %v8695, %v8694
  %v8734 = vpack.c.bf16 %v8697, %v8696
  %v8735 = vpack.c.bf16 %v8699, %v8698
  %v8736 = vpack.c.bf16 %v8701, %v8700
  %v8737 = vpack.c.bf16 %v8703, %v8702
  %v8738 = vpack.c.bf16 %v8705, %v8704
  %v8739 = vpack.c.bf16 %v8707, %v8706
  %v8740 = vpack.c.bf16 %v8709, %v8708
  %v8741 = vpack.c.bf16 %v8711, %v8710
  %v8742 = vpack.c.bf16 %v8713, %v8712
  %v8743 = vpack.c.bf16 %v8715, %v8714
  %v8744 = vld [vmem:[%s5] sm:$0xf]
  %v8745 = vld [vmem:[%s5 + $0x4] sm:$0xf]
  %v8746 = vld [vmem:[%s5 + $0x8] sm:$0xf]
  %v8747 = vld [vmem:[%s5 + $0xc] sm:$0xf]
  %v8748 = vld [vmem:[%s5 + $0x10] sm:$0xf]
  %v8749 = vld [vmem:[%s5 + $0x14] sm:$0xf]
  %v8750 = vld [vmem:[%s5 + $0x18] sm:$0xf]
  %v8751 = vld [vmem:[%s5 + $0x1c] sm:$0xf]
  %v8752 = vld [vmem:[%s5 + $0x20] sm:$0xf]
  %v8753 = vld [vmem:[%s5 + $0x24] sm:$0xf]
  %v8754 = vld [vmem:[%s5 + $0x28] sm:$0xf]
  %v8755 = vld [vmem:[%s5 + $0x2c] sm:$0xf]
  %v8756 = vld [vmem:[%s5 + $0x30] sm:$0xf]
  %v8757 = vld [vmem:[%s5 + $0x34] sm:$0xf]
  %v8758 = vld [vmem:[%s5 + $0x38] sm:$0xf]
  %v8759 = vld [vmem:[%s5 + $0x3c] sm:$0xf]
  %v8760 = vlaneseq
  %v8761 = vshrl.u32 %v8760, 7
  %v8762 = vsub.s32 5, %v8761
  %v8763 = vrot.slane %v83, %v8762
  %v8780 = vunpack.c.l.b16 %v8744
  %v8781 = vunpack.c.l.b16 %v8745
  %v8782 = vunpack.c.l.b16 %v8746
  %v8783 = vunpack.c.l.b16 %v8747
  %v8784 = vunpack.c.l.b16 %v8748
  %v8785 = vunpack.c.l.b16 %v8749
  %v8786 = vunpack.c.l.b16 %v8750
  %v8787 = vunpack.c.l.b16 %v8751
  %v8788 = vunpack.c.l.b16 %v8752
  %v8789 = vunpack.c.l.b16 %v8753
  %v8790 = vunpack.c.l.b16 %v8754
  %v8791 = vunpack.c.l.b16 %v8755
  %v8792 = vunpack.c.l.b16 %v8756
  %v8793 = vunpack.c.l.b16 %v8757
  %v8794 = vunpack.c.l.b16 %v8758
  %v8795 = vunpack.c.l.b16 %v8759
  %v8796 = vpack.c.b16 %v8781, %v8780
  %v8797 = vpack.c.b16 %v8783, %v8782
  %v8798 = vpack.c.b16 %v8785, %v8784
  %v8799 = vpack.c.b16 %v8787, %v8786
  %v8800 = vpack.c.b16 %v8789, %v8788
  %v8801 = vpack.c.b16 %v8791, %v8790
  %v8802 = vpack.c.b16 %v8793, %v8792
  %v8803 = vpack.c.b16 %v8795, %v8794
  %8812 = vmatprep.subr.bf16.mxu0 0
  %8813 = vmatpush1.bf16.msra.mxu0 %v8796
  %8814 = vmatprep.subr.bf16.mxu0 0
  %8815 = vmatpush1.bf16.msra.mxu0 %v8797
  %8816 = vmatprep.subr.bf16.mxu0 0
  %8817 = vmatpush1.bf16.msra.mxu0 %v8798
  %8818 = vmatprep.subr.bf16.mxu0 0
  %8819 = vmatpush1.bf16.msra.mxu0 %v8799
  %8820 = vmatprep.subr.bf16.mxu0 0
  %8821 = vmatpush1.bf16.msra.mxu0 %v8800
  %8822 = vmatprep.subr.bf16.mxu0 0
  %8823 = vmatpush1.bf16.msra.mxu0 %v8801
  %8824 = vmatprep.subr.bf16.mxu0 0
  %8825 = vmatpush1.bf16.msra.mxu0 %v8802
  %8826 = vmatprep.subr.bf16.mxu0 0
  %8827 = vmatpush1.bf16.msra.mxu0 %v8803
  %8828 = vmatprep.subr.bf16.mxu0 0
  %8829 = vmatpush1.bf16.msra.mxu0 0
  %8830 = vmatprep.subr.bf16.mxu0 0
  %8831 = vmatpush1.bf16.msra.mxu0 0
  %8832 = vmatprep.subr.bf16.mxu0 0
  %8833 = vmatpush1.bf16.msra.mxu0 0
  %8834 = vmatprep.subr.bf16.mxu0 0
  %8835 = vmatpush1.bf16.msra.mxu0 0
  %8836 = vmatprep.subr.bf16.mxu0 0
  %8837 = vmatpush1.bf16.msra.mxu0 0
  %8838 = vmatprep.subr.bf16.mxu0 0
  %8839 = vmatpush1.bf16.msra.mxu0 0
  %8840 = vmatprep.subr.bf16.mxu0 0
  %8841 = vmatpush1.bf16.msra.mxu0 0
  %8842 = vmatprep.subr.bf16.mxu0 0
  %8843 = vmatpush1.bf16.msra.mxu0 0
  %8844 = vmatprep.mubr.bf16.mxu0 0
  %8845 = vmatmul.mubr.bf16.gmra.mrb[0].mxu0 %v8716
  %v8846 = vpop.f32.mrb[0].mxu0
  %v8847 = vadd.f32 %v8763, %v8846
  %v8848 = vpop.f32.mrb[0].mxu0
  %v8849 = vpop.f32.mrb[0].mxu0
  %v8850 = vadd.f32 %v8763, %v8849
  %v8851 = vpop.f32.mrb[0].mxu0
  %8852 = vmatprep.mubr.bf16.mxu0 0
  %8853 = vmatmul.mubr.bf16.gmra.mrb[0].mxu0 %v8717
  %v8854 = vpop.f32.mrb[0].mxu0
  %v8855 = vadd.f32 %v8763, %v8854
  %v8856 = vpop.f32.mrb[0].mxu0
  %v8857 = vpop.f32.mrb[0].mxu0
  %v8858 = vadd.f32 %v8763, %v8857
  %v8859 = vpop.f32.mrb[0].mxu0
  %8860 = vmatprep.mubr.bf16.mxu0 0
  %8861 = vmatmul.mubr.bf16.gmra.mrb[0].mxu0 %v8718
  %v8862 = vpop.f32.mrb[0].mxu0
  %v8863 = vadd.f32 %v8763, %v8862
  %v8864 = vpop.f32.mrb[0].mxu0
  %v8865 = vpop.f32.mrb[0].mxu0
  %v8866 = vadd.f32 %v8763, %v8865
  %v8867 = vpop.f32.mrb[0].mxu0
  %8868 = vmatprep.mubr.bf16.mxu0 0
  %8869 = vmatmul.mubr.bf16.gmra.mrb[0].mxu0 %v8719
  %v8870 = vpop.f32.mrb[0].mxu0
  %v8871 = vadd.f32 %v8763, %v8870
  %v8872 = vpop.f32.mrb[0].mxu0
  %v8873 = vpop.f32.mrb[0].mxu0
  %v8874 = vadd.f32 %v8763, %v8873
  %v8875 = vpop.f32.mrb[0].mxu0
  %8876 = vmatprep.mubr.bf16.mxu0 0
  %8877 = vmatmul.mubr.bf16.gmra.mrb[0].mxu0 %v8720
  %v8878 = vpop.f32.mrb[0].mxu0
  %v8879 = vadd.f32 %v8763, %v8878
  %v8880 = vpop.f32.mrb[0].mxu0
  %v8881 = vpop.f32.mrb[0].mxu0
  %v8882 = vadd.f32 %v8763, %v8881
  %v8883 = vpop.f32.mrb[0].mxu0
  %8884 = vmatprep.mubr.bf16.mxu0 0
  %8885 = vmatmul.mubr.bf16.gmra.mrb[0].mxu0 %v8721
  %v8886 = vpop.f32.mrb[0].mxu0
  %v8887 = vadd.f32 %v8763, %v8886
  %v8888 = vpop.f32.mrb[0].mxu0
  %v8889 = vpop.f32.mrb[0].mxu0
  %v8890 = vadd.f32 %v8763, %v8889
  %v8891 = vpop.f32.mrb[0].mxu0
  %8892 = vmatprep.mubr.bf16.mxu0 0
  %8893 = vmatmul.mubr.bf16.gmra.mrb[0].mxu0 %v8722
  %v8894 = vpop.f32.mrb[0].mxu0
  %v8895 = vadd.f32 %v8763, %v8894
  %v8896 = vpop.f32.mrb[0].mxu0
  %v8897 = vpop.f32.mrb[0].mxu0
  %v8898 = vadd.f32 %v8763, %v8897
  %v8899 = vpop.f32.mrb[0].mxu0
  %8900 = vmatprep.mubr.bf16.mxu0 0
  %8901 = vmatmul.mubr.bf16.gmra.mrb[0].mxu0 %v8723
  %v8902 = vpop.f32.mrb[0].mxu0
  %v8903 = vadd.f32 %v8763, %v8902
  %v8904 = vpop.f32.mrb[0].mxu0
  %v8905 = vpop.f32.mrb[0].mxu0
  %v8906 = vadd.f32 %v8763, %v8905
  %v8907 = vpop.f32.mrb[0].mxu0
  %8908 = vmatprep.mubr.bf16.mxu0 0
  %8909 = vmatmul.mubr.bf16.gmra.mrb[0].mxu0 %v8724
  %v8910 = vpop.f32.mrb[0].mxu0
  %v8911 = vadd.f32 %v8763, %v8910
  %v8912 = vpop.f32.mrb[0].mxu0
  %v8913 = vpop.f32.mrb[0].mxu0
  %v8914 = vadd.f32 %v8763, %v8913
  %v8915 = vpop.f32.mrb[0].mxu0
  %8916 = vmatprep.mubr.bf16.mxu0 0
  %8917 = vmatmul.mubr.bf16.gmra.mrb[0].mxu0 %v8725
  %v8918 = vpop.f32.mrb[0].mxu0
  %v8919 = vadd.f32 %v8763, %v8918
  %v8920 = vpop.f32.mrb[0].mxu0
  %v8921 = vpop.f32.mrb[0].mxu0
  %v8922 = vadd.f32 %v8763, %v8921
  %v8923 = vpop.f32.mrb[0].mxu0
  %8924 = vmatprep.mubr.bf16.mxu0 0
  %8925 = vmatmul.mubr.bf16.gmra.mrb[0].mxu0 %v8726
  %v8926 = vpop.f32.mrb[0].mxu0
  %v8927 = vadd.f32 %v8763, %v8926
  %v8928 = vpop.f32.mrb[0].mxu0
  %v8929 = vpop.f32.mrb[0].mxu0
  %v8930 = vadd.f32 %v8763, %v8929
  %v8931 = vpop.f32.mrb[0].mxu0
  %8932 = vmatprep.mubr.bf16.mxu0 0
  %8933 = vmatmul.mubr.bf16.gmra.mrb[0].mxu0 %v8727
  %v8934 = vpop.f32.mrb[0].mxu0
  %v8935 = vadd.f32 %v8763, %v8934
  %v8936 = vpop.f32.mrb[0].mxu0
  %v8937 = vpop.f32.mrb[0].mxu0
  %v8938 = vadd.f32 %v8763, %v8937
  %v8939 = vpop.f32.mrb[0].mxu0
  %8940 = vmatprep.mubr.bf16.mxu0 0
  %8941 = vmatmul.mubr.bf16.gmra.mrb[0].mxu0 %v8728
  %v8942 = vpop.f32.mrb[0].mxu0
  %v8943 = vadd.f32 %v8763, %v8942
  %v8944 = vpop.f32.mrb[0].mxu0
  %v8945 = vpop.f32.mrb[0].mxu0
  %v8946 = vadd.f32 %v8763, %v8945
  %v8947 = vpop.f32.mrb[0].mxu0
  %8948 = vmatprep.mubr.bf16.mxu0 0
  %8949 = vmatmul.mubr.bf16.gmra.mrb[0].mxu0 %v8729
  %v8950 = vpop.f32.mrb[0].mxu0
  %v8951 = vadd.f32 %v8763, %v8950
  %v8952 = vpop.f32.mrb[0].mxu0
  %v8953 = vpop.f32.mrb[0].mxu0
  %v8954 = vadd.f32 %v8763, %v8953
  %v8955 = vpop.f32.mrb[0].mxu0
  %8956 = vmatprep.mubr.bf16.mxu0 0
  %8957 = vmatmul.mubr.bf16.gmra.mrb[0].mxu0 %v8730
  %v8958 = vpop.f32.mrb[0].mxu0
  %v8959 = vadd.f32 %v8763, %v8958
  %v8960 = vpop.f32.mrb[0].mxu0
  %v8961 = vpop.f32.mrb[0].mxu0
  %v8962 = vadd.f32 %v8763, %v8961
  %v8963 = vpop.f32.mrb[0].mxu0
  %8964 = vmatprep.mubr.bf16.mxu0 0
  %8965 = vmatmul.mubr.bf16.gmra.mrb[0].mxu0 %v8731
  %v8966 = vpop.f32.mrb[0].mxu0
  %v8967 = vadd.f32 %v8763, %v8966
  %v8968 = vpop.f32.mrb[0].mxu0
  %v8969 = vpop.f32.mrb[0].mxu0
  %v8970 = vadd.f32 %v8763, %v8969
  %v8971 = vpop.f32.mrb[0].mxu0
  %8972 = vmatprep.mubr.bf16.mxu0 0
  %8973 = vmatmul.mubr.bf16.gmra.mrb[0].mxu0 %v8732
  %v8974 = vpop.f32.mrb[0].mxu0
  %v8975 = vadd.f32 %v8763, %v8974
  %v8976 = vpop.f32.mrb[0].mxu0
  %v8977 = vpop.f32.mrb[0].mxu0
  %v8978 = vadd.f32 %v8763, %v8977
  %v8979 = vpop.f32.mrb[0].mxu0
  %8980 = vmatprep.mubr.bf16.mxu0 0
  %8981 = vmatmul.mubr.bf16.gmra.mrb[0].mxu0 %v8733
  %v8982 = vpop.f32.mrb[0].mxu0
  %v8983 = vadd.f32 %v8763, %v8982
  %v8984 = vpop.f32.mrb[0].mxu0
  %v8985 = vpop.f32.mrb[0].mxu0
  %v8986 = vadd.f32 %v8763, %v8985
  %v8987 = vpop.f32.mrb[0].mxu0
  %8988 = vmatprep.mubr.bf16.mxu0 0
  %8989 = vmatmul.mubr.bf16.gmra.mrb[0].mxu0 %v8734
  %v8990 = vpop.f32.mrb[0].mxu0
  %v8991 = vadd.f32 %v8763, %v8990
  %v8992 = vpop.f32.mrb[0].mxu0
  %v8993 = vpop.f32.mrb[0].mxu0
  %v8994 = vadd.f32 %v8763, %v8993
  %v8995 = vpop.f32.mrb[0].mxu0
  %8996 = vmatprep.mubr.bf16.mxu0 0
  %8997 = vmatmul.mubr.bf16.gmra.mrb[0].mxu0 %v8735
  %v8998 = vpop.f32.mrb[0].mxu0
  %v8999 = vadd.f32 %v8763, %v8998
  %v9000 = vpop.f32.mrb[0].mxu0
  %v9001 = vpop.f32.mrb[0].mxu0
  %v9002 = vadd.f32 %v8763, %v9001
  %v9003 = vpop.f32.mrb[0].mxu0
  %9004 = vmatprep.mubr.bf16.mxu0 0
  %9005 = vmatmul.mubr.bf16.gmra.mrb[0].mxu0 %v8736
  %v9006 = vpop.f32.mrb[0].mxu0
  %v9007 = vadd.f32 %v8763, %v9006
  %v9008 = vpop.f32.mrb[0].mxu0
  %v9009 = vpop.f32.mrb[0].mxu0
  %v9010 = vadd.f32 %v8763, %v9009
  %v9011 = vpop.f32.mrb[0].mxu0
  %9012 = vmatprep.mubr.bf16.mxu0 0
  %9013 = vmatmul.mubr.bf16.gmra.mrb[0].mxu0 %v8737
  %v9014 = vpop.f32.mrb[0].mxu0
  %v9015 = vadd.f32 %v8763, %v9014
  %v9016 = vpop.f32.mrb[0].mxu0
  %v9017 = vpop.f32.mrb[0].mxu0
  %v9018 = vadd.f32 %v8763, %v9017
  %v9019 = vpop.f32.mrb[0].mxu0
  %9020 = vmatprep.mubr.bf16.mxu0 0
  %9021 = vmatmul.mubr.bf16.gmra.mrb[0].mxu0 %v8738
  %v9022 = vpop.f32.mrb[0].mxu0
  %v9023 = vadd.f32 %v8763, %v9022
  %v9024 = vpop.f32.mrb[0].mxu0
  %v9025 = vpop.f32.mrb[0].mxu0
  %v9026 = vadd.f32 %v8763, %v9025
  %v9027 = vpop.f32.mrb[0].mxu0
  %9028 = vmatprep.mubr.bf16.mxu0 0
  %9029 = vmatmul.mubr.bf16.gmra.mrb[0].mxu0 %v8739
  %v9030 = vpop.f32.mrb[0].mxu0
  %v9031 = vadd.f32 %v8763, %v9030
  %v9032 = vpop.f32.mrb[0].mxu0
  %v9033 = vpop.f32.mrb[0].mxu0
  %v9034 = vadd.f32 %v8763, %v9033
  %v9035 = vpop.f32.mrb[0].mxu0
  %9036 = vmatprep.mubr.bf16.mxu0 0
  %9037 = vmatmul.mubr.bf16.gmra.mrb[0].mxu0 %v8740
  %v9038 = vpop.f32.mrb[0].mxu0
  %v9039 = vadd.f32 %v8763, %v9038
  %v9040 = vpop.f32.mrb[0].mxu0
  %v9041 = vpop.f32.mrb[0].mxu0
  %v9042 = vadd.f32 %v8763, %v9041
  %v9043 = vpop.f32.mrb[0].mxu0
  %9044 = vmatprep.mubr.bf16.mxu0 0
  %9045 = vmatmul.mubr.bf16.gmra.mrb[0].mxu0 %v8741
  %v9046 = vpop.f32.mrb[0].mxu0
  %v9047 = vadd.f32 %v8763, %v9046
  %v9048 = vpop.f32.mrb[0].mxu0
  %v9049 = vpop.f32.mrb[0].mxu0
  %v9050 = vadd.f32 %v8763, %v9049
  %v9051 = vpop.f32.mrb[0].mxu0
  %9052 = vmatprep.mubr.bf16.mxu0 0
  %9053 = vmatmul.mubr.bf16.gmra.mrb[0].mxu0 %v8742
  %v9054 = vpop.f32.mrb[0].mxu0
  %v9055 = vadd.f32 %v8763, %v9054
  %v9056 = vpop.f32.mrb[0].mxu0
  %v9057 = vpop.f32.mrb[0].mxu0
  %v9058 = vadd.f32 %v8763, %v9057
  %v9059 = vpop.f32.mrb[0].mxu0
  %9060 = vmatprep.mubr.bf16.mxu0 0
  %9061 = vmatmul.mubr.bf16.gmra.mrb[0].mxu0 %v8743
  %v9062 = vpop.f32.mrb[0].mxu0
  %v9063 = vadd.f32 %v8763, %v9062
  %v9064 = vpop.f32.mrb[0].mxu0
  %v9065 = vpop.f32.mrb[0].mxu0
  %v9066 = vadd.f32 %v8763, %v9065
  %v9067 = vpop.f32.mrb[0].mxu0
  %9068 = vdwg.mxu0
  %v9069 = vadd.f32 %v8847, %v6919
  %v9070 = vadd.f32 %v8850, %v6920
  %v9071 = vadd.f32 %v8855, %v6921
  %v9072 = vadd.f32 %v8858, %v6922
  %v9073 = vadd.f32 %v8863, %v6923
  %v9074 = vadd.f32 %v8866, %v6924
  %v9075 = vadd.f32 %v8871, %v6925
  %v9076 = vadd.f32 %v8874, %v6926
  %v9077 = vadd.f32 %v8879, %v6927
  %v9078 = vadd.f32 %v8882, %v6928
  %v9079 = vadd.f32 %v8887, %v6929
  %v9080 = vadd.f32 %v8890, %v6930
  %v9081 = vadd.f32 %v8895, %v6931
  %v9082 = vadd.f32 %v8898, %v6932
  %v9083 = vadd.f32 %v8903, %v6933
  %v9084 = vadd.f32 %v8906, %v6934
  %v9085 = vadd.f32 %v8911, %v6935
  %v9086 = vadd.f32 %v8914, %v6936
  %v9087 = vadd.f32 %v8919, %v6937
  %v9088 = vadd.f32 %v8922, %v6938
  %v9089 = vadd.f32 %v8927, %v6939
  %v9090 = vadd.f32 %v8930, %v6940
  %v9091 = vadd.f32 %v8935, %v6941
  %v9092 = vadd.f32 %v8938, %v6942
  %v9093 = vadd.f32 %v8943, %v6943
  %v9094 = vadd.f32 %v8946, %v6944
  %v9095 = vadd.f32 %v8951, %v6945
  %v9096 = vadd.f32 %v8954, %v6946
  %v9097 = vadd.f32 %v8959, %v6947
  %v9098 = vadd.f32 %v8962, %v6948
  %v9099 = vadd.f32 %v8967, %v6949
  %v9100 = vadd.f32 %v8970, %v6950
  %v9101 = vadd.f32 %v8975, %v6951
  %v9102 = vadd.f32 %v8978, %v6952
  %v9103 = vadd.f32 %v8983, %v6953
  %v9104 = vadd.f32 %v8986, %v6954
  %v9105 = vadd.f32 %v8991, %v6955
  %v9106 = vadd.f32 %v8994, %v6956
  %v9107 = vadd.f32 %v8999, %v6957
  %v9108 = vadd.f32 %v9002, %v6958
  %v9109 = vadd.f32 %v9007, %v6959
  %v9110 = vadd.f32 %v9010, %v6960
  %v9111 = vadd.f32 %v9015, %v6961
  %v9112 = vadd.f32 %v9018, %v6962
  %v9113 = vadd.f32 %v9023, %v6963
  %v9114 = vadd.f32 %v9026, %v6964
  %v9115 = vadd.f32 %v9031, %v6965
  %v9116 = vadd.f32 %v9034, %v6966
  %v9117 = vadd.f32 %v9039, %v6967
  %v9118 = vadd.f32 %v9042, %v6968
  %v9119 = vadd.f32 %v9047, %v6969
  %v9120 = vadd.f32 %v9050, %v6970
  %v9121 = vadd.f32 %v9055, %v6971
  %v9122 = vadd.f32 %v9058, %v6972
  %v9123 = vadd.f32 %v9063, %v6973
  %v9124 = vadd.f32 %v9066, %v6974
  %9125 = vst.msk [vmem:[%s7] sm:$0xff] %vm84, %v9069
  %9126 = vst.msk [vmem:[%s7 + $0x8] sm:$0xff] %vm84, %v9070
  %9127 = vst.msk [vmem:[%s7 + $0x10] sm:$0xff] %vm84, %v9071
  %9128 = vst.msk [vmem:[%s7 + $0x18] sm:$0xff] %vm84, %v9072
  %9129 = vst.msk [vmem:[%s7 + $0x20] sm:$0xff] %vm84, %v9073
  %9130 = vst.msk [vmem:[%s7 + $0x28] sm:$0xff] %vm84, %v9074
  %9131 = vst.msk [vmem:[%s7 + $0x30] sm:$0xff] %vm84, %v9075
  %9132 = vst.msk [vmem:[%s7 + $0x38] sm:$0xff] %vm84, %v9076
  %9133 = vst.msk [vmem:[%s7 + $0x40] sm:$0xff] %vm84, %v9077
  %9134 = vst.msk [vmem:[%s7 + $0x48] sm:$0xff] %vm84, %v9078
  %9135 = vst.msk [vmem:[%s7 + $0x50] sm:$0xff] %vm84, %v9079
  %9136 = vst.msk [vmem:[%s7 + $0x58] sm:$0xff] %vm84, %v9080
  %9137 = vst.msk [vmem:[%s7 + $0x60] sm:$0xff] %vm84, %v9081
  %9138 = vst.msk [vmem:[%s7 + $0x68] sm:$0xff] %vm84, %v9082
  %9139 = vst.msk [vmem:[%s7 + $0x70] sm:$0xff] %vm84, %v9083
  %9140 = vst.msk [vmem:[%s7 + $0x78] sm:$0xff] %vm84, %v9084
  %9141 = vst.msk [vmem:[%s7 + $0x80] sm:$0xff] %vm84, %v9085
  %9142 = vst.msk [vmem:[%s7 + $0x88] sm:$0xff] %vm84, %v9086
  %9143 = vst.msk [vmem:[%s7 + $0x90] sm:$0xff] %vm84, %v9087
  %9144 = vst.msk [vmem:[%s7 + $0x98] sm:$0xff] %vm84, %v9088
  %9145 = vst.msk [vmem:[%s7 + $0xa0] sm:$0xff] %vm84, %v9089
  %9146 = vst.msk [vmem:[%s7 + $0xa8] sm:$0xff] %vm84, %v9090
  %9147 = vst.msk [vmem:[%s7 + $0xb0] sm:$0xff] %vm84, %v9091
  %9148 = vst.msk [vmem:[%s7 + $0xb8] sm:$0xff] %vm84, %v9092
  %9149 = vst.msk [vmem:[%s7 + $0xc0] sm:$0xff] %vm84, %v9093
  %9150 = vst.msk [vmem:[%s7 + $0xc8] sm:$0xff] %vm84, %v9094
  %9151 = vst.msk [vmem:[%s7 + $0xd0] sm:$0xff] %vm84, %v9095
  %9152 = vst.msk [vmem:[%s7 + $0xd8] sm:$0xff] %vm84, %v9096
  %9153 = vst.msk [vmem:[%s7 + $0xe0] sm:$0xff] %vm84, %v9097
  %9154 = vst.msk [vmem:[%s7 + $0xe8] sm:$0xff] %vm84, %v9098
  %9155 = vst.msk [vmem:[%s7 + $0xf0] sm:$0xff] %vm84, %v9099
  %9156 = vst.msk [vmem:[%s7 + $0xf8] sm:$0xff] %vm84, %v9100
  %9157 = vst.msk [vmem:[%s7 + $0x100] sm:$0xff] %vm84, %v9101
  %9158 = vst.msk [vmem:[%s7 + $0x108] sm:$0xff] %vm84, %v9102
  %9159 = vst.msk [vmem:[%s7 + $0x110] sm:$0xff] %vm84, %v9103
  %9160 = vst.msk [vmem:[%s7 + $0x118] sm:$0xff] %vm84, %v9104
  %9161 = vst.msk [vmem:[%s7 + $0x120] sm:$0xff] %vm84, %v9105
  %9162 = vst.msk [vmem:[%s7 + $0x128] sm:$0xff] %vm84, %v9106
  %9163 = vst.msk [vmem:[%s7 + $0x130] sm:$0xff] %vm84, %v9107
  %9164 = vst.msk [vmem:[%s7 + $0x138] sm:$0xff] %vm84, %v9108
  %9165 = vst.msk [vmem:[%s7 + $0x140] sm:$0xff] %vm84, %v9109
  %9166 = vst.msk [vmem:[%s7 + $0x148] sm:$0xff] %vm84, %v9110
  %9167 = vst.msk [vmem:[%s7 + $0x150] sm:$0xff] %vm84, %v9111
  %9168 = vst.msk [vmem:[%s7 + $0x158] sm:$0xff] %vm84, %v9112
  %9169 = vst.msk [vmem:[%s7 + $0x160] sm:$0xff] %vm84, %v9113
  %9170 = vst.msk [vmem:[%s7 + $0x168] sm:$0xff] %vm84, %v9114
  %9171 = vst.msk [vmem:[%s7 + $0x170] sm:$0xff] %vm84, %v9115
  %9172 = vst.msk [vmem:[%s7 + $0x178] sm:$0xff] %vm84, %v9116
  %9173 = vst.msk [vmem:[%s7 + $0x180] sm:$0xff] %vm84, %v9117
  %9174 = vst.msk [vmem:[%s7 + $0x188] sm:$0xff] %vm84, %v9118
  %9175 = vst.msk [vmem:[%s7 + $0x190] sm:$0xff] %vm84, %v9119
  %9176 = vst.msk [vmem:[%s7 + $0x198] sm:$0xff] %vm84, %v9120
  %9177 = vst.msk [vmem:[%s7 + $0x1a0] sm:$0xff] %vm84, %v9121
  %9178 = vst.msk [vmem:[%s7 + $0x1a8] sm:$0xff] %vm84, %v9122
  %9179 = vst.msk [vmem:[%s7 + $0x1b0] sm:$0xff] %vm84, %v9123
  %9180 = vst.msk [vmem:[%s7 + $0x1b8] sm:$0xff] %vm84, %v9124
  // Predicated region
  $region30: #{tpu_custom_call.1} parent=0 // pred_check
    _
  $region31: #{tpu_custom_call.1} parent=0 // pred_check_branch
    %9182 = sbr.rel (0) target = $region33
  $region32: #{tpu_custom_call.1} parent=0 // pred_region
    _
  $region33: #{tpu_custom_call.1} parent=0 // pred_fallthru
    _
  // Predicated region
  $region34: #{tpu_custom_call.1} parent=0 // pred_check
    _
  $region35: #{tpu_custom_call.1} parent=0 // pred_check_branch
    %9184 = sbr.rel (0) target = $region37
  $region36: #{tpu_custom_call.1} parent=0 // pred_region
    _
  $region37: #{tpu_custom_call.1} parent=0 // pred_fallthru
    _

</llo_original>
